<compile_context>
chip_gen: v7x
topology: tpu7x:2x2x1
jax: 0.10.0
libtpu: 0.0.40
codegen_flags: <defaults>
</compile_context>

<pallas_src>
import functools

import jax
import jax.numpy as jnp
import numpy as np
from jax.experimental import pallas as pl
from jax.experimental.pallas import tpu as pltpu


# ------------------------------ in-kernel helpers ----------------------------


def _conv3x3_im2col(xpad_val, w9, b_row, H, W):
    """3x3 'same' conv of a zero-padded (H+2, W+2, Cin) value as ONE MXU matmul.

    w9 is the HWIO weight reshaped to (9*Cin, Cout) (row-major over ky,kx,cin,
    which matches the patch concat order below). Returns (H*W, Cout) f32.
    """
    cin = xpad_val.shape[-1]
    cols = []
    for dy in range(3):
        for dx in range(3):
            cols.append(xpad_val[dy:dy + H, dx:dx + W, :].reshape(H * W, cin))
    patches = jnp.concatenate(cols, axis=1)                    # (H*W, 9*Cin)
    return jnp.dot(patches, w9, preferred_element_type=jnp.float32) + b_row


# ------------------------------- fused kernel --------------------------------


def fused_coupling_kernel(scale_ref, shift_ref, xpad_ref, sec_ref,
                          in_w_ref, in_b_ref,
                          w1_ref, b1_ref, w2_ref, b2_ref, w3_ref, b3_ref,
                          out_w_ref, out_b_ref,
                          z2_ref, ls_ref,
                          pad_ref, *, H, W, cf, nblocks, half):
    # One grid step == one batch element. Everything below is VMEM-resident.

    # Zero the padded scratch once per step; only the interior is written later,
    # so the 1-pixel zero border provides the conv padding for every 3x3 conv.
    pad_ref[...] = jnp.zeros_like(pad_ref)

    # ---- input 3x3 conv (Cin = 2*in_channels) + ReLU -------------------------
    h = _conv3x3_im2col(xpad_ref[0], in_w_ref[...], in_b_ref[...], H, W)
    h = jnp.maximum(h, 0.0)                                    # (H*W, cf) f32

    # ---- residual blocks: 1x1 -> ReLU -> 3x3 -> ReLU -> 1x1 -> ReLU, +skip ---
    for i in range(nblocks):                                   # static unroll
        y = jnp.dot(h, w1_ref[i], preferred_element_type=jnp.float32) + b1_ref[i]
        y = jnp.maximum(y, 0.0)
        pad_ref[1:H + 1, 1:W + 1, :] = y.reshape(H, W, cf)     # re-pad in VMEM
        y = _conv3x3_im2col(pad_ref[...], w2_ref[i], b2_ref[i], H, W)
        y = jnp.maximum(y, 0.0)
        y = jnp.dot(y, w3_ref[i], preferred_element_type=jnp.float32) + b3_ref[i]
        y = jnp.maximum(y, 0.0)
        h = h + y                                              # residual add

    # ---- output 3x3 conv (cf -> 4*in_channels) -------------------------------
    pad_ref[1:H + 1, 1:W + 1, :] = h.reshape(H, W, cf)
    st = _conv3x3_im2col(pad_ref[...], out_w_ref[...], out_b_ref[...], H, W)
    # st: (H*W, 2*half);  channels [:half] == s, [half:] == t (== chunk(dim=1))

    # ---- fused affine coupling (tanh/exp on EUP, free filler) ----------------
    s = st[:, :half]
    t = st[:, half:]
    log_scale = scale_ref[0] * jnp.tanh(s) + shift_ref[0]      # (H*W, half)
    z2 = sec_ref[0] * jnp.exp(log_scale) + t
    z2_ref[0] = z2.astype(z2_ref.dtype)
    ls_ref[0] = log_scale


# ------------------------------- forward wrapper ------------------------------


def channel_affine_coupling_forward(x_nchw, params, top_condition=True):
    """Matches ChannelAffineCouplingLayer.forward: returns (z, jacobian), NCHW."""
    N, C, H, W = x_nchw.shape
    half = C // 2
    cf = params['in_w'].shape[-1]
    nblocks = len(params['blocks'])

    first = x_nchw[:, :half]
    second = x_nchw[:, half:]
    cond = first if top_condition else second
    other = second if top_condition else first

    # Layout glue (cheap XLA ops on tiny tensors):
    #  - conditioning input NCHW -> NHWC, zero-padded ONCE for the whole net
    #  - the "other" half in pixel-major (N, H*W, half) for the fused coupling
    cond_nhwc = jnp.transpose(cond, (0, 2, 3, 1))
    xpad = jnp.pad(cond_nhwc, ((0, 0), (1, 1), (1, 1), (0, 0)))
    sec_pm = jnp.transpose(other, (0, 2, 3, 1)).reshape(N, H * W, half)

    # im2col weight layout: HWIO (3,3,Cin,Cout) -> (9*Cin, Cout); stack blocks.
    in_w9 = params['in_w'].reshape(9 * half, cf)
    in_b = params['in_b'].reshape(1, cf)
    blocks = params['blocks']
    w1s = jnp.stack([b['w1'] for b in blocks])                       # (B, cf, cf)
    b1s = jnp.stack([b['b1'].reshape(1, cf) for b in blocks])        # (B, 1, cf)
    w2s = jnp.stack([b['w2'].reshape(9 * cf, cf) for b in blocks])   # (B, 9cf, cf)
    b2s = jnp.stack([b['b2'].reshape(1, cf) for b in blocks])
    w3s = jnp.stack([b['w3'] for b in blocks])
    b3s = jnp.stack([b['b3'].reshape(1, cf) for b in blocks])
    out_w9 = params['out_w'].reshape(9 * cf, 2 * half)
    out_b = params['out_b'].reshape(1, 2 * half)

    kernel = functools.partial(fused_coupling_kernel,
                               H=H, W=W, cf=cf, nblocks=nblocks, half=half)

    z2_pm, ls_pm = pl.pallas_call(
        kernel,
        out_shape=(jax.ShapeDtypeStruct((N, H * W, half), x_nchw.dtype),
                   jax.ShapeDtypeStruct((N, H * W, half), jnp.float32)),
        grid=(N,),
        in_specs=[
            pl.BlockSpec(memory_space=pltpu.MemorySpace.SMEM),   # scale
            pl.BlockSpec(memory_space=pltpu.MemorySpace.SMEM),   # scale_shift
            pl.BlockSpec((1, H + 2, W + 2, half), lambda n: (n, 0, 0, 0)),
            pl.BlockSpec((1, H * W, half), lambda n: (n, 0, 0)),
            pl.BlockSpec((9 * half, cf), lambda n: (0, 0)),
            pl.BlockSpec((1, cf), lambda n: (0, 0)),
            pl.BlockSpec((nblocks, cf, cf), lambda n: (0, 0, 0)),
            pl.BlockSpec((nblocks, 1, cf), lambda n: (0, 0, 0)),
            pl.BlockSpec((nblocks, 9 * cf, cf), lambda n: (0, 0, 0)),
            pl.BlockSpec((nblocks, 1, cf), lambda n: (0, 0, 0)),
            pl.BlockSpec((nblocks, cf, cf), lambda n: (0, 0, 0)),
            pl.BlockSpec((nblocks, 1, cf), lambda n: (0, 0, 0)),
            pl.BlockSpec((9 * cf, 2 * half), lambda n: (0, 0)),
            pl.BlockSpec((1, 2 * half), lambda n: (0, 0)),
        ],
        out_specs=(pl.BlockSpec((1, H * W, half), lambda n: (n, 0, 0)),
                   pl.BlockSpec((1, H * W, half), lambda n: (n, 0, 0))),
        scratch_shapes=[pltpu.VMEM((H + 2, W + 2, cf), jnp.float32)],
        compiler_params=pltpu.CompilerParams(
            dimension_semantics=("parallel",)),      # v7x: batch over both TCs
    )(params['scale'], params['scale_shift'], xpad, sec_pm,
      in_w9, in_b, w1s, b1s, w2s, b2s, w3s, b3s, out_w9, out_b)

    # Back to NCHW and assemble z / jacobian exactly like the torch module.
    z2 = jnp.transpose(z2_pm.reshape(N, H, W, half), (0, 3, 1, 2))
    log_scale = jnp.transpose(ls_pm.reshape(N, H, W, half), (0, 3, 1, 2))
    zeros = jnp.zeros_like(log_scale)
    if top_condition:
        z = jnp.concatenate([first, z2], axis=1)
        jac = jnp.concatenate([zeros, log_scale], axis=1)
    else:
        z = jnp.concatenate([z2, second], axis=1)
        jac = jnp.concatenate([log_scale, zeros], axis=1)
    return z, jac


# --------------------------- parameters (weight norm) -------------------------


def init_wn_conv(key, cin, cout, k):
    """Deterministic weight-norm Conv2d init: v ~ N, g = ||v|| (so w == v at init)."""
    kv, kb = jax.random.split(key)
    v = jax.random.normal(kv, (cout, cin, k, k), jnp.float32) * 0.1   # OIHW
    norm = jnp.sqrt(jnp.sum(v * v, axis=(1, 2, 3), keepdims=True))
    g = norm[:, 0, 0, 0]
    w = g.reshape(-1, 1, 1, 1) * v / norm            # weight_norm reparam (glue)
    b = jax.random.normal(kb, (cout,), jnp.float32) * 0.01
    w_hwio = jnp.transpose(w, (2, 3, 1, 0))          # OIHW -> HWIO
    return w_hwio, b


def init_params(key, in_channels, conv_filters, residual_blocks):
    keys = jax.random.split(key, residual_blocks + 2)
    p = {}
    p['in_w'], p['in_b'] = init_wn_conv(keys[0], 2 * in_channels, conv_filters, 3)
    blocks = []
    for i in range(residual_blocks):
        k1, k2, k3 = jax.random.split(keys[1 + i], 3)
        w1, b1 = init_wn_conv(k1, conv_filters, conv_filters, 1)
        w2, b2 = init_wn_conv(k2, conv_filters, conv_filters, 3)
        w3, b3 = init_wn_conv(k3, conv_filters, conv_filters, 1)
        blocks.append(dict(
            w1=w1.reshape(conv_filters, conv_filters), b1=b1,
            w2=w2, b2=b2,
            w3=w3.reshape(conv_filters, conv_filters), b3=b3))
    p['blocks'] = blocks
    p['out_w'], p['out_b'] = init_wn_conv(keys[-1], conv_filters,
                                          4 * in_channels, 3)
    p['scale'] = jnp.array([1.0], jnp.float32)        # nn.Parameter([1.0])
    p['scale_shift'] = jnp.array([0.0], jnp.float32)  # nn.Parameter([0.0])
    return p


# ------------------------------ pure-JAX reference ----------------------------


def _ref_conv(x, w_hwio, b, pad):
    y = jax.lax.conv_general_dilated(
        x, w_hwio, window_strides=(1, 1), padding=[(pad, pad), (pad, pad)],
        dimension_numbers=('NHWC', 'HWIO', 'NHWC'))
    return y + b


def reference_forward(x_nchw, params, top_condition=True):
    N, C, H, W = x_nchw.shape
    half = C // 2
    first = x_nchw[:, :half]
    second = x_nchw[:, half:]
    cond = first if top_condition else second
    xh = jnp.transpose(cond, (0, 2, 3, 1))

    h = jax.nn.relu(_ref_conv(xh, params['in_w'], params['in_b'], 1))
    cf = params['in_w'].shape[-1]
    for blk in params['blocks']:
        y = jax.nn.relu(_ref_conv(h, blk['w1'].reshape(1, 1, cf, cf), blk['b1'], 0))
        y = jax.nn.relu(_ref_conv(y, blk['w2'], blk['b2'], 1))
        y = jax.nn.relu(_ref_conv(y, blk['w3'].reshape(1, 1, cf, cf), blk['b3'], 0))
        h = y + h
    st = _ref_conv(h, params['out_w'], params['out_b'], 1)

    s = st[..., :half]
    t = st[..., half:]
    other = second if top_condition else first
    other_nhwc = jnp.transpose(other, (0, 2, 3, 1))
    log_scale = params['scale'][0] * jnp.tanh(s) + params['scale_shift'][0]
    z2 = other_nhwc * jnp.exp(log_scale) + t
    z2 = jnp.transpose(z2, (0, 3, 1, 2))
    log_scale = jnp.transpose(log_scale, (0, 3, 1, 2))
    zeros = jnp.zeros_like(log_scale)
    if top_condition:
        return (jnp.concatenate([first, z2], axis=1),
                jnp.concatenate([zeros, log_scale], axis=1))
    return (jnp.concatenate([z2, second], axis=1),
            jnp.concatenate([log_scale, zeros], axis=1))


# ------------------------------------ main ------------------------------------


if __name__ == "__main__":
    key = jax.random.PRNGKey(0)
    kx, kp = jax.random.split(key)

    # Module consistency: cnn input = 2*in_channels = C//2  =>  C = 4*in_channels.
    in_channels = 1
    N, C, H, W = 2, 4 * in_channels, 16, 16
    conv_filters, residual_blocks = 32, 2   # small config for a quick run

    x = jax.random.normal(kx, (N, C, H, W), jnp.float32)
    params = init_params(kp, in_channels, conv_filters, residual_blocks)

    fwd = jax.jit(channel_affine_coupling_forward,
                  static_argnames=("top_condition",))

    for top in (True, False):
        z, jac = fwd(x, params, top_condition=top)
        jax.block_until_ready((z, jac))
        assert z.shape == (N, C, H, W) and jac.shape == (N, C, H, W)

        z_ref, jac_ref = reference_forward(x, params, top_condition=top)
        # Tolerance accounts for TPU default (bf16-pass) matmul/conv precision
        # differing between the Pallas MXU dots and lax.conv in the reference.
        np.testing.assert_allclose(np.asarray(z), np.asarray(z_ref),
                                   rtol=2e-2, atol=2e-2)
        np.testing.assert_allclose(np.asarray(jac), np.asarray(jac_ref),
                                   rtol=2e-2, atol=2e-2)

    print("KERNEL_OK")
</pallas_src>

<mosaic_0001>
module attributes {stable_mosaic.version = 11 : i64} {
  func.func @fused_coupling_kernel(%arg0: i32, %arg1: memref<1xf32, #tpu.memory_space<smem>>, %arg2: memref<1xf32, #tpu.memory_space<smem>>, %arg3: memref<1x18x18x2xf32, #tpu.memory_space<vmem>>, %arg4: memref<1x256x2xf32, #tpu.memory_space<vmem>>, %arg5: memref<18x32xf32, #tpu.memory_space<vmem>>, %arg6: memref<1x32xf32, #tpu.memory_space<vmem>>, %arg7: memref<2x32x32xf32, #tpu.memory_space<vmem>>, %arg8: memref<2x1x32xf32, #tpu.memory_space<vmem>>, %arg9: memref<2x288x32xf32, #tpu.memory_space<vmem>>, %arg10: memref<2x1x32xf32, #tpu.memory_space<vmem>>, %arg11: memref<2x32x32xf32, #tpu.memory_space<vmem>>, %arg12: memref<2x1x32xf32, #tpu.memory_space<vmem>>, %arg13: memref<288x4xf32, #tpu.memory_space<vmem>>, %arg14: memref<1x4xf32, #tpu.memory_space<vmem>>, %arg15: memref<1x256x2xf32, #tpu.memory_space<vmem>>, %arg16: memref<1x256x2xf32, #tpu.memory_space<vmem>>, %arg17: memref<18x18x32xf32, #tpu.memory_space<vmem>>) attributes {dimension_semantics = [#tpu.dimension_semantics<parallel>], iteration_bounds = array<i64: 2>, scalar_prefetch = 0 : i64, scratch_operands = 1 : i64, tpu.core_type = #tpu.core_type<tc>, window_params = [{transform_indices = @transform_0, window_bounds = array<i64: 1>}, {transform_indices = @transform_1, window_bounds = array<i64: 1>}, {transform_indices = @transform_2, window_bounds = array<i64: 1, 18, 18, 2>}, {transform_indices = @transform_3, window_bounds = array<i64: 1, 256, 2>}, {pipeline_mode = #tpu.pipeline_mode<synchronous>, transform_indices = @transform_4, window_bounds = array<i64: 18, 32>}, {pipeline_mode = #tpu.pipeline_mode<synchronous>, transform_indices = @transform_5, window_bounds = array<i64: 1, 32>}, {pipeline_mode = #tpu.pipeline_mode<synchronous>, transform_indices = @transform_6, window_bounds = array<i64: 2, 32, 32>}, {pipeline_mode = #tpu.pipeline_mode<synchronous>, transform_indices = @transform_7, window_bounds = array<i64: 2, 1, 32>}, {pipeline_mode = #tpu.pipeline_mode<synchronous>, transform_indices = @transform_8, window_bounds = array<i64: 2, 288, 32>}, {pipeline_mode = #tpu.pipeline_mode<synchronous>, transform_indices = @transform_9, window_bounds = array<i64: 2, 1, 32>}, {pipeline_mode = #tpu.pipeline_mode<synchronous>, transform_indices = @transform_10, window_bounds = array<i64: 2, 32, 32>}, {pipeline_mode = #tpu.pipeline_mode<synchronous>, transform_indices = @transform_11, window_bounds = array<i64: 2, 1, 32>}, {pipeline_mode = #tpu.pipeline_mode<synchronous>, transform_indices = @transform_12, window_bounds = array<i64: 288, 4>}, {pipeline_mode = #tpu.pipeline_mode<synchronous>, transform_indices = @transform_13, window_bounds = array<i64: 1, 4>}, {transform_indices = @transform_14, window_bounds = array<i64: 1, 256, 2>}, {transform_indices = @transform_15, window_bounds = array<i64: 1, 256, 2>}]} {
    %cst = arith.constant 0.000000e+00 : f32
    %0 = vector.broadcast %cst : f32 to vector<18x18x32xf32>
    %c0 = arith.constant 0 : index
    %c0_0 = arith.constant 0 : index
    %c0_1 = arith.constant 0 : index
    %1 = vector.load %arg17[%c0, %c0_0, %c0_1] : memref<18x18x32xf32, #tpu.memory_space<vmem>>, vector<18x18x32xf32>
    tpu.vector_store %arg17[%c0, %c0_0, %c0_1], %0 {strides = array<i32>} : memref<18x18x32xf32, #tpu.memory_space<vmem>>, vector<18x18x32xf32>,
    %c0_2 = arith.constant 0 : index
    %c0_3 = arith.constant 0 : index
    %c0_4 = arith.constant 0 : index
    %c0_5 = arith.constant 0 : index
    %2 = vector.load %arg3[%c0_2, %c0_3, %c0_4, %c0_5] : memref<1x18x18x2xf32, #tpu.memory_space<vmem>>, vector<1x18x18x2xf32>
    %3 = vector.shape_cast %2 : vector<1x18x18x2xf32> to vector<18x18x2xf32>
    %c0_6 = arith.constant 0 : index
    %c0_7 = arith.constant 0 : index
    %4 = vector.load %arg5[%c0_6, %c0_7] : memref<18x32xf32, #tpu.memory_space<vmem>>, vector<18x32xf32>
    %c0_8 = arith.constant 0 : index
    %c0_9 = arith.constant 0 : index
    %5 = vector.load %arg6[%c0_8, %c0_9] : memref<1x32xf32, #tpu.memory_space<vmem>>, vector<1x32xf32>
    %6 = vector.extract_strided_slice %3 {offsets = [0, 0, 0], sizes = [16, 16, 2], strides = [1, 1, 1]} : vector<18x18x2xf32> to vector<16x16x2xf32>
    %7 = vector.shape_cast %6 : vector<16x16x2xf32> to vector<256x2xf32>
    %8 = vector.extract_strided_slice %3 {offsets = [0, 1, 0], sizes = [16, 16, 2], strides = [1, 1, 1]} : vector<18x18x2xf32> to vector<16x16x2xf32>
    %9 = vector.shape_cast %8 : vector<16x16x2xf32> to vector<256x2xf32>
    %10 = vector.extract_strided_slice %3 {offsets = [0, 2, 0], sizes = [16, 16, 2], strides = [1, 1, 1]} : vector<18x18x2xf32> to vector<16x16x2xf32>
    %11 = vector.shape_cast %10 : vector<16x16x2xf32> to vector<256x2xf32>
    %12 = vector.extract_strided_slice %3 {offsets = [1, 0, 0], sizes = [16, 16, 2], strides = [1, 1, 1]} : vector<18x18x2xf32> to vector<16x16x2xf32>
    %13 = vector.shape_cast %12 : vector<16x16x2xf32> to vector<256x2xf32>
    %14 = vector.extract_strided_slice %3 {offsets = [1, 1, 0], sizes = [16, 16, 2], strides = [1, 1, 1]} : vector<18x18x2xf32> to vector<16x16x2xf32>
    %15 = vector.shape_cast %14 : vector<16x16x2xf32> to vector<256x2xf32>
    %16 = vector.extract_strided_slice %3 {offsets = [1, 2, 0], sizes = [16, 16, 2], strides = [1, 1, 1]} : vector<18x18x2xf32> to vector<16x16x2xf32>
    %17 = vector.shape_cast %16 : vector<16x16x2xf32> to vector<256x2xf32>
    %18 = vector.extract_strided_slice %3 {offsets = [2, 0, 0], sizes = [16, 16, 2], strides = [1, 1, 1]} : vector<18x18x2xf32> to vector<16x16x2xf32>
    %19 = vector.shape_cast %18 : vector<16x16x2xf32> to vector<256x2xf32>
    %20 = vector.extract_strided_slice %3 {offsets = [2, 1, 0], sizes = [16, 16, 2], strides = [1, 1, 1]} : vector<18x18x2xf32> to vector<16x16x2xf32>
    %21 = vector.shape_cast %20 : vector<16x16x2xf32> to vector<256x2xf32>
    %22 = vector.extract_strided_slice %3 {offsets = [2, 2, 0], sizes = [16, 16, 2], strides = [1, 1, 1]} : vector<18x18x2xf32> to vector<16x16x2xf32>
    %23 = vector.shape_cast %22 : vector<16x16x2xf32> to vector<256x2xf32>
    %24 = tpu.concatenate %7, %9, %11, %13, %15, %17, %19, %21, %23 in 1 : vector<256x2xf32>, vector<256x2xf32>, vector<256x2xf32>, vector<256x2xf32>, vector<256x2xf32>, vector<256x2xf32>, vector<256x2xf32>, vector<256x2xf32>, vector<256x2xf32> -> vector<256x18xf32>
    %cst_10 = arith.constant dense<0.000000e+00> : vector<256x32xf32>
    %25 = tpu.matmul %24, %4, %cst_10 {dimension_numbers = #tpu.dot_dimension_numbers<[1], [0], [0], [1], [0, 0, 1, 1], [], []>} : vector<256x18xf32>, vector<18x32xf32>, vector<256x32xf32> -> vector<256x32xf32>
    %26 = vector.broadcast %5 : vector<1x32xf32> to vector<256x32xf32>
    %27 = arith.addf %25, %26 : vector<256x32xf32>
    %cst_11 = arith.constant 0.000000e+00 : f32
    %28 = vector.broadcast %cst_11 : f32 to vector<256x32xf32>
    %29 = arith.maximumf %27, %28 : vector<256x32xf32>
    %c0_12 = arith.constant 0 : index
    %c0_13 = arith.constant 0 : index
    %c0_14 = arith.constant 0 : index
    %30 = vector.load %arg7[%c0_12, %c0_13, %c0_14] : memref<2x32x32xf32, #tpu.memory_space<vmem>>, vector<1x32x32xf32>
    %31 = vector.shape_cast %30 : vector<1x32x32xf32> to vector<32x32xf32>
    %cst_15 = arith.constant dense<0.000000e+00> : vector<256x32xf32>
    %32 = tpu.matmul %29, %31, %cst_15 {dimension_numbers = #tpu.dot_dimension_numbers<[1], [0], [0], [1], [0, 0, 1, 1], [], []>} : vector<256x32xf32>, vector<32x32xf32>, vector<256x32xf32> -> vector<256x32xf32>
    %c0_16 = arith.constant 0 : index
    %c0_17 = arith.constant 0 : index
    %c0_18 = arith.constant 0 : index
    %33 = vector.load %arg8[%c0_16, %c0_17, %c0_18] : memref<2x1x32xf32, #tpu.memory_space<vmem>>, vector<1x1x32xf32>
    %34 = vector.shape_cast %33 : vector<1x1x32xf32> to vector<1x32xf32>
    %35 = vector.broadcast %34 : vector<1x32xf32> to vector<256x32xf32>
    %36 = arith.addf %32, %35 : vector<256x32xf32>
    %cst_19 = arith.constant 0.000000e+00 : f32
    %37 = vector.broadcast %cst_19 : f32 to vector<256x32xf32>
    %38 = arith.maximumf %36, %37 : vector<256x32xf32>
    %39 = vector.shape_cast %38 : vector<256x32xf32> to vector<16x16x32xf32>
    %c1 = arith.constant 1 : index
    %c1_20 = arith.constant 1 : index
    %c0_21 = arith.constant 0 : index
    %40 = vector.load %arg17[%c1, %c1_20, %c0_21] : memref<18x18x32xf32, #tpu.memory_space<vmem>>, vector<16x16x32xf32>
    tpu.vector_store %arg17[%c1, %c1_20, %c0_21], %39 {strides = array<i32>} : memref<18x18x32xf32, #tpu.memory_space<vmem>>, vector<16x16x32xf32>,
    %c0_22 = arith.constant 0 : index
    %c0_23 = arith.constant 0 : index
    %c0_24 = arith.constant 0 : index
    %41 = vector.load %arg17[%c0_22, %c0_23, %c0_24] : memref<18x18x32xf32, #tpu.memory_space<vmem>>, vector<18x18x32xf32>
    %c0_25 = arith.constant 0 : index
    %c0_26 = arith.constant 0 : index
    %c0_27 = arith.constant 0 : index
    %42 = vector.load %arg9[%c0_25, %c0_26, %c0_27] : memref<2x288x32xf32, #tpu.memory_space<vmem>>, vector<1x288x32xf32>
    %43 = vector.shape_cast %42 : vector<1x288x32xf32> to vector<288x32xf32>
    %c0_28 = arith.constant 0 : index
    %c0_29 = arith.constant 0 : index
    %c0_30 = arith.constant 0 : index
    %44 = vector.load %arg10[%c0_28, %c0_29, %c0_30] : memref<2x1x32xf32, #tpu.memory_space<vmem>>, vector<1x1x32xf32>
    %45 = vector.shape_cast %44 : vector<1x1x32xf32> to vector<1x32xf32>
    %46 = vector.extract_strided_slice %41 {offsets = [0, 0, 0], sizes = [16, 16, 32], strides = [1, 1, 1]} : vector<18x18x32xf32> to vector<16x16x32xf32>
    %47 = vector.shape_cast %46 : vector<16x16x32xf32> to vector<256x32xf32>
    %48 = vector.extract_strided_slice %41 {offsets = [0, 1, 0], sizes = [16, 16, 32], strides = [1, 1, 1]} : vector<18x18x32xf32> to vector<16x16x32xf32>
    %49 = vector.shape_cast %48 : vector<16x16x32xf32> to vector<256x32xf32>
    %50 = vector.extract_strided_slice %41 {offsets = [0, 2, 0], sizes = [16, 16, 32], strides = [1, 1, 1]} : vector<18x18x32xf32> to vector<16x16x32xf32>
    %51 = vector.shape_cast %50 : vector<16x16x32xf32> to vector<256x32xf32>
    %52 = vector.extract_strided_slice %41 {offsets = [1, 0, 0], sizes = [16, 16, 32], strides = [1, 1, 1]} : vector<18x18x32xf32> to vector<16x16x32xf32>
    %53 = vector.shape_cast %52 : vector<16x16x32xf32> to vector<256x32xf32>
    %54 = vector.extract_strided_slice %41 {offsets = [1, 1, 0], sizes = [16, 16, 32], strides = [1, 1, 1]} : vector<18x18x32xf32> to vector<16x16x32xf32>
    %55 = vector.shape_cast %54 : vector<16x16x32xf32> to vector<256x32xf32>
    %56 = vector.extract_strided_slice %41 {offsets = [1, 2, 0], sizes = [16, 16, 32], strides = [1, 1, 1]} : vector<18x18x32xf32> to vector<16x16x32xf32>
    %57 = vector.shape_cast %56 : vector<16x16x32xf32> to vector<256x32xf32>
    %58 = vector.extract_strided_slice %41 {offsets = [2, 0, 0], sizes = [16, 16, 32], strides = [1, 1, 1]} : vector<18x18x32xf32> to vector<16x16x32xf32>
    %59 = vector.shape_cast %58 : vector<16x16x32xf32> to vector<256x32xf32>
    %60 = vector.extract_strided_slice %41 {offsets = [2, 1, 0], sizes = [16, 16, 32], strides = [1, 1, 1]} : vector<18x18x32xf32> to vector<16x16x32xf32>
    %61 = vector.shape_cast %60 : vector<16x16x32xf32> to vector<256x32xf32>
    %62 = vector.extract_strided_slice %41 {offsets = [2, 2, 0], sizes = [16, 16, 32], strides = [1, 1, 1]} : vector<18x18x32xf32> to vector<16x16x32xf32>
    %63 = vector.shape_cast %62 : vector<16x16x32xf32> to vector<256x32xf32>
    %64 = tpu.concatenate %47, %49, %51, %53, %55, %57, %59, %61, %63 in 1 : vector<256x32xf32>, vector<256x32xf32>, vector<256x32xf32>, vector<256x32xf32>, vector<256x32xf32>, vector<256x32xf32>, vector<256x32xf32>, vector<256x32xf32>, vector<256x32xf32> -> vector<256x288xf32>
    %cst_31 = arith.constant dense<0.000000e+00> : vector<256x32xf32>
    %65 = tpu.matmul %64, %43, %cst_31 {dimension_numbers = #tpu.dot_dimension_numbers<[1], [0], [0], [1], [0, 0, 1, 1], [], []>} : vector<256x288xf32>, vector<288x32xf32>, vector<256x32xf32> -> vector<256x32xf32>
    %66 = vector.broadcast %45 : vector<1x32xf32> to vector<256x32xf32>
    %67 = arith.addf %65, %66 : vector<256x32xf32>
    %cst_32 = arith.constant 0.000000e+00 : f32
    %68 = vector.broadcast %cst_32 : f32 to vector<256x32xf32>
    %69 = arith.maximumf %67, %68 : vector<256x32xf32>
    %c0_33 = arith.constant 0 : index
    %c0_34 = arith.constant 0 : index
    %c0_35 = arith.constant 0 : index
    %70 = vector.load %arg11[%c0_33, %c0_34, %c0_35] : memref<2x32x32xf32, #tpu.memory_space<vmem>>, vector<1x32x32xf32>
    %71 = vector.shape_cast %70 : vector<1x32x32xf32> to vector<32x32xf32>
    %cst_36 = arith.constant dense<0.000000e+00> : vector<256x32xf32>
    %72 = tpu.matmul %69, %71, %cst_36 {dimension_numbers = #tpu.dot_dimension_numbers<[1], [0], [0], [1], [0, 0, 1, 1], [], []>} : vector<256x32xf32>, vector<32x32xf32>, vector<256x32xf32> -> vector<256x32xf32>
    %c0_37 = arith.constant 0 : index
    %c0_38 = arith.constant 0 : index
    %c0_39 = arith.constant 0 : index
    %73 = vector.load %arg12[%c0_37, %c0_38, %c0_39] : memref<2x1x32xf32, #tpu.memory_space<vmem>>, vector<1x1x32xf32>
    %74 = vector.shape_cast %73 : vector<1x1x32xf32> to vector<1x32xf32>
    %75 = vector.broadcast %74 : vector<1x32xf32> to vector<256x32xf32>
    %76 = arith.addf %72, %75 : vector<256x32xf32>
    %cst_40 = arith.constant 0.000000e+00 : f32
    %77 = vector.broadcast %cst_40 : f32 to vector<256x32xf32>
    %78 = arith.maximumf %76, %77 : vector<256x32xf32>
    %79 = arith.addf %29, %78 : vector<256x32xf32>
    %c1_41 = arith.constant 1 : index
    %c0_42 = arith.constant 0 : index
    %c0_43 = arith.constant 0 : index
    %80 = vector.load %arg7[%c1_41, %c0_42, %c0_43] : memref<2x32x32xf32, #tpu.memory_space<vmem>>, vector<1x32x32xf32>
    %81 = vector.shape_cast %80 : vector<1x32x32xf32> to vector<32x32xf32>
    %cst_44 = arith.constant dense<0.000000e+00> : vector<256x32xf32>
    %82 = tpu.matmul %79, %81, %cst_44 {dimension_numbers = #tpu.dot_dimension_numbers<[1], [0], [0], [1], [0, 0, 1, 1], [], []>} : vector<256x32xf32>, vector<32x32xf32>, vector<256x32xf32> -> vector<256x32xf32>
    %c1_45 = arith.constant 1 : index
    %c0_46 = arith.constant 0 : index
    %c0_47 = arith.constant 0 : index
    %83 = vector.load %arg8[%c1_45, %c0_46, %c0_47] : memref<2x1x32xf32, #tpu.memory_space<vmem>>, vector<1x1x32xf32>
    %84 = vector.shape_cast %83 : vector<1x1x32xf32> to vector<1x32xf32>
    %85 = vector.broadcast %84 : vector<1x32xf32> to vector<256x32xf32>
    %86 = arith.addf %82, %85 : vector<256x32xf32>
    %cst_48 = arith.constant 0.000000e+00 : f32
    %87 = vector.broadcast %cst_48 : f32 to vector<256x32xf32>
    %88 = arith.maximumf %86, %87 : vector<256x32xf32>
    %89 = vector.shape_cast %88 : vector<256x32xf32> to vector<16x16x32xf32>
    %c1_49 = arith.constant 1 : index
    %c1_50 = arith.constant 1 : index
    %c0_51 = arith.constant 0 : index
    %90 = vector.load %arg17[%c1_49, %c1_50, %c0_51] : memref<18x18x32xf32, #tpu.memory_space<vmem>>, vector<16x16x32xf32>
    tpu.vector_store %arg17[%c1_49, %c1_50, %c0_51], %89 {strides = array<i32>} : memref<18x18x32xf32, #tpu.memory_space<vmem>>, vector<16x16x32xf32>,
    %c0_52 = arith.constant 0 : index
    %c0_53 = arith.constant 0 : index
    %c0_54 = arith.constant 0 : index
    %91 = vector.load %arg17[%c0_52, %c0_53, %c0_54] : memref<18x18x32xf32, #tpu.memory_space<vmem>>, vector<18x18x32xf32>
    %c1_55 = arith.constant 1 : index
    %c0_56 = arith.constant 0 : index
    %c0_57 = arith.constant 0 : index
    %92 = vector.load %arg9[%c1_55, %c0_56, %c0_57] : memref<2x288x32xf32, #tpu.memory_space<vmem>>, vector<1x288x32xf32>
    %93 = vector.shape_cast %92 : vector<1x288x32xf32> to vector<288x32xf32>
    %c1_58 = arith.constant 1 : index
    %c0_59 = arith.constant 0 : index
    %c0_60 = arith.constant 0 : index
    %94 = vector.load %arg10[%c1_58, %c0_59, %c0_60] : memref<2x1x32xf32, #tpu.memory_space<vmem>>, vector<1x1x32xf32>
    %95 = vector.shape_cast %94 : vector<1x1x32xf32> to vector<1x32xf32>
    %96 = vector.extract_strided_slice %91 {offsets = [0, 0, 0], sizes = [16, 16, 32], strides = [1, 1, 1]} : vector<18x18x32xf32> to vector<16x16x32xf32>
    %97 = vector.shape_cast %96 : vector<16x16x32xf32> to vector<256x32xf32>
    %98 = vector.extract_strided_slice %91 {offsets = [0, 1, 0], sizes = [16, 16, 32], strides = [1, 1, 1]} : vector<18x18x32xf32> to vector<16x16x32xf32>
    %99 = vector.shape_cast %98 : vector<16x16x32xf32> to vector<256x32xf32>
    %100 = vector.extract_strided_slice %91 {offsets = [0, 2, 0], sizes = [16, 16, 32], strides = [1, 1, 1]} : vector<18x18x32xf32> to vector<16x16x32xf32>
    %101 = vector.shape_cast %100 : vector<16x16x32xf32> to vector<256x32xf32>
    %102 = vector.extract_strided_slice %91 {offsets = [1, 0, 0], sizes = [16, 16, 32], strides = [1, 1, 1]} : vector<18x18x32xf32> to vector<16x16x32xf32>
    %103 = vector.shape_cast %102 : vector<16x16x32xf32> to vector<256x32xf32>
    %104 = vector.extract_strided_slice %91 {offsets = [1, 1, 0], sizes = [16, 16, 32], strides = [1, 1, 1]} : vector<18x18x32xf32> to vector<16x16x32xf32>
    %105 = vector.shape_cast %104 : vector<16x16x32xf32> to vector<256x32xf32>
    %106 = vector.extract_strided_slice %91 {offsets = [1, 2, 0], sizes = [16, 16, 32], strides = [1, 1, 1]} : vector<18x18x32xf32> to vector<16x16x32xf32>
    %107 = vector.shape_cast %106 : vector<16x16x32xf32> to vector<256x32xf32>
    %108 = vector.extract_strided_slice %91 {offsets = [2, 0, 0], sizes = [16, 16, 32], strides = [1, 1, 1]} : vector<18x18x32xf32> to vector<16x16x32xf32>
    %109 = vector.shape_cast %108 : vector<16x16x32xf32> to vector<256x32xf32>
    %110 = vector.extract_strided_slice %91 {offsets = [2, 1, 0], sizes = [16, 16, 32], strides = [1, 1, 1]} : vector<18x18x32xf32> to vector<16x16x32xf32>
    %111 = vector.shape_cast %110 : vector<16x16x32xf32> to vector<256x32xf32>
    %112 = vector.extract_strided_slice %91 {offsets = [2, 2, 0], sizes = [16, 16, 32], strides = [1, 1, 1]} : vector<18x18x32xf32> to vector<16x16x32xf32>
    %113 = vector.shape_cast %112 : vector<16x16x32xf32> to vector<256x32xf32>
    %114 = tpu.concatenate %97, %99, %101, %103, %105, %107, %109, %111, %113 in 1 : vector<256x32xf32>, vector<256x32xf32>, vector<256x32xf32>, vector<256x32xf32>, vector<256x32xf32>, vector<256x32xf32>, vector<256x32xf32>, vector<256x32xf32>, vector<256x32xf32> -> vector<256x288xf32>
    %cst_61 = arith.constant dense<0.000000e+00> : vector<256x32xf32>
    %115 = tpu.matmul %114, %93, %cst_61 {dimension_numbers = #tpu.dot_dimension_numbers<[1], [0], [0], [1], [0, 0, 1, 1], [], []>} : vector<256x288xf32>, vector<288x32xf32>, vector<256x32xf32> -> vector<256x32xf32>
    %116 = vector.broadcast %95 : vector<1x32xf32> to vector<256x32xf32>
    %117 = arith.addf %115, %116 : vector<256x32xf32>
    %cst_62 = arith.constant 0.000000e+00 : f32
    %118 = vector.broadcast %cst_62 : f32 to vector<256x32xf32>
    %119 = arith.maximumf %117, %118 : vector<256x32xf32>
    %c1_63 = arith.constant 1 : index
    %c0_64 = arith.constant 0 : index
    %c0_65 = arith.constant 0 : index
    %120 = vector.load %arg11[%c1_63, %c0_64, %c0_65] : memref<2x32x32xf32, #tpu.memory_space<vmem>>, vector<1x32x32xf32>
    %121 = vector.shape_cast %120 : vector<1x32x32xf32> to vector<32x32xf32>
    %cst_66 = arith.constant dense<0.000000e+00> : vector<256x32xf32>
    %122 = tpu.matmul %119, %121, %cst_66 {dimension_numbers = #tpu.dot_dimension_numbers<[1], [0], [0], [1], [0, 0, 1, 1], [], []>} : vector<256x32xf32>, vector<32x32xf32>, vector<256x32xf32> -> vector<256x32xf32>
    %c1_67 = arith.constant 1 : index
    %c0_68 = arith.constant 0 : index
    %c0_69 = arith.constant 0 : index
    %123 = vector.load %arg12[%c1_67, %c0_68, %c0_69] : memref<2x1x32xf32, #tpu.memory_space<vmem>>, vector<1x1x32xf32>
    %124 = vector.shape_cast %123 : vector<1x1x32xf32> to vector<1x32xf32>
    %125 = vector.broadcast %124 : vector<1x32xf32> to vector<256x32xf32>
    %126 = arith.addf %122, %125 : vector<256x32xf32>
    %cst_70 = arith.constant 0.000000e+00 : f32
    %127 = vector.broadcast %cst_70 : f32 to vector<256x32xf32>
    %128 = arith.maximumf %126, %127 : vector<256x32xf32>
    %129 = arith.addf %79, %128 : vector<256x32xf32>
    %130 = vector.shape_cast %129 : vector<256x32xf32> to vector<16x16x32xf32>
    %c1_71 = arith.constant 1 : index
    %c1_72 = arith.constant 1 : index
    %c0_73 = arith.constant 0 : index
    %131 = vector.load %arg17[%c1_71, %c1_72, %c0_73] : memref<18x18x32xf32, #tpu.memory_space<vmem>>, vector<16x16x32xf32>
    tpu.vector_store %arg17[%c1_71, %c1_72, %c0_73], %130 {strides = array<i32>} : memref<18x18x32xf32, #tpu.memory_space<vmem>>, vector<16x16x32xf32>,
    %c0_74 = arith.constant 0 : index
    %c0_75 = arith.constant 0 : index
    %c0_76 = arith.constant 0 : index
    %132 = vector.load %arg17[%c0_74, %c0_75, %c0_76] : memref<18x18x32xf32, #tpu.memory_space<vmem>>, vector<18x18x32xf32>
    %c0_77 = arith.constant 0 : index
    %c0_78 = arith.constant 0 : index
    %133 = vector.load %arg13[%c0_77, %c0_78] : memref<288x4xf32, #tpu.memory_space<vmem>>, vector<288x4xf32>
    %c0_79 = arith.constant 0 : index
    %c0_80 = arith.constant 0 : index
    %134 = vector.load %arg14[%c0_79, %c0_80] : memref<1x4xf32, #tpu.memory_space<vmem>>, vector<1x4xf32>
    %135 = vector.extract_strided_slice %132 {offsets = [0, 0, 0], sizes = [16, 16, 32], strides = [1, 1, 1]} : vector<18x18x32xf32> to vector<16x16x32xf32>
    %136 = vector.shape_cast %135 : vector<16x16x32xf32> to vector<256x32xf32>
    %137 = vector.extract_strided_slice %132 {offsets = [0, 1, 0], sizes = [16, 16, 32], strides = [1, 1, 1]} : vector<18x18x32xf32> to vector<16x16x32xf32>
    %138 = vector.shape_cast %137 : vector<16x16x32xf32> to vector<256x32xf32>
    %139 = vector.extract_strided_slice %132 {offsets = [0, 2, 0], sizes = [16, 16, 32], strides = [1, 1, 1]} : vector<18x18x32xf32> to vector<16x16x32xf32>
    %140 = vector.shape_cast %139 : vector<16x16x32xf32> to vector<256x32xf32>
    %141 = vector.extract_strided_slice %132 {offsets = [1, 0, 0], sizes = [16, 16, 32], strides = [1, 1, 1]} : vector<18x18x32xf32> to vector<16x16x32xf32>
    %142 = vector.shape_cast %141 : vector<16x16x32xf32> to vector<256x32xf32>
    %143 = vector.extract_strided_slice %132 {offsets = [1, 1, 0], sizes = [16, 16, 32], strides = [1, 1, 1]} : vector<18x18x32xf32> to vector<16x16x32xf32>
    %144 = vector.shape_cast %143 : vector<16x16x32xf32> to vector<256x32xf32>
    %145 = vector.extract_strided_slice %132 {offsets = [1, 2, 0], sizes = [16, 16, 32], strides = [1, 1, 1]} : vector<18x18x32xf32> to vector<16x16x32xf32>
    %146 = vector.shape_cast %145 : vector<16x16x32xf32> to vector<256x32xf32>
    %147 = vector.extract_strided_slice %132 {offsets = [2, 0, 0], sizes = [16, 16, 32], strides = [1, 1, 1]} : vector<18x18x32xf32> to vector<16x16x32xf32>
    %148 = vector.shape_cast %147 : vector<16x16x32xf32> to vector<256x32xf32>
    %149 = vector.extract_strided_slice %132 {offsets = [2, 1, 0], sizes = [16, 16, 32], strides = [1, 1, 1]} : vector<18x18x32xf32> to vector<16x16x32xf32>
    %150 = vector.shape_cast %149 : vector<16x16x32xf32> to vector<256x32xf32>
    %151 = vector.extract_strided_slice %132 {offsets = [2, 2, 0], sizes = [16, 16, 32], strides = [1, 1, 1]} : vector<18x18x32xf32> to vector<16x16x32xf32>
    %152 = vector.shape_cast %151 : vector<16x16x32xf32> to vector<256x32xf32>
    %153 = tpu.concatenate %136, %138, %140, %142, %144, %146, %148, %150, %152 in 1 : vector<256x32xf32>, vector<256x32xf32>, vector<256x32xf32>, vector<256x32xf32>, vector<256x32xf32>, vector<256x32xf32>, vector<256x32xf32>, vector<256x32xf32>, vector<256x32xf32> -> vector<256x288xf32>
    %cst_81 = arith.constant dense<0.000000e+00> : vector<256x4xf32>
    %154 = tpu.matmul %153, %133, %cst_81 {dimension_numbers = #tpu.dot_dimension_numbers<[1], [0], [0], [1], [0, 0, 1, 1], [], []>} : vector<256x288xf32>, vector<288x4xf32>, vector<256x4xf32> -> vector<256x4xf32>
    %155 = vector.broadcast %134 : vector<1x4xf32> to vector<256x4xf32>
    %156 = arith.addf %154, %155 : vector<256x4xf32>
    %157 = vector.extract_strided_slice %156 {offsets = [0, 0], sizes = [256, 2], strides = [1, 1]} : vector<256x4xf32> to vector<256x2xf32>
    %158 = vector.extract_strided_slice %156 {offsets = [0, 2], sizes = [256, 2], strides = [1, 1]} : vector<256x4xf32> to vector<256x2xf32>
    %c0_82 = arith.constant 0 : index
    %159 = memref.load %arg1[%c0_82] : memref<1xf32, #tpu.memory_space<smem>>
    %160 = math.tanh %157 : vector<256x2xf32>
    %161 = vector.broadcast %159 : f32 to vector<256x2xf32>
    %162 = arith.mulf %161, %160 : vector<256x2xf32>
    %c0_83 = arith.constant 0 : index
    %163 = memref.load %arg2[%c0_83] : memref<1xf32, #tpu.memory_space<smem>>
    %164 = vector.broadcast %163 : f32 to vector<256x2xf32>
    %165 = arith.addf %162, %164 : vector<256x2xf32>
    %c0_84 = arith.constant 0 : index
    %c0_85 = arith.constant 0 : index
    %c0_86 = arith.constant 0 : index
    %166 = vector.load %arg4[%c0_84, %c0_85, %c0_86] : memref<1x256x2xf32, #tpu.memory_space<vmem>>, vector<1x256x2xf32>
    %167 = vector.shape_cast %166 : vector<1x256x2xf32> to vector<256x2xf32>
    %168 = math.exp %165 : vector<256x2xf32>
    %169 = arith.mulf %167, %168 : vector<256x2xf32>
    %170 = arith.addf %169, %158 : vector<256x2xf32>
    %c0_87 = arith.constant 0 : index
    %c0_88 = arith.constant 0 : index
    %c0_89 = arith.constant 0 : index
    %171 = vector.load %arg15[%c0_87, %c0_88, %c0_89] : memref<1x256x2xf32, #tpu.memory_space<vmem>>, vector<1x256x2xf32>
    %172 = vector.shape_cast %171 : vector<1x256x2xf32> to vector<256x2xf32>
    %173 = vector.shape_cast %170 : vector<256x2xf32> to vector<1x256x2xf32>
    tpu.vector_store %arg15[%c0_87, %c0_88, %c0_89], %173 {strides = array<i32>} : memref<1x256x2xf32, #tpu.memory_space<vmem>>, vector<1x256x2xf32>,
    %c0_90 = arith.constant 0 : index
    %c0_91 = arith.constant 0 : index
    %c0_92 = arith.constant 0 : index
    %174 = vector.load %arg16[%c0_90, %c0_91, %c0_92] : memref<1x256x2xf32, #tpu.memory_space<vmem>>, vector<1x256x2xf32>
    %175 = vector.shape_cast %174 : vector<1x256x2xf32> to vector<256x2xf32>
    %176 = vector.shape_cast %165 : vector<256x2xf32> to vector<1x256x2xf32>
    tpu.vector_store %arg16[%c0_90, %c0_91, %c0_92], %176 {strides = array<i32>} : memref<1x256x2xf32, #tpu.memory_space<vmem>>, vector<1x256x2xf32>,
    return
  }
  func.func @transform_0(%arg0: i32) -> i32 {
    %c0_i32 = arith.constant 0 : i32
    %c0_i32_0 = arith.constant 0 : i32
    return %c0_i32 : i32
  }
  func.func @transform_1(%arg0: i32) -> i32 {
    %c0_i32 = arith.constant 0 : i32
    %c0_i32_0 = arith.constant 0 : i32
    return %c0_i32 : i32
  }
  func.func @transform_2(%arg0: i32) -> (i32, i32, i32, i32) {
    %c0_i32 = arith.constant 0 : i32
    %c0_i32_0 = arith.constant 0 : i32
    %c0_i32_1 = arith.constant 0 : i32
    %c0_i32_2 = arith.constant 0 : i32
    return %arg0, %c0_i32, %c0_i32_0, %c0_i32_1 : i32, i32, i32, i32
  }
  func.func @transform_3(%arg0: i32) -> (i32, i32, i32) {
    %c0_i32 = arith.constant 0 : i32
    %c0_i32_0 = arith.constant 0 : i32
    %c0_i32_1 = arith.constant 0 : i32
    return %arg0, %c0_i32, %c0_i32_0 : i32, i32, i32
  }
  func.func @transform_4(%arg0: i32) -> (i32, i32) {
    %c0_i32 = arith.constant 0 : i32
    %c0_i32_0 = arith.constant 0 : i32
    %c0_i32_1 = arith.constant 0 : i32
    return %c0_i32, %c0_i32_0 : i32, i32
  }
  func.func @transform_5(%arg0: i32) -> (i32, i32) {
    %c0_i32 = arith.constant 0 : i32
    %c0_i32_0 = arith.constant 0 : i32
    %c0_i32_1 = arith.constant 0 : i32
    return %c0_i32, %c0_i32_0 : i32, i32
  }
  func.func @transform_6(%arg0: i32) -> (i32, i32, i32) {
    %c0_i32 = arith.constant 0 : i32
    %c0_i32_0 = arith.constant 0 : i32
    %c0_i32_1 = arith.constant 0 : i32
    %c0_i32_2 = arith.constant 0 : i32
    return %c0_i32, %c0_i32_0, %c0_i32_1 : i32, i32, i32
  }
  func.func @transform_7(%arg0: i32) -> (i32, i32, i32) {
    %c0_i32 = arith.constant 0 : i32
    %c0_i32_0 = arith.constant 0 : i32
    %c0_i32_1 = arith.constant 0 : i32
    %c0_i32_2 = arith.constant 0 : i32
    return %c0_i32, %c0_i32_0, %c0_i32_1 : i32, i32, i32
  }
  func.func @transform_8(%arg0: i32) -> (i32, i32, i32) {
    %c0_i32 = arith.constant 0 : i32
    %c0_i32_0 = arith.constant 0 : i32
    %c0_i32_1 = arith.constant 0 : i32
    %c0_i32_2 = arith.constant 0 : i32
    return %c0_i32, %c0_i32_0, %c0_i32_1 : i32, i32, i32
  }
  func.func @transform_9(%arg0: i32) -> (i32, i32, i32) {
    %c0_i32 = arith.constant 0 : i32
    %c0_i32_0 = arith.constant 0 : i32
    %c0_i32_1 = arith.constant 0 : i32
    %c0_i32_2 = arith.constant 0 : i32
    return %c0_i32, %c0_i32_0, %c0_i32_1 : i32, i32, i32
  }
  func.func @transform_10(%arg0: i32) -> (i32, i32, i32) {
    %c0_i32 = arith.constant 0 : i32
    %c0_i32_0 = arith.constant 0 : i32
    %c0_i32_1 = arith.constant 0 : i32
    %c0_i32_2 = arith.constant 0 : i32
    return %c0_i32, %c0_i32_0, %c0_i32_1 : i32, i32, i32
  }
  func.func @transform_11(%arg0: i32) -> (i32, i32, i32) {
    %c0_i32 = arith.constant 0 : i32
    %c0_i32_0 = arith.constant 0 : i32
    %c0_i32_1 = arith.constant 0 : i32
    %c0_i32_2 = arith.constant 0 : i32
    return %c0_i32, %c0_i32_0, %c0_i32_1 : i32, i32, i32
  }
  func.func @transform_12(%arg0: i32) -> (i32, i32) {
    %c0_i32 = arith.constant 0 : i32
    %c0_i32_0 = arith.constant 0 : i32
    %c0_i32_1 = arith.constant 0 : i32
    return %c0_i32, %c0_i32_0 : i32, i32
  }
  func.func @transform_13(%arg0: i32) -> (i32, i32) {
    %c0_i32 = arith.constant 0 : i32
    %c0_i32_0 = arith.constant 0 : i32
    %c0_i32_1 = arith.constant 0 : i32
    return %c0_i32, %c0_i32_0 : i32, i32
  }
  func.func @transform_14(%arg0: i32) -> (i32, i32, i32) {
    %c0_i32 = arith.constant 0 : i32
    %c0_i32_0 = arith.constant 0 : i32
    %c0_i32_1 = arith.constant 0 : i32
    return %arg0, %c0_i32, %c0_i32_0 : i32, i32, i32
  }
  func.func @transform_15(%arg0: i32) -> (i32, i32, i32) {
    %c0_i32 = arith.constant 0 : i32
    %c0_i32_0 = arith.constant 0 : i32
    %c0_i32_1 = arith.constant 0 : i32
    return %arg0, %c0_i32, %c0_i32_0 : i32, i32, i32
  }
}

</mosaic_0001>

<llo_original>
// kernel: channel_affine_coupling_forward.1
$region0: #{channel_affine_coupling_forward.1}
  #allocation0 [shape = 'u32[]', space=smem, size = 0x4, offset = 0x4, fixed_abs, tag = 'smem constant byte address 0x4 - core index']
  #allocation1 [shape = 'u32[144,128]{1,0:T(1,128)}', space=vmem, size = 0x12000, scoped, tag = 'internal scratch']
  #allocation2 [shape = 'f32[18,18,32]{2,1,0:T(8,128)}', space=vmem, size = 0x36000, scoped, tag = 'scratch operand']
  #allocation3 [shape = 'f32[1]{0:T(128)S(6)}', space=smem, size = 0x200, scoped, tag = 'scoped memory for channel_affine_coupling_forward.1']
  #allocation4 [shape = 'f32[1]{0:T(128)S(6)}', space=smem, size = 0x200, scoped, tag = 'scoped memory for channel_affine_coupling_forward.1']
  %s0 = inlined_call_operand.<no memory space> [shape: f32[1], index: 0, kind: input, shape index: {}]
  %s1 = inlined_call_operand.<no memory space> [shape: f32[1], index: 1, kind: input, shape index: {}]
  %s2 = inlined_call_operand.vmem [shape: f32[2,18,18,2], index: 2, kind: input, shape index: {}]
  %s3 = inlined_call_operand.vmem [shape: f32[2,256,2], index: 3, kind: input, shape index: {}]
  %s4 = inlined_call_operand.vmem [shape: f32[18,32], index: 4, kind: input, shape index: {}]
  %s5 = inlined_call_operand.vmem [shape: f32[1,32], index: 5, kind: input, shape index: {}]
  %s6 = inlined_call_operand.vmem [shape: f32[2,32,32], index: 6, kind: input, shape index: {}]
  %s7 = inlined_call_operand.vmem [shape: f32[2,1,32], index: 7, kind: input, shape index: {}]
  %s8 = inlined_call_operand.vmem [shape: f32[2,288,32], index: 8, kind: input, shape index: {}]
  %s9 = inlined_call_operand.vmem [shape: f32[2,1,32], index: 9, kind: input, shape index: {}]
  %s10 = inlined_call_operand.vmem [shape: f32[2,32,32], index: 10, kind: input, shape index: {}]
  %s11 = inlined_call_operand.vmem [shape: f32[2,1,32], index: 11, kind: input, shape index: {}]
  %s12 = inlined_call_operand.vmem [shape: f32[288,4], index: 12, kind: input, shape index: {}]
  %s13 = inlined_call_operand.vmem [shape: f32[1,4], index: 13, kind: input, shape index: {}]
  %s14 = inlined_call_operand.vmem [shape: f32[2,256,2], index: 14, kind: output, shape index: {0}]
  %s15 = inlined_call_operand.vmem [shape: f32[2,256,2], index: 15, kind: output, shape index: {1}]
  %16 = xla_tuple %s14, %s15
  %s17 = sld [smem:[#allocation0]]
  $region97: #{channel_affine_coupling_forward.1} parent=0
    _
  %s19 = ssub.s32 1, %s17
  %s20 = scalar_select 0, %s19, %s17
  %21 = sst [smem:[#allocation3]] %s0
  %22 = sst [smem:[#allocation4]] %s1
  loop: start=0, step=1, limit=4
  $region2: #{channel_affine_coupling_forward.1} parent=0 // loop_pre_header
    _
  $region3: #{channel_affine_coupling_forward.1} parent=0 // loop_header
    %s24 = sphi 0, %s28
    %p25 = scmp.ge.s32.totalorder %s24, 4
    %s32 = sphi 0, %s32
    %s34 = sphi 0, %s32
    %s35 = sphi 0, %s34
    %s49 = sphi 0, %s35
    %s53 = sphi 0, %s53
    %s55 = sphi 0, %s53
    %s56 = sphi 0, %s55
    %s70 = sphi 0, %s56
    %s76 = sphi 0, %s78
    %s79 = sphi 0, %s76
    %s80 = sphi 0, %s79
    %s96 = sphi 0, %s80
    %s102 = sphi 0, %s104
    %s105 = sphi 0, %s102
    %s106 = sphi 0, %s105
    %s122 = sphi 0, %s106
    %s126 = sphi 0, %s126
    %s128 = sphi 0, %s126
    %s129 = sphi 0, %s128
    %s143 = sphi 0, %s129
    %s147 = sphi 0, %s147
    %s149 = sphi 0, %s147
    %s150 = sphi 0, %s149
    %s164 = sphi 0, %s150
    %s168 = sphi 0, %s168
    %s170 = sphi 0, %s168
    %s171 = sphi 0, %s170
    %s185 = sphi 0, %s171
    %s189 = sphi 0, %s189
    %s191 = sphi 0, %s189
    %s192 = sphi 0, %s191
    %s206 = sphi 0, %s192
    %s210 = sphi 0, %s210
    %s212 = sphi 0, %s210
    %s213 = sphi 0, %s212
    %s227 = sphi 0, %s213
    %s231 = sphi 0, %s231
    %s233 = sphi 0, %s231
    %s234 = sphi 0, %s233
    %s248 = sphi 0, %s234
    %s252 = sphi 0, %s252
    %s254 = sphi 0, %s252
    %s255 = sphi 0, %s254
    %s269 = sphi 0, %s255
    %s273 = sphi 0, %s273
    %s275 = sphi 0, %s273
    %s276 = sphi 0, %s275
    %s290 = sphi 0, %s276
    %s294 = sphi 0, %s294
    %s296 = sphi 0, %s294
    %s297 = sphi 0, %s296
    %s311 = sphi 0, %s297
    %s315 = sphi 0, %s315
    %s317 = sphi 0, %s315
    %s318 = sphi 0, %s317
    %s332 = sphi 0, %s318
    %s338 = sphi 0, %s340
    %s341 = sphi 0, %s338
    %s342 = sphi 0, %s341
    %s358 = sphi 0, %s342
    %s364 = sphi 0, %s366
    %s367 = sphi 0, %s364
    %s368 = sphi 0, %s367
    %s384 = sphi 0, %s368
  $region4: #{channel_affine_coupling_forward.1} parent=0 // loop_header_branch
    %27 = sbr.rel (%p25) target = $region8
  $region5: #{channel_affine_coupling_forward.1} parent=0 // loop_body
    %s29 = ssub.s32 %s24, 1
    %s30 = ssub.s32 %s24, 2
    %s31 = sadd.s32 %s24, 1
    %s33 = sadd.s32 %s32, 1
    %p36 = scmp.eq.s32.totalorder %s24, 1
    %p37 = scmp.ne.s32.totalorder %s32, %s34
    %p38 = scmp.eq.s32.totalorder %s24, 0
    %p39 = por %p37, %p38
    %p40 = scmp.ne.s32.totalorder %s32, %s34
    %p41 = scmp.eq.s32.totalorder %s29, 1
    %p42 = por %p40, %p41
    %p43 = scmp.ne.s32.totalorder %s34, %s35
    %p44 = scmp.eq.s32.totalorder %s29, 0
    %p45 = por %p43, %p44
    %p46 = scmp.ne.s32.totalorder %s34, %s35
    %p47 = scmp.eq.s32.totalorder %s30, 1
    %p48 = por %p46, %p47
    %p50 = scmp.ne.s32.totalorder %s35, %s49
    %p51 = scmp.eq.s32.totalorder %s30, 0
    %p52 = por %p50, %p51
    %s54 = sadd.s32 %s53, 1
    %p57 = scmp.eq.s32.totalorder %s24, 1
    %p58 = scmp.ne.s32.totalorder %s53, %s55
    %p59 = scmp.eq.s32.totalorder %s24, 0
    %p60 = por %p58, %p59
    %p61 = scmp.ne.s32.totalorder %s53, %s55
    %p62 = scmp.eq.s32.totalorder %s29, 1
    %p63 = por %p61, %p62
    %p64 = scmp.ne.s32.totalorder %s55, %s56
    %p65 = scmp.eq.s32.totalorder %s29, 0
    %p66 = por %p64, %p65
    %p67 = scmp.ne.s32.totalorder %s55, %s56
    %p68 = scmp.eq.s32.totalorder %s30, 1
    %p69 = por %p67, %p68
    %p71 = scmp.ne.s32.totalorder %s56, %s70
    %p72 = scmp.eq.s32.totalorder %s30, 0
    %p73 = por %p71, %p72
    %s74 = ssub.s32 %s24, %s31
    %p75 = scmp.eq.s32.totalorder %s74, 0
    %s77 = sadd.s32 %s76, 1
    %s78 = scalar_select %p75, %s76, %s77
    %p81 = pneg %p75
    %p82 = scmp.eq.s32.totalorder %s24, 1
    %p83 = por %p81, %p82
    %p84 = scmp.ne.s32.totalorder %s76, %s79
    %p85 = scmp.eq.s32.totalorder %s24, 0
    %p86 = por %p84, %p85
    %p87 = scmp.ne.s32.totalorder %s76, %s79
    %p88 = scmp.eq.s32.totalorder %s29, 1
    %p89 = por %p87, %p88
    %p90 = scmp.ne.s32.totalorder %s79, %s80
    %p91 = scmp.eq.s32.totalorder %s29, 0
    %p92 = por %p90, %p91
    %p93 = scmp.ne.s32.totalorder %s79, %s80
    %p94 = scmp.eq.s32.totalorder %s30, 1
    %p95 = por %p93, %p94
    %p97 = scmp.ne.s32.totalorder %s80, %s96
    %p98 = scmp.eq.s32.totalorder %s30, 0
    %p99 = por %p97, %p98
    %s100 = ssub.s32 %s24, %s31
    %p101 = scmp.eq.s32.totalorder %s100, 0
    %s103 = sadd.s32 %s102, 1
    %s104 = scalar_select %p101, %s102, %s103
    %p107 = pneg %p101
    %p108 = scmp.eq.s32.totalorder %s24, 1
    %p109 = por %p107, %p108
    %p110 = scmp.ne.s32.totalorder %s102, %s105
    %p111 = scmp.eq.s32.totalorder %s24, 0
    %p112 = por %p110, %p111
    %p113 = scmp.ne.s32.totalorder %s102, %s105
    %p114 = scmp.eq.s32.totalorder %s29, 1
    %p115 = por %p113, %p114
    %p116 = scmp.ne.s32.totalorder %s105, %s106
    %p117 = scmp.eq.s32.totalorder %s29, 0
    %p118 = por %p116, %p117
    %p119 = scmp.ne.s32.totalorder %s105, %s106
    %p120 = scmp.eq.s32.totalorder %s30, 1
    %p121 = por %p119, %p120
    %p123 = scmp.ne.s32.totalorder %s106, %s122
    %p124 = scmp.eq.s32.totalorder %s30, 0
    %p125 = por %p123, %p124
    %s127 = sadd.s32 %s126, 1
    %p130 = scmp.eq.s32.totalorder %s24, 1
    %p131 = scmp.ne.s32.totalorder %s126, %s128
    %p132 = scmp.eq.s32.totalorder %s24, 0
    %p133 = por %p131, %p132
    %p134 = scmp.ne.s32.totalorder %s126, %s128
    %p135 = scmp.eq.s32.totalorder %s29, 1
    %p136 = por %p134, %p135
    %p137 = scmp.ne.s32.totalorder %s128, %s129
    %p138 = scmp.eq.s32.totalorder %s29, 0
    %p139 = por %p137, %p138
    %p140 = scmp.ne.s32.totalorder %s128, %s129
    %p141 = scmp.eq.s32.totalorder %s30, 1
    %p142 = por %p140, %p141
    %p144 = scmp.ne.s32.totalorder %s129, %s143
    %p145 = scmp.eq.s32.totalorder %s30, 0
    %p146 = por %p144, %p145
    %s148 = sadd.s32 %s147, 1
    %p151 = scmp.eq.s32.totalorder %s24, 1
    %p152 = scmp.ne.s32.totalorder %s147, %s149
    %p153 = scmp.eq.s32.totalorder %s24, 0
    %p154 = por %p152, %p153
    %p155 = scmp.ne.s32.totalorder %s147, %s149
    %p156 = scmp.eq.s32.totalorder %s29, 1
    %p157 = por %p155, %p156
    %p158 = scmp.ne.s32.totalorder %s149, %s150
    %p159 = scmp.eq.s32.totalorder %s29, 0
    %p160 = por %p158, %p159
    %p161 = scmp.ne.s32.totalorder %s149, %s150
    %p162 = scmp.eq.s32.totalorder %s30, 1
    %p163 = por %p161, %p162
    %p165 = scmp.ne.s32.totalorder %s150, %s164
    %p166 = scmp.eq.s32.totalorder %s30, 0
    %p167 = por %p165, %p166
    %s169 = sadd.s32 %s168, 1
    %p172 = scmp.eq.s32.totalorder %s24, 1
    %p173 = scmp.ne.s32.totalorder %s168, %s170
    %p174 = scmp.eq.s32.totalorder %s24, 0
    %p175 = por %p173, %p174
    %p176 = scmp.ne.s32.totalorder %s168, %s170
    %p177 = scmp.eq.s32.totalorder %s29, 1
    %p178 = por %p176, %p177
    %p179 = scmp.ne.s32.totalorder %s170, %s171
    %p180 = scmp.eq.s32.totalorder %s29, 0
    %p181 = por %p179, %p180
    %p182 = scmp.ne.s32.totalorder %s170, %s171
    %p183 = scmp.eq.s32.totalorder %s30, 1
    %p184 = por %p182, %p183
    %p186 = scmp.ne.s32.totalorder %s171, %s185
    %p187 = scmp.eq.s32.totalorder %s30, 0
    %p188 = por %p186, %p187
    %s190 = sadd.s32 %s189, 1
    %p193 = scmp.eq.s32.totalorder %s24, 1
    %p194 = scmp.ne.s32.totalorder %s189, %s191
    %p195 = scmp.eq.s32.totalorder %s24, 0
    %p196 = por %p194, %p195
    %p197 = scmp.ne.s32.totalorder %s189, %s191
    %p198 = scmp.eq.s32.totalorder %s29, 1
    %p199 = por %p197, %p198
    %p200 = scmp.ne.s32.totalorder %s191, %s192
    %p201 = scmp.eq.s32.totalorder %s29, 0
    %p202 = por %p200, %p201
    %p203 = scmp.ne.s32.totalorder %s191, %s192
    %p204 = scmp.eq.s32.totalorder %s30, 1
    %p205 = por %p203, %p204
    %p207 = scmp.ne.s32.totalorder %s192, %s206
    %p208 = scmp.eq.s32.totalorder %s30, 0
    %p209 = por %p207, %p208
    %s211 = sadd.s32 %s210, 1
    %p214 = scmp.eq.s32.totalorder %s24, 1
    %p215 = scmp.ne.s32.totalorder %s210, %s212
    %p216 = scmp.eq.s32.totalorder %s24, 0
    %p217 = por %p215, %p216
    %p218 = scmp.ne.s32.totalorder %s210, %s212
    %p219 = scmp.eq.s32.totalorder %s29, 1
    %p220 = por %p218, %p219
    %p221 = scmp.ne.s32.totalorder %s212, %s213
    %p222 = scmp.eq.s32.totalorder %s29, 0
    %p223 = por %p221, %p222
    %p224 = scmp.ne.s32.totalorder %s212, %s213
    %p225 = scmp.eq.s32.totalorder %s30, 1
    %p226 = por %p224, %p225
    %p228 = scmp.ne.s32.totalorder %s213, %s227
    %p229 = scmp.eq.s32.totalorder %s30, 0
    %p230 = por %p228, %p229
    %s232 = sadd.s32 %s231, 1
    %p235 = scmp.eq.s32.totalorder %s24, 1
    %p236 = scmp.ne.s32.totalorder %s231, %s233
    %p237 = scmp.eq.s32.totalorder %s24, 0
    %p238 = por %p236, %p237
    %p239 = scmp.ne.s32.totalorder %s231, %s233
    %p240 = scmp.eq.s32.totalorder %s29, 1
    %p241 = por %p239, %p240
    %p242 = scmp.ne.s32.totalorder %s233, %s234
    %p243 = scmp.eq.s32.totalorder %s29, 0
    %p244 = por %p242, %p243
    %p245 = scmp.ne.s32.totalorder %s233, %s234
    %p246 = scmp.eq.s32.totalorder %s30, 1
    %p247 = por %p245, %p246
    %p249 = scmp.ne.s32.totalorder %s234, %s248
    %p250 = scmp.eq.s32.totalorder %s30, 0
    %p251 = por %p249, %p250
    %s253 = sadd.s32 %s252, 1
    %p256 = scmp.eq.s32.totalorder %s24, 1
    %p257 = scmp.ne.s32.totalorder %s252, %s254
    %p258 = scmp.eq.s32.totalorder %s24, 0
    %p259 = por %p257, %p258
    %p260 = scmp.ne.s32.totalorder %s252, %s254
    %p261 = scmp.eq.s32.totalorder %s29, 1
    %p262 = por %p260, %p261
    %p263 = scmp.ne.s32.totalorder %s254, %s255
    %p264 = scmp.eq.s32.totalorder %s29, 0
    %p265 = por %p263, %p264
    %p266 = scmp.ne.s32.totalorder %s254, %s255
    %p267 = scmp.eq.s32.totalorder %s30, 1
    %p268 = por %p266, %p267
    %p270 = scmp.ne.s32.totalorder %s255, %s269
    %p271 = scmp.eq.s32.totalorder %s30, 0
    %p272 = por %p270, %p271
    %s274 = sadd.s32 %s273, 1
    %p277 = scmp.eq.s32.totalorder %s24, 1
    %p278 = scmp.ne.s32.totalorder %s273, %s275
    %p279 = scmp.eq.s32.totalorder %s24, 0
    %p280 = por %p278, %p279
    %p281 = scmp.ne.s32.totalorder %s273, %s275
    %p282 = scmp.eq.s32.totalorder %s29, 1
    %p283 = por %p281, %p282
    %p284 = scmp.ne.s32.totalorder %s275, %s276
    %p285 = scmp.eq.s32.totalorder %s29, 0
    %p286 = por %p284, %p285
    %p287 = scmp.ne.s32.totalorder %s275, %s276
    %p288 = scmp.eq.s32.totalorder %s30, 1
    %p289 = por %p287, %p288
    %p291 = scmp.ne.s32.totalorder %s276, %s290
    %p292 = scmp.eq.s32.totalorder %s30, 0
    %p293 = por %p291, %p292
    %s295 = sadd.s32 %s294, 1
    %p298 = scmp.eq.s32.totalorder %s24, 1
    %p299 = scmp.ne.s32.totalorder %s294, %s296
    %p300 = scmp.eq.s32.totalorder %s24, 0
    %p301 = por %p299, %p300
    %p302 = scmp.ne.s32.totalorder %s294, %s296
    %p303 = scmp.eq.s32.totalorder %s29, 1
    %p304 = por %p302, %p303
    %p305 = scmp.ne.s32.totalorder %s296, %s297
    %p306 = scmp.eq.s32.totalorder %s29, 0
    %p307 = por %p305, %p306
    %p308 = scmp.ne.s32.totalorder %s296, %s297
    %p309 = scmp.eq.s32.totalorder %s30, 1
    %p310 = por %p308, %p309
    %p312 = scmp.ne.s32.totalorder %s297, %s311
    %p313 = scmp.eq.s32.totalorder %s30, 0
    %p314 = por %p312, %p313
    %s316 = sadd.s32 %s315, 1
    %p319 = scmp.eq.s32.totalorder %s24, 1
    %p320 = scmp.ne.s32.totalorder %s315, %s317
    %p321 = scmp.eq.s32.totalorder %s24, 0
    %p322 = por %p320, %p321
    %p323 = scmp.ne.s32.totalorder %s315, %s317
    %p324 = scmp.eq.s32.totalorder %s29, 1
    %p325 = por %p323, %p324
    %p326 = scmp.ne.s32.totalorder %s317, %s318
    %p327 = scmp.eq.s32.totalorder %s29, 0
    %p328 = por %p326, %p327
    %p329 = scmp.ne.s32.totalorder %s317, %s318
    %p330 = scmp.eq.s32.totalorder %s30, 1
    %p331 = por %p329, %p330
    %p333 = scmp.ne.s32.totalorder %s318, %s332
    %p334 = scmp.eq.s32.totalorder %s30, 0
    %p335 = por %p333, %p334
    %s336 = ssub.s32 %s24, %s31
    %p337 = scmp.eq.s32.totalorder %s336, 0
    %s339 = sadd.s32 %s338, 1
    %s340 = scalar_select %p337, %s338, %s339
    %p343 = pneg %p337
    %p344 = scmp.eq.s32.totalorder %s24, 1
    %p345 = por %p343, %p344
    %p346 = scmp.ne.s32.totalorder %s338, %s341
    %p347 = scmp.eq.s32.totalorder %s24, 0
    %p348 = por %p346, %p347
    %p349 = scmp.ne.s32.totalorder %s338, %s341
    %p350 = scmp.eq.s32.totalorder %s29, 1
    %p351 = por %p349, %p350
    %p352 = scmp.ne.s32.totalorder %s341, %s342
    %p353 = scmp.eq.s32.totalorder %s29, 0
    %p354 = por %p352, %p353
    %p355 = scmp.ne.s32.totalorder %s341, %s342
    %p356 = scmp.eq.s32.totalorder %s30, 1
    %p357 = por %p355, %p356
    %p359 = scmp.ne.s32.totalorder %s342, %s358
    %p360 = scmp.eq.s32.totalorder %s30, 0
    %p361 = por %p359, %p360
    %s362 = ssub.s32 %s24, %s31
    %p363 = scmp.eq.s32.totalorder %s362, 0
    %s365 = sadd.s32 %s364, 1
    %s366 = scalar_select %p363, %s364, %s365
    %p369 = pneg %p363
    %p370 = scmp.eq.s32.totalorder %s24, 1
    %p371 = por %p369, %p370
    %p372 = scmp.ne.s32.totalorder %s364, %s367
    %p373 = scmp.eq.s32.totalorder %s24, 0
    %p374 = por %p372, %p373
    %p375 = scmp.ne.s32.totalorder %s364, %s367
    %p376 = scmp.eq.s32.totalorder %s29, 1
    %p377 = por %p375, %p376
    %p378 = scmp.ne.s32.totalorder %s367, %s368
    %p379 = scmp.eq.s32.totalorder %s29, 0
    %p380 = por %p378, %p379
    %p381 = scmp.ne.s32.totalorder %s367, %s368
    %p382 = scmp.eq.s32.totalorder %s30, 1
    %p383 = por %p381, %p382
    %p385 = scmp.ne.s32.totalorder %s368, %s384
    %p386 = scmp.eq.s32.totalorder %s30, 0
    %p387 = por %p385, %p386
    %p388 = scmp.le.s32.totalorder 1, %s24
    %p389 = scmp.lt.s32.totalorder %s24, 3
    %p390 = pnand %p388, %p389
    %p391 = pneg %p390
    // Predicated region
    $region9: #{channel_affine_coupling_forward.1} parent=5 // pred_check
      _
    $region10: #{channel_affine_coupling_forward.1} parent=5 // pred_check_branch
      %393 = sbr.rel (%p390) target = $region12
    $region11: #{channel_affine_coupling_forward.1} parent=5 // pred_region
      %s394 = ssub.s32 %s24, 1
      // Predicated region
      $region13: #{channel_affine_coupling_forward.1} parent=11 // pred_check
        %p395 = pneg %p45
      $region14: #{channel_affine_coupling_forward.1} parent=11 // pred_check_branch
        %397 = sbr.rel (%p395) target = $region16
      $region15: #{channel_affine_coupling_forward.1} parent=11 // pred_region
        _
      $region16: #{channel_affine_coupling_forward.1} parent=11 // pred_fallthru
        _
      // Predicated region
      $region17: #{channel_affine_coupling_forward.1} parent=11 // pred_check
        %p398 = pneg %p66
      $region18: #{channel_affine_coupling_forward.1} parent=11 // pred_check_branch
        %400 = sbr.rel (%p398) target = $region20
      $region19: #{channel_affine_coupling_forward.1} parent=11 // pred_region
        _
      $region20: #{channel_affine_coupling_forward.1} parent=11 // pred_fallthru
        _
      // Predicated region
      $region21: #{channel_affine_coupling_forward.1} parent=11 // pred_check
        %p401 = pneg %p139
      $region22: #{channel_affine_coupling_forward.1} parent=11 // pred_check_branch
        %403 = sbr.rel (%p401) target = $region24
      $region23: #{channel_affine_coupling_forward.1} parent=11 // pred_region
        _
      $region24: #{channel_affine_coupling_forward.1} parent=11 // pred_fallthru
        _
      // Predicated region
      $region25: #{channel_affine_coupling_forward.1} parent=11 // pred_check
        %p404 = pneg %p160
      $region26: #{channel_affine_coupling_forward.1} parent=11 // pred_check_branch
        %406 = sbr.rel (%p404) target = $region28
      $region27: #{channel_affine_coupling_forward.1} parent=11 // pred_region
        _
      $region28: #{channel_affine_coupling_forward.1} parent=11 // pred_fallthru
        _
      // Predicated region
      $region29: #{channel_affine_coupling_forward.1} parent=11 // pred_check
        %p407 = pneg %p181
      $region30: #{channel_affine_coupling_forward.1} parent=11 // pred_check_branch
        %409 = sbr.rel (%p407) target = $region32
      $region31: #{channel_affine_coupling_forward.1} parent=11 // pred_region
        _
      $region32: #{channel_affine_coupling_forward.1} parent=11 // pred_fallthru
        _
      // Predicated region
      $region33: #{channel_affine_coupling_forward.1} parent=11 // pred_check
        %p410 = pneg %p202
      $region34: #{channel_affine_coupling_forward.1} parent=11 // pred_check_branch
        %412 = sbr.rel (%p410) target = $region36
      $region35: #{channel_affine_coupling_forward.1} parent=11 // pred_region
        _
      $region36: #{channel_affine_coupling_forward.1} parent=11 // pred_fallthru
        _
      // Predicated region
      $region37: #{channel_affine_coupling_forward.1} parent=11 // pred_check
        %p413 = pneg %p223
      $region38: #{channel_affine_coupling_forward.1} parent=11 // pred_check_branch
        %415 = sbr.rel (%p413) target = $region40
      $region39: #{channel_affine_coupling_forward.1} parent=11 // pred_region
        _
      $region40: #{channel_affine_coupling_forward.1} parent=11 // pred_fallthru
        _
      // Predicated region
      $region41: #{channel_affine_coupling_forward.1} parent=11 // pred_check
        %p416 = pneg %p244
      $region42: #{channel_affine_coupling_forward.1} parent=11 // pred_check_branch
        %418 = sbr.rel (%p416) target = $region44
      $region43: #{channel_affine_coupling_forward.1} parent=11 // pred_region
        _
      $region44: #{channel_affine_coupling_forward.1} parent=11 // pred_fallthru
        _
      // Predicated region
      $region45: #{channel_affine_coupling_forward.1} parent=11 // pred_check
        %p419 = pneg %p265
      $region46: #{channel_affine_coupling_forward.1} parent=11 // pred_check_branch
        %421 = sbr.rel (%p419) target = $region48
      $region47: #{channel_affine_coupling_forward.1} parent=11 // pred_region
        _
      $region48: #{channel_affine_coupling_forward.1} parent=11 // pred_fallthru
        _
      // Predicated region
      $region49: #{channel_affine_coupling_forward.1} parent=11 // pred_check
        %p422 = pneg %p286
      $region50: #{channel_affine_coupling_forward.1} parent=11 // pred_check_branch
        %424 = sbr.rel (%p422) target = $region52
      $region51: #{channel_affine_coupling_forward.1} parent=11 // pred_region
        _
      $region52: #{channel_affine_coupling_forward.1} parent=11 // pred_fallthru
        _
      // Predicated region
      $region53: #{channel_affine_coupling_forward.1} parent=11 // pred_check
        %p425 = pneg %p307
      $region54: #{channel_affine_coupling_forward.1} parent=11 // pred_check_branch
        %427 = sbr.rel (%p425) target = $region56
      $region55: #{channel_affine_coupling_forward.1} parent=11 // pred_region
        _
      $region56: #{channel_affine_coupling_forward.1} parent=11 // pred_fallthru
        _
      // Predicated region
      $region57: #{channel_affine_coupling_forward.1} parent=11 // pred_check
        %p428 = pneg %p328
      $region58: #{channel_affine_coupling_forward.1} parent=11 // pred_check_branch
        %430 = sbr.rel (%p428) target = $region60
      $region59: #{channel_affine_coupling_forward.1} parent=11 // pred_region
        _
      $region60: #{channel_affine_coupling_forward.1} parent=11 // pred_fallthru
        _
    $region12: #{channel_affine_coupling_forward.1} parent=5 // pred_fallthru
      _
    %p431 = scmp.lt.s32.totalorder %s24, 2
    // Predicated region
    $region61: #{channel_affine_coupling_forward.1} parent=5 // pred_check
      %p432 = pneg %p431
    $region62: #{channel_affine_coupling_forward.1} parent=5 // pred_check_branch
      %434 = sbr.rel (%p432) target = $region64
    $region63: #{channel_affine_coupling_forward.1} parent=5 // pred_region
      // Predicated region
      $region65: #{channel_affine_coupling_forward.1} parent=63 // pred_check
        %p435 = pneg %p86
      $region66: #{channel_affine_coupling_forward.1} parent=63 // pred_check_branch
        %437 = sbr.rel (%p435) target = $region68
      $region67: #{channel_affine_coupling_forward.1} parent=63 // pred_region
        %p438 = scmp.lt.s32.totalorder %s24, 1
        %s439 = scalar_select %p438, %s24, 1
        %s440 = smul.addr %s439, 54
        %s441 = smul.addr %s440, 8
        %s442 = scalar_lea.vmem %s2, %s441
      $region68: #{channel_affine_coupling_forward.1} parent=63 // pred_fallthru
        _
      // Predicated region
      $region69: #{channel_affine_coupling_forward.1} parent=63 // pred_check
        %p443 = pneg %p112
      $region70: #{channel_affine_coupling_forward.1} parent=63 // pred_check_branch
        %445 = sbr.rel (%p443) target = $region72
      $region71: #{channel_affine_coupling_forward.1} parent=63 // pred_region
        %p446 = scmp.lt.s32.totalorder %s24, 1
        %s447 = scalar_select %p446, %s24, 1
        %s448 = smul.addr %s447, 32
        %s449 = smul.addr %s448, 8
        %s450 = scalar_lea.vmem %s3, %s449
      $region72: #{channel_affine_coupling_forward.1} parent=63 // pred_fallthru
        _
    $region64: #{channel_affine_coupling_forward.1} parent=5 // pred_fallthru
      _
    %p451 = scmp.le.s32.totalorder 1, %s24
    %p452 = scmp.lt.s32.totalorder %s24, 3
    %p453 = pnand %p451, %p452
    %p454 = pneg %p453
    // Predicated region
    $region73: #{channel_affine_coupling_forward.1} parent=5 // pred_check
      _
    $region74: #{channel_affine_coupling_forward.1} parent=5 // pred_check_branch
      %456 = sbr.rel (%p453) target = $region76
    $region75: #{channel_affine_coupling_forward.1} parent=5 // pred_region
      %s457 = ssub.s32 %s24, 1
      %p458 = pneg %p45
      %p459 = pneg %p42
      %p460 = pneg %p66
      %p461 = pneg %p63
      %p462 = scmp.lt.s32.totalorder %s29, 1
      %s463 = scalar_select %p462, %s29, 1
      %s464 = smul.addr %s463, 54
      %s465 = smul.addr %s464, 8
      %s466 = scalar_lea.vmem %s2, %s465
      %p467 = pneg %p92
      %p468 = pneg %p89
      %p469 = scmp.lt.s32.totalorder %s29, 1
      %s470 = scalar_select %p469, %s29, 1
      %s471 = smul.addr %s470, 32
      %s472 = smul.addr %s471, 8
      %s473 = scalar_lea.vmem %s3, %s472
      %p474 = pneg %p118
      %p475 = pneg %p115
      %p476 = pneg %p139
      %p477 = pneg %p136
      %p478 = pneg %p160
      %p479 = pneg %p157
      %p480 = pneg %p181
      %p481 = pneg %p178
      %p482 = pneg %p202
      %p483 = pneg %p199
      %p484 = pneg %p223
      %p485 = pneg %p220
      %p486 = pneg %p244
      %p487 = pneg %p241
      %p488 = pneg %p265
      %p489 = pneg %p262
      %p490 = pneg %p286
      %p491 = pneg %p283
      %p492 = pneg %p307
      %p493 = pneg %p304
      %p494 = pneg %p328
      %p495 = pneg %p325
      %p496 = pneg %p354
      %p497 = pneg %p351
      %p498 = scmp.lt.s32.totalorder %s29, 1
      %s499 = scalar_select %p498, %s29, 1
      %s500 = smul.addr %s499, 32
      %s501 = smul.addr %s500, 8
      %s502 = scalar_lea.vmem %s14, %s501
      %p503 = pneg %p380
      %p504 = pneg %p377
      %p505 = scmp.lt.s32.totalorder %s29, 1
      %s506 = scalar_select %p505, %s29, 1
      %s507 = smul.addr %s506, 32
      %s508 = smul.addr %s507, 8
      %s509 = scalar_lea.vmem %s15, %s508
      %p510 = scmp.lt.s32.totalorder %s29, 1
      %s511 = scalar_select %p510, %s29, 1
      %s512 = smul.addr %s511, 54
      %s513 = smul.addr %s512, 8
      %s514 = scalar_lea.vmem %s2, %s513
      %p515 = scmp.lt.s32.totalorder %s29, 1
      %s516 = scalar_select %p515, %s29, 1
      %s517 = smul.addr %s516, 32
      %s518 = smul.addr %s517, 8
      %s519 = scalar_lea.vmem %s3, %s518
      %p520 = scmp.lt.s32.totalorder %s29, 1
      %s521 = scalar_select %p520, %s29, 1
      %s522 = smul.addr %s521, 32
      %s523 = smul.addr %s522, 8
      %s524 = scalar_lea.vmem %s14, %s523
      %p525 = scmp.lt.s32.totalorder %s29, 1
      %s526 = scalar_select %p525, %s29, 1
      %s527 = smul.addr %s526, 32
      %s528 = smul.addr %s527, 8
      %s529 = scalar_lea.vmem %s15, %s528
      %vm530 = vcmask 261120
      %531 = vst.msk [vmem:[#allocation2] sm:$0xff] %vm530, 0.0
      %532 = vst.msk [vmem:[#allocation2 + $0x8] sm:$0xff] %vm530, 0.0
      %vm533 = vcmask 254976
      %534 = vst.msk [vmem:[#allocation2 + $0x10] sm:$0x3] %vm533, 0.0
      %535 = vst.msk [vmem:[#allocation2 + $0x18] sm:$0xff] %vm530, 0.0
      %536 = vst.msk [vmem:[#allocation2 + $0x20] sm:$0xff] %vm530, 0.0
      %537 = vst.msk [vmem:[#allocation2 + $0x28] sm:$0x3] %vm533, 0.0
      %538 = vst.msk [vmem:[#allocation2 + $0x30] sm:$0xff] %vm530, 0.0
      %539 = vst.msk [vmem:[#allocation2 + $0x38] sm:$0xff] %vm530, 0.0
      %540 = vst.msk [vmem:[#allocation2 + $0x40] sm:$0x3] %vm533, 0.0
      %541 = vst.msk [vmem:[#allocation2 + $0x48] sm:$0xff] %vm530, 0.0
      %542 = vst.msk [vmem:[#allocation2 + $0x50] sm:$0xff] %vm530, 0.0
      %543 = vst.msk [vmem:[#allocation2 + $0x58] sm:$0x3] %vm533, 0.0
      %544 = vst.msk [vmem:[#allocation2 + $0x60] sm:$0xff] %vm530, 0.0
      %545 = vst.msk [vmem:[#allocation2 + $0x68] sm:$0xff] %vm530, 0.0
      %546 = vst.msk [vmem:[#allocation2 + $0x70] sm:$0x3] %vm533, 0.0
      %547 = vst.msk [vmem:[#allocation2 + $0x78] sm:$0xff] %vm530, 0.0
      %548 = vst.msk [vmem:[#allocation2 + $0x80] sm:$0xff] %vm530, 0.0
      %549 = vst.msk [vmem:[#allocation2 + $0x88] sm:$0x3] %vm533, 0.0
      %550 = vst.msk [vmem:[#allocation2 + $0x90] sm:$0xff] %vm530, 0.0
      %551 = vst.msk [vmem:[#allocation2 + $0x98] sm:$0xff] %vm530, 0.0
      %552 = vst.msk [vmem:[#allocation2 + $0xa0] sm:$0x3] %vm533, 0.0
      %553 = vst.msk [vmem:[#allocation2 + $0xa8] sm:$0xff] %vm530, 0.0
      %554 = vst.msk [vmem:[#allocation2 + $0xb0] sm:$0xff] %vm530, 0.0
      %555 = vst.msk [vmem:[#allocation2 + $0xb8] sm:$0x3] %vm533, 0.0
      %556 = vst.msk [vmem:[#allocation2 + $0xc0] sm:$0xff] %vm530, 0.0
      %557 = vst.msk [vmem:[#allocation2 + $0xc8] sm:$0xff] %vm530, 0.0
      %558 = vst.msk [vmem:[#allocation2 + $0xd0] sm:$0x3] %vm533, 0.0
      %559 = vst.msk [vmem:[#allocation2 + $0xd8] sm:$0xff] %vm530, 0.0
      %560 = vst.msk [vmem:[#allocation2 + $0xe0] sm:$0xff] %vm530, 0.0
      %561 = vst.msk [vmem:[#allocation2 + $0xe8] sm:$0x3] %vm533, 0.0
      %562 = vst.msk [vmem:[#allocation2 + $0xf0] sm:$0xff] %vm530, 0.0
      %563 = vst.msk [vmem:[#allocation2 + $0xf8] sm:$0xff] %vm530, 0.0
      %564 = vst.msk [vmem:[#allocation2 + $0x100] sm:$0x3] %vm533, 0.0
      %565 = vst.msk [vmem:[#allocation2 + $0x108] sm:$0xff] %vm530, 0.0
      %566 = vst.msk [vmem:[#allocation2 + $0x110] sm:$0xff] %vm530, 0.0
      %567 = vst.msk [vmem:[#allocation2 + $0x118] sm:$0x3] %vm533, 0.0
      %568 = vst.msk [vmem:[#allocation2 + $0x120] sm:$0xff] %vm530, 0.0
      %569 = vst.msk [vmem:[#allocation2 + $0x128] sm:$0xff] %vm530, 0.0
      %570 = vst.msk [vmem:[#allocation2 + $0x130] sm:$0x3] %vm533, 0.0
      %571 = vst.msk [vmem:[#allocation2 + $0x138] sm:$0xff] %vm530, 0.0
      %572 = vst.msk [vmem:[#allocation2 + $0x140] sm:$0xff] %vm530, 0.0
      %573 = vst.msk [vmem:[#allocation2 + $0x148] sm:$0x3] %vm533, 0.0
      %574 = vst.msk [vmem:[#allocation2 + $0x150] sm:$0xff] %vm530, 0.0
      %575 = vst.msk [vmem:[#allocation2 + $0x158] sm:$0xff] %vm530, 0.0
      %576 = vst.msk [vmem:[#allocation2 + $0x160] sm:$0x3] %vm533, 0.0
      %577 = vst.msk [vmem:[#allocation2 + $0x168] sm:$0xff] %vm530, 0.0
      %578 = vst.msk [vmem:[#allocation2 + $0x170] sm:$0xff] %vm530, 0.0
      %579 = vst.msk [vmem:[#allocation2 + $0x178] sm:$0x3] %vm533, 0.0
      %580 = vst.msk [vmem:[#allocation2 + $0x180] sm:$0xff] %vm530, 0.0
      %581 = vst.msk [vmem:[#allocation2 + $0x188] sm:$0xff] %vm530, 0.0
      %582 = vst.msk [vmem:[#allocation2 + $0x190] sm:$0x3] %vm533, 0.0
      %583 = vst.msk [vmem:[#allocation2 + $0x198] sm:$0xff] %vm530, 0.0
      %584 = vst.msk [vmem:[#allocation2 + $0x1a0] sm:$0xff] %vm530, 0.0
      %585 = vst.msk [vmem:[#allocation2 + $0x1a8] sm:$0x3] %vm533, 0.0
      %v586 = vld [vmem:[%s514] sm:$0xff]
      %v587 = vld [vmem:[%s514 + $0x8] sm:$0xff]
      %v588 = vld [vmem:[%s514 + $0x10] sm:$0x3]
      %v589 = vld [vmem:[%s514 + $0x18] sm:$0xff]
      %v590 = vld [vmem:[%s514 + $0x20] sm:$0xff]
      %v591 = vld [vmem:[%s514 + $0x28] sm:$0x3]
      %v592 = vld [vmem:[%s514 + $0x30] sm:$0xff]
      %v593 = vld [vmem:[%s514 + $0x38] sm:$0xff]
      %v594 = vld [vmem:[%s514 + $0x40] sm:$0x3]
      %v595 = vld [vmem:[%s514 + $0x48] sm:$0xff]
      %v596 = vld [vmem:[%s514 + $0x50] sm:$0xff]
      %v597 = vld [vmem:[%s514 + $0x58] sm:$0x3]
      %v598 = vld [vmem:[%s514 + $0x60] sm:$0xff]
      %v599 = vld [vmem:[%s514 + $0x68] sm:$0xff]
      %v600 = vld [vmem:[%s514 + $0x70] sm:$0x3]
      %v601 = vld [vmem:[%s514 + $0x78] sm:$0xff]
      %v602 = vld [vmem:[%s514 + $0x80] sm:$0xff]
      %v603 = vld [vmem:[%s514 + $0x88] sm:$0x3]
      %v604 = vld [vmem:[%s514 + $0x90] sm:$0xff]
      %v605 = vld [vmem:[%s514 + $0x98] sm:$0xff]
      %v606 = vld [vmem:[%s514 + $0xa0] sm:$0x3]
      %v607 = vld [vmem:[%s514 + $0xa8] sm:$0xff]
      %v608 = vld [vmem:[%s514 + $0xb0] sm:$0xff]
      %v609 = vld [vmem:[%s514 + $0xb8] sm:$0x3]
      %v610 = vld [vmem:[%s514 + $0xc0] sm:$0xff]
      %v611 = vld [vmem:[%s514 + $0xc8] sm:$0xff]
      %v612 = vld [vmem:[%s514 + $0xd0] sm:$0x3]
      %v613 = vld [vmem:[%s514 + $0xd8] sm:$0xff]
      %v614 = vld [vmem:[%s514 + $0xe0] sm:$0xff]
      %v615 = vld [vmem:[%s514 + $0xe8] sm:$0x3]
      %v616 = vld [vmem:[%s514 + $0xf0] sm:$0xff]
      %v617 = vld [vmem:[%s514 + $0xf8] sm:$0xff]
      %v618 = vld [vmem:[%s514 + $0x100] sm:$0x3]
      %v619 = vld [vmem:[%s514 + $0x108] sm:$0xff]
      %v620 = vld [vmem:[%s514 + $0x110] sm:$0xff]
      %v621 = vld [vmem:[%s514 + $0x118] sm:$0x3]
      %v622 = vld [vmem:[%s514 + $0x120] sm:$0xff]
      %v623 = vld [vmem:[%s514 + $0x128] sm:$0xff]
      %v624 = vld [vmem:[%s514 + $0x130] sm:$0x3]
      %v625 = vld [vmem:[%s514 + $0x138] sm:$0xff]
      %v626 = vld [vmem:[%s514 + $0x140] sm:$0xff]
      %v627 = vld [vmem:[%s514 + $0x148] sm:$0x3]
      %v628 = vld [vmem:[%s514 + $0x150] sm:$0xff]
      %v629 = vld [vmem:[%s514 + $0x158] sm:$0xff]
      %v630 = vld [vmem:[%s514 + $0x160] sm:$0x3]
      %v631 = vld [vmem:[%s514 + $0x168] sm:$0xff]
      %v632 = vld [vmem:[%s514 + $0x170] sm:$0xff]
      %v633 = vld [vmem:[%s514 + $0x178] sm:$0x3]
      %v634 = vld [vmem:[%s514 + $0x180] sm:$0xff]
      %v635 = vld [vmem:[%s514 + $0x188] sm:$0xff]
      %v636 = vld [vmem:[%s514 + $0x190] sm:$0x3]
      %v637 = vld [vmem:[%s514 + $0x198] sm:$0xff]
      %v638 = vld [vmem:[%s514 + $0x1a0] sm:$0xff]
      %v639 = vld [vmem:[%s514 + $0x1a8] sm:$0x3]
      %v640 = vld [vmem:[%s4] sm:$0xff]
      %v641 = vld [vmem:[%s4 + $0x8] sm:$0xff]
      %v642 = vld [vmem:[%s4 + $0x10] sm:$0x3]
      %v643 = vld [vmem:[%s5] sm:$0x1]
      %vm692 = vcmask 1046528
      %v693 = vrot.slane %v586, 1
      %v694 = vrot.slane %v587, 1
      %v695 = vsel %vm692, %v693, %v694
      %v696 = vrot.slane %v588, 1
      %v697 = vsel %vm692, %v694, %v696
      %v698 = vrot.slane %v589, 1
      %v699 = vrot.slane %v590, 1
      %v700 = vsel %vm692, %v698, %v699
      %v701 = vrot.slane %v591, 1
      %v702 = vsel %vm692, %v699, %v701
      %v703 = vrot.slane %v592, 1
      %v704 = vrot.slane %v593, 1
      %v705 = vsel %vm692, %v703, %v704
      %v706 = vrot.slane %v594, 1
      %v707 = vsel %vm692, %v704, %v706
      %v708 = vrot.slane %v595, 1
      %v709 = vrot.slane %v596, 1
      %v710 = vsel %vm692, %v708, %v709
      %v711 = vrot.slane %v597, 1
      %v712 = vsel %vm692, %v709, %v711
      %v713 = vrot.slane %v598, 1
      %v714 = vrot.slane %v599, 1
      %v715 = vsel %vm692, %v713, %v714
      %v716 = vrot.slane %v600, 1
      %v717 = vsel %vm692, %v714, %v716
      %v718 = vrot.slane %v601, 1
      %v719 = vrot.slane %v602, 1
      %v720 = vsel %vm692, %v718, %v719
      %v721 = vrot.slane %v603, 1
      %v722 = vsel %vm692, %v719, %v721
      %v723 = vrot.slane %v604, 1
      %v724 = vrot.slane %v605, 1
      %v725 = vsel %vm692, %v723, %v724
      %v726 = vrot.slane %v606, 1
      %v727 = vsel %vm692, %v724, %v726
      %v728 = vrot.slane %v607, 1
      %v729 = vrot.slane %v608, 1
      %v730 = vsel %vm692, %v728, %v729
      %v731 = vrot.slane %v609, 1
      %v732 = vsel %vm692, %v729, %v731
      %v733 = vrot.slane %v610, 1
      %v734 = vrot.slane %v611, 1
      %v735 = vsel %vm692, %v733, %v734
      %v736 = vrot.slane %v612, 1
      %v737 = vsel %vm692, %v734, %v736
      %v738 = vrot.slane %v613, 1
      %v739 = vrot.slane %v614, 1
      %v740 = vsel %vm692, %v738, %v739
      %v741 = vrot.slane %v615, 1
      %v742 = vsel %vm692, %v739, %v741
      %v743 = vrot.slane %v616, 1
      %v744 = vrot.slane %v617, 1
      %v745 = vsel %vm692, %v743, %v744
      %v746 = vrot.slane %v618, 1
      %v747 = vsel %vm692, %v744, %v746
      %v748 = vrot.slane %v619, 1
      %v749 = vrot.slane %v620, 1
      %v750 = vsel %vm692, %v748, %v749
      %v751 = vrot.slane %v621, 1
      %v752 = vsel %vm692, %v749, %v751
      %v753 = vrot.slane %v622, 1
      %v754 = vrot.slane %v623, 1
      %v755 = vsel %vm692, %v753, %v754
      %v756 = vrot.slane %v624, 1
      %v757 = vsel %vm692, %v754, %v756
      %v758 = vrot.slane %v625, 1
      %v759 = vrot.slane %v626, 1
      %v760 = vsel %vm692, %v758, %v759
      %v761 = vrot.slane %v627, 1
      %v762 = vsel %vm692, %v759, %v761
      %v763 = vrot.slane %v628, 1
      %v764 = vrot.slane %v629, 1
      %v765 = vsel %vm692, %v763, %v764
      %v766 = vrot.slane %v630, 1
      %v767 = vsel %vm692, %v764, %v766
      %v768 = vrot.slane %v631, 1
      %v769 = vrot.slane %v632, 1
      %v770 = vsel %vm692, %v768, %v769
      %v771 = vrot.slane %v633, 1
      %v772 = vsel %vm692, %v769, %v771
      %vm773 = vcmask 1045504
      %v774 = vrot.slane %v586, 2
      %v775 = vrot.slane %v587, 2
      %v776 = vsel %vm773, %v774, %v775
      %v777 = vrot.slane %v588, 2
      %v778 = vsel %vm773, %v775, %v777
      %v779 = vrot.slane %v589, 2
      %v780 = vrot.slane %v590, 2
      %v781 = vsel %vm773, %v779, %v780
      %v782 = vrot.slane %v591, 2
      %v783 = vsel %vm773, %v780, %v782
      %v784 = vrot.slane %v592, 2
      %v785 = vrot.slane %v593, 2
      %v786 = vsel %vm773, %v784, %v785
      %v787 = vrot.slane %v594, 2
      %v788 = vsel %vm773, %v785, %v787
      %v789 = vrot.slane %v595, 2
      %v790 = vrot.slane %v596, 2
      %v791 = vsel %vm773, %v789, %v790
      %v792 = vrot.slane %v597, 2
      %v793 = vsel %vm773, %v790, %v792
      %v794 = vrot.slane %v598, 2
      %v795 = vrot.slane %v599, 2
      %v796 = vsel %vm773, %v794, %v795
      %v797 = vrot.slane %v600, 2
      %v798 = vsel %vm773, %v795, %v797
      %v799 = vrot.slane %v601, 2
      %v800 = vrot.slane %v602, 2
      %v801 = vsel %vm773, %v799, %v800
      %v802 = vrot.slane %v603, 2
      %v803 = vsel %vm773, %v800, %v802
      %v804 = vrot.slane %v604, 2
      %v805 = vrot.slane %v605, 2
      %v806 = vsel %vm773, %v804, %v805
      %v807 = vrot.slane %v606, 2
      %v808 = vsel %vm773, %v805, %v807
      %v809 = vrot.slane %v607, 2
      %v810 = vrot.slane %v608, 2
      %v811 = vsel %vm773, %v809, %v810
      %v812 = vrot.slane %v609, 2
      %v813 = vsel %vm773, %v810, %v812
      %v814 = vrot.slane %v610, 2
      %v815 = vrot.slane %v611, 2
      %v816 = vsel %vm773, %v814, %v815
      %v817 = vrot.slane %v612, 2
      %v818 = vsel %vm773, %v815, %v817
      %v819 = vrot.slane %v613, 2
      %v820 = vrot.slane %v614, 2
      %v821 = vsel %vm773, %v819, %v820
      %v822 = vrot.slane %v615, 2
      %v823 = vsel %vm773, %v820, %v822
      %v824 = vrot.slane %v616, 2
      %v825 = vrot.slane %v617, 2
      %v826 = vsel %vm773, %v824, %v825
      %v827 = vrot.slane %v618, 2
      %v828 = vsel %vm773, %v825, %v827
      %v829 = vrot.slane %v619, 2
      %v830 = vrot.slane %v620, 2
      %v831 = vsel %vm773, %v829, %v830
      %v832 = vrot.slane %v621, 2
      %v833 = vsel %vm773, %v830, %v832
      %v834 = vrot.slane %v622, 2
      %v835 = vrot.slane %v623, 2
      %v836 = vsel %vm773, %v834, %v835
      %v837 = vrot.slane %v624, 2
      %v838 = vsel %vm773, %v835, %v837
      %v839 = vrot.slane %v625, 2
      %v840 = vrot.slane %v626, 2
      %v841 = vsel %vm773, %v839, %v840
      %v842 = vrot.slane %v627, 2
      %v843 = vsel %vm773, %v840, %v842
      %v844 = vrot.slane %v628, 2
      %v845 = vrot.slane %v629, 2
      %v846 = vsel %vm773, %v844, %v845
      %v847 = vrot.slane %v630, 2
      %v848 = vsel %vm773, %v845, %v847
      %v849 = vrot.slane %v631, 2
      %v850 = vrot.slane %v632, 2
      %v851 = vsel %vm773, %v849, %v850
      %v852 = vrot.slane %v633, 2
      %v853 = vsel %vm773, %v850, %v852
      %v857 = vrot.slane %v634, 1
      %v858 = vrot.slane %v635, 1
      %v859 = vsel %vm692, %v857, %v858
      %v860 = vrot.slane %v636, 1
      %v861 = vsel %vm692, %v858, %v860
      %v862 = vrot.slane %v634, 2
      %v863 = vrot.slane %v635, 2
      %v864 = vsel %vm773, %v862, %v863
      %v865 = vrot.slane %v636, 2
      %v866 = vsel %vm773, %v863, %v865
      %v870 = vrot.slane %v637, 1
      %v871 = vrot.slane %v638, 1
      %v872 = vsel %vm692, %v870, %v871
      %v873 = vrot.slane %v639, 1
      %v874 = vsel %vm692, %v871, %v873
      %v875 = vrot.slane %v637, 2
      %v876 = vrot.slane %v638, 2
      %v877 = vsel %vm773, %v875, %v876
      %v878 = vrot.slane %v639, 2
      %v879 = vsel %vm773, %v876, %v878
      %880 = vrot.lane.b32.xlu0 %v695, 2
      %v881 = vpop.permute.xlu0 %880
      %882 = vrot.lane.b32.xlu0 %v697, 2
      %v883 = vpop.permute.xlu0 %882
      %884 = vrot.lane.b32.xlu0 %v700, 2
      %v885 = vpop.permute.xlu0 %884
      %886 = vrot.lane.b32.xlu0 %v702, 2
      %v887 = vpop.permute.xlu0 %886
      %888 = vrot.lane.b32.xlu0 %v705, 2
      %v889 = vpop.permute.xlu0 %888
      %890 = vrot.lane.b32.xlu0 %v707, 2
      %v891 = vpop.permute.xlu0 %890
      %892 = vrot.lane.b32.xlu0 %v710, 2
      %v893 = vpop.permute.xlu0 %892
      %894 = vrot.lane.b32.xlu0 %v712, 2
      %v895 = vpop.permute.xlu0 %894
      %896 = vrot.lane.b32.xlu0 %v715, 2
      %v897 = vpop.permute.xlu0 %896
      %898 = vrot.lane.b32.xlu0 %v717, 2
      %v899 = vpop.permute.xlu0 %898
      %900 = vrot.lane.b32.xlu0 %v720, 2
      %v901 = vpop.permute.xlu0 %900
      %902 = vrot.lane.b32.xlu0 %v722, 2
      %v903 = vpop.permute.xlu0 %902
      %904 = vrot.lane.b32.xlu0 %v725, 2
      %v905 = vpop.permute.xlu0 %904
      %906 = vrot.lane.b32.xlu0 %v727, 2
      %v907 = vpop.permute.xlu0 %906
      %908 = vrot.lane.b32.xlu0 %v730, 2
      %v909 = vpop.permute.xlu0 %908
      %910 = vrot.lane.b32.xlu0 %v732, 2
      %v911 = vpop.permute.xlu0 %910
      %912 = vrot.lane.b32.xlu0 %v735, 2
      %v913 = vpop.permute.xlu0 %912
      %914 = vrot.lane.b32.xlu0 %v737, 2
      %v915 = vpop.permute.xlu0 %914
      %916 = vrot.lane.b32.xlu0 %v740, 2
      %v917 = vpop.permute.xlu0 %916
      %918 = vrot.lane.b32.xlu0 %v742, 2
      %v919 = vpop.permute.xlu0 %918
      %920 = vrot.lane.b32.xlu0 %v745, 2
      %v921 = vpop.permute.xlu0 %920
      %922 = vrot.lane.b32.xlu0 %v747, 2
      %v923 = vpop.permute.xlu0 %922
      %924 = vrot.lane.b32.xlu0 %v750, 2
      %v925 = vpop.permute.xlu0 %924
      %926 = vrot.lane.b32.xlu0 %v752, 2
      %v927 = vpop.permute.xlu0 %926
      %928 = vrot.lane.b32.xlu0 %v755, 2
      %v929 = vpop.permute.xlu0 %928
      %930 = vrot.lane.b32.xlu0 %v757, 2
      %v931 = vpop.permute.xlu0 %930
      %932 = vrot.lane.b32.xlu0 %v760, 2
      %v933 = vpop.permute.xlu0 %932
      %934 = vrot.lane.b32.xlu0 %v762, 2
      %v935 = vpop.permute.xlu0 %934
      %936 = vrot.lane.b32.xlu0 %v765, 2
      %v937 = vpop.permute.xlu0 %936
      %938 = vrot.lane.b32.xlu0 %v767, 2
      %v939 = vpop.permute.xlu0 %938
      %940 = vrot.lane.b32.xlu0 %v770, 2
      %v941 = vpop.permute.xlu0 %940
      %942 = vrot.lane.b32.xlu0 %v772, 2
      %v943 = vpop.permute.xlu0 %942
      %976 = vrot.lane.b32.xlu0 %v776, 4
      %v977 = vpop.permute.xlu0 %976
      %978 = vrot.lane.b32.xlu0 %v778, 4
      %v979 = vpop.permute.xlu0 %978
      %980 = vrot.lane.b32.xlu0 %v781, 4
      %v981 = vpop.permute.xlu0 %980
      %982 = vrot.lane.b32.xlu0 %v783, 4
      %v983 = vpop.permute.xlu0 %982
      %984 = vrot.lane.b32.xlu0 %v786, 4
      %v985 = vpop.permute.xlu0 %984
      %986 = vrot.lane.b32.xlu0 %v788, 4
      %v987 = vpop.permute.xlu0 %986
      %988 = vrot.lane.b32.xlu0 %v791, 4
      %v989 = vpop.permute.xlu0 %988
      %990 = vrot.lane.b32.xlu0 %v793, 4
      %v991 = vpop.permute.xlu0 %990
      %992 = vrot.lane.b32.xlu0 %v796, 4
      %v993 = vpop.permute.xlu0 %992
      %994 = vrot.lane.b32.xlu0 %v798, 4
      %v995 = vpop.permute.xlu0 %994
      %996 = vrot.lane.b32.xlu0 %v801, 4
      %v997 = vpop.permute.xlu0 %996
      %998 = vrot.lane.b32.xlu0 %v803, 4
      %v999 = vpop.permute.xlu0 %998
      %1000 = vrot.lane.b32.xlu0 %v806, 4
      %v1001 = vpop.permute.xlu0 %1000
      %1002 = vrot.lane.b32.xlu0 %v808, 4
      %v1003 = vpop.permute.xlu0 %1002
      %1004 = vrot.lane.b32.xlu0 %v811, 4
      %v1005 = vpop.permute.xlu0 %1004
      %1006 = vrot.lane.b32.xlu0 %v813, 4
      %v1007 = vpop.permute.xlu0 %1006
      %1008 = vrot.lane.b32.xlu0 %v816, 4
      %v1009 = vpop.permute.xlu0 %1008
      %1010 = vrot.lane.b32.xlu0 %v818, 4
      %v1011 = vpop.permute.xlu0 %1010
      %1012 = vrot.lane.b32.xlu0 %v821, 4
      %v1013 = vpop.permute.xlu0 %1012
      %1014 = vrot.lane.b32.xlu0 %v823, 4
      %v1015 = vpop.permute.xlu0 %1014
      %1016 = vrot.lane.b32.xlu0 %v826, 4
      %v1017 = vpop.permute.xlu0 %1016
      %1018 = vrot.lane.b32.xlu0 %v828, 4
      %v1019 = vpop.permute.xlu0 %1018
      %1020 = vrot.lane.b32.xlu0 %v831, 4
      %v1021 = vpop.permute.xlu0 %1020
      %1022 = vrot.lane.b32.xlu0 %v833, 4
      %v1023 = vpop.permute.xlu0 %1022
      %1024 = vrot.lane.b32.xlu0 %v836, 4
      %v1025 = vpop.permute.xlu0 %1024
      %1026 = vrot.lane.b32.xlu0 %v838, 4
      %v1027 = vpop.permute.xlu0 %1026
      %1028 = vrot.lane.b32.xlu0 %v841, 4
      %v1029 = vpop.permute.xlu0 %1028
      %1030 = vrot.lane.b32.xlu0 %v843, 4
      %v1031 = vpop.permute.xlu0 %1030
      %1032 = vrot.lane.b32.xlu0 %v846, 4
      %v1033 = vpop.permute.xlu0 %1032
      %1034 = vrot.lane.b32.xlu0 %v848, 4
      %v1035 = vpop.permute.xlu0 %1034
      %1036 = vrot.lane.b32.xlu0 %v851, 4
      %v1037 = vpop.permute.xlu0 %1036
      %1038 = vrot.lane.b32.xlu0 %v853, 4
      %v1039 = vpop.permute.xlu0 %1038
      %1072 = vrot.lane.b32.xlu0 %v589, 6
      %v1073 = vpop.permute.xlu0 %1072
      %1074 = vrot.lane.b32.xlu0 %v590, 6
      %v1075 = vpop.permute.xlu0 %1074
      %1076 = vrot.lane.b32.xlu0 %v592, 6
      %v1077 = vpop.permute.xlu0 %1076
      %1078 = vrot.lane.b32.xlu0 %v593, 6
      %v1079 = vpop.permute.xlu0 %1078
      %1080 = vrot.lane.b32.xlu0 %v595, 6
      %v1081 = vpop.permute.xlu0 %1080
      %1082 = vrot.lane.b32.xlu0 %v596, 6
      %v1083 = vpop.permute.xlu0 %1082
      %1084 = vrot.lane.b32.xlu0 %v598, 6
      %v1085 = vpop.permute.xlu0 %1084
      %1086 = vrot.lane.b32.xlu0 %v599, 6
      %v1087 = vpop.permute.xlu0 %1086
      %1088 = vrot.lane.b32.xlu0 %v601, 6
      %v1089 = vpop.permute.xlu0 %1088
      %1090 = vrot.lane.b32.xlu0 %v602, 6
      %v1091 = vpop.permute.xlu0 %1090
      %1092 = vrot.lane.b32.xlu0 %v604, 6
      %v1093 = vpop.permute.xlu0 %1092
      %1094 = vrot.lane.b32.xlu0 %v605, 6
      %v1095 = vpop.permute.xlu0 %1094
      %1096 = vrot.lane.b32.xlu0 %v607, 6
      %v1097 = vpop.permute.xlu0 %1096
      %1098 = vrot.lane.b32.xlu0 %v608, 6
      %v1099 = vpop.permute.xlu0 %1098
      %1100 = vrot.lane.b32.xlu0 %v610, 6
      %v1101 = vpop.permute.xlu0 %1100
      %1102 = vrot.lane.b32.xlu0 %v611, 6
      %v1103 = vpop.permute.xlu0 %1102
      %1104 = vrot.lane.b32.xlu0 %v613, 6
      %v1105 = vpop.permute.xlu0 %1104
      %1106 = vrot.lane.b32.xlu0 %v614, 6
      %v1107 = vpop.permute.xlu0 %1106
      %1108 = vrot.lane.b32.xlu0 %v616, 6
      %v1109 = vpop.permute.xlu0 %1108
      %1110 = vrot.lane.b32.xlu0 %v617, 6
      %v1111 = vpop.permute.xlu0 %1110
      %1112 = vrot.lane.b32.xlu0 %v619, 6
      %v1113 = vpop.permute.xlu0 %1112
      %1114 = vrot.lane.b32.xlu0 %v620, 6
      %v1115 = vpop.permute.xlu0 %1114
      %1116 = vrot.lane.b32.xlu0 %v622, 6
      %v1117 = vpop.permute.xlu0 %1116
      %1118 = vrot.lane.b32.xlu0 %v623, 6
      %v1119 = vpop.permute.xlu0 %1118
      %1120 = vrot.lane.b32.xlu0 %v625, 6
      %v1121 = vpop.permute.xlu0 %1120
      %1122 = vrot.lane.b32.xlu0 %v626, 6
      %v1123 = vpop.permute.xlu0 %1122
      %1124 = vrot.lane.b32.xlu0 %v628, 6
      %v1125 = vpop.permute.xlu0 %1124
      %1126 = vrot.lane.b32.xlu0 %v629, 6
      %v1127 = vpop.permute.xlu0 %1126
      %1128 = vrot.lane.b32.xlu0 %v631, 6
      %v1129 = vpop.permute.xlu0 %1128
      %1130 = vrot.lane.b32.xlu0 %v632, 6
      %v1131 = vpop.permute.xlu0 %1130
      %1132 = vrot.lane.b32.xlu0 %v634, 6
      %v1133 = vpop.permute.xlu0 %1132
      %1134 = vrot.lane.b32.xlu0 %v635, 6
      %v1135 = vpop.permute.xlu0 %1134
      %1168 = vrot.lane.b32.xlu0 %v700, 8
      %v1169 = vpop.permute.xlu0 %1168
      %1170 = vrot.lane.b32.xlu0 %v702, 8
      %v1171 = vpop.permute.xlu0 %1170
      %1172 = vrot.lane.b32.xlu0 %v705, 8
      %v1173 = vpop.permute.xlu0 %1172
      %1174 = vrot.lane.b32.xlu0 %v707, 8
      %v1175 = vpop.permute.xlu0 %1174
      %1176 = vrot.lane.b32.xlu0 %v710, 8
      %v1177 = vpop.permute.xlu0 %1176
      %1178 = vrot.lane.b32.xlu0 %v712, 8
      %v1179 = vpop.permute.xlu0 %1178
      %1180 = vrot.lane.b32.xlu0 %v715, 8
      %v1181 = vpop.permute.xlu0 %1180
      %1182 = vrot.lane.b32.xlu0 %v717, 8
      %v1183 = vpop.permute.xlu0 %1182
      %1184 = vrot.lane.b32.xlu0 %v720, 8
      %v1185 = vpop.permute.xlu0 %1184
      %1186 = vrot.lane.b32.xlu0 %v722, 8
      %v1187 = vpop.permute.xlu0 %1186
      %1188 = vrot.lane.b32.xlu0 %v725, 8
      %v1189 = vpop.permute.xlu0 %1188
      %1190 = vrot.lane.b32.xlu0 %v727, 8
      %v1191 = vpop.permute.xlu0 %1190
      %1192 = vrot.lane.b32.xlu0 %v730, 8
      %v1193 = vpop.permute.xlu0 %1192
      %1194 = vrot.lane.b32.xlu0 %v732, 8
      %v1195 = vpop.permute.xlu0 %1194
      %1196 = vrot.lane.b32.xlu0 %v735, 8
      %v1197 = vpop.permute.xlu0 %1196
      %1198 = vrot.lane.b32.xlu0 %v737, 8
      %v1199 = vpop.permute.xlu0 %1198
      %1200 = vrot.lane.b32.xlu0 %v740, 8
      %v1201 = vpop.permute.xlu0 %1200
      %1202 = vrot.lane.b32.xlu0 %v742, 8
      %v1203 = vpop.permute.xlu0 %1202
      %1204 = vrot.lane.b32.xlu0 %v745, 8
      %v1205 = vpop.permute.xlu0 %1204
      %1206 = vrot.lane.b32.xlu0 %v747, 8
      %v1207 = vpop.permute.xlu0 %1206
      %1208 = vrot.lane.b32.xlu0 %v750, 8
      %v1209 = vpop.permute.xlu0 %1208
      %1210 = vrot.lane.b32.xlu0 %v752, 8
      %v1211 = vpop.permute.xlu0 %1210
      %1212 = vrot.lane.b32.xlu0 %v755, 8
      %v1213 = vpop.permute.xlu0 %1212
      %1214 = vrot.lane.b32.xlu0 %v757, 8
      %v1215 = vpop.permute.xlu0 %1214
      %1216 = vrot.lane.b32.xlu0 %v760, 8
      %v1217 = vpop.permute.xlu0 %1216
      %1218 = vrot.lane.b32.xlu0 %v762, 8
      %v1219 = vpop.permute.xlu0 %1218
      %1220 = vrot.lane.b32.xlu0 %v765, 8
      %v1221 = vpop.permute.xlu0 %1220
      %1222 = vrot.lane.b32.xlu0 %v767, 8
      %v1223 = vpop.permute.xlu0 %1222
      %1224 = vrot.lane.b32.xlu0 %v770, 8
      %v1225 = vpop.permute.xlu0 %1224
      %1226 = vrot.lane.b32.xlu0 %v772, 8
      %v1227 = vpop.permute.xlu0 %1226
      %1228 = vrot.lane.b32.xlu0 %v859, 8
      %v1229 = vpop.permute.xlu0 %1228
      %1230 = vrot.lane.b32.xlu0 %v861, 8
      %v1231 = vpop.permute.xlu0 %1230
      %1264 = vrot.lane.b32.xlu0 %v781, 10
      %v1265 = vpop.permute.xlu0 %1264
      %1266 = vrot.lane.b32.xlu0 %v783, 10
      %v1267 = vpop.permute.xlu0 %1266
      %1268 = vrot.lane.b32.xlu0 %v786, 10
      %v1269 = vpop.permute.xlu0 %1268
      %1270 = vrot.lane.b32.xlu0 %v788, 10
      %v1271 = vpop.permute.xlu0 %1270
      %1272 = vrot.lane.b32.xlu0 %v791, 10
      %v1273 = vpop.permute.xlu0 %1272
      %1274 = vrot.lane.b32.xlu0 %v793, 10
      %v1275 = vpop.permute.xlu0 %1274
      %1276 = vrot.lane.b32.xlu0 %v796, 10
      %v1277 = vpop.permute.xlu0 %1276
      %1278 = vrot.lane.b32.xlu0 %v798, 10
      %v1279 = vpop.permute.xlu0 %1278
      %1280 = vrot.lane.b32.xlu0 %v801, 10
      %v1281 = vpop.permute.xlu0 %1280
      %1282 = vrot.lane.b32.xlu0 %v803, 10
      %v1283 = vpop.permute.xlu0 %1282
      %1284 = vrot.lane.b32.xlu0 %v806, 10
      %v1285 = vpop.permute.xlu0 %1284
      %1286 = vrot.lane.b32.xlu0 %v808, 10
      %v1287 = vpop.permute.xlu0 %1286
      %1288 = vrot.lane.b32.xlu0 %v811, 10
      %v1289 = vpop.permute.xlu0 %1288
      %1290 = vrot.lane.b32.xlu0 %v813, 10
      %v1291 = vpop.permute.xlu0 %1290
      %1292 = vrot.lane.b32.xlu0 %v816, 10
      %v1293 = vpop.permute.xlu0 %1292
      %1294 = vrot.lane.b32.xlu0 %v818, 10
      %v1295 = vpop.permute.xlu0 %1294
      %1296 = vrot.lane.b32.xlu0 %v821, 10
      %v1297 = vpop.permute.xlu0 %1296
      %1298 = vrot.lane.b32.xlu0 %v823, 10
      %v1299 = vpop.permute.xlu0 %1298
      %1300 = vrot.lane.b32.xlu0 %v826, 10
      %v1301 = vpop.permute.xlu0 %1300
      %1302 = vrot.lane.b32.xlu0 %v828, 10
      %v1303 = vpop.permute.xlu0 %1302
      %1304 = vrot.lane.b32.xlu0 %v831, 10
      %v1305 = vpop.permute.xlu0 %1304
      %1306 = vrot.lane.b32.xlu0 %v833, 10
      %v1307 = vpop.permute.xlu0 %1306
      %1308 = vrot.lane.b32.xlu0 %v836, 10
      %v1309 = vpop.permute.xlu0 %1308
      %1310 = vrot.lane.b32.xlu0 %v838, 10
      %v1311 = vpop.permute.xlu0 %1310
      %1312 = vrot.lane.b32.xlu0 %v841, 10
      %v1313 = vpop.permute.xlu0 %1312
      %1314 = vrot.lane.b32.xlu0 %v843, 10
      %v1315 = vpop.permute.xlu0 %1314
      %1316 = vrot.lane.b32.xlu0 %v846, 10
      %v1317 = vpop.permute.xlu0 %1316
      %1318 = vrot.lane.b32.xlu0 %v848, 10
      %v1319 = vpop.permute.xlu0 %1318
      %1320 = vrot.lane.b32.xlu0 %v851, 10
      %v1321 = vpop.permute.xlu0 %1320
      %1322 = vrot.lane.b32.xlu0 %v853, 10
      %v1323 = vpop.permute.xlu0 %1322
      %1324 = vrot.lane.b32.xlu0 %v864, 10
      %v1325 = vpop.permute.xlu0 %1324
      %1326 = vrot.lane.b32.xlu0 %v866, 10
      %v1327 = vpop.permute.xlu0 %1326
      %1360 = vrot.lane.b32.xlu0 %v592, 12
      %v1361 = vpop.permute.xlu0 %1360
      %1362 = vrot.lane.b32.xlu0 %v593, 12
      %v1363 = vpop.permute.xlu0 %1362
      %1364 = vrot.lane.b32.xlu0 %v595, 12
      %v1365 = vpop.permute.xlu0 %1364
      %1366 = vrot.lane.b32.xlu0 %v596, 12
      %v1367 = vpop.permute.xlu0 %1366
      %1368 = vrot.lane.b32.xlu0 %v598, 12
      %v1369 = vpop.permute.xlu0 %1368
      %1370 = vrot.lane.b32.xlu0 %v599, 12
      %v1371 = vpop.permute.xlu0 %1370
      %1372 = vrot.lane.b32.xlu0 %v601, 12
      %v1373 = vpop.permute.xlu0 %1372
      %1374 = vrot.lane.b32.xlu0 %v602, 12
      %v1375 = vpop.permute.xlu0 %1374
      %1376 = vrot.lane.b32.xlu0 %v604, 12
      %v1377 = vpop.permute.xlu0 %1376
      %1378 = vrot.lane.b32.xlu0 %v605, 12
      %v1379 = vpop.permute.xlu0 %1378
      %1380 = vrot.lane.b32.xlu0 %v607, 12
      %v1381 = vpop.permute.xlu0 %1380
      %1382 = vrot.lane.b32.xlu0 %v608, 12
      %v1383 = vpop.permute.xlu0 %1382
      %1384 = vrot.lane.b32.xlu0 %v610, 12
      %v1385 = vpop.permute.xlu0 %1384
      %1386 = vrot.lane.b32.xlu0 %v611, 12
      %v1387 = vpop.permute.xlu0 %1386
      %1388 = vrot.lane.b32.xlu0 %v613, 12
      %v1389 = vpop.permute.xlu0 %1388
      %1390 = vrot.lane.b32.xlu0 %v614, 12
      %v1391 = vpop.permute.xlu0 %1390
      %1392 = vrot.lane.b32.xlu0 %v616, 12
      %v1393 = vpop.permute.xlu0 %1392
      %1394 = vrot.lane.b32.xlu0 %v617, 12
      %v1395 = vpop.permute.xlu0 %1394
      %1396 = vrot.lane.b32.xlu0 %v619, 12
      %v1397 = vpop.permute.xlu0 %1396
      %1398 = vrot.lane.b32.xlu0 %v620, 12
      %v1399 = vpop.permute.xlu0 %1398
      %1400 = vrot.lane.b32.xlu0 %v622, 12
      %v1401 = vpop.permute.xlu0 %1400
      %1402 = vrot.lane.b32.xlu0 %v623, 12
      %v1403 = vpop.permute.xlu0 %1402
      %1404 = vrot.lane.b32.xlu0 %v625, 12
      %v1405 = vpop.permute.xlu0 %1404
      %1406 = vrot.lane.b32.xlu0 %v626, 12
      %v1407 = vpop.permute.xlu0 %1406
      %1408 = vrot.lane.b32.xlu0 %v628, 12
      %v1409 = vpop.permute.xlu0 %1408
      %1410 = vrot.lane.b32.xlu0 %v629, 12
      %v1411 = vpop.permute.xlu0 %1410
      %1412 = vrot.lane.b32.xlu0 %v631, 12
      %v1413 = vpop.permute.xlu0 %1412
      %1414 = vrot.lane.b32.xlu0 %v632, 12
      %v1415 = vpop.permute.xlu0 %1414
      %1416 = vrot.lane.b32.xlu0 %v634, 12
      %v1417 = vpop.permute.xlu0 %1416
      %1418 = vrot.lane.b32.xlu0 %v635, 12
      %v1419 = vpop.permute.xlu0 %1418
      %1420 = vrot.lane.b32.xlu0 %v637, 12
      %v1421 = vpop.permute.xlu0 %1420
      %1422 = vrot.lane.b32.xlu0 %v638, 12
      %v1423 = vpop.permute.xlu0 %1422
      %1456 = vrot.lane.b32.xlu0 %v705, 14
      %v1457 = vpop.permute.xlu0 %1456
      %1458 = vrot.lane.b32.xlu0 %v707, 14
      %v1459 = vpop.permute.xlu0 %1458
      %1460 = vrot.lane.b32.xlu0 %v710, 14
      %v1461 = vpop.permute.xlu0 %1460
      %1462 = vrot.lane.b32.xlu0 %v712, 14
      %v1463 = vpop.permute.xlu0 %1462
      %1464 = vrot.lane.b32.xlu0 %v715, 14
      %v1465 = vpop.permute.xlu0 %1464
      %1466 = vrot.lane.b32.xlu0 %v717, 14
      %v1467 = vpop.permute.xlu0 %1466
      %1468 = vrot.lane.b32.xlu0 %v720, 14
      %v1469 = vpop.permute.xlu0 %1468
      %1470 = vrot.lane.b32.xlu0 %v722, 14
      %v1471 = vpop.permute.xlu0 %1470
      %1472 = vrot.lane.b32.xlu0 %v725, 14
      %v1473 = vpop.permute.xlu0 %1472
      %1474 = vrot.lane.b32.xlu0 %v727, 14
      %v1475 = vpop.permute.xlu0 %1474
      %1476 = vrot.lane.b32.xlu0 %v730, 14
      %v1477 = vpop.permute.xlu0 %1476
      %1478 = vrot.lane.b32.xlu0 %v732, 14
      %v1479 = vpop.permute.xlu0 %1478
      %1480 = vrot.lane.b32.xlu0 %v735, 14
      %v1481 = vpop.permute.xlu0 %1480
      %1482 = vrot.lane.b32.xlu0 %v737, 14
      %v1483 = vpop.permute.xlu0 %1482
      %1484 = vrot.lane.b32.xlu0 %v740, 14
      %v1485 = vpop.permute.xlu0 %1484
      %1486 = vrot.lane.b32.xlu0 %v742, 14
      %v1487 = vpop.permute.xlu0 %1486
      %1488 = vrot.lane.b32.xlu0 %v745, 14
      %v1489 = vpop.permute.xlu0 %1488
      %1490 = vrot.lane.b32.xlu0 %v747, 14
      %v1491 = vpop.permute.xlu0 %1490
      %1492 = vrot.lane.b32.xlu0 %v750, 14
      %v1493 = vpop.permute.xlu0 %1492
      %1494 = vrot.lane.b32.xlu0 %v752, 14
      %v1495 = vpop.permute.xlu0 %1494
      %1496 = vrot.lane.b32.xlu0 %v755, 14
      %v1497 = vpop.permute.xlu0 %1496
      %1498 = vrot.lane.b32.xlu0 %v757, 14
      %v1499 = vpop.permute.xlu0 %1498
      %1500 = vrot.lane.b32.xlu0 %v760, 14
      %v1501 = vpop.permute.xlu0 %1500
      %1502 = vrot.lane.b32.xlu0 %v762, 14
      %v1503 = vpop.permute.xlu0 %1502
      %1504 = vrot.lane.b32.xlu0 %v765, 14
      %v1505 = vpop.permute.xlu0 %1504
      %1506 = vrot.lane.b32.xlu0 %v767, 14
      %v1507 = vpop.permute.xlu0 %1506
      %1508 = vrot.lane.b32.xlu0 %v770, 14
      %v1509 = vpop.permute.xlu0 %1508
      %1510 = vrot.lane.b32.xlu0 %v772, 14
      %v1511 = vpop.permute.xlu0 %1510
      %1512 = vrot.lane.b32.xlu0 %v859, 14
      %v1513 = vpop.permute.xlu0 %1512
      %1514 = vrot.lane.b32.xlu0 %v861, 14
      %v1515 = vpop.permute.xlu0 %1514
      %1516 = vrot.lane.b32.xlu0 %v872, 14
      %v1517 = vpop.permute.xlu0 %1516
      %1518 = vrot.lane.b32.xlu0 %v874, 14
      %v1519 = vpop.permute.xlu0 %1518
      %1552 = vrot.lane.b32.xlu0 %v786, 16
      %v1553 = vpop.permute.xlu0 %1552
      %1554 = vrot.lane.b32.xlu0 %v788, 16
      %v1555 = vpop.permute.xlu0 %1554
      %1556 = vrot.lane.b32.xlu0 %v791, 16
      %v1557 = vpop.permute.xlu0 %1556
      %1558 = vrot.lane.b32.xlu0 %v793, 16
      %v1559 = vpop.permute.xlu0 %1558
      %1560 = vrot.lane.b32.xlu0 %v796, 16
      %v1561 = vpop.permute.xlu0 %1560
      %1562 = vrot.lane.b32.xlu0 %v798, 16
      %v1563 = vpop.permute.xlu0 %1562
      %1564 = vrot.lane.b32.xlu0 %v801, 16
      %v1565 = vpop.permute.xlu0 %1564
      %1566 = vrot.lane.b32.xlu0 %v803, 16
      %v1567 = vpop.permute.xlu0 %1566
      %1568 = vrot.lane.b32.xlu0 %v806, 16
      %v1569 = vpop.permute.xlu0 %1568
      %1570 = vrot.lane.b32.xlu0 %v808, 16
      %v1571 = vpop.permute.xlu0 %1570
      %1572 = vrot.lane.b32.xlu0 %v811, 16
      %v1573 = vpop.permute.xlu0 %1572
      %1574 = vrot.lane.b32.xlu0 %v813, 16
      %v1575 = vpop.permute.xlu0 %1574
      %1576 = vrot.lane.b32.xlu0 %v816, 16
      %v1577 = vpop.permute.xlu0 %1576
      %1578 = vrot.lane.b32.xlu0 %v818, 16
      %v1579 = vpop.permute.xlu0 %1578
      %1580 = vrot.lane.b32.xlu0 %v821, 16
      %v1581 = vpop.permute.xlu0 %1580
      %1582 = vrot.lane.b32.xlu0 %v823, 16
      %v1583 = vpop.permute.xlu0 %1582
      %1584 = vrot.lane.b32.xlu0 %v826, 16
      %v1585 = vpop.permute.xlu0 %1584
      %1586 = vrot.lane.b32.xlu0 %v828, 16
      %v1587 = vpop.permute.xlu0 %1586
      %1588 = vrot.lane.b32.xlu0 %v831, 16
      %v1589 = vpop.permute.xlu0 %1588
      %1590 = vrot.lane.b32.xlu0 %v833, 16
      %v1591 = vpop.permute.xlu0 %1590
      %1592 = vrot.lane.b32.xlu0 %v836, 16
      %v1593 = vpop.permute.xlu0 %1592
      %1594 = vrot.lane.b32.xlu0 %v838, 16
      %v1595 = vpop.permute.xlu0 %1594
      %1596 = vrot.lane.b32.xlu0 %v841, 16
      %v1597 = vpop.permute.xlu0 %1596
      %1598 = vrot.lane.b32.xlu0 %v843, 16
      %v1599 = vpop.permute.xlu0 %1598
      %1600 = vrot.lane.b32.xlu0 %v846, 16
      %v1601 = vpop.permute.xlu0 %1600
      %1602 = vrot.lane.b32.xlu0 %v848, 16
      %v1603 = vpop.permute.xlu0 %1602
      %1604 = vrot.lane.b32.xlu0 %v851, 16
      %v1605 = vpop.permute.xlu0 %1604
      %1606 = vrot.lane.b32.xlu0 %v853, 16
      %v1607 = vpop.permute.xlu0 %1606
      %1608 = vrot.lane.b32.xlu0 %v864, 16
      %v1609 = vpop.permute.xlu0 %1608
      %1610 = vrot.lane.b32.xlu0 %v866, 16
      %v1611 = vpop.permute.xlu0 %1610
      %1612 = vrot.lane.b32.xlu0 %v877, 16
      %v1613 = vpop.permute.xlu0 %1612
      %1614 = vrot.lane.b32.xlu0 %v879, 16
      %v1615 = vpop.permute.xlu0 %1614
      %vm1648 = vcmask 15360
      %v1649 = vsel %vm1648, %v586, %v881
      %v1650 = vsel %vm1648, %v587, %v883
      %v1651 = vsel %vm1648, %v589, %v885
      %v1652 = vsel %vm1648, %v590, %v887
      %v1653 = vsel %vm1648, %v592, %v889
      %v1654 = vsel %vm1648, %v593, %v891
      %v1655 = vsel %vm1648, %v595, %v893
      %v1656 = vsel %vm1648, %v596, %v895
      %v1657 = vsel %vm1648, %v598, %v897
      %v1658 = vsel %vm1648, %v599, %v899
      %v1659 = vsel %vm1648, %v601, %v901
      %v1660 = vsel %vm1648, %v602, %v903
      %v1661 = vsel %vm1648, %v604, %v905
      %v1662 = vsel %vm1648, %v605, %v907
      %v1663 = vsel %vm1648, %v607, %v909
      %v1664 = vsel %vm1648, %v608, %v911
      %v1665 = vsel %vm1648, %v610, %v913
      %v1666 = vsel %vm1648, %v611, %v915
      %v1667 = vsel %vm1648, %v613, %v917
      %v1668 = vsel %vm1648, %v614, %v919
      %v1669 = vsel %vm1648, %v616, %v921
      %v1670 = vsel %vm1648, %v617, %v923
      %v1671 = vsel %vm1648, %v619, %v925
      %v1672 = vsel %vm1648, %v620, %v927
      %v1673 = vsel %vm1648, %v622, %v929
      %v1674 = vsel %vm1648, %v623, %v931
      %v1675 = vsel %vm1648, %v625, %v933
      %v1676 = vsel %vm1648, %v626, %v935
      %v1677 = vsel %vm1648, %v628, %v937
      %v1678 = vsel %vm1648, %v629, %v939
      %v1679 = vsel %vm1648, %v631, %v941
      %v1680 = vsel %vm1648, %v632, %v943
      %vm1681 = vcmask 31744
      %v1682 = vsel %vm1681, %v1649, %v977
      %v1683 = vsel %vm1681, %v1650, %v979
      %v1684 = vsel %vm1681, %v1651, %v981
      %v1685 = vsel %vm1681, %v1652, %v983
      %v1686 = vsel %vm1681, %v1653, %v985
      %v1687 = vsel %vm1681, %v1654, %v987
      %v1688 = vsel %vm1681, %v1655, %v989
      %v1689 = vsel %vm1681, %v1656, %v991
      %v1690 = vsel %vm1681, %v1657, %v993
      %v1691 = vsel %vm1681, %v1658, %v995
      %v1692 = vsel %vm1681, %v1659, %v997
      %v1693 = vsel %vm1681, %v1660, %v999
      %v1694 = vsel %vm1681, %v1661, %v1001
      %v1695 = vsel %vm1681, %v1662, %v1003
      %v1696 = vsel %vm1681, %v1663, %v1005
      %v1697 = vsel %vm1681, %v1664, %v1007
      %v1698 = vsel %vm1681, %v1665, %v1009
      %v1699 = vsel %vm1681, %v1666, %v1011
      %v1700 = vsel %vm1681, %v1667, %v1013
      %v1701 = vsel %vm1681, %v1668, %v1015
      %v1702 = vsel %vm1681, %v1669, %v1017
      %v1703 = vsel %vm1681, %v1670, %v1019
      %v1704 = vsel %vm1681, %v1671, %v1021
      %v1705 = vsel %vm1681, %v1672, %v1023
      %v1706 = vsel %vm1681, %v1673, %v1025
      %v1707 = vsel %vm1681, %v1674, %v1027
      %v1708 = vsel %vm1681, %v1675, %v1029
      %v1709 = vsel %vm1681, %v1676, %v1031
      %v1710 = vsel %vm1681, %v1677, %v1033
      %v1711 = vsel %vm1681, %v1678, %v1035
      %v1712 = vsel %vm1681, %v1679, %v1037
      %v1713 = vsel %vm1681, %v1680, %v1039
      %vm1714 = vcmask 48128
      %v1715 = vsel %vm1714, %v1682, %v1073
      %v1716 = vsel %vm1714, %v1683, %v1075
      %v1717 = vsel %vm1714, %v1684, %v1077
      %v1718 = vsel %vm1714, %v1685, %v1079
      %v1719 = vsel %vm1714, %v1686, %v1081
      %v1720 = vsel %vm1714, %v1687, %v1083
      %v1721 = vsel %vm1714, %v1688, %v1085
      %v1722 = vsel %vm1714, %v1689, %v1087
      %v1723 = vsel %vm1714, %v1690, %v1089
      %v1724 = vsel %vm1714, %v1691, %v1091
      %v1725 = vsel %vm1714, %v1692, %v1093
      %v1726 = vsel %vm1714, %v1693, %v1095
      %v1727 = vsel %vm1714, %v1694, %v1097
      %v1728 = vsel %vm1714, %v1695, %v1099
      %v1729 = vsel %vm1714, %v1696, %v1101
      %v1730 = vsel %vm1714, %v1697, %v1103
      %v1731 = vsel %vm1714, %v1698, %v1105
      %v1732 = vsel %vm1714, %v1699, %v1107
      %v1733 = vsel %vm1714, %v1700, %v1109
      %v1734 = vsel %vm1714, %v1701, %v1111
      %v1735 = vsel %vm1714, %v1702, %v1113
      %v1736 = vsel %vm1714, %v1703, %v1115
      %v1737 = vsel %vm1714, %v1704, %v1117
      %v1738 = vsel %vm1714, %v1705, %v1119
      %v1739 = vsel %vm1714, %v1706, %v1121
      %v1740 = vsel %vm1714, %v1707, %v1123
      %v1741 = vsel %vm1714, %v1708, %v1125
      %v1742 = vsel %vm1714, %v1709, %v1127
      %v1743 = vsel %vm1714, %v1710, %v1129
      %v1744 = vsel %vm1714, %v1711, %v1131
      %v1745 = vsel %vm1714, %v1712, %v1133
      %v1746 = vsel %vm1714, %v1713, %v1135
      %vm1747 = vcmask 64512
      %v1748 = vsel %vm1747, %v1715, %v1169
      %v1749 = vsel %vm1747, %v1716, %v1171
      %v1750 = vsel %vm1747, %v1717, %v1173
      %v1751 = vsel %vm1747, %v1718, %v1175
      %v1752 = vsel %vm1747, %v1719, %v1177
      %v1753 = vsel %vm1747, %v1720, %v1179
      %v1754 = vsel %vm1747, %v1721, %v1181
      %v1755 = vsel %vm1747, %v1722, %v1183
      %v1756 = vsel %vm1747, %v1723, %v1185
      %v1757 = vsel %vm1747, %v1724, %v1187
      %v1758 = vsel %vm1747, %v1725, %v1189
      %v1759 = vsel %vm1747, %v1726, %v1191
      %v1760 = vsel %vm1747, %v1727, %v1193
      %v1761 = vsel %vm1747, %v1728, %v1195
      %v1762 = vsel %vm1747, %v1729, %v1197
      %v1763 = vsel %vm1747, %v1730, %v1199
      %v1764 = vsel %vm1747, %v1731, %v1201
      %v1765 = vsel %vm1747, %v1732, %v1203
      %v1766 = vsel %vm1747, %v1733, %v1205
      %v1767 = vsel %vm1747, %v1734, %v1207
      %v1768 = vsel %vm1747, %v1735, %v1209
      %v1769 = vsel %vm1747, %v1736, %v1211
      %v1770 = vsel %vm1747, %v1737, %v1213
      %v1771 = vsel %vm1747, %v1738, %v1215
      %v1772 = vsel %vm1747, %v1739, %v1217
      %v1773 = vsel %vm1747, %v1740, %v1219
      %v1774 = vsel %vm1747, %v1741, %v1221
      %v1775 = vsel %vm1747, %v1742, %v1223
      %v1776 = vsel %vm1747, %v1743, %v1225
      %v1777 = vsel %vm1747, %v1744, %v1227
      %v1778 = vsel %vm1747, %v1745, %v1229
      %v1779 = vsel %vm1747, %v1746, %v1231
      %vm1780 = vcmask 80896
      %v1781 = vsel %vm1780, %v1748, %v1265
      %v1782 = vsel %vm1780, %v1749, %v1267
      %v1783 = vsel %vm1780, %v1750, %v1269
      %v1784 = vsel %vm1780, %v1751, %v1271
      %v1785 = vsel %vm1780, %v1752, %v1273
      %v1786 = vsel %vm1780, %v1753, %v1275
      %v1787 = vsel %vm1780, %v1754, %v1277
      %v1788 = vsel %vm1780, %v1755, %v1279
      %v1789 = vsel %vm1780, %v1756, %v1281
      %v1790 = vsel %vm1780, %v1757, %v1283
      %v1791 = vsel %vm1780, %v1758, %v1285
      %v1792 = vsel %vm1780, %v1759, %v1287
      %v1793 = vsel %vm1780, %v1760, %v1289
      %v1794 = vsel %vm1780, %v1761, %v1291
      %v1795 = vsel %vm1780, %v1762, %v1293
      %v1796 = vsel %vm1780, %v1763, %v1295
      %v1797 = vsel %vm1780, %v1764, %v1297
      %v1798 = vsel %vm1780, %v1765, %v1299
      %v1799 = vsel %vm1780, %v1766, %v1301
      %v1800 = vsel %vm1780, %v1767, %v1303
      %v1801 = vsel %vm1780, %v1768, %v1305
      %v1802 = vsel %vm1780, %v1769, %v1307
      %v1803 = vsel %vm1780, %v1770, %v1309
      %v1804 = vsel %vm1780, %v1771, %v1311
      %v1805 = vsel %vm1780, %v1772, %v1313
      %v1806 = vsel %vm1780, %v1773, %v1315
      %v1807 = vsel %vm1780, %v1774, %v1317
      %v1808 = vsel %vm1780, %v1775, %v1319
      %v1809 = vsel %vm1780, %v1776, %v1321
      %v1810 = vsel %vm1780, %v1777, %v1323
      %v1811 = vsel %vm1780, %v1778, %v1325
      %v1812 = vsel %vm1780, %v1779, %v1327
      %vm1813 = vcmask 97280
      %v1814 = vsel %vm1813, %v1781, %v1361
      %v1815 = vsel %vm1813, %v1782, %v1363
      %v1816 = vsel %vm1813, %v1783, %v1365
      %v1817 = vsel %vm1813, %v1784, %v1367
      %v1818 = vsel %vm1813, %v1785, %v1369
      %v1819 = vsel %vm1813, %v1786, %v1371
      %v1820 = vsel %vm1813, %v1787, %v1373
      %v1821 = vsel %vm1813, %v1788, %v1375
      %v1822 = vsel %vm1813, %v1789, %v1377
      %v1823 = vsel %vm1813, %v1790, %v1379
      %v1824 = vsel %vm1813, %v1791, %v1381
      %v1825 = vsel %vm1813, %v1792, %v1383
      %v1826 = vsel %vm1813, %v1793, %v1385
      %v1827 = vsel %vm1813, %v1794, %v1387
      %v1828 = vsel %vm1813, %v1795, %v1389
      %v1829 = vsel %vm1813, %v1796, %v1391
      %v1830 = vsel %vm1813, %v1797, %v1393
      %v1831 = vsel %vm1813, %v1798, %v1395
      %v1832 = vsel %vm1813, %v1799, %v1397
      %v1833 = vsel %vm1813, %v1800, %v1399
      %v1834 = vsel %vm1813, %v1801, %v1401
      %v1835 = vsel %vm1813, %v1802, %v1403
      %v1836 = vsel %vm1813, %v1803, %v1405
      %v1837 = vsel %vm1813, %v1804, %v1407
      %v1838 = vsel %vm1813, %v1805, %v1409
      %v1839 = vsel %vm1813, %v1806, %v1411
      %v1840 = vsel %vm1813, %v1807, %v1413
      %v1841 = vsel %vm1813, %v1808, %v1415
      %v1842 = vsel %vm1813, %v1809, %v1417
      %v1843 = vsel %vm1813, %v1810, %v1419
      %v1844 = vsel %vm1813, %v1811, %v1421
      %v1845 = vsel %vm1813, %v1812, %v1423
      %vm1846 = vcmask 113664
      %v1847 = vsel %vm1846, %v1814, %v1457
      %v1848 = vsel %vm1846, %v1815, %v1459
      %v1849 = vsel %vm1846, %v1816, %v1461
      %v1850 = vsel %vm1846, %v1817, %v1463
      %v1851 = vsel %vm1846, %v1818, %v1465
      %v1852 = vsel %vm1846, %v1819, %v1467
      %v1853 = vsel %vm1846, %v1820, %v1469
      %v1854 = vsel %vm1846, %v1821, %v1471
      %v1855 = vsel %vm1846, %v1822, %v1473
      %v1856 = vsel %vm1846, %v1823, %v1475
      %v1857 = vsel %vm1846, %v1824, %v1477
      %v1858 = vsel %vm1846, %v1825, %v1479
      %v1859 = vsel %vm1846, %v1826, %v1481
      %v1860 = vsel %vm1846, %v1827, %v1483
      %v1861 = vsel %vm1846, %v1828, %v1485
      %v1862 = vsel %vm1846, %v1829, %v1487
      %v1863 = vsel %vm1846, %v1830, %v1489
      %v1864 = vsel %vm1846, %v1831, %v1491
      %v1865 = vsel %vm1846, %v1832, %v1493
      %v1866 = vsel %vm1846, %v1833, %v1495
      %v1867 = vsel %vm1846, %v1834, %v1497
      %v1868 = vsel %vm1846, %v1835, %v1499
      %v1869 = vsel %vm1846, %v1836, %v1501
      %v1870 = vsel %vm1846, %v1837, %v1503
      %v1871 = vsel %vm1846, %v1838, %v1505
      %v1872 = vsel %vm1846, %v1839, %v1507
      %v1873 = vsel %vm1846, %v1840, %v1509
      %v1874 = vsel %vm1846, %v1841, %v1511
      %v1875 = vsel %vm1846, %v1842, %v1513
      %v1876 = vsel %vm1846, %v1843, %v1515
      %v1877 = vsel %vm1846, %v1844, %v1517
      %v1878 = vsel %vm1846, %v1845, %v1519
      %vm1879 = vcmask 130048
      %v1880 = vsel %vm1879, %v1847, %v1553
      %v1881 = vsel %vm1879, %v1848, %v1555
      %v1882 = vsel %vm1879, %v1849, %v1557
      %v1883 = vsel %vm1879, %v1850, %v1559
      %v1884 = vsel %vm1879, %v1851, %v1561
      %v1885 = vsel %vm1879, %v1852, %v1563
      %v1886 = vsel %vm1879, %v1853, %v1565
      %v1887 = vsel %vm1879, %v1854, %v1567
      %v1888 = vsel %vm1879, %v1855, %v1569
      %v1889 = vsel %vm1879, %v1856, %v1571
      %v1890 = vsel %vm1879, %v1857, %v1573
      %v1891 = vsel %vm1879, %v1858, %v1575
      %v1892 = vsel %vm1879, %v1859, %v1577
      %v1893 = vsel %vm1879, %v1860, %v1579
      %v1894 = vsel %vm1879, %v1861, %v1581
      %v1895 = vsel %vm1879, %v1862, %v1583
      %v1896 = vsel %vm1879, %v1863, %v1585
      %v1897 = vsel %vm1879, %v1864, %v1587
      %v1898 = vsel %vm1879, %v1865, %v1589
      %v1899 = vsel %vm1879, %v1866, %v1591
      %v1900 = vsel %vm1879, %v1867, %v1593
      %v1901 = vsel %vm1879, %v1868, %v1595
      %v1902 = vsel %vm1879, %v1869, %v1597
      %v1903 = vsel %vm1879, %v1870, %v1599
      %v1904 = vsel %vm1879, %v1871, %v1601
      %v1905 = vsel %vm1879, %v1872, %v1603
      %v1906 = vsel %vm1879, %v1873, %v1605
      %v1907 = vsel %vm1879, %v1874, %v1607
      %v1908 = vsel %vm1879, %v1875, %v1609
      %v1909 = vsel %vm1879, %v1876, %v1611
      %v1910 = vsel %vm1879, %v1877, %v1613
      %v1911 = vsel %vm1879, %v1878, %v1615
      %v1913 = vlaneseq
      %v1914 = vshrl.u32 %v1913, 7
      %v1915 = vsub.s32 0, %v1914
      %v1916 = vrot.slane %v643, %v1915
      %vm1918 = vcmask 146432
      %v1920 = vsel %vm1918, %v1880, 0
      %v1923 = vsel %vm1918, %v1881, 0
      %v1926 = vsel %vm1918, %v1882, 0
      %v1929 = vsel %vm1918, %v1883, 0
      %v1932 = vsel %vm1918, %v1884, 0
      %v1935 = vsel %vm1918, %v1885, 0
      %v1938 = vsel %vm1918, %v1886, 0
      %v1941 = vsel %vm1918, %v1887, 0
      %v1944 = vsel %vm1918, %v1888, 0
      %v1947 = vsel %vm1918, %v1889, 0
      %v1950 = vsel %vm1918, %v1890, 0
      %v1953 = vsel %vm1918, %v1891, 0
      %v1956 = vsel %vm1918, %v1892, 0
      %v1959 = vsel %vm1918, %v1893, 0
      %v1962 = vsel %vm1918, %v1894, 0
      %v1965 = vsel %vm1918, %v1895, 0
      %v1968 = vsel %vm1918, %v1896, 0
      %v1971 = vsel %vm1918, %v1897, 0
      %v1974 = vsel %vm1918, %v1898, 0
      %v1977 = vsel %vm1918, %v1899, 0
      %v1980 = vsel %vm1918, %v1900, 0
      %v1983 = vsel %vm1918, %v1901, 0
      %v1986 = vsel %vm1918, %v1902, 0
      %v1989 = vsel %vm1918, %v1903, 0
      %v1992 = vsel %vm1918, %v1904, 0
      %v1995 = vsel %vm1918, %v1905, 0
      %v1998 = vsel %vm1918, %v1906, 0
      %v2001 = vsel %vm1918, %v1907, 0
      %v2004 = vsel %vm1918, %v1908, 0
      %v2007 = vsel %vm1918, %v1909, 0
      %v2010 = vsel %vm1918, %v1910, 0
      %v2013 = vsel %vm1918, %v1911, 0
      %vm2015 = vcmask 1041408
      %v2017 = vsel %vm2015, %v642, 0
      %2019 = vmatprep.subr.mxu0 0.0
      %2020 = vmatpush1.msra.mxu0 %v640
      %2021 = vmatprep.subr.mxu0 0.0
      %2022 = vmatpush1.msra.mxu0 %v641
      %2023 = vmatprep.subr.mxu0 0.0
      %2024 = vmatpush1.msra.mxu0 %v2017
      %2025 = vmatprep.subr.mxu0 0.0
      %2026 = vmatpush1.msra.mxu0 0.0
      %2027 = vmatprep.subr.mxu0 0.0
      %2028 = vmatpush1.msra.mxu0 0.0
      %2029 = vmatprep.subr.mxu0 0.0
      %2030 = vmatpush1.msra.mxu0 0.0
      %2031 = vmatprep.subr.mxu0 0.0
      %2032 = vmatpush1.msra.mxu0 0.0
      %2033 = vmatprep.subr.mxu0 0.0
      %2034 = vmatpush1.msra.mxu0 0.0
      %2035 = vmatprep.subr.mxu0 0.0
      %2036 = vmatpush1.msra.mxu0 0.0
      %2037 = vmatprep.subr.mxu0 0.0
      %2038 = vmatpush1.msra.mxu0 0.0
      %2039 = vmatprep.subr.mxu0 0.0
      %2040 = vmatpush1.msra.mxu0 0.0
      %2041 = vmatprep.subr.mxu0 0.0
      %2042 = vmatpush1.msra.mxu0 0.0
      %2043 = vmatprep.subr.mxu0 0.0
      %2044 = vmatpush1.msra.mxu0 0.0
      %2045 = vmatprep.subr.mxu0 0.0
      %2046 = vmatpush1.msra.mxu0 0.0
      %2047 = vmatprep.subr.mxu0 0.0
      %2048 = vmatpush1.msra.mxu0 0.0
      %2049 = vmatprep.subr.mxu0 0.0
      %2050 = vmatpush1.msra.mxu0 0.0
      %2051 = vmatprep.subr.mxu0 0.0
      %2052 = vmatpush1.msra.mxu0 0.0
      %2053 = vmatprep.subr.mxu0 0.0
      %2054 = vmatpush1.msra.mxu0 0.0
      %2055 = vmatprep.subr.mxu0 0.0
      %2056 = vmatpush1.msra.mxu0 0.0
      %2057 = vmatprep.subr.mxu0 0.0
      %2058 = vmatpush1.msra.mxu0 0.0
      %2059 = vmatprep.subr.mxu0 0.0
      %2060 = vmatpush1.msra.mxu0 0.0
      %2061 = vmatprep.subr.mxu0 0.0
      %2062 = vmatpush1.msra.mxu0 0.0
      %2063 = vmatprep.subr.mxu0 0.0
      %2064 = vmatpush1.msra.mxu0 0.0
      %2065 = vmatprep.subr.mxu0 0.0
      %2066 = vmatpush1.msra.mxu0 0.0
      %2067 = vmatprep.subr.mxu0 0.0
      %2068 = vmatpush1.msra.mxu0 0.0
      %2069 = vmatprep.subr.mxu0 0.0
      %2070 = vmatpush1.msra.mxu0 0.0
      %2071 = vmatprep.subr.mxu0 0.0
      %2072 = vmatpush1.msra.mxu0 0.0
      %2073 = vmatprep.subr.mxu0 0.0
      %2074 = vmatpush1.msra.mxu0 0.0
      %2075 = vmatprep.subr.mxu0 0.0
      %2076 = vmatpush1.msra.mxu0 0.0
      %2077 = vmatprep.subr.mxu0 0.0
      %2078 = vmatpush1.msra.mxu0 0.0
      %2079 = vmatprep.subr.mxu0 0.0
      %2080 = vmatpush1.msra.mxu0 0.0
      %2081 = vmatprep.subr.mxu0 0.0
      %2082 = vmatpush1.msra.mxu0 0.0
      %2083 = vmatprep.mubr.f32.mxu0 0.0
      %2084 = vmatmul.mubr.f32.gmra.mrb[0].mxu0 %v1920
      %v2085 = vpop.f32.mrb[0].mxu0
      %v2086 = vadd.f32 %v1916, %v2085
      %v2087 = vpop.f32.mrb[0].mxu0
      %2088 = vmatprep.mubr.f32.mxu0 0.0
      %2089 = vmatmul.mubr.f32.gmra.mrb[0].mxu0 %v1923
      %v2090 = vpop.f32.mrb[0].mxu0
      %v2091 = vadd.f32 %v1916, %v2090
      %v2092 = vpop.f32.mrb[0].mxu0
      %2093 = vmatprep.mubr.f32.mxu0 0.0
      %2094 = vmatmul.mubr.f32.gmra.mrb[0].mxu0 %v1926
      %v2095 = vpop.f32.mrb[0].mxu0
      %v2096 = vadd.f32 %v1916, %v2095
      %v2097 = vpop.f32.mrb[0].mxu0
      %2098 = vmatprep.mubr.f32.mxu0 0.0
      %2099 = vmatmul.mubr.f32.gmra.mrb[0].mxu0 %v1929
      %v2100 = vpop.f32.mrb[0].mxu0
      %v2101 = vadd.f32 %v1916, %v2100
      %v2102 = vpop.f32.mrb[0].mxu0
      %2103 = vmatprep.mubr.f32.mxu0 0.0
      %2104 = vmatmul.mubr.f32.gmra.mrb[0].mxu0 %v1932
      %v2105 = vpop.f32.mrb[0].mxu0
      %v2106 = vadd.f32 %v1916, %v2105
      %v2107 = vpop.f32.mrb[0].mxu0
      %2108 = vmatprep.mubr.f32.mxu0 0.0
      %2109 = vmatmul.mubr.f32.gmra.mrb[0].mxu0 %v1935
      %v2110 = vpop.f32.mrb[0].mxu0
      %v2111 = vadd.f32 %v1916, %v2110
      %v2112 = vpop.f32.mrb[0].mxu0
      %2113 = vmatprep.mubr.f32.mxu0 0.0
      %2114 = vmatmul.mubr.f32.gmra.mrb[0].mxu0 %v1938
      %v2115 = vpop.f32.mrb[0].mxu0
      %v2116 = vadd.f32 %v1916, %v2115
      %v2117 = vpop.f32.mrb[0].mxu0
      %2118 = vmatprep.mubr.f32.mxu0 0.0
      %2119 = vmatmul.mubr.f32.gmra.mrb[0].mxu0 %v1941
      %v2120 = vpop.f32.mrb[0].mxu0
      %v2121 = vadd.f32 %v1916, %v2120
      %v2122 = vpop.f32.mrb[0].mxu0
      %2123 = vmatprep.mubr.f32.mxu0 0.0
      %2124 = vmatmul.mubr.f32.gmra.mrb[0].mxu0 %v1944
      %v2125 = vpop.f32.mrb[0].mxu0
      %v2126 = vadd.f32 %v1916, %v2125
      %v2127 = vpop.f32.mrb[0].mxu0
      %2128 = vmatprep.mubr.f32.mxu0 0.0
      %2129 = vmatmul.mubr.f32.gmra.mrb[0].mxu0 %v1947
      %v2130 = vpop.f32.mrb[0].mxu0
      %v2131 = vadd.f32 %v1916, %v2130
      %v2132 = vpop.f32.mrb[0].mxu0
      %2133 = vmatprep.mubr.f32.mxu0 0.0
      %2134 = vmatmul.mubr.f32.gmra.mrb[0].mxu0 %v1950
      %v2135 = vpop.f32.mrb[0].mxu0
      %v2136 = vadd.f32 %v1916, %v2135
      %v2137 = vpop.f32.mrb[0].mxu0
      %2138 = vmatprep.mubr.f32.mxu0 0.0
      %2139 = vmatmul.mubr.f32.gmra.mrb[0].mxu0 %v1953
      %v2140 = vpop.f32.mrb[0].mxu0
      %v2141 = vadd.f32 %v1916, %v2140
      %v2142 = vpop.f32.mrb[0].mxu0
      %2143 = vmatprep.mubr.f32.mxu0 0.0
      %2144 = vmatmul.mubr.f32.gmra.mrb[0].mxu0 %v1956
      %v2145 = vpop.f32.mrb[0].mxu0
      %v2146 = vadd.f32 %v1916, %v2145
      %v2147 = vpop.f32.mrb[0].mxu0
      %2148 = vmatprep.mubr.f32.mxu0 0.0
      %2149 = vmatmul.mubr.f32.gmra.mrb[0].mxu0 %v1959
      %v2150 = vpop.f32.mrb[0].mxu0
      %v2151 = vadd.f32 %v1916, %v2150
      %v2152 = vpop.f32.mrb[0].mxu0
      %2153 = vmatprep.mubr.f32.mxu0 0.0
      %2154 = vmatmul.mubr.f32.gmra.mrb[0].mxu0 %v1962
      %v2155 = vpop.f32.mrb[0].mxu0
      %v2156 = vadd.f32 %v1916, %v2155
      %v2157 = vpop.f32.mrb[0].mxu0
      %2158 = vmatprep.mubr.f32.mxu0 0.0
      %2159 = vmatmul.mubr.f32.gmra.mrb[0].mxu0 %v1965
      %v2160 = vpop.f32.mrb[0].mxu0
      %v2161 = vadd.f32 %v1916, %v2160
      %v2162 = vpop.f32.mrb[0].mxu0
      %2163 = vmatprep.mubr.f32.mxu0 0.0
      %2164 = vmatmul.mubr.f32.gmra.mrb[0].mxu0 %v1968
      %v2165 = vpop.f32.mrb[0].mxu0
      %v2166 = vadd.f32 %v1916, %v2165
      %v2167 = vpop.f32.mrb[0].mxu0
      %2168 = vmatprep.mubr.f32.mxu0 0.0
      %2169 = vmatmul.mubr.f32.gmra.mrb[0].mxu0 %v1971
      %v2170 = vpop.f32.mrb[0].mxu0
      %v2171 = vadd.f32 %v1916, %v2170
      %v2172 = vpop.f32.mrb[0].mxu0
      %2173 = vmatprep.mubr.f32.mxu0 0.0
      %2174 = vmatmul.mubr.f32.gmra.mrb[0].mxu0 %v1974
      %v2175 = vpop.f32.mrb[0].mxu0
      %v2176 = vadd.f32 %v1916, %v2175
      %v2177 = vpop.f32.mrb[0].mxu0
      %2178 = vmatprep.mubr.f32.mxu0 0.0
      %2179 = vmatmul.mubr.f32.gmra.mrb[0].mxu0 %v1977
      %v2180 = vpop.f32.mrb[0].mxu0
      %v2181 = vadd.f32 %v1916, %v2180
      %v2182 = vpop.f32.mrb[0].mxu0
      %2183 = vmatprep.mubr.f32.mxu0 0.0
      %2184 = vmatmul.mubr.f32.gmra.mrb[0].mxu0 %v1980
      %v2185 = vpop.f32.mrb[0].mxu0
      %v2186 = vadd.f32 %v1916, %v2185
      %v2187 = vpop.f32.mrb[0].mxu0
      %2188 = vmatprep.mubr.f32.mxu0 0.0
      %2189 = vmatmul.mubr.f32.gmra.mrb[0].mxu0 %v1983
      %v2190 = vpop.f32.mrb[0].mxu0
      %v2191 = vadd.f32 %v1916, %v2190
      %v2192 = vpop.f32.mrb[0].mxu0
      %2193 = vmatprep.mubr.f32.mxu0 0.0
      %2194 = vmatmul.mubr.f32.gmra.mrb[0].mxu0 %v1986
      %v2195 = vpop.f32.mrb[0].mxu0
      %v2196 = vadd.f32 %v1916, %v2195
      %v2197 = vpop.f32.mrb[0].mxu0
      %2198 = vmatprep.mubr.f32.mxu0 0.0
      %2199 = vmatmul.mubr.f32.gmra.mrb[0].mxu0 %v1989
      %v2200 = vpop.f32.mrb[0].mxu0
      %v2201 = vadd.f32 %v1916, %v2200
      %v2202 = vpop.f32.mrb[0].mxu0
      %2203 = vmatprep.mubr.f32.mxu0 0.0
      %2204 = vmatmul.mubr.f32.gmra.mrb[0].mxu0 %v1992
      %v2205 = vpop.f32.mrb[0].mxu0
      %v2206 = vadd.f32 %v1916, %v2205
      %v2207 = vpop.f32.mrb[0].mxu0
      %2208 = vmatprep.mubr.f32.mxu0 0.0
      %2209 = vmatmul.mubr.f32.gmra.mrb[0].mxu0 %v1995
      %v2210 = vpop.f32.mrb[0].mxu0
      %v2211 = vadd.f32 %v1916, %v2210
      %v2212 = vpop.f32.mrb[0].mxu0
      %2213 = vmatprep.mubr.f32.mxu0 0.0
      %2214 = vmatmul.mubr.f32.gmra.mrb[0].mxu0 %v1998
      %v2215 = vpop.f32.mrb[0].mxu0
      %v2216 = vadd.f32 %v1916, %v2215
      %v2217 = vpop.f32.mrb[0].mxu0
      %2218 = vmatprep.mubr.f32.mxu0 0.0
      %2219 = vmatmul.mubr.f32.gmra.mrb[0].mxu0 %v2001
      %v2220 = vpop.f32.mrb[0].mxu0
      %v2221 = vadd.f32 %v1916, %v2220
      %v2222 = vpop.f32.mrb[0].mxu0
      %2223 = vmatprep.mubr.f32.mxu0 0.0
      %2224 = vmatmul.mubr.f32.gmra.mrb[0].mxu0 %v2004
      %v2225 = vpop.f32.mrb[0].mxu0
      %v2226 = vadd.f32 %v1916, %v2225
      %v2227 = vpop.f32.mrb[0].mxu0
      %2228 = vmatprep.mubr.f32.mxu0 0.0
      %2229 = vmatmul.mubr.f32.gmra.mrb[0].mxu0 %v2007
      %v2230 = vpop.f32.mrb[0].mxu0
      %v2231 = vadd.f32 %v1916, %v2230
      %v2232 = vpop.f32.mrb[0].mxu0
      %2233 = vmatprep.mubr.f32.mxu0 0.0
      %2234 = vmatmul.mubr.f32.gmra.mrb[0].mxu0 %v2010
      %v2235 = vpop.f32.mrb[0].mxu0
      %v2236 = vadd.f32 %v1916, %v2235
      %v2237 = vpop.f32.mrb[0].mxu0
      %2238 = vmatprep.mubr.f32.mxu0 0.0
      %2239 = vmatmul.mubr.f32.gmra.mrb[0].mxu0 %v2013
      %v2240 = vpop.f32.mrb[0].mxu0
      %v2241 = vadd.f32 %v1916, %v2240
      %v2242 = vpop.f32.mrb[0].mxu0
      %2243 = vdwg.mxu0
      %v2244 = vmax.f32 %v2086, 0.0
      %v2245 = vmax.f32 %v2091, 0.0
      %v2246 = vmax.f32 %v2096, 0.0
      %v2247 = vmax.f32 %v2101, 0.0
      %v2248 = vmax.f32 %v2106, 0.0
      %v2249 = vmax.f32 %v2111, 0.0
      %v2250 = vmax.f32 %v2116, 0.0
      %v2251 = vmax.f32 %v2121, 0.0
      %v2252 = vmax.f32 %v2126, 0.0
      %v2253 = vmax.f32 %v2131, 0.0
      %v2254 = vmax.f32 %v2136, 0.0
      %v2255 = vmax.f32 %v2141, 0.0
      %v2256 = vmax.f32 %v2146, 0.0
      %v2257 = vmax.f32 %v2151, 0.0
      %v2258 = vmax.f32 %v2156, 0.0
      %v2259 = vmax.f32 %v2161, 0.0
      %v2260 = vmax.f32 %v2166, 0.0
      %v2261 = vmax.f32 %v2171, 0.0
      %v2262 = vmax.f32 %v2176, 0.0
      %v2263 = vmax.f32 %v2181, 0.0
      %v2264 = vmax.f32 %v2186, 0.0
      %v2265 = vmax.f32 %v2191, 0.0
      %v2266 = vmax.f32 %v2196, 0.0
      %v2267 = vmax.f32 %v2201, 0.0
      %v2268 = vmax.f32 %v2206, 0.0
      %v2269 = vmax.f32 %v2211, 0.0
      %v2270 = vmax.f32 %v2216, 0.0
      %v2271 = vmax.f32 %v2221, 0.0
      %v2272 = vmax.f32 %v2226, 0.0
      %v2273 = vmax.f32 %v2231, 0.0
      %v2274 = vmax.f32 %v2236, 0.0
      %v2275 = vmax.f32 %v2241, 0.0
      %v2276 = vld [vmem:[%s6] sm:$0xff]
      %v2277 = vld [vmem:[%s6 + $0x8] sm:$0xff]
      %v2278 = vld [vmem:[%s6 + $0x10] sm:$0xff]
      %v2279 = vld [vmem:[%s6 + $0x18] sm:$0xff]
      %v2280 = vld [vmem:[%s7] sm:$0x1]
      %v2282 = vlaneseq
      %v2283 = vshrl.u32 %v2282, 7
      %v2284 = vsub.s32 0, %v2283
      %v2285 = vrot.slane %v2280, %v2284
      %v2288 = vsel %vm530, %v2244, 0
      %v2291 = vsel %vm530, %v2245, 0
      %v2294 = vsel %vm530, %v2246, 0
      %v2297 = vsel %vm530, %v2247, 0
      %v2300 = vsel %vm530, %v2248, 0
      %v2303 = vsel %vm530, %v2249, 0
      %v2306 = vsel %vm530, %v2250, 0
      %v2309 = vsel %vm530, %v2251, 0
      %v2312 = vsel %vm530, %v2252, 0
      %v2315 = vsel %vm530, %v2253, 0
      %v2318 = vsel %vm530, %v2254, 0
      %v2321 = vsel %vm530, %v2255, 0
      %v2324 = vsel %vm530, %v2256, 0
      %v2327 = vsel %vm530, %v2257, 0
      %v2330 = vsel %vm530, %v2258, 0
      %v2333 = vsel %vm530, %v2259, 0
      %v2336 = vsel %vm530, %v2260, 0
      %v2339 = vsel %vm530, %v2261, 0
      %v2342 = vsel %vm530, %v2262, 0
      %v2345 = vsel %vm530, %v2263, 0
      %v2348 = vsel %vm530, %v2264, 0
      %v2351 = vsel %vm530, %v2265, 0
      %v2354 = vsel %vm530, %v2266, 0
      %v2357 = vsel %vm530, %v2267, 0
      %v2360 = vsel %vm530, %v2268, 0
      %v2363 = vsel %vm530, %v2269, 0
      %v2366 = vsel %vm530, %v2270, 0
      %v2369 = vsel %vm530, %v2271, 0
      %v2372 = vsel %vm530, %v2272, 0
      %v2375 = vsel %vm530, %v2273, 0
      %v2378 = vsel %vm530, %v2274, 0
      %v2381 = vsel %vm530, %v2275, 0
      %2383 = vmatprep.subr.mxu0 0.0
      %2384 = vmatpush1.msra.mxu0 %v2276
      %2385 = vmatprep.subr.mxu0 0.0
      %2386 = vmatpush1.msra.mxu0 %v2277
      %2387 = vmatprep.subr.mxu0 0.0
      %2388 = vmatpush1.msra.mxu0 %v2278
      %2389 = vmatprep.subr.mxu0 0.0
      %2390 = vmatpush1.msra.mxu0 %v2279
      %2391 = vmatprep.subr.mxu0 0.0
      %2392 = vmatpush1.msra.mxu0 0.0
      %2393 = vmatprep.subr.mxu0 0.0
      %2394 = vmatpush1.msra.mxu0 0.0
      %2395 = vmatprep.subr.mxu0 0.0
      %2396 = vmatpush1.msra.mxu0 0.0
      %2397 = vmatprep.subr.mxu0 0.0
      %2398 = vmatpush1.msra.mxu0 0.0
      %2399 = vmatprep.subr.mxu0 0.0
      %2400 = vmatpush1.msra.mxu0 0.0
      %2401 = vmatprep.subr.mxu0 0.0
      %2402 = vmatpush1.msra.mxu0 0.0
      %2403 = vmatprep.subr.mxu0 0.0
      %2404 = vmatpush1.msra.mxu0 0.0
      %2405 = vmatprep.subr.mxu0 0.0
      %2406 = vmatpush1.msra.mxu0 0.0
      %2407 = vmatprep.subr.mxu0 0.0
      %2408 = vmatpush1.msra.mxu0 0.0
      %2409 = vmatprep.subr.mxu0 0.0
      %2410 = vmatpush1.msra.mxu0 0.0
      %2411 = vmatprep.subr.mxu0 0.0
      %2412 = vmatpush1.msra.mxu0 0.0
      %2413 = vmatprep.subr.mxu0 0.0
      %2414 = vmatpush1.msra.mxu0 0.0
      %2415 = vmatprep.subr.mxu0 0.0
      %2416 = vmatpush1.msra.mxu0 0.0
      %2417 = vmatprep.subr.mxu0 0.0
      %2418 = vmatpush1.msra.mxu0 0.0
      %2419 = vmatprep.subr.mxu0 0.0
      %2420 = vmatpush1.msra.mxu0 0.0
      %2421 = vmatprep.subr.mxu0 0.0
      %2422 = vmatpush1.msra.mxu0 0.0
      %2423 = vmatprep.subr.mxu0 0.0
      %2424 = vmatpush1.msra.mxu0 0.0
      %2425 = vmatprep.subr.mxu0 0.0
      %2426 = vmatpush1.msra.mxu0 0.0
      %2427 = vmatprep.subr.mxu0 0.0
      %2428 = vmatpush1.msra.mxu0 0.0
      %2429 = vmatprep.subr.mxu0 0.0
      %2430 = vmatpush1.msra.mxu0 0.0
      %2431 = vmatprep.subr.mxu0 0.0
      %2432 = vmatpush1.msra.mxu0 0.0
      %2433 = vmatprep.subr.mxu0 0.0
      %2434 = vmatpush1.msra.mxu0 0.0
      %2435 = vmatprep.subr.mxu0 0.0
      %2436 = vmatpush1.msra.mxu0 0.0
      %2437 = vmatprep.subr.mxu0 0.0
      %2438 = vmatpush1.msra.mxu0 0.0
      %2439 = vmatprep.subr.mxu0 0.0
      %2440 = vmatpush1.msra.mxu0 0.0
      %2441 = vmatprep.subr.mxu0 0.0
      %2442 = vmatpush1.msra.mxu0 0.0
      %2443 = vmatprep.subr.mxu0 0.0
      %2444 = vmatpush1.msra.mxu0 0.0
      %2445 = vmatprep.subr.mxu0 0.0
      %2446 = vmatpush1.msra.mxu0 0.0
      %2447 = vmatprep.mubr.f32.mxu0 0.0
      %2448 = vmatmul.mubr.f32.gmra.mrb[0].mxu0 %v2288
      %v2449 = vpop.f32.mrb[0].mxu0
      %v2450 = vadd.f32 %v2285, %v2449
      %v2451 = vpop.f32.mrb[0].mxu0
      %2452 = vmatprep.mubr.f32.mxu0 0.0
      %2453 = vmatmul.mubr.f32.gmra.mrb[0].mxu0 %v2291
      %v2454 = vpop.f32.mrb[0].mxu0
      %v2455 = vadd.f32 %v2285, %v2454
      %v2456 = vpop.f32.mrb[0].mxu0
      %2457 = vmatprep.mubr.f32.mxu0 0.0
      %2458 = vmatmul.mubr.f32.gmra.mrb[0].mxu0 %v2294
      %v2459 = vpop.f32.mrb[0].mxu0
      %v2460 = vadd.f32 %v2285, %v2459
      %v2461 = vpop.f32.mrb[0].mxu0
      %2462 = vmatprep.mubr.f32.mxu0 0.0
      %2463 = vmatmul.mubr.f32.gmra.mrb[0].mxu0 %v2297
      %v2464 = vpop.f32.mrb[0].mxu0
      %v2465 = vadd.f32 %v2285, %v2464
      %v2466 = vpop.f32.mrb[0].mxu0
      %2467 = vmatprep.mubr.f32.mxu0 0.0
      %2468 = vmatmul.mubr.f32.gmra.mrb[0].mxu0 %v2300
      %v2469 = vpop.f32.mrb[0].mxu0
      %v2470 = vadd.f32 %v2285, %v2469
      %v2471 = vpop.f32.mrb[0].mxu0
      %2472 = vmatprep.mubr.f32.mxu0 0.0
      %2473 = vmatmul.mubr.f32.gmra.mrb[0].mxu0 %v2303
      %v2474 = vpop.f32.mrb[0].mxu0
      %v2475 = vadd.f32 %v2285, %v2474
      %v2476 = vpop.f32.mrb[0].mxu0
      %2477 = vmatprep.mubr.f32.mxu0 0.0
      %2478 = vmatmul.mubr.f32.gmra.mrb[0].mxu0 %v2306
      %v2479 = vpop.f32.mrb[0].mxu0
      %v2480 = vadd.f32 %v2285, %v2479
      %v2481 = vpop.f32.mrb[0].mxu0
      %2482 = vmatprep.mubr.f32.mxu0 0.0
      %2483 = vmatmul.mubr.f32.gmra.mrb[0].mxu0 %v2309
      %v2484 = vpop.f32.mrb[0].mxu0
      %v2485 = vadd.f32 %v2285, %v2484
      %v2486 = vpop.f32.mrb[0].mxu0
      %2487 = vmatprep.mubr.f32.mxu0 0.0
      %2488 = vmatmul.mubr.f32.gmra.mrb[0].mxu0 %v2312
      %v2489 = vpop.f32.mrb[0].mxu0
      %v2490 = vadd.f32 %v2285, %v2489
      %v2491 = vpop.f32.mrb[0].mxu0
      %2492 = vmatprep.mubr.f32.mxu0 0.0
      %2493 = vmatmul.mubr.f32.gmra.mrb[0].mxu0 %v2315
      %v2494 = vpop.f32.mrb[0].mxu0
      %v2495 = vadd.f32 %v2285, %v2494
      %v2496 = vpop.f32.mrb[0].mxu0
      %2497 = vmatprep.mubr.f32.mxu0 0.0
      %2498 = vmatmul.mubr.f32.gmra.mrb[0].mxu0 %v2318
      %v2499 = vpop.f32.mrb[0].mxu0
      %v2500 = vadd.f32 %v2285, %v2499
      %v2501 = vpop.f32.mrb[0].mxu0
      %2502 = vmatprep.mubr.f32.mxu0 0.0
      %2503 = vmatmul.mubr.f32.gmra.mrb[0].mxu0 %v2321
      %v2504 = vpop.f32.mrb[0].mxu0
      %v2505 = vadd.f32 %v2285, %v2504
      %v2506 = vpop.f32.mrb[0].mxu0
      %2507 = vmatprep.mubr.f32.mxu0 0.0
      %2508 = vmatmul.mubr.f32.gmra.mrb[0].mxu0 %v2324
      %v2509 = vpop.f32.mrb[0].mxu0
      %v2510 = vadd.f32 %v2285, %v2509
      %v2511 = vpop.f32.mrb[0].mxu0
      %2512 = vmatprep.mubr.f32.mxu0 0.0
      %2513 = vmatmul.mubr.f32.gmra.mrb[0].mxu0 %v2327
      %v2514 = vpop.f32.mrb[0].mxu0
      %v2515 = vadd.f32 %v2285, %v2514
      %v2516 = vpop.f32.mrb[0].mxu0
      %2517 = vmatprep.mubr.f32.mxu0 0.0
      %2518 = vmatmul.mubr.f32.gmra.mrb[0].mxu0 %v2330
      %v2519 = vpop.f32.mrb[0].mxu0
      %v2520 = vadd.f32 %v2285, %v2519
      %v2521 = vpop.f32.mrb[0].mxu0
      %2522 = vmatprep.mubr.f32.mxu0 0.0
      %2523 = vmatmul.mubr.f32.gmra.mrb[0].mxu0 %v2333
      %v2524 = vpop.f32.mrb[0].mxu0
      %v2525 = vadd.f32 %v2285, %v2524
      %v2526 = vpop.f32.mrb[0].mxu0
      %2527 = vmatprep.mubr.f32.mxu0 0.0
      %2528 = vmatmul.mubr.f32.gmra.mrb[0].mxu0 %v2336
      %v2529 = vpop.f32.mrb[0].mxu0
      %v2530 = vadd.f32 %v2285, %v2529
      %v2531 = vpop.f32.mrb[0].mxu0
      %2532 = vmatprep.mubr.f32.mxu0 0.0
      %2533 = vmatmul.mubr.f32.gmra.mrb[0].mxu0 %v2339
      %v2534 = vpop.f32.mrb[0].mxu0
      %v2535 = vadd.f32 %v2285, %v2534
      %v2536 = vpop.f32.mrb[0].mxu0
      %2537 = vmatprep.mubr.f32.mxu0 0.0
      %2538 = vmatmul.mubr.f32.gmra.mrb[0].mxu0 %v2342
      %v2539 = vpop.f32.mrb[0].mxu0
      %v2540 = vadd.f32 %v2285, %v2539
      %v2541 = vpop.f32.mrb[0].mxu0
      %2542 = vmatprep.mubr.f32.mxu0 0.0
      %2543 = vmatmul.mubr.f32.gmra.mrb[0].mxu0 %v2345
      %v2544 = vpop.f32.mrb[0].mxu0
      %v2545 = vadd.f32 %v2285, %v2544
      %v2546 = vpop.f32.mrb[0].mxu0
      %2547 = vmatprep.mubr.f32.mxu0 0.0
      %2548 = vmatmul.mubr.f32.gmra.mrb[0].mxu0 %v2348
      %v2549 = vpop.f32.mrb[0].mxu0
      %v2550 = vadd.f32 %v2285, %v2549
      %v2551 = vpop.f32.mrb[0].mxu0
      %2552 = vmatprep.mubr.f32.mxu0 0.0
      %2553 = vmatmul.mubr.f32.gmra.mrb[0].mxu0 %v2351
      %v2554 = vpop.f32.mrb[0].mxu0
      %v2555 = vadd.f32 %v2285, %v2554
      %v2556 = vpop.f32.mrb[0].mxu0
      %2557 = vmatprep.mubr.f32.mxu0 0.0
      %2558 = vmatmul.mubr.f32.gmra.mrb[0].mxu0 %v2354
      %v2559 = vpop.f32.mrb[0].mxu0
      %v2560 = vadd.f32 %v2285, %v2559
      %v2561 = vpop.f32.mrb[0].mxu0
      %2562 = vmatprep.mubr.f32.mxu0 0.0
      %2563 = vmatmul.mubr.f32.gmra.mrb[0].mxu0 %v2357
      %v2564 = vpop.f32.mrb[0].mxu0
      %v2565 = vadd.f32 %v2285, %v2564
      %v2566 = vpop.f32.mrb[0].mxu0
      %2567 = vmatprep.mubr.f32.mxu0 0.0
      %2568 = vmatmul.mubr.f32.gmra.mrb[0].mxu0 %v2360
      %v2569 = vpop.f32.mrb[0].mxu0
      %v2570 = vadd.f32 %v2285, %v2569
      %v2571 = vpop.f32.mrb[0].mxu0
      %2572 = vmatprep.mubr.f32.mxu0 0.0
      %2573 = vmatmul.mubr.f32.gmra.mrb[0].mxu0 %v2363
      %v2574 = vpop.f32.mrb[0].mxu0
      %v2575 = vadd.f32 %v2285, %v2574
      %v2576 = vpop.f32.mrb[0].mxu0
      %2577 = vmatprep.mubr.f32.mxu0 0.0
      %2578 = vmatmul.mubr.f32.gmra.mrb[0].mxu0 %v2366
      %v2579 = vpop.f32.mrb[0].mxu0
      %v2580 = vadd.f32 %v2285, %v2579
      %v2581 = vpop.f32.mrb[0].mxu0
      %2582 = vmatprep.mubr.f32.mxu0 0.0
      %2583 = vmatmul.mubr.f32.gmra.mrb[0].mxu0 %v2369
      %v2584 = vpop.f32.mrb[0].mxu0
      %v2585 = vadd.f32 %v2285, %v2584
      %v2586 = vpop.f32.mrb[0].mxu0
      %2587 = vmatprep.mubr.f32.mxu0 0.0
      %2588 = vmatmul.mubr.f32.gmra.mrb[0].mxu0 %v2372
      %v2589 = vpop.f32.mrb[0].mxu0
      %v2590 = vadd.f32 %v2285, %v2589
      %v2591 = vpop.f32.mrb[0].mxu0
      %2592 = vmatprep.mubr.f32.mxu0 0.0
      %2593 = vmatmul.mubr.f32.gmra.mrb[0].mxu0 %v2375
      %v2594 = vpop.f32.mrb[0].mxu0
      %v2595 = vadd.f32 %v2285, %v2594
      %v2596 = vpop.f32.mrb[0].mxu0
      %2597 = vmatprep.mubr.f32.mxu0 0.0
      %2598 = vmatmul.mubr.f32.gmra.mrb[0].mxu0 %v2378
      %v2599 = vpop.f32.mrb[0].mxu0
      %v2600 = vadd.f32 %v2285, %v2599
      %v2601 = vpop.f32.mrb[0].mxu0
      %2602 = vmatprep.mubr.f32.mxu0 0.0
      %2603 = vmatmul.mubr.f32.gmra.mrb[0].mxu0 %v2381
      %v2604 = vpop.f32.mrb[0].mxu0
      %v2605 = vadd.f32 %v2285, %v2604
      %v2606 = vpop.f32.mrb[0].mxu0
      %2607 = vdwg.mxu0
      %v2608 = vmax.f32 %v2450, 0.0
      %v2609 = vmax.f32 %v2455, 0.0
      %v2610 = vmax.f32 %v2460, 0.0
      %v2611 = vmax.f32 %v2465, 0.0
      %v2612 = vmax.f32 %v2470, 0.0
      %v2613 = vmax.f32 %v2475, 0.0
      %v2614 = vmax.f32 %v2480, 0.0
      %v2615 = vmax.f32 %v2485, 0.0
      %v2616 = vmax.f32 %v2490, 0.0
      %v2617 = vmax.f32 %v2495, 0.0
      %v2618 = vmax.f32 %v2500, 0.0
      %v2619 = vmax.f32 %v2505, 0.0
      %v2620 = vmax.f32 %v2510, 0.0
      %v2621 = vmax.f32 %v2515, 0.0
      %v2622 = vmax.f32 %v2520, 0.0
      %v2623 = vmax.f32 %v2525, 0.0
      %v2624 = vmax.f32 %v2530, 0.0
      %v2625 = vmax.f32 %v2535, 0.0
      %v2626 = vmax.f32 %v2540, 0.0
      %v2627 = vmax.f32 %v2545, 0.0
      %v2628 = vmax.f32 %v2550, 0.0
      %v2629 = vmax.f32 %v2555, 0.0
      %v2630 = vmax.f32 %v2560, 0.0
      %v2631 = vmax.f32 %v2565, 0.0
      %v2632 = vmax.f32 %v2570, 0.0
      %v2633 = vmax.f32 %v2575, 0.0
      %v2634 = vmax.f32 %v2580, 0.0
      %v2635 = vmax.f32 %v2585, 0.0
      %v2636 = vmax.f32 %v2590, 0.0
      %v2637 = vmax.f32 %v2595, 0.0
      %v2638 = vmax.f32 %v2600, 0.0
      %v2639 = vmax.f32 %v2605, 0.0
      %s2640 = scalar_lea.vmem [#allocation2], 24
      %2641 = vst.msk [vmem:[%s2640 + $0x1] sm:$0xff] %vm530, %v2608
      %2642 = vst.msk [vmem:[%s2640 + $0x9] sm:$0xff] %vm530, %v2609
      %2643 = vst.msk [vmem:[%s2640 + $0x19] sm:$0xff] %vm530, %v2610
      %2644 = vst.msk [vmem:[%s2640 + $0x21] sm:$0xff] %vm530, %v2611
      %2645 = vst.msk [vmem:[%s2640 + $0x31] sm:$0xff] %vm530, %v2612
      %2646 = vst.msk [vmem:[%s2640 + $0x39] sm:$0xff] %vm530, %v2613
      %2647 = vst.msk [vmem:[%s2640 + $0x49] sm:$0xff] %vm530, %v2614
      %2648 = vst.msk [vmem:[%s2640 + $0x51] sm:$0xff] %vm530, %v2615
      %2649 = vst.msk [vmem:[%s2640 + $0x61] sm:$0xff] %vm530, %v2616
      %2650 = vst.msk [vmem:[%s2640 + $0x69] sm:$0xff] %vm530, %v2617
      %2651 = vst.msk [vmem:[%s2640 + $0x79] sm:$0xff] %vm530, %v2618
      %2652 = vst.msk [vmem:[%s2640 + $0x81] sm:$0xff] %vm530, %v2619
      %2653 = vst.msk [vmem:[%s2640 + $0x91] sm:$0xff] %vm530, %v2620
      %2654 = vst.msk [vmem:[%s2640 + $0x99] sm:$0xff] %vm530, %v2621
      %2655 = vst.msk [vmem:[%s2640 + $0xa9] sm:$0xff] %vm530, %v2622
      %2656 = vst.msk [vmem:[%s2640 + $0xb1] sm:$0xff] %vm530, %v2623
      %2657 = vst.msk [vmem:[%s2640 + $0xc1] sm:$0xff] %vm530, %v2624
      %2658 = vst.msk [vmem:[%s2640 + $0xc9] sm:$0xff] %vm530, %v2625
      %2659 = vst.msk [vmem:[%s2640 + $0xd9] sm:$0xff] %vm530, %v2626
      %2660 = vst.msk [vmem:[%s2640 + $0xe1] sm:$0xff] %vm530, %v2627
      %2661 = vst.msk [vmem:[%s2640 + $0xf1] sm:$0xff] %vm530, %v2628
      %2662 = vst.msk [vmem:[%s2640 + $0xf9] sm:$0xff] %vm530, %v2629
      %2663 = vst.msk [vmem:[%s2640 + $0x109] sm:$0xff] %vm530, %v2630
      %2664 = vst.msk [vmem:[%s2640 + $0x111] sm:$0xff] %vm530, %v2631
      %2665 = vst.msk [vmem:[%s2640 + $0x121] sm:$0xff] %vm530, %v2632
      %2666 = vst.msk [vmem:[%s2640 + $0x129] sm:$0xff] %vm530, %v2633
      %2667 = vst.msk [vmem:[%s2640 + $0x139] sm:$0xff] %vm530, %v2634
      %2668 = vst.msk [vmem:[%s2640 + $0x141] sm:$0xff] %vm530, %v2635
      %2669 = vst.msk [vmem:[%s2640 + $0x151] sm:$0xff] %vm530, %v2636
      %2670 = vst.msk [vmem:[%s2640 + $0x159] sm:$0xff] %vm530, %v2637
      %2671 = vst.msk [vmem:[%s2640 + $0x169] sm:$0xff] %vm530, %v2638
      %2672 = vst.msk [vmem:[%s2640 + $0x171] sm:$0xff] %vm530, %v2639
      %v2673 = vld [vmem:[#allocation2] sm:$0xff]
      %v2674 = vld [vmem:[#allocation2 + $0x8] sm:$0xff]
      %v2675 = vld [vmem:[#allocation2 + $0x10] sm:$0x3]
      %v2676 = vld [vmem:[#allocation2 + $0x18] sm:$0xff]
      %v2677 = vld [vmem:[#allocation2 + $0x20] sm:$0xff]
      %v2678 = vld [vmem:[#allocation2 + $0x28] sm:$0x3]
      %v2679 = vld [vmem:[#allocation2 + $0x30] sm:$0xff]
      %v2680 = vld [vmem:[#allocation2 + $0x38] sm:$0xff]
      %v2681 = vld [vmem:[#allocation2 + $0x40] sm:$0x3]
      %v2682 = vld [vmem:[#allocation2 + $0x48] sm:$0xff]
      %v2683 = vld [vmem:[#allocation2 + $0x50] sm:$0xff]
      %v2684 = vld [vmem:[#allocation2 + $0x58] sm:$0x3]
      %v2685 = vld [vmem:[#allocation2 + $0x60] sm:$0xff]
      %v2686 = vld [vmem:[#allocation2 + $0x68] sm:$0xff]
      %v2687 = vld [vmem:[#allocation2 + $0x70] sm:$0x3]
      %v2688 = vld [vmem:[#allocation2 + $0x78] sm:$0xff]
      %v2689 = vld [vmem:[#allocation2 + $0x80] sm:$0xff]
      %v2690 = vld [vmem:[#allocation2 + $0x88] sm:$0x3]
      %v2691 = vld [vmem:[#allocation2 + $0x90] sm:$0xff]
      %v2692 = vld [vmem:[#allocation2 + $0x98] sm:$0xff]
      %v2693 = vld [vmem:[#allocation2 + $0xa0] sm:$0x3]
      %v2694 = vld [vmem:[#allocation2 + $0xa8] sm:$0xff]
      %v2695 = vld [vmem:[#allocation2 + $0xb0] sm:$0xff]
      %v2696 = vld [vmem:[#allocation2 + $0xb8] sm:$0x3]
      %v2697 = vld [vmem:[#allocation2 + $0xc0] sm:$0xff]
      %v2698 = vld [vmem:[#allocation2 + $0xc8] sm:$0xff]
      %v2699 = vld [vmem:[#allocation2 + $0xd0] sm:$0x3]
      %v2700 = vld [vmem:[#allocation2 + $0xd8] sm:$0xff]
      %v2701 = vld [vmem:[#allocation2 + $0xe0] sm:$0xff]
      %v2702 = vld [vmem:[#allocation2 + $0xe8] sm:$0x3]
      %v2703 = vld [vmem:[#allocation2 + $0xf0] sm:$0xff]
      %v2704 = vld [vmem:[#allocation2 + $0xf8] sm:$0xff]
      %v2705 = vld [vmem:[#allocation2 + $0x100] sm:$0x3]
      %v2706 = vld [vmem:[#allocation2 + $0x108] sm:$0xff]
      %v2707 = vld [vmem:[#allocation2 + $0x110] sm:$0xff]
      %v2708 = vld [vmem:[#allocation2 + $0x118] sm:$0x3]
      %v2709 = vld [vmem:[#allocation2 + $0x120] sm:$0xff]
      %v2710 = vld [vmem:[#allocation2 + $0x128] sm:$0xff]
      %v2711 = vld [vmem:[#allocation2 + $0x130] sm:$0x3]
      %v2712 = vld [vmem:[#allocation2 + $0x138] sm:$0xff]
      %v2713 = vld [vmem:[#allocation2 + $0x140] sm:$0xff]
      %v2714 = vld [vmem:[#allocation2 + $0x148] sm:$0x3]
      %v2715 = vld [vmem:[#allocation2 + $0x150] sm:$0xff]
      %v2716 = vld [vmem:[#allocation2 + $0x158] sm:$0xff]
      %v2717 = vld [vmem:[#allocation2 + $0x160] sm:$0x3]
      %v2718 = vld [vmem:[#allocation2 + $0x168] sm:$0xff]
      %v2719 = vld [vmem:[#allocation2 + $0x170] sm:$0xff]
      %v2720 = vld [vmem:[#allocation2 + $0x178] sm:$0x3]
      %v2721 = vld [vmem:[#allocation2 + $0x180] sm:$0xff]
      %v2722 = vld [vmem:[#allocation2 + $0x188] sm:$0xff]
      %v2723 = vld [vmem:[#allocation2 + $0x190] sm:$0x3]
      %v2724 = vld [vmem:[#allocation2 + $0x198] sm:$0xff]
      %v2725 = vld [vmem:[#allocation2 + $0x1a0] sm:$0xff]
      %v2726 = vld [vmem:[#allocation2 + $0x1a8] sm:$0x3]
      %v2727 = vld [vmem:[%s8] sm:$0xff]
      %v2728 = vld [vmem:[%s8 + $0x8] sm:$0xff]
      %v2729 = vld [vmem:[%s8 + $0x10] sm:$0xff]
      %v2730 = vld [vmem:[%s8 + $0x18] sm:$0xff]
      %v2731 = vld [vmem:[%s8 + $0x20] sm:$0xff]
      %v2732 = vld [vmem:[%s8 + $0x28] sm:$0xff]
      %v2733 = vld [vmem:[%s8 + $0x30] sm:$0xff]
      %v2734 = vld [vmem:[%s8 + $0x38] sm:$0xff]
      %v2735 = vld [vmem:[%s8 + $0x40] sm:$0xff]
      %v2736 = vld [vmem:[%s8 + $0x48] sm:$0xff]
      %v2737 = vld [vmem:[%s8 + $0x50] sm:$0xff]
      %v2738 = vld [vmem:[%s8 + $0x58] sm:$0xff]
      %v2739 = vld [vmem:[%s8 + $0x60] sm:$0xff]
      %v2740 = vld [vmem:[%s8 + $0x68] sm:$0xff]
      %v2741 = vld [vmem:[%s8 + $0x70] sm:$0xff]
      %v2742 = vld [vmem:[%s8 + $0x78] sm:$0xff]
      %v2743 = vld [vmem:[%s8 + $0x80] sm:$0xff]
      %v2744 = vld [vmem:[%s8 + $0x88] sm:$0xff]
      %v2745 = vld [vmem:[%s8 + $0x90] sm:$0xff]
      %v2746 = vld [vmem:[%s8 + $0x98] sm:$0xff]
      %v2747 = vld [vmem:[%s8 + $0xa0] sm:$0xff]
      %v2748 = vld [vmem:[%s8 + $0xa8] sm:$0xff]
      %v2749 = vld [vmem:[%s8 + $0xb0] sm:$0xff]
      %v2750 = vld [vmem:[%s8 + $0xb8] sm:$0xff]
      %v2751 = vld [vmem:[%s8 + $0xc0] sm:$0xff]
      %v2752 = vld [vmem:[%s8 + $0xc8] sm:$0xff]
      %v2753 = vld [vmem:[%s8 + $0xd0] sm:$0xff]
      %v2754 = vld [vmem:[%s8 + $0xd8] sm:$0xff]
      %v2755 = vld [vmem:[%s8 + $0xe0] sm:$0xff]
      %v2756 = vld [vmem:[%s8 + $0xe8] sm:$0xff]
      %v2757 = vld [vmem:[%s8 + $0xf0] sm:$0xff]
      %v2758 = vld [vmem:[%s8 + $0xf8] sm:$0xff]
      %v2759 = vld [vmem:[%s8 + $0x100] sm:$0xff]
      %v2760 = vld [vmem:[%s8 + $0x108] sm:$0xff]
      %v2761 = vld [vmem:[%s8 + $0x110] sm:$0xff]
      %v2762 = vld [vmem:[%s8 + $0x118] sm:$0xff]
      %v2763 = vld [vmem:[%s9] sm:$0x1]
      %v2812 = vrot.slane %v2673, 1
      %v2813 = vrot.slane %v2674, 1
      %v2814 = vsel %vm692, %v2812, %v2813
      %v2815 = vrot.slane %v2675, 1
      %v2816 = vsel %vm692, %v2813, %v2815
      %v2817 = vrot.slane %v2676, 1
      %v2818 = vrot.slane %v2677, 1
      %v2819 = vsel %vm692, %v2817, %v2818
      %v2820 = vrot.slane %v2678, 1
      %v2821 = vsel %vm692, %v2818, %v2820
      %v2822 = vrot.slane %v2679, 1
      %v2823 = vrot.slane %v2680, 1
      %v2824 = vsel %vm692, %v2822, %v2823
      %v2825 = vrot.slane %v2681, 1
      %v2826 = vsel %vm692, %v2823, %v2825
      %v2827 = vrot.slane %v2682, 1
      %v2828 = vrot.slane %v2683, 1
      %v2829 = vsel %vm692, %v2827, %v2828
      %v2830 = vrot.slane %v2684, 1
      %v2831 = vsel %vm692, %v2828, %v2830
      %v2832 = vrot.slane %v2685, 1
      %v2833 = vrot.slane %v2686, 1
      %v2834 = vsel %vm692, %v2832, %v2833
      %v2835 = vrot.slane %v2687, 1
      %v2836 = vsel %vm692, %v2833, %v2835
      %v2837 = vrot.slane %v2688, 1
      %v2838 = vrot.slane %v2689, 1
      %v2839 = vsel %vm692, %v2837, %v2838
      %v2840 = vrot.slane %v2690, 1
      %v2841 = vsel %vm692, %v2838, %v2840
      %v2842 = vrot.slane %v2691, 1
      %v2843 = vrot.slane %v2692, 1
      %v2844 = vsel %vm692, %v2842, %v2843
      %v2845 = vrot.slane %v2693, 1
      %v2846 = vsel %vm692, %v2843, %v2845
      %v2847 = vrot.slane %v2694, 1
      %v2848 = vrot.slane %v2695, 1
      %v2849 = vsel %vm692, %v2847, %v2848
      %v2850 = vrot.slane %v2696, 1
      %v2851 = vsel %vm692, %v2848, %v2850
      %v2852 = vrot.slane %v2697, 1
      %v2853 = vrot.slane %v2698, 1
      %v2854 = vsel %vm692, %v2852, %v2853
      %v2855 = vrot.slane %v2699, 1
      %v2856 = vsel %vm692, %v2853, %v2855
      %v2857 = vrot.slane %v2700, 1
      %v2858 = vrot.slane %v2701, 1
      %v2859 = vsel %vm692, %v2857, %v2858
      %v2860 = vrot.slane %v2702, 1
      %v2861 = vsel %vm692, %v2858, %v2860
      %v2862 = vrot.slane %v2703, 1
      %v2863 = vrot.slane %v2704, 1
      %v2864 = vsel %vm692, %v2862, %v2863
      %v2865 = vrot.slane %v2705, 1
      %v2866 = vsel %vm692, %v2863, %v2865
      %v2867 = vrot.slane %v2706, 1
      %v2868 = vrot.slane %v2707, 1
      %v2869 = vsel %vm692, %v2867, %v2868
      %v2870 = vrot.slane %v2708, 1
      %v2871 = vsel %vm692, %v2868, %v2870
      %v2872 = vrot.slane %v2709, 1
      %v2873 = vrot.slane %v2710, 1
      %v2874 = vsel %vm692, %v2872, %v2873
      %v2875 = vrot.slane %v2711, 1
      %v2876 = vsel %vm692, %v2873, %v2875
      %v2877 = vrot.slane %v2712, 1
      %v2878 = vrot.slane %v2713, 1
      %v2879 = vsel %vm692, %v2877, %v2878
      %v2880 = vrot.slane %v2714, 1
      %v2881 = vsel %vm692, %v2878, %v2880
      %v2882 = vrot.slane %v2715, 1
      %v2883 = vrot.slane %v2716, 1
      %v2884 = vsel %vm692, %v2882, %v2883
      %v2885 = vrot.slane %v2717, 1
      %v2886 = vsel %vm692, %v2883, %v2885
      %v2887 = vrot.slane %v2718, 1
      %v2888 = vrot.slane %v2719, 1
      %v2889 = vsel %vm692, %v2887, %v2888
      %v2890 = vrot.slane %v2720, 1
      %v2891 = vsel %vm692, %v2888, %v2890
      %v2892 = vrot.slane %v2673, 2
      %v2893 = vrot.slane %v2674, 2
      %v2894 = vsel %vm773, %v2892, %v2893
      %v2895 = vrot.slane %v2675, 2
      %v2896 = vsel %vm773, %v2893, %v2895
      %v2897 = vrot.slane %v2676, 2
      %v2898 = vrot.slane %v2677, 2
      %v2899 = vsel %vm773, %v2897, %v2898
      %v2900 = vrot.slane %v2678, 2
      %v2901 = vsel %vm773, %v2898, %v2900
      %v2902 = vrot.slane %v2679, 2
      %v2903 = vrot.slane %v2680, 2
      %v2904 = vsel %vm773, %v2902, %v2903
      %v2905 = vrot.slane %v2681, 2
      %v2906 = vsel %vm773, %v2903, %v2905
      %v2907 = vrot.slane %v2682, 2
      %v2908 = vrot.slane %v2683, 2
      %v2909 = vsel %vm773, %v2907, %v2908
      %v2910 = vrot.slane %v2684, 2
      %v2911 = vsel %vm773, %v2908, %v2910
      %v2912 = vrot.slane %v2685, 2
      %v2913 = vrot.slane %v2686, 2
      %v2914 = vsel %vm773, %v2912, %v2913
      %v2915 = vrot.slane %v2687, 2
      %v2916 = vsel %vm773, %v2913, %v2915
      %v2917 = vrot.slane %v2688, 2
      %v2918 = vrot.slane %v2689, 2
      %v2919 = vsel %vm773, %v2917, %v2918
      %v2920 = vrot.slane %v2690, 2
      %v2921 = vsel %vm773, %v2918, %v2920
      %v2922 = vrot.slane %v2691, 2
      %v2923 = vrot.slane %v2692, 2
      %v2924 = vsel %vm773, %v2922, %v2923
      %v2925 = vrot.slane %v2693, 2
      %v2926 = vsel %vm773, %v2923, %v2925
      %v2927 = vrot.slane %v2694, 2
      %v2928 = vrot.slane %v2695, 2
      %v2929 = vsel %vm773, %v2927, %v2928
      %v2930 = vrot.slane %v2696, 2
      %v2931 = vsel %vm773, %v2928, %v2930
      %v2932 = vrot.slane %v2697, 2
      %v2933 = vrot.slane %v2698, 2
      %v2934 = vsel %vm773, %v2932, %v2933
      %v2935 = vrot.slane %v2699, 2
      %v2936 = vsel %vm773, %v2933, %v2935
      %v2937 = vrot.slane %v2700, 2
      %v2938 = vrot.slane %v2701, 2
      %v2939 = vsel %vm773, %v2937, %v2938
      %v2940 = vrot.slane %v2702, 2
      %v2941 = vsel %vm773, %v2938, %v2940
      %v2942 = vrot.slane %v2703, 2
      %v2943 = vrot.slane %v2704, 2
      %v2944 = vsel %vm773, %v2942, %v2943
      %v2945 = vrot.slane %v2705, 2
      %v2946 = vsel %vm773, %v2943, %v2945
      %v2947 = vrot.slane %v2706, 2
      %v2948 = vrot.slane %v2707, 2
      %v2949 = vsel %vm773, %v2947, %v2948
      %v2950 = vrot.slane %v2708, 2
      %v2951 = vsel %vm773, %v2948, %v2950
      %v2952 = vrot.slane %v2709, 2
      %v2953 = vrot.slane %v2710, 2
      %v2954 = vsel %vm773, %v2952, %v2953
      %v2955 = vrot.slane %v2711, 2
      %v2956 = vsel %vm773, %v2953, %v2955
      %v2957 = vrot.slane %v2712, 2
      %v2958 = vrot.slane %v2713, 2
      %v2959 = vsel %vm773, %v2957, %v2958
      %v2960 = vrot.slane %v2714, 2
      %v2961 = vsel %vm773, %v2958, %v2960
      %v2962 = vrot.slane %v2715, 2
      %v2963 = vrot.slane %v2716, 2
      %v2964 = vsel %vm773, %v2962, %v2963
      %v2965 = vrot.slane %v2717, 2
      %v2966 = vsel %vm773, %v2963, %v2965
      %v2967 = vrot.slane %v2718, 2
      %v2968 = vrot.slane %v2719, 2
      %v2969 = vsel %vm773, %v2967, %v2968
      %v2970 = vrot.slane %v2720, 2
      %v2971 = vsel %vm773, %v2968, %v2970
      %v2975 = vrot.slane %v2721, 1
      %v2976 = vrot.slane %v2722, 1
      %v2977 = vsel %vm692, %v2975, %v2976
      %v2978 = vrot.slane %v2723, 1
      %v2979 = vsel %vm692, %v2976, %v2978
      %v3012 = vrot.slane %v2721, 2
      %v3013 = vrot.slane %v2722, 2
      %v3014 = vsel %vm773, %v3012, %v3013
      %v3015 = vrot.slane %v2723, 2
      %v3016 = vsel %vm773, %v3013, %v3015
      %v3020 = vrot.slane %v2724, 1
      %v3021 = vrot.slane %v2725, 1
      %v3022 = vsel %vm692, %v3020, %v3021
      %v3023 = vrot.slane %v2726, 1
      %v3024 = vsel %vm692, %v3021, %v3023
      %v3025 = vrot.slane %v2724, 2
      %v3026 = vrot.slane %v2725, 2
      %v3027 = vsel %vm773, %v3025, %v3026
      %v3028 = vrot.slane %v2726, 2
      %v3029 = vsel %vm773, %v3026, %v3028
      %3030 = vrot.lane.b32.xlu0 %v2814, 32
      %v3031 = vpop.permute.xlu0 %3030
      %3032 = vrot.lane.b32.xlu0 %v2816, 32
      %v3033 = vpop.permute.xlu0 %3032
      %3034 = vrot.lane.b32.xlu0 %v2819, 32
      %v3035 = vpop.permute.xlu0 %3034
      %3036 = vrot.lane.b32.xlu0 %v2821, 32
      %v3037 = vpop.permute.xlu0 %3036
      %3038 = vrot.lane.b32.xlu0 %v2824, 32
      %v3039 = vpop.permute.xlu0 %3038
      %3040 = vrot.lane.b32.xlu0 %v2826, 32
      %v3041 = vpop.permute.xlu0 %3040
      %3042 = vrot.lane.b32.xlu0 %v2829, 32
      %v3043 = vpop.permute.xlu0 %3042
      %3044 = vrot.lane.b32.xlu0 %v2831, 32
      %v3045 = vpop.permute.xlu0 %3044
      %3046 = vrot.lane.b32.xlu0 %v2834, 32
      %v3047 = vpop.permute.xlu0 %3046
      %3048 = vrot.lane.b32.xlu0 %v2836, 32
      %v3049 = vpop.permute.xlu0 %3048
      %3050 = vrot.lane.b32.xlu0 %v2839, 32
      %v3051 = vpop.permute.xlu0 %3050
      %3052 = vrot.lane.b32.xlu0 %v2841, 32
      %v3053 = vpop.permute.xlu0 %3052
      %3054 = vrot.lane.b32.xlu0 %v2844, 32
      %v3055 = vpop.permute.xlu0 %3054
      %3056 = vrot.lane.b32.xlu0 %v2846, 32
      %v3057 = vpop.permute.xlu0 %3056
      %3058 = vrot.lane.b32.xlu0 %v2849, 32
      %v3059 = vpop.permute.xlu0 %3058
      %3060 = vrot.lane.b32.xlu0 %v2851, 32
      %v3061 = vpop.permute.xlu0 %3060
      %3062 = vrot.lane.b32.xlu0 %v2854, 32
      %v3063 = vpop.permute.xlu0 %3062
      %3064 = vrot.lane.b32.xlu0 %v2856, 32
      %v3065 = vpop.permute.xlu0 %3064
      %3066 = vrot.lane.b32.xlu0 %v2859, 32
      %v3067 = vpop.permute.xlu0 %3066
      %3068 = vrot.lane.b32.xlu0 %v2861, 32
      %v3069 = vpop.permute.xlu0 %3068
      %3070 = vrot.lane.b32.xlu0 %v2864, 32
      %v3071 = vpop.permute.xlu0 %3070
      %3072 = vrot.lane.b32.xlu0 %v2866, 32
      %v3073 = vpop.permute.xlu0 %3072
      %3074 = vrot.lane.b32.xlu0 %v2869, 32
      %v3075 = vpop.permute.xlu0 %3074
      %3076 = vrot.lane.b32.xlu0 %v2871, 32
      %v3077 = vpop.permute.xlu0 %3076
      %3078 = vrot.lane.b32.xlu0 %v2874, 32
      %v3079 = vpop.permute.xlu0 %3078
      %3080 = vrot.lane.b32.xlu0 %v2876, 32
      %v3081 = vpop.permute.xlu0 %3080
      %3082 = vrot.lane.b32.xlu0 %v2879, 32
      %v3083 = vpop.permute.xlu0 %3082
      %3084 = vrot.lane.b32.xlu0 %v2881, 32
      %v3085 = vpop.permute.xlu0 %3084
      %3086 = vrot.lane.b32.xlu0 %v2884, 32
      %v3087 = vpop.permute.xlu0 %3086
      %3088 = vrot.lane.b32.xlu0 %v2886, 32
      %v3089 = vpop.permute.xlu0 %3088
      %3090 = vrot.lane.b32.xlu0 %v2889, 32
      %v3091 = vpop.permute.xlu0 %3090
      %3092 = vrot.lane.b32.xlu0 %v2891, 32
      %v3093 = vpop.permute.xlu0 %3092
      %3126 = vrot.lane.b32.xlu0 %v2894, 64
      %v3127 = vpop.permute.xlu0 %3126
      %3128 = vrot.lane.b32.xlu0 %v2896, 64
      %v3129 = vpop.permute.xlu0 %3128
      %3130 = vrot.lane.b32.xlu0 %v2899, 64
      %v3131 = vpop.permute.xlu0 %3130
      %3132 = vrot.lane.b32.xlu0 %v2901, 64
      %v3133 = vpop.permute.xlu0 %3132
      %3134 = vrot.lane.b32.xlu0 %v2904, 64
      %v3135 = vpop.permute.xlu0 %3134
      %3136 = vrot.lane.b32.xlu0 %v2906, 64
      %v3137 = vpop.permute.xlu0 %3136
      %3138 = vrot.lane.b32.xlu0 %v2909, 64
      %v3139 = vpop.permute.xlu0 %3138
      %3140 = vrot.lane.b32.xlu0 %v2911, 64
      %v3141 = vpop.permute.xlu0 %3140
      %3142 = vrot.lane.b32.xlu0 %v2914, 64
      %v3143 = vpop.permute.xlu0 %3142
      %3144 = vrot.lane.b32.xlu0 %v2916, 64
      %v3145 = vpop.permute.xlu0 %3144
      %3146 = vrot.lane.b32.xlu0 %v2919, 64
      %v3147 = vpop.permute.xlu0 %3146
      %3148 = vrot.lane.b32.xlu0 %v2921, 64
      %v3149 = vpop.permute.xlu0 %3148
      %3150 = vrot.lane.b32.xlu0 %v2924, 64
      %v3151 = vpop.permute.xlu0 %3150
      %3152 = vrot.lane.b32.xlu0 %v2926, 64
      %v3153 = vpop.permute.xlu0 %3152
      %3154 = vrot.lane.b32.xlu0 %v2929, 64
      %v3155 = vpop.permute.xlu0 %3154
      %3156 = vrot.lane.b32.xlu0 %v2931, 64
      %v3157 = vpop.permute.xlu0 %3156
      %3158 = vrot.lane.b32.xlu0 %v2934, 64
      %v3159 = vpop.permute.xlu0 %3158
      %3160 = vrot.lane.b32.xlu0 %v2936, 64
      %v3161 = vpop.permute.xlu0 %3160
      %3162 = vrot.lane.b32.xlu0 %v2939, 64
      %v3163 = vpop.permute.xlu0 %3162
      %3164 = vrot.lane.b32.xlu0 %v2941, 64
      %v3165 = vpop.permute.xlu0 %3164
      %3166 = vrot.lane.b32.xlu0 %v2944, 64
      %v3167 = vpop.permute.xlu0 %3166
      %3168 = vrot.lane.b32.xlu0 %v2946, 64
      %v3169 = vpop.permute.xlu0 %3168
      %3170 = vrot.lane.b32.xlu0 %v2949, 64
      %v3171 = vpop.permute.xlu0 %3170
      %3172 = vrot.lane.b32.xlu0 %v2951, 64
      %v3173 = vpop.permute.xlu0 %3172
      %3174 = vrot.lane.b32.xlu0 %v2954, 64
      %v3175 = vpop.permute.xlu0 %3174
      %3176 = vrot.lane.b32.xlu0 %v2956, 64
      %v3177 = vpop.permute.xlu0 %3176
      %3178 = vrot.lane.b32.xlu0 %v2959, 64
      %v3179 = vpop.permute.xlu0 %3178
      %3180 = vrot.lane.b32.xlu0 %v2961, 64
      %v3181 = vpop.permute.xlu0 %3180
      %3182 = vrot.lane.b32.xlu0 %v2964, 64
      %v3183 = vpop.permute.xlu0 %3182
      %3184 = vrot.lane.b32.xlu0 %v2966, 64
      %v3185 = vpop.permute.xlu0 %3184
      %3186 = vrot.lane.b32.xlu0 %v2969, 64
      %v3187 = vpop.permute.xlu0 %3186
      %3188 = vrot.lane.b32.xlu0 %v2971, 64
      %v3189 = vpop.permute.xlu0 %3188
      %3222 = vrot.lane.b32.xlu0 %v2676, 96
      %v3223 = vpop.permute.xlu0 %3222
      %3224 = vrot.lane.b32.xlu0 %v2677, 96
      %v3225 = vpop.permute.xlu0 %3224
      %3226 = vrot.lane.b32.xlu0 %v2679, 96
      %v3227 = vpop.permute.xlu0 %3226
      %3228 = vrot.lane.b32.xlu0 %v2680, 96
      %v3229 = vpop.permute.xlu0 %3228
      %3230 = vrot.lane.b32.xlu0 %v2682, 96
      %v3231 = vpop.permute.xlu0 %3230
      %3232 = vrot.lane.b32.xlu0 %v2683, 96
      %v3233 = vpop.permute.xlu0 %3232
      %3234 = vrot.lane.b32.xlu0 %v2685, 96
      %v3235 = vpop.permute.xlu0 %3234
      %3236 = vrot.lane.b32.xlu0 %v2686, 96
      %v3237 = vpop.permute.xlu0 %3236
      %3238 = vrot.lane.b32.xlu0 %v2688, 96
      %v3239 = vpop.permute.xlu0 %3238
      %3240 = vrot.lane.b32.xlu0 %v2689, 96
      %v3241 = vpop.permute.xlu0 %3240
      %3242 = vrot.lane.b32.xlu0 %v2691, 96
      %v3243 = vpop.permute.xlu0 %3242
      %3244 = vrot.lane.b32.xlu0 %v2692, 96
      %v3245 = vpop.permute.xlu0 %3244
      %3246 = vrot.lane.b32.xlu0 %v2694, 96
      %v3247 = vpop.permute.xlu0 %3246
      %3248 = vrot.lane.b32.xlu0 %v2695, 96
      %v3249 = vpop.permute.xlu0 %3248
      %3250 = vrot.lane.b32.xlu0 %v2697, 96
      %v3251 = vpop.permute.xlu0 %3250
      %3252 = vrot.lane.b32.xlu0 %v2698, 96
      %v3253 = vpop.permute.xlu0 %3252
      %3254 = vrot.lane.b32.xlu0 %v2700, 96
      %v3255 = vpop.permute.xlu0 %3254
      %3256 = vrot.lane.b32.xlu0 %v2701, 96
      %v3257 = vpop.permute.xlu0 %3256
      %3258 = vrot.lane.b32.xlu0 %v2703, 96
      %v3259 = vpop.permute.xlu0 %3258
      %3260 = vrot.lane.b32.xlu0 %v2704, 96
      %v3261 = vpop.permute.xlu0 %3260
      %3262 = vrot.lane.b32.xlu0 %v2706, 96
      %v3263 = vpop.permute.xlu0 %3262
      %3264 = vrot.lane.b32.xlu0 %v2707, 96
      %v3265 = vpop.permute.xlu0 %3264
      %3266 = vrot.lane.b32.xlu0 %v2709, 96
      %v3267 = vpop.permute.xlu0 %3266
      %3268 = vrot.lane.b32.xlu0 %v2710, 96
      %v3269 = vpop.permute.xlu0 %3268
      %3270 = vrot.lane.b32.xlu0 %v2712, 96
      %v3271 = vpop.permute.xlu0 %3270
      %3272 = vrot.lane.b32.xlu0 %v2713, 96
      %v3273 = vpop.permute.xlu0 %3272
      %3274 = vrot.lane.b32.xlu0 %v2715, 96
      %v3275 = vpop.permute.xlu0 %3274
      %3276 = vrot.lane.b32.xlu0 %v2716, 96
      %v3277 = vpop.permute.xlu0 %3276
      %3278 = vrot.lane.b32.xlu0 %v2718, 96
      %v3279 = vpop.permute.xlu0 %3278
      %3280 = vrot.lane.b32.xlu0 %v2719, 96
      %v3281 = vpop.permute.xlu0 %3280
      %3282 = vrot.lane.b32.xlu0 %v2721, 96
      %v3283 = vpop.permute.xlu0 %3282
      %3284 = vrot.lane.b32.xlu0 %v2722, 96
      %v3285 = vpop.permute.xlu0 %3284
      %3318 = vrot.lane.b32.xlu0 %v2899, 32
      %v3319 = vpop.permute.xlu0 %3318
      %3320 = vrot.lane.b32.xlu0 %v2901, 32
      %v3321 = vpop.permute.xlu0 %3320
      %3322 = vrot.lane.b32.xlu0 %v2904, 32
      %v3323 = vpop.permute.xlu0 %3322
      %3324 = vrot.lane.b32.xlu0 %v2906, 32
      %v3325 = vpop.permute.xlu0 %3324
      %3326 = vrot.lane.b32.xlu0 %v2909, 32
      %v3327 = vpop.permute.xlu0 %3326
      %3328 = vrot.lane.b32.xlu0 %v2911, 32
      %v3329 = vpop.permute.xlu0 %3328
      %3330 = vrot.lane.b32.xlu0 %v2914, 32
      %v3331 = vpop.permute.xlu0 %3330
      %3332 = vrot.lane.b32.xlu0 %v2916, 32
      %v3333 = vpop.permute.xlu0 %3332
      %3334 = vrot.lane.b32.xlu0 %v2919, 32
      %v3335 = vpop.permute.xlu0 %3334
      %3336 = vrot.lane.b32.xlu0 %v2921, 32
      %v3337 = vpop.permute.xlu0 %3336
      %3338 = vrot.lane.b32.xlu0 %v2924, 32
      %v3339 = vpop.permute.xlu0 %3338
      %3340 = vrot.lane.b32.xlu0 %v2926, 32
      %v3341 = vpop.permute.xlu0 %3340
      %3342 = vrot.lane.b32.xlu0 %v2929, 32
      %v3343 = vpop.permute.xlu0 %3342
      %3344 = vrot.lane.b32.xlu0 %v2931, 32
      %v3345 = vpop.permute.xlu0 %3344
      %3346 = vrot.lane.b32.xlu0 %v2934, 32
      %v3347 = vpop.permute.xlu0 %3346
      %3348 = vrot.lane.b32.xlu0 %v2936, 32
      %v3349 = vpop.permute.xlu0 %3348
      %3350 = vrot.lane.b32.xlu0 %v2939, 32
      %v3351 = vpop.permute.xlu0 %3350
      %3352 = vrot.lane.b32.xlu0 %v2941, 32
      %v3353 = vpop.permute.xlu0 %3352
      %3354 = vrot.lane.b32.xlu0 %v2944, 32
      %v3355 = vpop.permute.xlu0 %3354
      %3356 = vrot.lane.b32.xlu0 %v2946, 32
      %v3357 = vpop.permute.xlu0 %3356
      %3358 = vrot.lane.b32.xlu0 %v2949, 32
      %v3359 = vpop.permute.xlu0 %3358
      %3360 = vrot.lane.b32.xlu0 %v2951, 32
      %v3361 = vpop.permute.xlu0 %3360
      %3362 = vrot.lane.b32.xlu0 %v2954, 32
      %v3363 = vpop.permute.xlu0 %3362
      %3364 = vrot.lane.b32.xlu0 %v2956, 32
      %v3365 = vpop.permute.xlu0 %3364
      %3366 = vrot.lane.b32.xlu0 %v2959, 32
      %v3367 = vpop.permute.xlu0 %3366
      %3368 = vrot.lane.b32.xlu0 %v2961, 32
      %v3369 = vpop.permute.xlu0 %3368
      %3370 = vrot.lane.b32.xlu0 %v2964, 32
      %v3371 = vpop.permute.xlu0 %3370
      %3372 = vrot.lane.b32.xlu0 %v2966, 32
      %v3373 = vpop.permute.xlu0 %3372
      %3374 = vrot.lane.b32.xlu0 %v2969, 32
      %v3375 = vpop.permute.xlu0 %3374
      %3376 = vrot.lane.b32.xlu0 %v2971, 32
      %v3377 = vpop.permute.xlu0 %3376
      %3378 = vrot.lane.b32.xlu0 %v3014, 32
      %v3379 = vpop.permute.xlu0 %3378
      %3380 = vrot.lane.b32.xlu0 %v3016, 32
      %v3381 = vpop.permute.xlu0 %3380
      %3414 = vrot.lane.b32.xlu0 %v2679, 64
      %v3415 = vpop.permute.xlu0 %3414
      %3416 = vrot.lane.b32.xlu0 %v2680, 64
      %v3417 = vpop.permute.xlu0 %3416
      %3418 = vrot.lane.b32.xlu0 %v2682, 64
      %v3419 = vpop.permute.xlu0 %3418
      %3420 = vrot.lane.b32.xlu0 %v2683, 64
      %v3421 = vpop.permute.xlu0 %3420
      %3422 = vrot.lane.b32.xlu0 %v2685, 64
      %v3423 = vpop.permute.xlu0 %3422
      %3424 = vrot.lane.b32.xlu0 %v2686, 64
      %v3425 = vpop.permute.xlu0 %3424
      %3426 = vrot.lane.b32.xlu0 %v2688, 64
      %v3427 = vpop.permute.xlu0 %3426
      %3428 = vrot.lane.b32.xlu0 %v2689, 64
      %v3429 = vpop.permute.xlu0 %3428
      %3430 = vrot.lane.b32.xlu0 %v2691, 64
      %v3431 = vpop.permute.xlu0 %3430
      %3432 = vrot.lane.b32.xlu0 %v2692, 64
      %v3433 = vpop.permute.xlu0 %3432
      %3434 = vrot.lane.b32.xlu0 %v2694, 64
      %v3435 = vpop.permute.xlu0 %3434
      %3436 = vrot.lane.b32.xlu0 %v2695, 64
      %v3437 = vpop.permute.xlu0 %3436
      %3438 = vrot.lane.b32.xlu0 %v2697, 64
      %v3439 = vpop.permute.xlu0 %3438
      %3440 = vrot.lane.b32.xlu0 %v2698, 64
      %v3441 = vpop.permute.xlu0 %3440
      %3442 = vrot.lane.b32.xlu0 %v2700, 64
      %v3443 = vpop.permute.xlu0 %3442
      %3444 = vrot.lane.b32.xlu0 %v2701, 64
      %v3445 = vpop.permute.xlu0 %3444
      %3446 = vrot.lane.b32.xlu0 %v2703, 64
      %v3447 = vpop.permute.xlu0 %3446
      %3448 = vrot.lane.b32.xlu0 %v2704, 64
      %v3449 = vpop.permute.xlu0 %3448
      %3450 = vrot.lane.b32.xlu0 %v2706, 64
      %v3451 = vpop.permute.xlu0 %3450
      %3452 = vrot.lane.b32.xlu0 %v2707, 64
      %v3453 = vpop.permute.xlu0 %3452
      %3454 = vrot.lane.b32.xlu0 %v2709, 64
      %v3455 = vpop.permute.xlu0 %3454
      %3456 = vrot.lane.b32.xlu0 %v2710, 64
      %v3457 = vpop.permute.xlu0 %3456
      %3458 = vrot.lane.b32.xlu0 %v2712, 64
      %v3459 = vpop.permute.xlu0 %3458
      %3460 = vrot.lane.b32.xlu0 %v2713, 64
      %v3461 = vpop.permute.xlu0 %3460
      %3462 = vrot.lane.b32.xlu0 %v2715, 64
      %v3463 = vpop.permute.xlu0 %3462
      %3464 = vrot.lane.b32.xlu0 %v2716, 64
      %v3465 = vpop.permute.xlu0 %3464
      %3466 = vrot.lane.b32.xlu0 %v2718, 64
      %v3467 = vpop.permute.xlu0 %3466
      %3468 = vrot.lane.b32.xlu0 %v2719, 64
      %v3469 = vpop.permute.xlu0 %3468
      %3470 = vrot.lane.b32.xlu0 %v2721, 64
      %v3471 = vpop.permute.xlu0 %3470
      %3472 = vrot.lane.b32.xlu0 %v2722, 64
      %v3473 = vpop.permute.xlu0 %3472
      %3474 = vrot.lane.b32.xlu0 %v2724, 64
      %v3475 = vpop.permute.xlu0 %3474
      %3476 = vrot.lane.b32.xlu0 %v2725, 64
      %v3477 = vpop.permute.xlu0 %3476
      %3510 = vrot.lane.b32.xlu0 %v2824, 96
      %v3511 = vpop.permute.xlu0 %3510
      %3512 = vrot.lane.b32.xlu0 %v2826, 96
      %v3513 = vpop.permute.xlu0 %3512
      %3514 = vrot.lane.b32.xlu0 %v2829, 96
      %v3515 = vpop.permute.xlu0 %3514
      %3516 = vrot.lane.b32.xlu0 %v2831, 96
      %v3517 = vpop.permute.xlu0 %3516
      %3518 = vrot.lane.b32.xlu0 %v2834, 96
      %v3519 = vpop.permute.xlu0 %3518
      %3520 = vrot.lane.b32.xlu0 %v2836, 96
      %v3521 = vpop.permute.xlu0 %3520
      %3522 = vrot.lane.b32.xlu0 %v2839, 96
      %v3523 = vpop.permute.xlu0 %3522
      %3524 = vrot.lane.b32.xlu0 %v2841, 96
      %v3525 = vpop.permute.xlu0 %3524
      %3526 = vrot.lane.b32.xlu0 %v2844, 96
      %v3527 = vpop.permute.xlu0 %3526
      %3528 = vrot.lane.b32.xlu0 %v2846, 96
      %v3529 = vpop.permute.xlu0 %3528
      %3530 = vrot.lane.b32.xlu0 %v2849, 96
      %v3531 = vpop.permute.xlu0 %3530
      %3532 = vrot.lane.b32.xlu0 %v2851, 96
      %v3533 = vpop.permute.xlu0 %3532
      %3534 = vrot.lane.b32.xlu0 %v2854, 96
      %v3535 = vpop.permute.xlu0 %3534
      %3536 = vrot.lane.b32.xlu0 %v2856, 96
      %v3537 = vpop.permute.xlu0 %3536
      %3538 = vrot.lane.b32.xlu0 %v2859, 96
      %v3539 = vpop.permute.xlu0 %3538
      %3540 = vrot.lane.b32.xlu0 %v2861, 96
      %v3541 = vpop.permute.xlu0 %3540
      %3542 = vrot.lane.b32.xlu0 %v2864, 96
      %v3543 = vpop.permute.xlu0 %3542
      %3544 = vrot.lane.b32.xlu0 %v2866, 96
      %v3545 = vpop.permute.xlu0 %3544
      %3546 = vrot.lane.b32.xlu0 %v2869, 96
      %v3547 = vpop.permute.xlu0 %3546
      %3548 = vrot.lane.b32.xlu0 %v2871, 96
      %v3549 = vpop.permute.xlu0 %3548
      %3550 = vrot.lane.b32.xlu0 %v2874, 96
      %v3551 = vpop.permute.xlu0 %3550
      %3552 = vrot.lane.b32.xlu0 %v2876, 96
      %v3553 = vpop.permute.xlu0 %3552
      %3554 = vrot.lane.b32.xlu0 %v2879, 96
      %v3555 = vpop.permute.xlu0 %3554
      %3556 = vrot.lane.b32.xlu0 %v2881, 96
      %v3557 = vpop.permute.xlu0 %3556
      %3558 = vrot.lane.b32.xlu0 %v2884, 96
      %v3559 = vpop.permute.xlu0 %3558
      %3560 = vrot.lane.b32.xlu0 %v2886, 96
      %v3561 = vpop.permute.xlu0 %3560
      %3562 = vrot.lane.b32.xlu0 %v2889, 96
      %v3563 = vpop.permute.xlu0 %3562
      %3564 = vrot.lane.b32.xlu0 %v2891, 96
      %v3565 = vpop.permute.xlu0 %3564
      %3566 = vrot.lane.b32.xlu0 %v2977, 96
      %v3567 = vpop.permute.xlu0 %3566
      %3568 = vrot.lane.b32.xlu0 %v2979, 96
      %v3569 = vpop.permute.xlu0 %3568
      %3570 = vrot.lane.b32.xlu0 %v3022, 96
      %v3571 = vpop.permute.xlu0 %3570
      %3572 = vrot.lane.b32.xlu0 %v3024, 96
      %v3573 = vpop.permute.xlu0 %3572
      %v3606 = vsel %vm530, %v2673, %v3031
      %v3607 = vsel %vm530, %v2674, %v3033
      %v3608 = vsel %vm530, %v2676, %v3035
      %v3609 = vsel %vm530, %v2677, %v3037
      %v3610 = vsel %vm530, %v2679, %v3039
      %v3611 = vsel %vm530, %v2680, %v3041
      %v3612 = vsel %vm530, %v2682, %v3043
      %v3613 = vsel %vm530, %v2683, %v3045
      %v3614 = vsel %vm530, %v2685, %v3047
      %v3615 = vsel %vm530, %v2686, %v3049
      %v3616 = vsel %vm530, %v2688, %v3051
      %v3617 = vsel %vm530, %v2689, %v3053
      %v3618 = vsel %vm530, %v2691, %v3055
      %v3619 = vsel %vm530, %v2692, %v3057
      %v3620 = vsel %vm530, %v2694, %v3059
      %v3621 = vsel %vm530, %v2695, %v3061
      %v3622 = vsel %vm530, %v2697, %v3063
      %v3623 = vsel %vm530, %v2698, %v3065
      %v3624 = vsel %vm530, %v2700, %v3067
      %v3625 = vsel %vm530, %v2701, %v3069
      %v3626 = vsel %vm530, %v2703, %v3071
      %v3627 = vsel %vm530, %v2704, %v3073
      %v3628 = vsel %vm530, %v2706, %v3075
      %v3629 = vsel %vm530, %v2707, %v3077
      %v3630 = vsel %vm530, %v2709, %v3079
      %v3631 = vsel %vm530, %v2710, %v3081
      %v3632 = vsel %vm530, %v2712, %v3083
      %v3633 = vsel %vm530, %v2713, %v3085
      %v3634 = vsel %vm530, %v2715, %v3087
      %v3635 = vsel %vm530, %v2716, %v3089
      %v3636 = vsel %vm530, %v2718, %v3091
      %v3637 = vsel %vm530, %v2719, %v3093
      %vm3638 = vcmask 523264
      %v3639 = vsel %vm3638, %v3606, %v3127
      %v3640 = vsel %vm3638, %v3607, %v3129
      %v3641 = vsel %vm3638, %v3608, %v3131
      %v3642 = vsel %vm3638, %v3609, %v3133
      %v3643 = vsel %vm3638, %v3610, %v3135
      %v3644 = vsel %vm3638, %v3611, %v3137
      %v3645 = vsel %vm3638, %v3612, %v3139
      %v3646 = vsel %vm3638, %v3613, %v3141
      %v3647 = vsel %vm3638, %v3614, %v3143
      %v3648 = vsel %vm3638, %v3615, %v3145
      %v3649 = vsel %vm3638, %v3616, %v3147
      %v3650 = vsel %vm3638, %v3617, %v3149
      %v3651 = vsel %vm3638, %v3618, %v3151
      %v3652 = vsel %vm3638, %v3619, %v3153
      %v3653 = vsel %vm3638, %v3620, %v3155
      %v3654 = vsel %vm3638, %v3621, %v3157
      %v3655 = vsel %vm3638, %v3622, %v3159
      %v3656 = vsel %vm3638, %v3623, %v3161
      %v3657 = vsel %vm3638, %v3624, %v3163
      %v3658 = vsel %vm3638, %v3625, %v3165
      %v3659 = vsel %vm3638, %v3626, %v3167
      %v3660 = vsel %vm3638, %v3627, %v3169
      %v3661 = vsel %vm3638, %v3628, %v3171
      %v3662 = vsel %vm3638, %v3629, %v3173
      %v3663 = vsel %vm3638, %v3630, %v3175
      %v3664 = vsel %vm3638, %v3631, %v3177
      %v3665 = vsel %vm3638, %v3632, %v3179
      %v3666 = vsel %vm3638, %v3633, %v3181
      %v3667 = vsel %vm3638, %v3634, %v3183
      %v3668 = vsel %vm3638, %v3635, %v3185
      %v3669 = vsel %vm3638, %v3636, %v3187
      %v3670 = vsel %vm3638, %v3637, %v3189
      %vm3671 = vcmask 785408
      %v3672 = vsel %vm3671, %v3639, %v3223
      %v3673 = vsel %vm3671, %v3640, %v3225
      %v3674 = vsel %vm3671, %v3641, %v3227
      %v3675 = vsel %vm3671, %v3642, %v3229
      %v3676 = vsel %vm3671, %v3643, %v3231
      %v3677 = vsel %vm3671, %v3644, %v3233
      %v3678 = vsel %vm3671, %v3645, %v3235
      %v3679 = vsel %vm3671, %v3646, %v3237
      %v3680 = vsel %vm3671, %v3647, %v3239
      %v3681 = vsel %vm3671, %v3648, %v3241
      %v3682 = vsel %vm3671, %v3649, %v3243
      %v3683 = vsel %vm3671, %v3650, %v3245
      %v3684 = vsel %vm3671, %v3651, %v3247
      %v3685 = vsel %vm3671, %v3652, %v3249
      %v3686 = vsel %vm3671, %v3653, %v3251
      %v3687 = vsel %vm3671, %v3654, %v3253
      %v3688 = vsel %vm3671, %v3655, %v3255
      %v3689 = vsel %vm3671, %v3656, %v3257
      %v3690 = vsel %vm3671, %v3657, %v3259
      %v3691 = vsel %vm3671, %v3658, %v3261
      %v3692 = vsel %vm3671, %v3659, %v3263
      %v3693 = vsel %vm3671, %v3660, %v3265
      %v3694 = vsel %vm3671, %v3661, %v3267
      %v3695 = vsel %vm3671, %v3662, %v3269
      %v3696 = vsel %vm3671, %v3663, %v3271
      %v3697 = vsel %vm3671, %v3664, %v3273
      %v3698 = vsel %vm3671, %v3665, %v3275
      %v3699 = vsel %vm3671, %v3666, %v3277
      %v3700 = vsel %vm3671, %v3667, %v3279
      %v3701 = vsel %vm3671, %v3668, %v3281
      %v3702 = vsel %vm3671, %v3669, %v3283
      %v3703 = vsel %vm3671, %v3670, %v3285
      %v3704 = vsel %vm530, %v2819, %v3319
      %v3705 = vsel %vm530, %v2821, %v3321
      %v3706 = vsel %vm530, %v2824, %v3323
      %v3707 = vsel %vm530, %v2826, %v3325
      %v3708 = vsel %vm530, %v2829, %v3327
      %v3709 = vsel %vm530, %v2831, %v3329
      %v3710 = vsel %vm530, %v2834, %v3331
      %v3711 = vsel %vm530, %v2836, %v3333
      %v3712 = vsel %vm530, %v2839, %v3335
      %v3713 = vsel %vm530, %v2841, %v3337
      %v3714 = vsel %vm530, %v2844, %v3339
      %v3715 = vsel %vm530, %v2846, %v3341
      %v3716 = vsel %vm530, %v2849, %v3343
      %v3717 = vsel %vm530, %v2851, %v3345
      %v3718 = vsel %vm530, %v2854, %v3347
      %v3719 = vsel %vm530, %v2856, %v3349
      %v3720 = vsel %vm530, %v2859, %v3351
      %v3721 = vsel %vm530, %v2861, %v3353
      %v3722 = vsel %vm530, %v2864, %v3355
      %v3723 = vsel %vm530, %v2866, %v3357
      %v3724 = vsel %vm530, %v2869, %v3359
      %v3725 = vsel %vm530, %v2871, %v3361
      %v3726 = vsel %vm530, %v2874, %v3363
      %v3727 = vsel %vm530, %v2876, %v3365
      %v3728 = vsel %vm530, %v2879, %v3367
      %v3729 = vsel %vm530, %v2881, %v3369
      %v3730 = vsel %vm530, %v2884, %v3371
      %v3731 = vsel %vm530, %v2886, %v3373
      %v3732 = vsel %vm530, %v2889, %v3375
      %v3733 = vsel %vm530, %v2891, %v3377
      %v3734 = vsel %vm530, %v2977, %v3379
      %v3735 = vsel %vm530, %v2979, %v3381
      %v3736 = vsel %vm3638, %v3704, %v3415
      %v3737 = vsel %vm3638, %v3705, %v3417
      %v3738 = vsel %vm3638, %v3706, %v3419
      %v3739 = vsel %vm3638, %v3707, %v3421
      %v3740 = vsel %vm3638, %v3708, %v3423
      %v3741 = vsel %vm3638, %v3709, %v3425
      %v3742 = vsel %vm3638, %v3710, %v3427
      %v3743 = vsel %vm3638, %v3711, %v3429
      %v3744 = vsel %vm3638, %v3712, %v3431
      %v3745 = vsel %vm3638, %v3713, %v3433
      %v3746 = vsel %vm3638, %v3714, %v3435
      %v3747 = vsel %vm3638, %v3715, %v3437
      %v3748 = vsel %vm3638, %v3716, %v3439
      %v3749 = vsel %vm3638, %v3717, %v3441
      %v3750 = vsel %vm3638, %v3718, %v3443
      %v3751 = vsel %vm3638, %v3719, %v3445
      %v3752 = vsel %vm3638, %v3720, %v3447
      %v3753 = vsel %vm3638, %v3721, %v3449
      %v3754 = vsel %vm3638, %v3722, %v3451
      %v3755 = vsel %vm3638, %v3723, %v3453
      %v3756 = vsel %vm3638, %v3724, %v3455
      %v3757 = vsel %vm3638, %v3725, %v3457
      %v3758 = vsel %vm3638, %v3726, %v3459
      %v3759 = vsel %vm3638, %v3727, %v3461
      %v3760 = vsel %vm3638, %v3728, %v3463
      %v3761 = vsel %vm3638, %v3729, %v3465
      %v3762 = vsel %vm3638, %v3730, %v3467
      %v3763 = vsel %vm3638, %v3731, %v3469
      %v3764 = vsel %vm3638, %v3732, %v3471
      %v3765 = vsel %vm3638, %v3733, %v3473
      %v3766 = vsel %vm3638, %v3734, %v3475
      %v3767 = vsel %vm3638, %v3735, %v3477
      %v3768 = vsel %vm3671, %v3736, %v3511
      %v3769 = vsel %vm3671, %v3737, %v3513
      %v3770 = vsel %vm3671, %v3738, %v3515
      %v3771 = vsel %vm3671, %v3739, %v3517
      %v3772 = vsel %vm3671, %v3740, %v3519
      %v3773 = vsel %vm3671, %v3741, %v3521
      %v3774 = vsel %vm3671, %v3742, %v3523
      %v3775 = vsel %vm3671, %v3743, %v3525
      %v3776 = vsel %vm3671, %v3744, %v3527
      %v3777 = vsel %vm3671, %v3745, %v3529
      %v3778 = vsel %vm3671, %v3746, %v3531
      %v3779 = vsel %vm3671, %v3747, %v3533
      %v3780 = vsel %vm3671, %v3748, %v3535
      %v3781 = vsel %vm3671, %v3749, %v3537
      %v3782 = vsel %vm3671, %v3750, %v3539
      %v3783 = vsel %vm3671, %v3751, %v3541
      %v3784 = vsel %vm3671, %v3752, %v3543
      %v3785 = vsel %vm3671, %v3753, %v3545
      %v3786 = vsel %vm3671, %v3754, %v3547
      %v3787 = vsel %vm3671, %v3755, %v3549
      %v3788 = vsel %vm3671, %v3756, %v3551
      %v3789 = vsel %vm3671, %v3757, %v3553
      %v3790 = vsel %vm3671, %v3758, %v3555
      %v3791 = vsel %vm3671, %v3759, %v3557
      %v3792 = vsel %vm3671, %v3760, %v3559
      %v3793 = vsel %vm3671, %v3761, %v3561
      %v3794 = vsel %vm3671, %v3762, %v3563
      %v3795 = vsel %vm3671, %v3763, %v3565
      %v3796 = vsel %vm3671, %v3764, %v3567
      %v3797 = vsel %vm3671, %v3765, %v3569
      %v3798 = vsel %vm3671, %v3766, %v3571
      %v3799 = vsel %vm3671, %v3767, %v3573
      %v3801 = vlaneseq
      %v3802 = vshrl.u32 %v3801, 7
      %v3803 = vsub.s32 0, %v3802
      %v3804 = vrot.slane %v2763, %v3803
      %v3806 = vsel %vm530, %v2904, 0
      %v3808 = vsel %vm530, %v2906, 0
      %v3810 = vsel %vm530, %v2909, 0
      %v3812 = vsel %vm530, %v2911, 0
      %v3814 = vsel %vm530, %v2914, 0
      %v3816 = vsel %vm530, %v2916, 0
      %v3818 = vsel %vm530, %v2919, 0
      %v3820 = vsel %vm530, %v2921, 0
      %v3822 = vsel %vm530, %v2924, 0
      %v3824 = vsel %vm530, %v2926, 0
      %v3826 = vsel %vm530, %v2929, 0
      %v3828 = vsel %vm530, %v2931, 0
      %v3830 = vsel %vm530, %v2934, 0
      %v3832 = vsel %vm530, %v2936, 0
      %v3834 = vsel %vm530, %v2939, 0
      %v3836 = vsel %vm530, %v2941, 0
      %v3838 = vsel %vm530, %v2944, 0
      %v3840 = vsel %vm530, %v2946, 0
      %v3842 = vsel %vm530, %v2949, 0
      %v3844 = vsel %vm530, %v2951, 0
      %v3846 = vsel %vm530, %v2954, 0
      %v3848 = vsel %vm530, %v2956, 0
      %v3850 = vsel %vm530, %v2959, 0
      %v3852 = vsel %vm530, %v2961, 0
      %v3854 = vsel %vm530, %v2964, 0
      %v3856 = vsel %vm530, %v2966, 0
      %v3858 = vsel %vm530, %v2969, 0
      %v3860 = vsel %vm530, %v2971, 0
      %v3862 = vsel %vm530, %v3014, 0
      %v3864 = vsel %vm530, %v3016, 0
      %v3866 = vsel %vm530, %v3027, 0
      %v3868 = vsel %vm530, %v3029, 0
      %3870 = vmatprep.subr.mxu0 0.0
      %3871 = vmatpush1.msra.mxu0 %v2727
      %3872 = vmatprep.subr.mxu0 0.0
      %3873 = vmatpush1.msra.mxu0 %v2728
      %3874 = vmatprep.subr.mxu0 0.0
      %3875 = vmatpush1.msra.mxu0 %v2729
      %3876 = vmatprep.subr.mxu0 0.0
      %3877 = vmatpush1.msra.mxu0 %v2730
      %3878 = vmatprep.subr.mxu0 0.0
      %3879 = vmatpush1.msra.mxu0 %v2731
      %3880 = vmatprep.subr.mxu0 0.0
      %3881 = vmatpush1.msra.mxu0 %v2732
      %3882 = vmatprep.subr.mxu0 0.0
      %3883 = vmatpush1.msra.mxu0 %v2733
      %3884 = vmatprep.subr.mxu0 0.0
      %3885 = vmatpush1.msra.mxu0 %v2734
      %3886 = vmatprep.subr.mxu0 0.0
      %3887 = vmatpush1.msra.mxu0 %v2735
      %3888 = vmatprep.subr.mxu0 0.0
      %3889 = vmatpush1.msra.mxu0 %v2736
      %3890 = vmatprep.subr.mxu0 0.0
      %3891 = vmatpush1.msra.mxu0 %v2737
      %3892 = vmatprep.subr.mxu0 0.0
      %3893 = vmatpush1.msra.mxu0 %v2738
      %3894 = vmatprep.subr.mxu0 0.0
      %3895 = vmatpush1.msra.mxu0 %v2739
      %3896 = vmatprep.subr.mxu0 0.0
      %3897 = vmatpush1.msra.mxu0 %v2740
      %3898 = vmatprep.subr.mxu0 0.0
      %3899 = vmatpush1.msra.mxu0 %v2741
      %3900 = vmatprep.subr.mxu0 0.0
      %3901 = vmatpush1.msra.mxu0 %v2742
      %3902 = vmatprep.subr.mxu0 0.0
      %3903 = vmatpush1.msra.mxu0 %v2743
      %3904 = vmatprep.subr.mxu0 0.0
      %3905 = vmatpush1.msra.mxu0 %v2744
      %3906 = vmatprep.subr.mxu0 0.0
      %3907 = vmatpush1.msra.mxu0 %v2745
      %3908 = vmatprep.subr.mxu0 0.0
      %3909 = vmatpush1.msra.mxu0 %v2746
      %3910 = vmatprep.subr.mxu0 0.0
      %3911 = vmatpush1.msra.mxu0 %v2747
      %3912 = vmatprep.subr.mxu0 0.0
      %3913 = vmatpush1.msra.mxu0 %v2748
      %3914 = vmatprep.subr.mxu0 0.0
      %3915 = vmatpush1.msra.mxu0 %v2749
      %3916 = vmatprep.subr.mxu0 0.0
      %3917 = vmatpush1.msra.mxu0 %v2750
      %3918 = vmatprep.subr.mxu0 0.0
      %3919 = vmatpush1.msra.mxu0 %v2751
      %3920 = vmatprep.subr.mxu0 0.0
      %3921 = vmatpush1.msra.mxu0 %v2752
      %3922 = vmatprep.subr.mxu0 0.0
      %3923 = vmatpush1.msra.mxu0 %v2753
      %3924 = vmatprep.subr.mxu0 0.0
      %3925 = vmatpush1.msra.mxu0 %v2754
      %3926 = vmatprep.subr.mxu0 0.0
      %3927 = vmatpush1.msra.mxu0 %v2755
      %3928 = vmatprep.subr.mxu0 0.0
      %3929 = vmatpush1.msra.mxu0 %v2756
      %3930 = vmatprep.subr.mxu0 0.0
      %3931 = vmatpush1.msra.mxu0 %v2757
      %3932 = vmatprep.subr.mxu0 0.0
      %3933 = vmatpush1.msra.mxu0 %v2758
      %3934 = vmatprep.mubr.f32.mxu0 %v3768
      %3935 = vmatmul.mubr.f32.gmra.mrb[0].mxu0 %v3672
      %v3936 = vpop.f32.mrb[0].mxu0
      %v3937 = vadd.f32 %v3804, %v3936
      %v3938 = vpop.f32.mrb[0].mxu0
      %3939 = vmatprep.mubr.f32.mxu0 %v3769
      %3940 = vmatmul.mubr.f32.gmra.mrb[0].mxu0 %v3673
      %v3941 = vpop.f32.mrb[0].mxu0
      %v3942 = vadd.f32 %v3804, %v3941
      %v3943 = vpop.f32.mrb[0].mxu0
      %3944 = vmatprep.mubr.f32.mxu0 %v3770
      %3945 = vmatmul.mubr.f32.gmra.mrb[0].mxu0 %v3674
      %v3946 = vpop.f32.mrb[0].mxu0
      %v3947 = vadd.f32 %v3804, %v3946
      %v3948 = vpop.f32.mrb[0].mxu0
      %3949 = vmatprep.mubr.f32.mxu0 %v3771
      %3950 = vmatmul.mubr.f32.gmra.mrb[0].mxu0 %v3675
      %v3951 = vpop.f32.mrb[0].mxu0
      %v3952 = vadd.f32 %v3804, %v3951
      %v3953 = vpop.f32.mrb[0].mxu0
      %3954 = vmatprep.mubr.f32.mxu0 %v3772
      %3955 = vmatmul.mubr.f32.gmra.mrb[0].mxu0 %v3676
      %v3956 = vpop.f32.mrb[0].mxu0
      %v3957 = vadd.f32 %v3804, %v3956
      %v3958 = vpop.f32.mrb[0].mxu0
      %3959 = vmatprep.mubr.f32.mxu0 %v3773
      %3960 = vmatmul.mubr.f32.gmra.mrb[0].mxu0 %v3677
      %v3961 = vpop.f32.mrb[0].mxu0
      %v3962 = vadd.f32 %v3804, %v3961
      %v3963 = vpop.f32.mrb[0].mxu0
      %3964 = vmatprep.mubr.f32.mxu0 %v3774
      %3965 = vmatmul.mubr.f32.gmra.mrb[0].mxu0 %v3678
      %v3966 = vpop.f32.mrb[0].mxu0
      %v3967 = vadd.f32 %v3804, %v3966
      %v3968 = vpop.f32.mrb[0].mxu0
      %3969 = vmatprep.mubr.f32.mxu0 %v3775
      %3970 = vmatmul.mubr.f32.gmra.mrb[0].mxu0 %v3679
      %v3971 = vpop.f32.mrb[0].mxu0
      %v3972 = vadd.f32 %v3804, %v3971
      %v3973 = vpop.f32.mrb[0].mxu0
      %3974 = vmatprep.mubr.f32.mxu0 %v3776
      %3975 = vmatmul.mubr.f32.gmra.mrb[0].mxu0 %v3680
      %v3976 = vpop.f32.mrb[0].mxu0
      %v3977 = vadd.f32 %v3804, %v3976
      %v3978 = vpop.f32.mrb[0].mxu0
      %3979 = vmatprep.mubr.f32.mxu0 %v3777
      %3980 = vmatmul.mubr.f32.gmra.mrb[0].mxu0 %v3681
      %v3981 = vpop.f32.mrb[0].mxu0
      %v3982 = vadd.f32 %v3804, %v3981
      %v3983 = vpop.f32.mrb[0].mxu0
      %3984 = vmatprep.mubr.f32.mxu0 %v3778
      %3985 = vmatmul.mubr.f32.gmra.mrb[0].mxu0 %v3682
      %v3986 = vpop.f32.mrb[0].mxu0
      %v3987 = vadd.f32 %v3804, %v3986
      %v3988 = vpop.f32.mrb[0].mxu0
      %3989 = vmatprep.mubr.f32.mxu0 %v3779
      %3990 = vmatmul.mubr.f32.gmra.mrb[0].mxu0 %v3683
      %v3991 = vpop.f32.mrb[0].mxu0
      %v3992 = vadd.f32 %v3804, %v3991
      %v3993 = vpop.f32.mrb[0].mxu0
      %3994 = vmatprep.mubr.f32.mxu0 %v3780
      %3995 = vmatmul.mubr.f32.gmra.mrb[0].mxu0 %v3684
      %v3996 = vpop.f32.mrb[0].mxu0
      %v3997 = vadd.f32 %v3804, %v3996
      %v3998 = vpop.f32.mrb[0].mxu0
      %3999 = vmatprep.mubr.f32.mxu0 %v3781
      %4000 = vmatmul.mubr.f32.gmra.mrb[0].mxu0 %v3685
      %v4001 = vpop.f32.mrb[0].mxu0
      %v4002 = vadd.f32 %v3804, %v4001
      %v4003 = vpop.f32.mrb[0].mxu0
      %4004 = vmatprep.mubr.f32.mxu0 %v3782
      %4005 = vmatmul.mubr.f32.gmra.mrb[0].mxu0 %v3686
      %v4006 = vpop.f32.mrb[0].mxu0
      %v4007 = vadd.f32 %v3804, %v4006
      %v4008 = vpop.f32.mrb[0].mxu0
      %4009 = vmatprep.mubr.f32.mxu0 %v3783
      %4010 = vmatmul.mubr.f32.gmra.mrb[0].mxu0 %v3687
      %v4011 = vpop.f32.mrb[0].mxu0
      %v4012 = vadd.f32 %v3804, %v4011
      %v4013 = vpop.f32.mrb[0].mxu0
      %4014 = vmatprep.mubr.f32.mxu0 %v3784
      %4015 = vmatmul.mubr.f32.gmra.mrb[0].mxu0 %v3688
      %v4016 = vpop.f32.mrb[0].mxu0
      %v4017 = vadd.f32 %v3804, %v4016
      %v4018 = vpop.f32.mrb[0].mxu0
      %4019 = vmatprep.mubr.f32.mxu0 %v3785
      %4020 = vmatmul.mubr.f32.gmra.mrb[0].mxu0 %v3689
      %v4021 = vpop.f32.mrb[0].mxu0
      %v4022 = vadd.f32 %v3804, %v4021
      %v4023 = vpop.f32.mrb[0].mxu0
      %4024 = vmatprep.mubr.f32.mxu0 %v3786
      %4025 = vmatmul.mubr.f32.gmra.mrb[0].mxu0 %v3690
      %v4026 = vpop.f32.mrb[0].mxu0
      %v4027 = vadd.f32 %v3804, %v4026
      %v4028 = vpop.f32.mrb[0].mxu0
      %4029 = vmatprep.mubr.f32.mxu0 %v3787
      %4030 = vmatmul.mubr.f32.gmra.mrb[0].mxu0 %v3691
      %v4031 = vpop.f32.mrb[0].mxu0
      %v4032 = vadd.f32 %v3804, %v4031
      %v4033 = vpop.f32.mrb[0].mxu0
      %4034 = vmatprep.mubr.f32.mxu0 %v3788
      %4035 = vmatmul.mubr.f32.gmra.mrb[0].mxu0 %v3692
      %v4036 = vpop.f32.mrb[0].mxu0
      %v4037 = vadd.f32 %v3804, %v4036
      %v4038 = vpop.f32.mrb[0].mxu0
      %4039 = vmatprep.mubr.f32.mxu0 %v3789
      %4040 = vmatmul.mubr.f32.gmra.mrb[0].mxu0 %v3693
      %v4041 = vpop.f32.mrb[0].mxu0
      %v4042 = vadd.f32 %v3804, %v4041
      %v4043 = vpop.f32.mrb[0].mxu0
      %4044 = vmatprep.mubr.f32.mxu0 %v3790
      %4045 = vmatmul.mubr.f32.gmra.mrb[0].mxu0 %v3694
      %v4046 = vpop.f32.mrb[0].mxu0
      %v4047 = vadd.f32 %v3804, %v4046
      %v4048 = vpop.f32.mrb[0].mxu0
      %4049 = vmatprep.mubr.f32.mxu0 %v3791
      %4050 = vmatmul.mubr.f32.gmra.mrb[0].mxu0 %v3695
      %v4051 = vpop.f32.mrb[0].mxu0
      %v4052 = vadd.f32 %v3804, %v4051
      %v4053 = vpop.f32.mrb[0].mxu0
      %4054 = vmatprep.mubr.f32.mxu0 %v3792
      %4055 = vmatmul.mubr.f32.gmra.mrb[0].mxu0 %v3696
      %v4056 = vpop.f32.mrb[0].mxu0
      %v4057 = vadd.f32 %v3804, %v4056
      %v4058 = vpop.f32.mrb[0].mxu0
      %4059 = vmatprep.mubr.f32.mxu0 %v3793
      %4060 = vmatmul.mubr.f32.gmra.mrb[0].mxu0 %v3697
      %v4061 = vpop.f32.mrb[0].mxu0
      %v4062 = vadd.f32 %v3804, %v4061
      %v4063 = vpop.f32.mrb[0].mxu0
      %4064 = vmatprep.mubr.f32.mxu0 %v3794
      %4065 = vmatmul.mubr.f32.gmra.mrb[0].mxu0 %v3698
      %v4066 = vpop.f32.mrb[0].mxu0
      %v4067 = vadd.f32 %v3804, %v4066
      %v4068 = vpop.f32.mrb[0].mxu0
      %4069 = vmatprep.mubr.f32.mxu0 %v3795
      %4070 = vmatmul.mubr.f32.gmra.mrb[0].mxu0 %v3699
      %v4071 = vpop.f32.mrb[0].mxu0
      %v4072 = vadd.f32 %v3804, %v4071
      %v4073 = vpop.f32.mrb[0].mxu0
      %4074 = vmatprep.mubr.f32.mxu0 %v3796
      %4075 = vmatmul.mubr.f32.gmra.mrb[0].mxu0 %v3700
      %v4076 = vpop.f32.mrb[0].mxu0
      %v4077 = vadd.f32 %v3804, %v4076
      %v4078 = vpop.f32.mrb[0].mxu0
      %4079 = vmatprep.mubr.f32.mxu0 %v3797
      %4080 = vmatmul.mubr.f32.gmra.mrb[0].mxu0 %v3701
      %v4081 = vpop.f32.mrb[0].mxu0
      %v4082 = vadd.f32 %v3804, %v4081
      %v4083 = vpop.f32.mrb[0].mxu0
      %4084 = vmatprep.mubr.f32.mxu0 %v3798
      %4085 = vmatmul.mubr.f32.gmra.mrb[0].mxu0 %v3702
      %v4086 = vpop.f32.mrb[0].mxu0
      %v4087 = vadd.f32 %v3804, %v4086
      %v4088 = vpop.f32.mrb[0].mxu0
      %4089 = vmatprep.mubr.f32.mxu0 %v3799
      %4090 = vmatmul.mubr.f32.gmra.mrb[0].mxu0 %v3703
      %v4091 = vpop.f32.mrb[0].mxu0
      %v4092 = vadd.f32 %v3804, %v4091
      %v4093 = vpop.f32.mrb[0].mxu0
      %4094 = vdwg.mxu0
      %4095 = vmatprep.subr.mxu0 0.0
      %4096 = vmatpush1.msra.mxu0 %v2759
      %4097 = vmatprep.subr.mxu0 0.0
      %4098 = vmatpush1.msra.mxu0 %v2760
      %4099 = vmatprep.subr.mxu0 0.0
      %4100 = vmatpush1.msra.mxu0 %v2761
      %4101 = vmatprep.subr.mxu0 0.0
      %4102 = vmatpush1.msra.mxu0 %v2762
      %4103 = vmatprep.subr.mxu0 0.0
      %4104 = vmatpush1.msra.mxu0 0.0
      %4105 = vmatprep.subr.mxu0 0.0
      %4106 = vmatpush1.msra.mxu0 0.0
      %4107 = vmatprep.subr.mxu0 0.0
      %4108 = vmatpush1.msra.mxu0 0.0
      %4109 = vmatprep.subr.mxu0 0.0
      %4110 = vmatpush1.msra.mxu0 0.0
      %4111 = vmatprep.subr.mxu0 0.0
      %4112 = vmatpush1.msra.mxu0 0.0
      %4113 = vmatprep.subr.mxu0 0.0
      %4114 = vmatpush1.msra.mxu0 0.0
      %4115 = vmatprep.subr.mxu0 0.0
      %4116 = vmatpush1.msra.mxu0 0.0
      %4117 = vmatprep.subr.mxu0 0.0
      %4118 = vmatpush1.msra.mxu0 0.0
      %4119 = vmatprep.subr.mxu0 0.0
      %4120 = vmatpush1.msra.mxu0 0.0
      %4121 = vmatprep.subr.mxu0 0.0
      %4122 = vmatpush1.msra.mxu0 0.0
      %4123 = vmatprep.subr.mxu0 0.0
      %4124 = vmatpush1.msra.mxu0 0.0
      %4125 = vmatprep.subr.mxu0 0.0
      %4126 = vmatpush1.msra.mxu0 0.0
      %4127 = vmatprep.subr.mxu0 0.0
      %4128 = vmatpush1.msra.mxu0 0.0
      %4129 = vmatprep.subr.mxu0 0.0
      %4130 = vmatpush1.msra.mxu0 0.0
      %4131 = vmatprep.subr.mxu0 0.0
      %4132 = vmatpush1.msra.mxu0 0.0
      %4133 = vmatprep.subr.mxu0 0.0
      %4134 = vmatpush1.msra.mxu0 0.0
      %4135 = vmatprep.subr.mxu0 0.0
      %4136 = vmatpush1.msra.mxu0 0.0
      %4137 = vmatprep.subr.mxu0 0.0
      %4138 = vmatpush1.msra.mxu0 0.0
      %4139 = vmatprep.subr.mxu0 0.0
      %4140 = vmatpush1.msra.mxu0 0.0
      %4141 = vmatprep.subr.mxu0 0.0
      %4142 = vmatpush1.msra.mxu0 0.0
      %4143 = vmatprep.subr.mxu0 0.0
      %4144 = vmatpush1.msra.mxu0 0.0
      %4145 = vmatprep.subr.mxu0 0.0
      %4146 = vmatpush1.msra.mxu0 0.0
      %4147 = vmatprep.subr.mxu0 0.0
      %4148 = vmatpush1.msra.mxu0 0.0
      %4149 = vmatprep.subr.mxu0 0.0
      %4150 = vmatpush1.msra.mxu0 0.0
      %4151 = vmatprep.subr.mxu0 0.0
      %4152 = vmatpush1.msra.mxu0 0.0
      %4153 = vmatprep.subr.mxu0 0.0
      %4154 = vmatpush1.msra.mxu0 0.0
      %4155 = vmatprep.subr.mxu0 0.0
      %4156 = vmatpush1.msra.mxu0 0.0
      %4157 = vmatprep.subr.mxu0 0.0
      %4158 = vmatpush1.msra.mxu0 0.0
      %4159 = vmatprep.mubr.f32.mxu0 0.0
      %4160 = vmatmul.mubr.f32.gmra.mrb[0].mxu0 %v3806
      %v4161 = vpop.f32.mrb[0].mxu0
      %v4162 = vadd.f32 %v3937, %v4161
      %v4163 = vpop.f32.mrb[0].mxu0
      %4164 = vmatprep.mubr.f32.mxu0 0.0
      %4165 = vmatmul.mubr.f32.gmra.mrb[0].mxu0 %v3808
      %v4166 = vpop.f32.mrb[0].mxu0
      %v4167 = vadd.f32 %v3942, %v4166
      %v4168 = vpop.f32.mrb[0].mxu0
      %4169 = vmatprep.mubr.f32.mxu0 0.0
      %4170 = vmatmul.mubr.f32.gmra.mrb[0].mxu0 %v3810
      %v4171 = vpop.f32.mrb[0].mxu0
      %v4172 = vadd.f32 %v3947, %v4171
      %v4173 = vpop.f32.mrb[0].mxu0
      %4174 = vmatprep.mubr.f32.mxu0 0.0
      %4175 = vmatmul.mubr.f32.gmra.mrb[0].mxu0 %v3812
      %v4176 = vpop.f32.mrb[0].mxu0
      %v4177 = vadd.f32 %v3952, %v4176
      %v4178 = vpop.f32.mrb[0].mxu0
      %4179 = vmatprep.mubr.f32.mxu0 0.0
      %4180 = vmatmul.mubr.f32.gmra.mrb[0].mxu0 %v3814
      %v4181 = vpop.f32.mrb[0].mxu0
      %v4182 = vadd.f32 %v3957, %v4181
      %v4183 = vpop.f32.mrb[0].mxu0
      %4184 = vmatprep.mubr.f32.mxu0 0.0
      %4185 = vmatmul.mubr.f32.gmra.mrb[0].mxu0 %v3816
      %v4186 = vpop.f32.mrb[0].mxu0
      %v4187 = vadd.f32 %v3962, %v4186
      %v4188 = vpop.f32.mrb[0].mxu0
      %4189 = vmatprep.mubr.f32.mxu0 0.0
      %4190 = vmatmul.mubr.f32.gmra.mrb[0].mxu0 %v3818
      %v4191 = vpop.f32.mrb[0].mxu0
      %v4192 = vadd.f32 %v3967, %v4191
      %v4193 = vpop.f32.mrb[0].mxu0
      %4194 = vmatprep.mubr.f32.mxu0 0.0
      %4195 = vmatmul.mubr.f32.gmra.mrb[0].mxu0 %v3820
      %v4196 = vpop.f32.mrb[0].mxu0
      %v4197 = vadd.f32 %v3972, %v4196
      %v4198 = vpop.f32.mrb[0].mxu0
      %4199 = vmatprep.mubr.f32.mxu0 0.0
      %4200 = vmatmul.mubr.f32.gmra.mrb[0].mxu0 %v3822
      %v4201 = vpop.f32.mrb[0].mxu0
      %v4202 = vadd.f32 %v3977, %v4201
      %v4203 = vpop.f32.mrb[0].mxu0
      %4204 = vmatprep.mubr.f32.mxu0 0.0
      %4205 = vmatmul.mubr.f32.gmra.mrb[0].mxu0 %v3824
      %v4206 = vpop.f32.mrb[0].mxu0
      %v4207 = vadd.f32 %v3982, %v4206
      %v4208 = vpop.f32.mrb[0].mxu0
      %4209 = vmatprep.mubr.f32.mxu0 0.0
      %4210 = vmatmul.mubr.f32.gmra.mrb[0].mxu0 %v3826
      %v4211 = vpop.f32.mrb[0].mxu0
      %v4212 = vadd.f32 %v3987, %v4211
      %v4213 = vpop.f32.mrb[0].mxu0
      %4214 = vmatprep.mubr.f32.mxu0 0.0
      %4215 = vmatmul.mubr.f32.gmra.mrb[0].mxu0 %v3828
      %v4216 = vpop.f32.mrb[0].mxu0
      %v4217 = vadd.f32 %v3992, %v4216
      %v4218 = vpop.f32.mrb[0].mxu0
      %4219 = vmatprep.mubr.f32.mxu0 0.0
      %4220 = vmatmul.mubr.f32.gmra.mrb[0].mxu0 %v3830
      %v4221 = vpop.f32.mrb[0].mxu0
      %v4222 = vadd.f32 %v3997, %v4221
      %v4223 = vpop.f32.mrb[0].mxu0
      %4224 = vmatprep.mubr.f32.mxu0 0.0
      %4225 = vmatmul.mubr.f32.gmra.mrb[0].mxu0 %v3832
      %v4226 = vpop.f32.mrb[0].mxu0
      %v4227 = vadd.f32 %v4002, %v4226
      %v4228 = vpop.f32.mrb[0].mxu0
      %4229 = vmatprep.mubr.f32.mxu0 0.0
      %4230 = vmatmul.mubr.f32.gmra.mrb[0].mxu0 %v3834
      %v4231 = vpop.f32.mrb[0].mxu0
      %v4232 = vadd.f32 %v4007, %v4231
      %v4233 = vpop.f32.mrb[0].mxu0
      %4234 = vmatprep.mubr.f32.mxu0 0.0
      %4235 = vmatmul.mubr.f32.gmra.mrb[0].mxu0 %v3836
      %v4236 = vpop.f32.mrb[0].mxu0
      %v4237 = vadd.f32 %v4012, %v4236
      %v4238 = vpop.f32.mrb[0].mxu0
      %4239 = vmatprep.mubr.f32.mxu0 0.0
      %4240 = vmatmul.mubr.f32.gmra.mrb[0].mxu0 %v3838
      %v4241 = vpop.f32.mrb[0].mxu0
      %v4242 = vadd.f32 %v4017, %v4241
      %v4243 = vpop.f32.mrb[0].mxu0
      %4244 = vmatprep.mubr.f32.mxu0 0.0
      %4245 = vmatmul.mubr.f32.gmra.mrb[0].mxu0 %v3840
      %v4246 = vpop.f32.mrb[0].mxu0
      %v4247 = vadd.f32 %v4022, %v4246
      %v4248 = vpop.f32.mrb[0].mxu0
      %4249 = vmatprep.mubr.f32.mxu0 0.0
      %4250 = vmatmul.mubr.f32.gmra.mrb[0].mxu0 %v3842
      %v4251 = vpop.f32.mrb[0].mxu0
      %v4252 = vadd.f32 %v4027, %v4251
      %v4253 = vpop.f32.mrb[0].mxu0
      %4254 = vmatprep.mubr.f32.mxu0 0.0
      %4255 = vmatmul.mubr.f32.gmra.mrb[0].mxu0 %v3844
      %v4256 = vpop.f32.mrb[0].mxu0
      %v4257 = vadd.f32 %v4032, %v4256
      %v4258 = vpop.f32.mrb[0].mxu0
      %4259 = vmatprep.mubr.f32.mxu0 0.0
      %4260 = vmatmul.mubr.f32.gmra.mrb[0].mxu0 %v3846
      %v4261 = vpop.f32.mrb[0].mxu0
      %v4262 = vadd.f32 %v4037, %v4261
      %v4263 = vpop.f32.mrb[0].mxu0
      %4264 = vmatprep.mubr.f32.mxu0 0.0
      %4265 = vmatmul.mubr.f32.gmra.mrb[0].mxu0 %v3848
      %v4266 = vpop.f32.mrb[0].mxu0
      %v4267 = vadd.f32 %v4042, %v4266
      %v4268 = vpop.f32.mrb[0].mxu0
      %4269 = vmatprep.mubr.f32.mxu0 0.0
      %4270 = vmatmul.mubr.f32.gmra.mrb[0].mxu0 %v3850
      %v4271 = vpop.f32.mrb[0].mxu0
      %v4272 = vadd.f32 %v4047, %v4271
      %v4273 = vpop.f32.mrb[0].mxu0
      %4274 = vmatprep.mubr.f32.mxu0 0.0
      %4275 = vmatmul.mubr.f32.gmra.mrb[0].mxu0 %v3852
      %v4276 = vpop.f32.mrb[0].mxu0
      %v4277 = vadd.f32 %v4052, %v4276
      %v4278 = vpop.f32.mrb[0].mxu0
      %4279 = vmatprep.mubr.f32.mxu0 0.0
      %4280 = vmatmul.mubr.f32.gmra.mrb[0].mxu0 %v3854
      %v4281 = vpop.f32.mrb[0].mxu0
      %v4282 = vadd.f32 %v4057, %v4281
      %v4283 = vpop.f32.mrb[0].mxu0
      %4284 = vmatprep.mubr.f32.mxu0 0.0
      %4285 = vmatmul.mubr.f32.gmra.mrb[0].mxu0 %v3856
      %v4286 = vpop.f32.mrb[0].mxu0
      %v4287 = vadd.f32 %v4062, %v4286
      %v4288 = vpop.f32.mrb[0].mxu0
      %4289 = vmatprep.mubr.f32.mxu0 0.0
      %4290 = vmatmul.mubr.f32.gmra.mrb[0].mxu0 %v3858
      %v4291 = vpop.f32.mrb[0].mxu0
      %v4292 = vadd.f32 %v4067, %v4291
      %v4293 = vpop.f32.mrb[0].mxu0
      %4294 = vmatprep.mubr.f32.mxu0 0.0
      %4295 = vmatmul.mubr.f32.gmra.mrb[0].mxu0 %v3860
      %v4296 = vpop.f32.mrb[0].mxu0
      %v4297 = vadd.f32 %v4072, %v4296
      %v4298 = vpop.f32.mrb[0].mxu0
      %4299 = vmatprep.mubr.f32.mxu0 0.0
      %4300 = vmatmul.mubr.f32.gmra.mrb[0].mxu0 %v3862
      %v4301 = vpop.f32.mrb[0].mxu0
      %v4302 = vadd.f32 %v4077, %v4301
      %v4303 = vpop.f32.mrb[0].mxu0
      %4304 = vmatprep.mubr.f32.mxu0 0.0
      %4305 = vmatmul.mubr.f32.gmra.mrb[0].mxu0 %v3864
      %v4306 = vpop.f32.mrb[0].mxu0
      %v4307 = vadd.f32 %v4082, %v4306
      %v4308 = vpop.f32.mrb[0].mxu0
      %4309 = vmatprep.mubr.f32.mxu0 0.0
      %4310 = vmatmul.mubr.f32.gmra.mrb[0].mxu0 %v3866
      %v4311 = vpop.f32.mrb[0].mxu0
      %v4312 = vadd.f32 %v4087, %v4311
      %v4313 = vpop.f32.mrb[0].mxu0
      %4314 = vmatprep.mubr.f32.mxu0 0.0
      %4315 = vmatmul.mubr.f32.gmra.mrb[0].mxu0 %v3868
      %v4316 = vpop.f32.mrb[0].mxu0
      %v4317 = vadd.f32 %v4092, %v4316
      %v4318 = vpop.f32.mrb[0].mxu0
      %4319 = vdwg.mxu0
      %v4320 = vmax.f32 %v4162, 0.0
      %v4321 = vmax.f32 %v4167, 0.0
      %v4322 = vmax.f32 %v4172, 0.0
      %v4323 = vmax.f32 %v4177, 0.0
      %v4324 = vmax.f32 %v4182, 0.0
      %v4325 = vmax.f32 %v4187, 0.0
      %v4326 = vmax.f32 %v4192, 0.0
      %v4327 = vmax.f32 %v4197, 0.0
      %v4328 = vmax.f32 %v4202, 0.0
      %v4329 = vmax.f32 %v4207, 0.0
      %v4330 = vmax.f32 %v4212, 0.0
      %v4331 = vmax.f32 %v4217, 0.0
      %v4332 = vmax.f32 %v4222, 0.0
      %v4333 = vmax.f32 %v4227, 0.0
      %v4334 = vmax.f32 %v4232, 0.0
      %v4335 = vmax.f32 %v4237, 0.0
      %v4336 = vmax.f32 %v4242, 0.0
      %v4337 = vmax.f32 %v4247, 0.0
      %v4338 = vmax.f32 %v4252, 0.0
      %v4339 = vmax.f32 %v4257, 0.0
      %v4340 = vmax.f32 %v4262, 0.0
      %v4341 = vmax.f32 %v4267, 0.0
      %v4342 = vmax.f32 %v4272, 0.0
      %v4343 = vmax.f32 %v4277, 0.0
      %v4344 = vmax.f32 %v4282, 0.0
      %v4345 = vmax.f32 %v4287, 0.0
      %v4346 = vmax.f32 %v4292, 0.0
      %v4347 = vmax.f32 %v4297, 0.0
      %v4348 = vmax.f32 %v4302, 0.0
      %v4349 = vmax.f32 %v4307, 0.0
      %v4350 = vmax.f32 %v4312, 0.0
      %v4351 = vmax.f32 %v4317, 0.0
      %v4352 = vld [vmem:[%s10] sm:$0xff]
      %v4353 = vld [vmem:[%s10 + $0x8] sm:$0xff]
      %v4354 = vld [vmem:[%s10 + $0x10] sm:$0xff]
      %v4355 = vld [vmem:[%s10 + $0x18] sm:$0xff]
      %v4356 = vld [vmem:[%s11] sm:$0x1]
      %v4358 = vlaneseq
      %v4359 = vshrl.u32 %v4358, 7
      %v4360 = vsub.s32 0, %v4359
      %v4361 = vrot.slane %v4356, %v4360
      %v4364 = vsel %vm530, %v4320, 0
      %v4367 = vsel %vm530, %v4321, 0
      %v4370 = vsel %vm530, %v4322, 0
      %v4373 = vsel %vm530, %v4323, 0
      %v4376 = vsel %vm530, %v4324, 0
      %v4379 = vsel %vm530, %v4325, 0
      %v4382 = vsel %vm530, %v4326, 0
      %v4385 = vsel %vm530, %v4327, 0
      %v4388 = vsel %vm530, %v4328, 0
      %v4391 = vsel %vm530, %v4329, 0
      %v4394 = vsel %vm530, %v4330, 0
      %v4397 = vsel %vm530, %v4331, 0
      %v4400 = vsel %vm530, %v4332, 0
      %v4403 = vsel %vm530, %v4333, 0
      %v4406 = vsel %vm530, %v4334, 0
      %v4409 = vsel %vm530, %v4335, 0
      %v4412 = vsel %vm530, %v4336, 0
      %v4415 = vsel %vm530, %v4337, 0
      %v4418 = vsel %vm530, %v4338, 0
      %v4421 = vsel %vm530, %v4339, 0
      %v4424 = vsel %vm530, %v4340, 0
      %v4427 = vsel %vm530, %v4341, 0
      %v4430 = vsel %vm530, %v4342, 0
      %v4433 = vsel %vm530, %v4343, 0
      %v4436 = vsel %vm530, %v4344, 0
      %v4439 = vsel %vm530, %v4345, 0
      %v4442 = vsel %vm530, %v4346, 0
      %v4445 = vsel %vm530, %v4347, 0
      %v4448 = vsel %vm530, %v4348, 0
      %v4451 = vsel %vm530, %v4349, 0
      %v4454 = vsel %vm530, %v4350, 0
      %v4457 = vsel %vm530, %v4351, 0
      %4459 = vmatprep.subr.mxu0 0.0
      %4460 = vmatpush1.msra.mxu0 %v4352
      %4461 = vmatprep.subr.mxu0 0.0
      %4462 = vmatpush1.msra.mxu0 %v4353
      %4463 = vmatprep.subr.mxu0 0.0
      %4464 = vmatpush1.msra.mxu0 %v4354
      %4465 = vmatprep.subr.mxu0 0.0
      %4466 = vmatpush1.msra.mxu0 %v4355
      %4467 = vmatprep.subr.mxu0 0.0
      %4468 = vmatpush1.msra.mxu0 0.0
      %4469 = vmatprep.subr.mxu0 0.0
      %4470 = vmatpush1.msra.mxu0 0.0
      %4471 = vmatprep.subr.mxu0 0.0
      %4472 = vmatpush1.msra.mxu0 0.0
      %4473 = vmatprep.subr.mxu0 0.0
      %4474 = vmatpush1.msra.mxu0 0.0
      %4475 = vmatprep.subr.mxu0 0.0
      %4476 = vmatpush1.msra.mxu0 0.0
      %4477 = vmatprep.subr.mxu0 0.0
      %4478 = vmatpush1.msra.mxu0 0.0
      %4479 = vmatprep.subr.mxu0 0.0
      %4480 = vmatpush1.msra.mxu0 0.0
      %4481 = vmatprep.subr.mxu0 0.0
      %4482 = vmatpush1.msra.mxu0 0.0
      %4483 = vmatprep.subr.mxu0 0.0
      %4484 = vmatpush1.msra.mxu0 0.0
      %4485 = vmatprep.subr.mxu0 0.0
      %4486 = vmatpush1.msra.mxu0 0.0
      %4487 = vmatprep.subr.mxu0 0.0
      %4488 = vmatpush1.msra.mxu0 0.0
      %4489 = vmatprep.subr.mxu0 0.0
      %4490 = vmatpush1.msra.mxu0 0.0
      %4491 = vmatprep.subr.mxu0 0.0
      %4492 = vmatpush1.msra.mxu0 0.0
      %4493 = vmatprep.subr.mxu0 0.0
      %4494 = vmatpush1.msra.mxu0 0.0
      %4495 = vmatprep.subr.mxu0 0.0
      %4496 = vmatpush1.msra.mxu0 0.0
      %4497 = vmatprep.subr.mxu0 0.0
      %4498 = vmatpush1.msra.mxu0 0.0
      %4499 = vmatprep.subr.mxu0 0.0
      %4500 = vmatpush1.msra.mxu0 0.0
      %4501 = vmatprep.subr.mxu0 0.0
      %4502 = vmatpush1.msra.mxu0 0.0
      %4503 = vmatprep.subr.mxu0 0.0
      %4504 = vmatpush1.msra.mxu0 0.0
      %4505 = vmatprep.subr.mxu0 0.0
      %4506 = vmatpush1.msra.mxu0 0.0
      %4507 = vmatprep.subr.mxu0 0.0
      %4508 = vmatpush1.msra.mxu0 0.0
      %4509 = vmatprep.subr.mxu0 0.0
      %4510 = vmatpush1.msra.mxu0 0.0
      %4511 = vmatprep.subr.mxu0 0.0
      %4512 = vmatpush1.msra.mxu0 0.0
      %4513 = vmatprep.subr.mxu0 0.0
      %4514 = vmatpush1.msra.mxu0 0.0
      %4515 = vmatprep.subr.mxu0 0.0
      %4516 = vmatpush1.msra.mxu0 0.0
      %4517 = vmatprep.subr.mxu0 0.0
      %4518 = vmatpush1.msra.mxu0 0.0
      %4519 = vmatprep.subr.mxu0 0.0
      %4520 = vmatpush1.msra.mxu0 0.0
      %4521 = vmatprep.subr.mxu0 0.0
      %4522 = vmatpush1.msra.mxu0 0.0
      %4523 = vmatprep.mubr.f32.mxu0 0.0
      %4524 = vmatmul.mubr.f32.gmra.mrb[0].mxu0 %v4364
      %v4525 = vpop.f32.mrb[0].mxu0
      %v4526 = vadd.f32 %v4361, %v4525
      %v4527 = vpop.f32.mrb[0].mxu0
      %4528 = vmatprep.mubr.f32.mxu0 0.0
      %4529 = vmatmul.mubr.f32.gmra.mrb[0].mxu0 %v4367
      %v4530 = vpop.f32.mrb[0].mxu0
      %v4531 = vadd.f32 %v4361, %v4530
      %v4532 = vpop.f32.mrb[0].mxu0
      %4533 = vmatprep.mubr.f32.mxu0 0.0
      %4534 = vmatmul.mubr.f32.gmra.mrb[0].mxu0 %v4370
      %v4535 = vpop.f32.mrb[0].mxu0
      %v4536 = vadd.f32 %v4361, %v4535
      %v4537 = vpop.f32.mrb[0].mxu0
      %4538 = vmatprep.mubr.f32.mxu0 0.0
      %4539 = vmatmul.mubr.f32.gmra.mrb[0].mxu0 %v4373
      %v4540 = vpop.f32.mrb[0].mxu0
      %v4541 = vadd.f32 %v4361, %v4540
      %v4542 = vpop.f32.mrb[0].mxu0
      %4543 = vmatprep.mubr.f32.mxu0 0.0
      %4544 = vmatmul.mubr.f32.gmra.mrb[0].mxu0 %v4376
      %v4545 = vpop.f32.mrb[0].mxu0
      %v4546 = vadd.f32 %v4361, %v4545
      %v4547 = vpop.f32.mrb[0].mxu0
      %4548 = vmatprep.mubr.f32.mxu0 0.0
      %4549 = vmatmul.mubr.f32.gmra.mrb[0].mxu0 %v4379
      %v4550 = vpop.f32.mrb[0].mxu0
      %v4551 = vadd.f32 %v4361, %v4550
      %v4552 = vpop.f32.mrb[0].mxu0
      %4553 = vmatprep.mubr.f32.mxu0 0.0
      %4554 = vmatmul.mubr.f32.gmra.mrb[0].mxu0 %v4382
      %v4555 = vpop.f32.mrb[0].mxu0
      %v4556 = vadd.f32 %v4361, %v4555
      %v4557 = vpop.f32.mrb[0].mxu0
      %4558 = vmatprep.mubr.f32.mxu0 0.0
      %4559 = vmatmul.mubr.f32.gmra.mrb[0].mxu0 %v4385
      %v4560 = vpop.f32.mrb[0].mxu0
      %v4561 = vadd.f32 %v4361, %v4560
      %v4562 = vpop.f32.mrb[0].mxu0
      %4563 = vmatprep.mubr.f32.mxu0 0.0
      %4564 = vmatmul.mubr.f32.gmra.mrb[0].mxu0 %v4388
      %v4565 = vpop.f32.mrb[0].mxu0
      %v4566 = vadd.f32 %v4361, %v4565
      %v4567 = vpop.f32.mrb[0].mxu0
      %4568 = vmatprep.mubr.f32.mxu0 0.0
      %4569 = vmatmul.mubr.f32.gmra.mrb[0].mxu0 %v4391
      %v4570 = vpop.f32.mrb[0].mxu0
      %v4571 = vadd.f32 %v4361, %v4570
      %v4572 = vpop.f32.mrb[0].mxu0
      %4573 = vmatprep.mubr.f32.mxu0 0.0
      %4574 = vmatmul.mubr.f32.gmra.mrb[0].mxu0 %v4394
      %v4575 = vpop.f32.mrb[0].mxu0
      %v4576 = vadd.f32 %v4361, %v4575
      %v4577 = vpop.f32.mrb[0].mxu0
      %4578 = vmatprep.mubr.f32.mxu0 0.0
      %4579 = vmatmul.mubr.f32.gmra.mrb[0].mxu0 %v4397
      %v4580 = vpop.f32.mrb[0].mxu0
      %v4581 = vadd.f32 %v4361, %v4580
      %v4582 = vpop.f32.mrb[0].mxu0
      %4583 = vmatprep.mubr.f32.mxu0 0.0
      %4584 = vmatmul.mubr.f32.gmra.mrb[0].mxu0 %v4400
      %v4585 = vpop.f32.mrb[0].mxu0
      %v4586 = vadd.f32 %v4361, %v4585
      %v4587 = vpop.f32.mrb[0].mxu0
      %4588 = vmatprep.mubr.f32.mxu0 0.0
      %4589 = vmatmul.mubr.f32.gmra.mrb[0].mxu0 %v4403
      %v4590 = vpop.f32.mrb[0].mxu0
      %v4591 = vadd.f32 %v4361, %v4590
      %v4592 = vpop.f32.mrb[0].mxu0
      %4593 = vmatprep.mubr.f32.mxu0 0.0
      %4594 = vmatmul.mubr.f32.gmra.mrb[0].mxu0 %v4406
      %v4595 = vpop.f32.mrb[0].mxu0
      %v4596 = vadd.f32 %v4361, %v4595
      %v4597 = vpop.f32.mrb[0].mxu0
      %4598 = vmatprep.mubr.f32.mxu0 0.0
      %4599 = vmatmul.mubr.f32.gmra.mrb[0].mxu0 %v4409
      %v4600 = vpop.f32.mrb[0].mxu0
      %v4601 = vadd.f32 %v4361, %v4600
      %v4602 = vpop.f32.mrb[0].mxu0
      %4603 = vmatprep.mubr.f32.mxu0 0.0
      %4604 = vmatmul.mubr.f32.gmra.mrb[0].mxu0 %v4412
      %v4605 = vpop.f32.mrb[0].mxu0
      %v4606 = vadd.f32 %v4361, %v4605
      %v4607 = vpop.f32.mrb[0].mxu0
      %4608 = vmatprep.mubr.f32.mxu0 0.0
      %4609 = vmatmul.mubr.f32.gmra.mrb[0].mxu0 %v4415
      %v4610 = vpop.f32.mrb[0].mxu0
      %v4611 = vadd.f32 %v4361, %v4610
      %v4612 = vpop.f32.mrb[0].mxu0
      %4613 = vmatprep.mubr.f32.mxu0 0.0
      %4614 = vmatmul.mubr.f32.gmra.mrb[0].mxu0 %v4418
      %v4615 = vpop.f32.mrb[0].mxu0
      %v4616 = vadd.f32 %v4361, %v4615
      %v4617 = vpop.f32.mrb[0].mxu0
      %4618 = vmatprep.mubr.f32.mxu0 0.0
      %4619 = vmatmul.mubr.f32.gmra.mrb[0].mxu0 %v4421
      %v4620 = vpop.f32.mrb[0].mxu0
      %v4621 = vadd.f32 %v4361, %v4620
      %v4622 = vpop.f32.mrb[0].mxu0
      %4623 = vmatprep.mubr.f32.mxu0 0.0
      %4624 = vmatmul.mubr.f32.gmra.mrb[0].mxu0 %v4424
      %v4625 = vpop.f32.mrb[0].mxu0
      %v4626 = vadd.f32 %v4361, %v4625
      %v4627 = vpop.f32.mrb[0].mxu0
      %4628 = vmatprep.mubr.f32.mxu0 0.0
      %4629 = vmatmul.mubr.f32.gmra.mrb[0].mxu0 %v4427
      %v4630 = vpop.f32.mrb[0].mxu0
      %v4631 = vadd.f32 %v4361, %v4630
      %v4632 = vpop.f32.mrb[0].mxu0
      %4633 = vmatprep.mubr.f32.mxu0 0.0
      %4634 = vmatmul.mubr.f32.gmra.mrb[0].mxu0 %v4430
      %v4635 = vpop.f32.mrb[0].mxu0
      %v4636 = vadd.f32 %v4361, %v4635
      %v4637 = vpop.f32.mrb[0].mxu0
      %4638 = vmatprep.mubr.f32.mxu0 0.0
      %4639 = vmatmul.mubr.f32.gmra.mrb[0].mxu0 %v4433
      %v4640 = vpop.f32.mrb[0].mxu0
      %v4641 = vadd.f32 %v4361, %v4640
      %v4642 = vpop.f32.mrb[0].mxu0
      %4643 = vmatprep.mubr.f32.mxu0 0.0
      %4644 = vmatmul.mubr.f32.gmra.mrb[0].mxu0 %v4436
      %v4645 = vpop.f32.mrb[0].mxu0
      %v4646 = vadd.f32 %v4361, %v4645
      %v4647 = vpop.f32.mrb[0].mxu0
      %4648 = vmatprep.mubr.f32.mxu0 0.0
      %4649 = vmatmul.mubr.f32.gmra.mrb[0].mxu0 %v4439
      %v4650 = vpop.f32.mrb[0].mxu0
      %v4651 = vadd.f32 %v4361, %v4650
      %v4652 = vpop.f32.mrb[0].mxu0
      %4653 = vmatprep.mubr.f32.mxu0 0.0
      %4654 = vmatmul.mubr.f32.gmra.mrb[0].mxu0 %v4442
      %v4655 = vpop.f32.mrb[0].mxu0
      %v4656 = vadd.f32 %v4361, %v4655
      %v4657 = vpop.f32.mrb[0].mxu0
      %4658 = vmatprep.mubr.f32.mxu0 0.0
      %4659 = vmatmul.mubr.f32.gmra.mrb[0].mxu0 %v4445
      %v4660 = vpop.f32.mrb[0].mxu0
      %v4661 = vadd.f32 %v4361, %v4660
      %v4662 = vpop.f32.mrb[0].mxu0
      %4663 = vmatprep.mubr.f32.mxu0 0.0
      %4664 = vmatmul.mubr.f32.gmra.mrb[0].mxu0 %v4448
      %v4665 = vpop.f32.mrb[0].mxu0
      %v4666 = vadd.f32 %v4361, %v4665
      %v4667 = vpop.f32.mrb[0].mxu0
      %4668 = vmatprep.mubr.f32.mxu0 0.0
      %4669 = vmatmul.mubr.f32.gmra.mrb[0].mxu0 %v4451
      %v4670 = vpop.f32.mrb[0].mxu0
      %v4671 = vadd.f32 %v4361, %v4670
      %v4672 = vpop.f32.mrb[0].mxu0
      %4673 = vmatprep.mubr.f32.mxu0 0.0
      %4674 = vmatmul.mubr.f32.gmra.mrb[0].mxu0 %v4454
      %v4675 = vpop.f32.mrb[0].mxu0
      %v4676 = vadd.f32 %v4361, %v4675
      %v4677 = vpop.f32.mrb[0].mxu0
      %4678 = vmatprep.mubr.f32.mxu0 0.0
      %4679 = vmatmul.mubr.f32.gmra.mrb[0].mxu0 %v4457
      %v4680 = vpop.f32.mrb[0].mxu0
      %v4681 = vadd.f32 %v4361, %v4680
      %v4682 = vpop.f32.mrb[0].mxu0
      %4683 = vdwg.mxu0
      %v4684 = vmax.f32 %v4526, 0.0
      %v4685 = vmax.f32 %v4531, 0.0
      %v4686 = vmax.f32 %v4536, 0.0
      %v4687 = vmax.f32 %v4541, 0.0
      %v4688 = vmax.f32 %v4546, 0.0
      %v4689 = vmax.f32 %v4551, 0.0
      %v4690 = vmax.f32 %v4556, 0.0
      %v4691 = vmax.f32 %v4561, 0.0
      %v4692 = vmax.f32 %v4566, 0.0
      %v4693 = vmax.f32 %v4571, 0.0
      %v4694 = vmax.f32 %v4576, 0.0
      %v4695 = vmax.f32 %v4581, 0.0
      %v4696 = vmax.f32 %v4586, 0.0
      %v4697 = vmax.f32 %v4591, 0.0
      %v4698 = vmax.f32 %v4596, 0.0
      %v4699 = vmax.f32 %v4601, 0.0
      %v4700 = vmax.f32 %v4606, 0.0
      %v4701 = vmax.f32 %v4611, 0.0
      %v4702 = vmax.f32 %v4616, 0.0
      %v4703 = vmax.f32 %v4621, 0.0
      %v4704 = vmax.f32 %v4626, 0.0
      %v4705 = vmax.f32 %v4631, 0.0
      %v4706 = vmax.f32 %v4636, 0.0
      %v4707 = vmax.f32 %v4641, 0.0
      %v4708 = vmax.f32 %v4646, 0.0
      %v4709 = vmax.f32 %v4651, 0.0
      %v4710 = vmax.f32 %v4656, 0.0
      %v4711 = vmax.f32 %v4661, 0.0
      %v4712 = vmax.f32 %v4666, 0.0
      %v4713 = vmax.f32 %v4671, 0.0
      %v4714 = vmax.f32 %v4676, 0.0
      %v4715 = vmax.f32 %v4681, 0.0
      %v4716 = vadd.f32 %v2244, %v4684
      %v4717 = vadd.f32 %v2245, %v4685
      %v4718 = vadd.f32 %v2246, %v4686
      %v4719 = vadd.f32 %v2247, %v4687
      %v4720 = vadd.f32 %v2248, %v4688
      %v4721 = vadd.f32 %v2249, %v4689
      %v4722 = vadd.f32 %v2250, %v4690
      %v4723 = vadd.f32 %v2251, %v4691
      %v4724 = vadd.f32 %v2252, %v4692
      %v4725 = vadd.f32 %v2253, %v4693
      %v4726 = vadd.f32 %v2254, %v4694
      %v4727 = vadd.f32 %v2255, %v4695
      %v4728 = vadd.f32 %v2256, %v4696
      %v4729 = vadd.f32 %v2257, %v4697
      %v4730 = vadd.f32 %v2258, %v4698
      %v4731 = vadd.f32 %v2259, %v4699
      %v4732 = vadd.f32 %v2260, %v4700
      %v4733 = vadd.f32 %v2261, %v4701
      %v4734 = vadd.f32 %v2262, %v4702
      %v4735 = vadd.f32 %v2263, %v4703
      %v4736 = vadd.f32 %v2264, %v4704
      %v4737 = vadd.f32 %v2265, %v4705
      %v4738 = vadd.f32 %v2266, %v4706
      %v4739 = vadd.f32 %v2267, %v4707
      %v4740 = vadd.f32 %v2268, %v4708
      %v4741 = vadd.f32 %v2269, %v4709
      %v4742 = vadd.f32 %v2270, %v4710
      %v4743 = vadd.f32 %v2271, %v4711
      %v4744 = vadd.f32 %v2272, %v4712
      %v4745 = vadd.f32 %v2273, %v4713
      %v4746 = vadd.f32 %v2274, %v4714
      %v4747 = vadd.f32 %v2275, %v4715
      %s4748 = scalar_lea.vmem %s6, 32
      %v4749 = vld [vmem:[%s4748] sm:$0xff]
      %v4750 = vld [vmem:[%s4748 + $0x8] sm:$0xff]
      %v4751 = vld [vmem:[%s4748 + $0x10] sm:$0xff]
      %v4752 = vld [vmem:[%s4748 + $0x18] sm:$0xff]
      %s4753 = scalar_lea.vmem %s7, 1
      %v4754 = vld [vmem:[%s4753] sm:$0x1]
      %v4756 = vlaneseq
      %v4757 = vshrl.u32 %v4756, 7
      %v4758 = vsub.s32 0, %v4757
      %v4759 = vrot.slane %v4754, %v4758
      %v4762 = vsel %vm530, %v4716, 0
      %v4765 = vsel %vm530, %v4717, 0
      %v4768 = vsel %vm530, %v4718, 0
      %v4771 = vsel %vm530, %v4719, 0
      %v4774 = vsel %vm530, %v4720, 0
      %v4777 = vsel %vm530, %v4721, 0
      %v4780 = vsel %vm530, %v4722, 0
      %v4783 = vsel %vm530, %v4723, 0
      %v4786 = vsel %vm530, %v4724, 0
      %v4789 = vsel %vm530, %v4725, 0
      %v4792 = vsel %vm530, %v4726, 0
      %v4795 = vsel %vm530, %v4727, 0
      %v4798 = vsel %vm530, %v4728, 0
      %v4801 = vsel %vm530, %v4729, 0
      %v4804 = vsel %vm530, %v4730, 0
      %v4807 = vsel %vm530, %v4731, 0
      %v4810 = vsel %vm530, %v4732, 0
      %v4813 = vsel %vm530, %v4733, 0
      %v4816 = vsel %vm530, %v4734, 0
      %v4819 = vsel %vm530, %v4735, 0
      %v4822 = vsel %vm530, %v4736, 0
      %v4825 = vsel %vm530, %v4737, 0
      %v4828 = vsel %vm530, %v4738, 0
      %v4831 = vsel %vm530, %v4739, 0
      %v4834 = vsel %vm530, %v4740, 0
      %v4837 = vsel %vm530, %v4741, 0
      %v4840 = vsel %vm530, %v4742, 0
      %v4843 = vsel %vm530, %v4743, 0
      %v4846 = vsel %vm530, %v4744, 0
      %v4849 = vsel %vm530, %v4745, 0
      %v4852 = vsel %vm530, %v4746, 0
      %v4855 = vsel %vm530, %v4747, 0
      %4857 = vmatprep.subr.mxu0 0.0
      %4858 = vmatpush1.msra.mxu0 %v4749
      %4859 = vmatprep.subr.mxu0 0.0
      %4860 = vmatpush1.msra.mxu0 %v4750
      %4861 = vmatprep.subr.mxu0 0.0
      %4862 = vmatpush1.msra.mxu0 %v4751
      %4863 = vmatprep.subr.mxu0 0.0
      %4864 = vmatpush1.msra.mxu0 %v4752
      %4865 = vmatprep.subr.mxu0 0.0
      %4866 = vmatpush1.msra.mxu0 0.0
      %4867 = vmatprep.subr.mxu0 0.0
      %4868 = vmatpush1.msra.mxu0 0.0
      %4869 = vmatprep.subr.mxu0 0.0
      %4870 = vmatpush1.msra.mxu0 0.0
      %4871 = vmatprep.subr.mxu0 0.0
      %4872 = vmatpush1.msra.mxu0 0.0
      %4873 = vmatprep.subr.mxu0 0.0
      %4874 = vmatpush1.msra.mxu0 0.0
      %4875 = vmatprep.subr.mxu0 0.0
      %4876 = vmatpush1.msra.mxu0 0.0
      %4877 = vmatprep.subr.mxu0 0.0
      %4878 = vmatpush1.msra.mxu0 0.0
      %4879 = vmatprep.subr.mxu0 0.0
      %4880 = vmatpush1.msra.mxu0 0.0
      %4881 = vmatprep.subr.mxu0 0.0
      %4882 = vmatpush1.msra.mxu0 0.0
      %4883 = vmatprep.subr.mxu0 0.0
      %4884 = vmatpush1.msra.mxu0 0.0
      %4885 = vmatprep.subr.mxu0 0.0
      %4886 = vmatpush1.msra.mxu0 0.0
      %4887 = vmatprep.subr.mxu0 0.0
      %4888 = vmatpush1.msra.mxu0 0.0
      %4889 = vmatprep.subr.mxu0 0.0
      %4890 = vmatpush1.msra.mxu0 0.0
      %4891 = vmatprep.subr.mxu0 0.0
      %4892 = vmatpush1.msra.mxu0 0.0
      %4893 = vmatprep.subr.mxu0 0.0
      %4894 = vmatpush1.msra.mxu0 0.0
      %4895 = vmatprep.subr.mxu0 0.0
      %4896 = vmatpush1.msra.mxu0 0.0
      %4897 = vmatprep.subr.mxu0 0.0
      %4898 = vmatpush1.msra.mxu0 0.0
      %4899 = vmatprep.subr.mxu0 0.0
      %4900 = vmatpush1.msra.mxu0 0.0
      %4901 = vmatprep.subr.mxu0 0.0
      %4902 = vmatpush1.msra.mxu0 0.0
      %4903 = vmatprep.subr.mxu0 0.0
      %4904 = vmatpush1.msra.mxu0 0.0
      %4905 = vmatprep.subr.mxu0 0.0
      %4906 = vmatpush1.msra.mxu0 0.0
      %4907 = vmatprep.subr.mxu0 0.0
      %4908 = vmatpush1.msra.mxu0 0.0
      %4909 = vmatprep.subr.mxu0 0.0
      %4910 = vmatpush1.msra.mxu0 0.0
      %4911 = vmatprep.subr.mxu0 0.0
      %4912 = vmatpush1.msra.mxu0 0.0
      %4913 = vmatprep.subr.mxu0 0.0
      %4914 = vmatpush1.msra.mxu0 0.0
      %4915 = vmatprep.subr.mxu0 0.0
      %4916 = vmatpush1.msra.mxu0 0.0
      %4917 = vmatprep.subr.mxu0 0.0
      %4918 = vmatpush1.msra.mxu0 0.0
      %4919 = vmatprep.subr.mxu0 0.0
      %4920 = vmatpush1.msra.mxu0 0.0
      %4921 = vmatprep.mubr.f32.mxu0 0.0
      %4922 = vmatmul.mubr.f32.gmra.mrb[0].mxu0 %v4762
      %v4923 = vpop.f32.mrb[0].mxu0
      %v4924 = vadd.f32 %v4759, %v4923
      %v4925 = vpop.f32.mrb[0].mxu0
      %4926 = vmatprep.mubr.f32.mxu0 0.0
      %4927 = vmatmul.mubr.f32.gmra.mrb[0].mxu0 %v4765
      %v4928 = vpop.f32.mrb[0].mxu0
      %v4929 = vadd.f32 %v4759, %v4928
      %v4930 = vpop.f32.mrb[0].mxu0
      %4931 = vmatprep.mubr.f32.mxu0 0.0
      %4932 = vmatmul.mubr.f32.gmra.mrb[0].mxu0 %v4768
      %v4933 = vpop.f32.mrb[0].mxu0
      %v4934 = vadd.f32 %v4759, %v4933
      %v4935 = vpop.f32.mrb[0].mxu0
      %4936 = vmatprep.mubr.f32.mxu0 0.0
      %4937 = vmatmul.mubr.f32.gmra.mrb[0].mxu0 %v4771
      %v4938 = vpop.f32.mrb[0].mxu0
      %v4939 = vadd.f32 %v4759, %v4938
      %v4940 = vpop.f32.mrb[0].mxu0
      %4941 = vmatprep.mubr.f32.mxu0 0.0
      %4942 = vmatmul.mubr.f32.gmra.mrb[0].mxu0 %v4774
      %v4943 = vpop.f32.mrb[0].mxu0
      %v4944 = vadd.f32 %v4759, %v4943
      %v4945 = vpop.f32.mrb[0].mxu0
      %4946 = vmatprep.mubr.f32.mxu0 0.0
      %4947 = vmatmul.mubr.f32.gmra.mrb[0].mxu0 %v4777
      %v4948 = vpop.f32.mrb[0].mxu0
      %v4949 = vadd.f32 %v4759, %v4948
      %v4950 = vpop.f32.mrb[0].mxu0
      %4951 = vmatprep.mubr.f32.mxu0 0.0
      %4952 = vmatmul.mubr.f32.gmra.mrb[0].mxu0 %v4780
      %v4953 = vpop.f32.mrb[0].mxu0
      %v4954 = vadd.f32 %v4759, %v4953
      %v4955 = vpop.f32.mrb[0].mxu0
      %4956 = vmatprep.mubr.f32.mxu0 0.0
      %4957 = vmatmul.mubr.f32.gmra.mrb[0].mxu0 %v4783
      %v4958 = vpop.f32.mrb[0].mxu0
      %v4959 = vadd.f32 %v4759, %v4958
      %v4960 = vpop.f32.mrb[0].mxu0
      %4961 = vmatprep.mubr.f32.mxu0 0.0
      %4962 = vmatmul.mubr.f32.gmra.mrb[0].mxu0 %v4786
      %v4963 = vpop.f32.mrb[0].mxu0
      %v4964 = vadd.f32 %v4759, %v4963
      %v4965 = vpop.f32.mrb[0].mxu0
      %4966 = vmatprep.mubr.f32.mxu0 0.0
      %4967 = vmatmul.mubr.f32.gmra.mrb[0].mxu0 %v4789
      %v4968 = vpop.f32.mrb[0].mxu0
      %v4969 = vadd.f32 %v4759, %v4968
      %v4970 = vpop.f32.mrb[0].mxu0
      %4971 = vmatprep.mubr.f32.mxu0 0.0
      %4972 = vmatmul.mubr.f32.gmra.mrb[0].mxu0 %v4792
      %v4973 = vpop.f32.mrb[0].mxu0
      %v4974 = vadd.f32 %v4759, %v4973
      %v4975 = vpop.f32.mrb[0].mxu0
      %4976 = vmatprep.mubr.f32.mxu0 0.0
      %4977 = vmatmul.mubr.f32.gmra.mrb[0].mxu0 %v4795
      %v4978 = vpop.f32.mrb[0].mxu0
      %v4979 = vadd.f32 %v4759, %v4978
      %v4980 = vpop.f32.mrb[0].mxu0
      %4981 = vmatprep.mubr.f32.mxu0 0.0
      %4982 = vmatmul.mubr.f32.gmra.mrb[0].mxu0 %v4798
      %v4983 = vpop.f32.mrb[0].mxu0
      %v4984 = vadd.f32 %v4759, %v4983
      %v4985 = vpop.f32.mrb[0].mxu0
      %4986 = vmatprep.mubr.f32.mxu0 0.0
      %4987 = vmatmul.mubr.f32.gmra.mrb[0].mxu0 %v4801
      %v4988 = vpop.f32.mrb[0].mxu0
      %v4989 = vadd.f32 %v4759, %v4988
      %v4990 = vpop.f32.mrb[0].mxu0
      %4991 = vmatprep.mubr.f32.mxu0 0.0
      %4992 = vmatmul.mubr.f32.gmra.mrb[0].mxu0 %v4804
      %v4993 = vpop.f32.mrb[0].mxu0
      %v4994 = vadd.f32 %v4759, %v4993
      %v4995 = vpop.f32.mrb[0].mxu0
      %4996 = vmatprep.mubr.f32.mxu0 0.0
      %4997 = vmatmul.mubr.f32.gmra.mrb[0].mxu0 %v4807
      %v4998 = vpop.f32.mrb[0].mxu0
      %v4999 = vadd.f32 %v4759, %v4998
      %v5000 = vpop.f32.mrb[0].mxu0
      %5001 = vmatprep.mubr.f32.mxu0 0.0
      %5002 = vmatmul.mubr.f32.gmra.mrb[0].mxu0 %v4810
      %v5003 = vpop.f32.mrb[0].mxu0
      %v5004 = vadd.f32 %v4759, %v5003
      %v5005 = vpop.f32.mrb[0].mxu0
      %5006 = vmatprep.mubr.f32.mxu0 0.0
      %5007 = vmatmul.mubr.f32.gmra.mrb[0].mxu0 %v4813
      %v5008 = vpop.f32.mrb[0].mxu0
      %v5009 = vadd.f32 %v4759, %v5008
      %v5010 = vpop.f32.mrb[0].mxu0
      %5011 = vmatprep.mubr.f32.mxu0 0.0
      %5012 = vmatmul.mubr.f32.gmra.mrb[0].mxu0 %v4816
      %v5013 = vpop.f32.mrb[0].mxu0
      %v5014 = vadd.f32 %v4759, %v5013
      %v5015 = vpop.f32.mrb[0].mxu0
      %5016 = vmatprep.mubr.f32.mxu0 0.0
      %5017 = vmatmul.mubr.f32.gmra.mrb[0].mxu0 %v4819
      %v5018 = vpop.f32.mrb[0].mxu0
      %v5019 = vadd.f32 %v4759, %v5018
      %v5020 = vpop.f32.mrb[0].mxu0
      %5021 = vmatprep.mubr.f32.mxu0 0.0
      %5022 = vmatmul.mubr.f32.gmra.mrb[0].mxu0 %v4822
      %v5023 = vpop.f32.mrb[0].mxu0
      %v5024 = vadd.f32 %v4759, %v5023
      %v5025 = vpop.f32.mrb[0].mxu0
      %5026 = vmatprep.mubr.f32.mxu0 0.0
      %5027 = vmatmul.mubr.f32.gmra.mrb[0].mxu0 %v4825
      %v5028 = vpop.f32.mrb[0].mxu0
      %v5029 = vadd.f32 %v4759, %v5028
      %v5030 = vpop.f32.mrb[0].mxu0
      %5031 = vmatprep.mubr.f32.mxu0 0.0
      %5032 = vmatmul.mubr.f32.gmra.mrb[0].mxu0 %v4828
      %v5033 = vpop.f32.mrb[0].mxu0
      %v5034 = vadd.f32 %v4759, %v5033
      %v5035 = vpop.f32.mrb[0].mxu0
      %5036 = vmatprep.mubr.f32.mxu0 0.0
      %5037 = vmatmul.mubr.f32.gmra.mrb[0].mxu0 %v4831
      %v5038 = vpop.f32.mrb[0].mxu0
      %v5039 = vadd.f32 %v4759, %v5038
      %v5040 = vpop.f32.mrb[0].mxu0
      %5041 = vmatprep.mubr.f32.mxu0 0.0
      %5042 = vmatmul.mubr.f32.gmra.mrb[0].mxu0 %v4834
      %v5043 = vpop.f32.mrb[0].mxu0
      %v5044 = vadd.f32 %v4759, %v5043
      %v5045 = vpop.f32.mrb[0].mxu0
      %5046 = vmatprep.mubr.f32.mxu0 0.0
      %5047 = vmatmul.mubr.f32.gmra.mrb[0].mxu0 %v4837
      %v5048 = vpop.f32.mrb[0].mxu0
      %v5049 = vadd.f32 %v4759, %v5048
      %v5050 = vpop.f32.mrb[0].mxu0
      %5051 = vmatprep.mubr.f32.mxu0 0.0
      %5052 = vmatmul.mubr.f32.gmra.mrb[0].mxu0 %v4840
      %v5053 = vpop.f32.mrb[0].mxu0
      %v5054 = vadd.f32 %v4759, %v5053
      %v5055 = vpop.f32.mrb[0].mxu0
      %5056 = vmatprep.mubr.f32.mxu0 0.0
      %5057 = vmatmul.mubr.f32.gmra.mrb[0].mxu0 %v4843
      %v5058 = vpop.f32.mrb[0].mxu0
      %v5059 = vadd.f32 %v4759, %v5058
      %v5060 = vpop.f32.mrb[0].mxu0
      %5061 = vmatprep.mubr.f32.mxu0 0.0
      %5062 = vmatmul.mubr.f32.gmra.mrb[0].mxu0 %v4846
      %v5063 = vpop.f32.mrb[0].mxu0
      %v5064 = vadd.f32 %v4759, %v5063
      %v5065 = vpop.f32.mrb[0].mxu0
      %5066 = vmatprep.mubr.f32.mxu0 0.0
      %5067 = vmatmul.mubr.f32.gmra.mrb[0].mxu0 %v4849
      %v5068 = vpop.f32.mrb[0].mxu0
      %v5069 = vadd.f32 %v4759, %v5068
      %v5070 = vpop.f32.mrb[0].mxu0
      %5071 = vmatprep.mubr.f32.mxu0 0.0
      %5072 = vmatmul.mubr.f32.gmra.mrb[0].mxu0 %v4852
      %v5073 = vpop.f32.mrb[0].mxu0
      %v5074 = vadd.f32 %v4759, %v5073
      %v5075 = vpop.f32.mrb[0].mxu0
      %5076 = vmatprep.mubr.f32.mxu0 0.0
      %5077 = vmatmul.mubr.f32.gmra.mrb[0].mxu0 %v4855
      %v5078 = vpop.f32.mrb[0].mxu0
      %v5079 = vadd.f32 %v4759, %v5078
      %v5080 = vpop.f32.mrb[0].mxu0
      %5081 = vdwg.mxu0
      %v5082 = vmax.f32 %v4924, 0.0
      %v5083 = vmax.f32 %v4929, 0.0
      %v5084 = vmax.f32 %v4934, 0.0
      %v5085 = vmax.f32 %v4939, 0.0
      %v5086 = vmax.f32 %v4944, 0.0
      %v5087 = vmax.f32 %v4949, 0.0
      %v5088 = vmax.f32 %v4954, 0.0
      %v5089 = vmax.f32 %v4959, 0.0
      %v5090 = vmax.f32 %v4964, 0.0
      %v5091 = vmax.f32 %v4969, 0.0
      %v5092 = vmax.f32 %v4974, 0.0
      %v5093 = vmax.f32 %v4979, 0.0
      %v5094 = vmax.f32 %v4984, 0.0
      %v5095 = vmax.f32 %v4989, 0.0
      %v5096 = vmax.f32 %v4994, 0.0
      %v5097 = vmax.f32 %v4999, 0.0
      %v5098 = vmax.f32 %v5004, 0.0
      %v5099 = vmax.f32 %v5009, 0.0
      %v5100 = vmax.f32 %v5014, 0.0
      %v5101 = vmax.f32 %v5019, 0.0
      %v5102 = vmax.f32 %v5024, 0.0
      %v5103 = vmax.f32 %v5029, 0.0
      %v5104 = vmax.f32 %v5034, 0.0
      %v5105 = vmax.f32 %v5039, 0.0
      %v5106 = vmax.f32 %v5044, 0.0
      %v5107 = vmax.f32 %v5049, 0.0
      %v5108 = vmax.f32 %v5054, 0.0
      %v5109 = vmax.f32 %v5059, 0.0
      %v5110 = vmax.f32 %v5064, 0.0
      %v5111 = vmax.f32 %v5069, 0.0
      %v5112 = vmax.f32 %v5074, 0.0
      %v5113 = vmax.f32 %v5079, 0.0
      %5114 = vst.msk [vmem:[%s2640 + $0x1] sm:$0xff] %vm530, %v5082
      %5115 = vst.msk [vmem:[%s2640 + $0x9] sm:$0xff] %vm530, %v5083
      %5116 = vst.msk [vmem:[%s2640 + $0x19] sm:$0xff] %vm530, %v5084
      %5117 = vst.msk [vmem:[%s2640 + $0x21] sm:$0xff] %vm530, %v5085
      %5118 = vst.msk [vmem:[%s2640 + $0x31] sm:$0xff] %vm530, %v5086
      %5119 = vst.msk [vmem:[%s2640 + $0x39] sm:$0xff] %vm530, %v5087
      %5120 = vst.msk [vmem:[%s2640 + $0x49] sm:$0xff] %vm530, %v5088
      %5121 = vst.msk [vmem:[%s2640 + $0x51] sm:$0xff] %vm530, %v5089
      %5122 = vst.msk [vmem:[%s2640 + $0x61] sm:$0xff] %vm530, %v5090
      %5123 = vst.msk [vmem:[%s2640 + $0x69] sm:$0xff] %vm530, %v5091
      %5124 = vst.msk [vmem:[%s2640 + $0x79] sm:$0xff] %vm530, %v5092
      %5125 = vst.msk [vmem:[%s2640 + $0x81] sm:$0xff] %vm530, %v5093
      %5126 = vst.msk [vmem:[%s2640 + $0x91] sm:$0xff] %vm530, %v5094
      %5127 = vst.msk [vmem:[%s2640 + $0x99] sm:$0xff] %vm530, %v5095
      %5128 = vst.msk [vmem:[%s2640 + $0xa9] sm:$0xff] %vm530, %v5096
      %5129 = vst.msk [vmem:[%s2640 + $0xb1] sm:$0xff] %vm530, %v5097
      %5130 = vst.msk [vmem:[%s2640 + $0xc1] sm:$0xff] %vm530, %v5098
      %5131 = vst.msk [vmem:[%s2640 + $0xc9] sm:$0xff] %vm530, %v5099
      %5132 = vst.msk [vmem:[%s2640 + $0xd9] sm:$0xff] %vm530, %v5100
      %5133 = vst.msk [vmem:[%s2640 + $0xe1] sm:$0xff] %vm530, %v5101
      %5134 = vst.msk [vmem:[%s2640 + $0xf1] sm:$0xff] %vm530, %v5102
      %5135 = vst.msk [vmem:[%s2640 + $0xf9] sm:$0xff] %vm530, %v5103
      %5136 = vst.msk [vmem:[%s2640 + $0x109] sm:$0xff] %vm530, %v5104
      %5137 = vst.msk [vmem:[%s2640 + $0x111] sm:$0xff] %vm530, %v5105
      %5138 = vst.msk [vmem:[%s2640 + $0x121] sm:$0xff] %vm530, %v5106
      %5139 = vst.msk [vmem:[%s2640 + $0x129] sm:$0xff] %vm530, %v5107
      %5140 = vst.msk [vmem:[%s2640 + $0x139] sm:$0xff] %vm530, %v5108
      %5141 = vst.msk [vmem:[%s2640 + $0x141] sm:$0xff] %vm530, %v5109
      %5142 = vst.msk [vmem:[%s2640 + $0x151] sm:$0xff] %vm530, %v5110
      %5143 = vst.msk [vmem:[%s2640 + $0x159] sm:$0xff] %vm530, %v5111
      %5144 = vst.msk [vmem:[%s2640 + $0x169] sm:$0xff] %vm530, %v5112
      %5145 = vst.msk [vmem:[%s2640 + $0x171] sm:$0xff] %vm530, %v5113
      %v5146 = vld [vmem:[#allocation2] sm:$0xff]
      %v5147 = vld [vmem:[#allocation2 + $0x8] sm:$0xff]
      %v5148 = vld [vmem:[#allocation2 + $0x10] sm:$0x3]
      %v5149 = vld [vmem:[#allocation2 + $0x18] sm:$0xff]
      %v5150 = vld [vmem:[#allocation2 + $0x20] sm:$0xff]
      %v5151 = vld [vmem:[#allocation2 + $0x28] sm:$0x3]
      %v5152 = vld [vmem:[#allocation2 + $0x30] sm:$0xff]
      %v5153 = vld [vmem:[#allocation2 + $0x38] sm:$0xff]
      %v5154 = vld [vmem:[#allocation2 + $0x40] sm:$0x3]
      %v5155 = vld [vmem:[#allocation2 + $0x48] sm:$0xff]
      %v5156 = vld [vmem:[#allocation2 + $0x50] sm:$0xff]
      %v5157 = vld [vmem:[#allocation2 + $0x58] sm:$0x3]
      %v5158 = vld [vmem:[#allocation2 + $0x60] sm:$0xff]
      %v5159 = vld [vmem:[#allocation2 + $0x68] sm:$0xff]
      %v5160 = vld [vmem:[#allocation2 + $0x70] sm:$0x3]
      %v5161 = vld [vmem:[#allocation2 + $0x78] sm:$0xff]
      %v5162 = vld [vmem:[#allocation2 + $0x80] sm:$0xff]
      %v5163 = vld [vmem:[#allocation2 + $0x88] sm:$0x3]
      %v5164 = vld [vmem:[#allocation2 + $0x90] sm:$0xff]
      %v5165 = vld [vmem:[#allocation2 + $0x98] sm:$0xff]
      %v5166 = vld [vmem:[#allocation2 + $0xa0] sm:$0x3]
      %v5167 = vld [vmem:[#allocation2 + $0xa8] sm:$0xff]
      %v5168 = vld [vmem:[#allocation2 + $0xb0] sm:$0xff]
      %v5169 = vld [vmem:[#allocation2 + $0xb8] sm:$0x3]
      %v5170 = vld [vmem:[#allocation2 + $0xc0] sm:$0xff]
      %v5171 = vld [vmem:[#allocation2 + $0xc8] sm:$0xff]
      %v5172 = vld [vmem:[#allocation2 + $0xd0] sm:$0x3]
      %v5173 = vld [vmem:[#allocation2 + $0xd8] sm:$0xff]
      %v5174 = vld [vmem:[#allocation2 + $0xe0] sm:$0xff]
      %v5175 = vld [vmem:[#allocation2 + $0xe8] sm:$0x3]
      %v5176 = vld [vmem:[#allocation2 + $0xf0] sm:$0xff]
      %v5177 = vld [vmem:[#allocation2 + $0xf8] sm:$0xff]
      %v5178 = vld [vmem:[#allocation2 + $0x100] sm:$0x3]
      %v5179 = vld [vmem:[#allocation2 + $0x108] sm:$0xff]
      %v5180 = vld [vmem:[#allocation2 + $0x110] sm:$0xff]
      %v5181 = vld [vmem:[#allocation2 + $0x118] sm:$0x3]
      %v5182 = vld [vmem:[#allocation2 + $0x120] sm:$0xff]
      %v5183 = vld [vmem:[#allocation2 + $0x128] sm:$0xff]
      %v5184 = vld [vmem:[#allocation2 + $0x130] sm:$0x3]
      %v5185 = vld [vmem:[#allocation2 + $0x138] sm:$0xff]
      %v5186 = vld [vmem:[#allocation2 + $0x140] sm:$0xff]
      %v5187 = vld [vmem:[#allocation2 + $0x148] sm:$0x3]
      %v5188 = vld [vmem:[#allocation2 + $0x150] sm:$0xff]
      %v5189 = vld [vmem:[#allocation2 + $0x158] sm:$0xff]
      %v5190 = vld [vmem:[#allocation2 + $0x160] sm:$0x3]
      %v5191 = vld [vmem:[#allocation2 + $0x168] sm:$0xff]
      %v5192 = vld [vmem:[#allocation2 + $0x170] sm:$0xff]
      %v5193 = vld [vmem:[#allocation2 + $0x178] sm:$0x3]
      %v5194 = vld [vmem:[#allocation2 + $0x180] sm:$0xff]
      %v5195 = vld [vmem:[#allocation2 + $0x188] sm:$0xff]
      %v5196 = vld [vmem:[#allocation2 + $0x190] sm:$0x3]
      %v5197 = vld [vmem:[#allocation2 + $0x198] sm:$0xff]
      %v5198 = vld [vmem:[#allocation2 + $0x1a0] sm:$0xff]
      %v5199 = vld [vmem:[#allocation2 + $0x1a8] sm:$0x3]
      %s5200 = scalar_lea.vmem %s8, 288
      %v5201 = vld [vmem:[%s5200] sm:$0xff]
      %v5202 = vld [vmem:[%s5200 + $0x8] sm:$0xff]
      %v5203 = vld [vmem:[%s5200 + $0x10] sm:$0xff]
      %v5204 = vld [vmem:[%s5200 + $0x18] sm:$0xff]
      %v5205 = vld [vmem:[%s5200 + $0x20] sm:$0xff]
      %v5206 = vld [vmem:[%s5200 + $0x28] sm:$0xff]
      %v5207 = vld [vmem:[%s5200 + $0x30] sm:$0xff]
      %v5208 = vld [vmem:[%s5200 + $0x38] sm:$0xff]
      %v5209 = vld [vmem:[%s5200 + $0x40] sm:$0xff]
      %v5210 = vld [vmem:[%s5200 + $0x48] sm:$0xff]
      %v5211 = vld [vmem:[%s5200 + $0x50] sm:$0xff]
      %v5212 = vld [vmem:[%s5200 + $0x58] sm:$0xff]
      %v5213 = vld [vmem:[%s5200 + $0x60] sm:$0xff]
      %v5214 = vld [vmem:[%s5200 + $0x68] sm:$0xff]
      %v5215 = vld [vmem:[%s5200 + $0x70] sm:$0xff]
      %v5216 = vld [vmem:[%s5200 + $0x78] sm:$0xff]
      %v5217 = vld [vmem:[%s5200 + $0x80] sm:$0xff]
      %v5218 = vld [vmem:[%s5200 + $0x88] sm:$0xff]
      %v5219 = vld [vmem:[%s5200 + $0x90] sm:$0xff]
      %v5220 = vld [vmem:[%s5200 + $0x98] sm:$0xff]
      %v5221 = vld [vmem:[%s5200 + $0xa0] sm:$0xff]
      %v5222 = vld [vmem:[%s5200 + $0xa8] sm:$0xff]
      %v5223 = vld [vmem:[%s5200 + $0xb0] sm:$0xff]
      %v5224 = vld [vmem:[%s5200 + $0xb8] sm:$0xff]
      %v5225 = vld [vmem:[%s5200 + $0xc0] sm:$0xff]
      %v5226 = vld [vmem:[%s5200 + $0xc8] sm:$0xff]
      %v5227 = vld [vmem:[%s5200 + $0xd0] sm:$0xff]
      %v5228 = vld [vmem:[%s5200 + $0xd8] sm:$0xff]
      %v5229 = vld [vmem:[%s5200 + $0xe0] sm:$0xff]
      %v5230 = vld [vmem:[%s5200 + $0xe8] sm:$0xff]
      %v5231 = vld [vmem:[%s5200 + $0xf0] sm:$0xff]
      %v5232 = vld [vmem:[%s5200 + $0xf8] sm:$0xff]
      %v5233 = vld [vmem:[%s5200 + $0x100] sm:$0xff]
      %v5234 = vld [vmem:[%s5200 + $0x108] sm:$0xff]
      %v5235 = vld [vmem:[%s5200 + $0x110] sm:$0xff]
      %v5236 = vld [vmem:[%s5200 + $0x118] sm:$0xff]
      %s5237 = scalar_lea.vmem %s9, 1
      %v5238 = vld [vmem:[%s5237] sm:$0x1]
      %v5287 = vrot.slane %v5146, 1
      %v5288 = vrot.slane %v5147, 1
      %v5289 = vsel %vm692, %v5287, %v5288
      %v5290 = vrot.slane %v5148, 1
      %v5291 = vsel %vm692, %v5288, %v5290
      %v5292 = vrot.slane %v5149, 1
      %v5293 = vrot.slane %v5150, 1
      %v5294 = vsel %vm692, %v5292, %v5293
      %v5295 = vrot.slane %v5151, 1
      %v5296 = vsel %vm692, %v5293, %v5295
      %v5297 = vrot.slane %v5152, 1
      %v5298 = vrot.slane %v5153, 1
      %v5299 = vsel %vm692, %v5297, %v5298
      %v5300 = vrot.slane %v5154, 1
      %v5301 = vsel %vm692, %v5298, %v5300
      %v5302 = vrot.slane %v5155, 1
      %v5303 = vrot.slane %v5156, 1
      %v5304 = vsel %vm692, %v5302, %v5303
      %v5305 = vrot.slane %v5157, 1
      %v5306 = vsel %vm692, %v5303, %v5305
      %v5307 = vrot.slane %v5158, 1
      %v5308 = vrot.slane %v5159, 1
      %v5309 = vsel %vm692, %v5307, %v5308
      %v5310 = vrot.slane %v5160, 1
      %v5311 = vsel %vm692, %v5308, %v5310
      %v5312 = vrot.slane %v5161, 1
      %v5313 = vrot.slane %v5162, 1
      %v5314 = vsel %vm692, %v5312, %v5313
      %v5315 = vrot.slane %v5163, 1
      %v5316 = vsel %vm692, %v5313, %v5315
      %v5317 = vrot.slane %v5164, 1
      %v5318 = vrot.slane %v5165, 1
      %v5319 = vsel %vm692, %v5317, %v5318
      %v5320 = vrot.slane %v5166, 1
      %v5321 = vsel %vm692, %v5318, %v5320
      %v5322 = vrot.slane %v5167, 1
      %v5323 = vrot.slane %v5168, 1
      %v5324 = vsel %vm692, %v5322, %v5323
      %v5325 = vrot.slane %v5169, 1
      %v5326 = vsel %vm692, %v5323, %v5325
      %v5327 = vrot.slane %v5170, 1
      %v5328 = vrot.slane %v5171, 1
      %v5329 = vsel %vm692, %v5327, %v5328
      %v5330 = vrot.slane %v5172, 1
      %v5331 = vsel %vm692, %v5328, %v5330
      %v5332 = vrot.slane %v5173, 1
      %v5333 = vrot.slane %v5174, 1
      %v5334 = vsel %vm692, %v5332, %v5333
      %v5335 = vrot.slane %v5175, 1
      %v5336 = vsel %vm692, %v5333, %v5335
      %v5337 = vrot.slane %v5176, 1
      %v5338 = vrot.slane %v5177, 1
      %v5339 = vsel %vm692, %v5337, %v5338
      %v5340 = vrot.slane %v5178, 1
      %v5341 = vsel %vm692, %v5338, %v5340
      %v5342 = vrot.slane %v5179, 1
      %v5343 = vrot.slane %v5180, 1
      %v5344 = vsel %vm692, %v5342, %v5343
      %v5345 = vrot.slane %v5181, 1
      %v5346 = vsel %vm692, %v5343, %v5345
      %v5347 = vrot.slane %v5182, 1
      %v5348 = vrot.slane %v5183, 1
      %v5349 = vsel %vm692, %v5347, %v5348
      %v5350 = vrot.slane %v5184, 1
      %v5351 = vsel %vm692, %v5348, %v5350
      %v5352 = vrot.slane %v5185, 1
      %v5353 = vrot.slane %v5186, 1
      %v5354 = vsel %vm692, %v5352, %v5353
      %v5355 = vrot.slane %v5187, 1
      %v5356 = vsel %vm692, %v5353, %v5355
      %v5357 = vrot.slane %v5188, 1
      %v5358 = vrot.slane %v5189, 1
      %v5359 = vsel %vm692, %v5357, %v5358
      %v5360 = vrot.slane %v5190, 1
      %v5361 = vsel %vm692, %v5358, %v5360
      %v5362 = vrot.slane %v5191, 1
      %v5363 = vrot.slane %v5192, 1
      %v5364 = vsel %vm692, %v5362, %v5363
      %v5365 = vrot.slane %v5193, 1
      %v5366 = vsel %vm692, %v5363, %v5365
      %v5367 = vrot.slane %v5146, 2
      %v5368 = vrot.slane %v5147, 2
      %v5369 = vsel %vm773, %v5367, %v5368
      %v5370 = vrot.slane %v5148, 2
      %v5371 = vsel %vm773, %v5368, %v5370
      %v5372 = vrot.slane %v5149, 2
      %v5373 = vrot.slane %v5150, 2
      %v5374 = vsel %vm773, %v5372, %v5373
      %v5375 = vrot.slane %v5151, 2
      %v5376 = vsel %vm773, %v5373, %v5375
      %v5377 = vrot.slane %v5152, 2
      %v5378 = vrot.slane %v5153, 2
      %v5379 = vsel %vm773, %v5377, %v5378
      %v5380 = vrot.slane %v5154, 2
      %v5381 = vsel %vm773, %v5378, %v5380
      %v5382 = vrot.slane %v5155, 2
      %v5383 = vrot.slane %v5156, 2
      %v5384 = vsel %vm773, %v5382, %v5383
      %v5385 = vrot.slane %v5157, 2
      %v5386 = vsel %vm773, %v5383, %v5385
      %v5387 = vrot.slane %v5158, 2
      %v5388 = vrot.slane %v5159, 2
      %v5389 = vsel %vm773, %v5387, %v5388
      %v5390 = vrot.slane %v5160, 2
      %v5391 = vsel %vm773, %v5388, %v5390
      %v5392 = vrot.slane %v5161, 2
      %v5393 = vrot.slane %v5162, 2
      %v5394 = vsel %vm773, %v5392, %v5393
      %v5395 = vrot.slane %v5163, 2
      %v5396 = vsel %vm773, %v5393, %v5395
      %v5397 = vrot.slane %v5164, 2
      %v5398 = vrot.slane %v5165, 2
      %v5399 = vsel %vm773, %v5397, %v5398
      %v5400 = vrot.slane %v5166, 2
      %v5401 = vsel %vm773, %v5398, %v5400
      %v5402 = vrot.slane %v5167, 2
      %v5403 = vrot.slane %v5168, 2
      %v5404 = vsel %vm773, %v5402, %v5403
      %v5405 = vrot.slane %v5169, 2
      %v5406 = vsel %vm773, %v5403, %v5405
      %v5407 = vrot.slane %v5170, 2
      %v5408 = vrot.slane %v5171, 2
      %v5409 = vsel %vm773, %v5407, %v5408
      %v5410 = vrot.slane %v5172, 2
      %v5411 = vsel %vm773, %v5408, %v5410
      %v5412 = vrot.slane %v5173, 2
      %v5413 = vrot.slane %v5174, 2
      %v5414 = vsel %vm773, %v5412, %v5413
      %v5415 = vrot.slane %v5175, 2
      %v5416 = vsel %vm773, %v5413, %v5415
      %v5417 = vrot.slane %v5176, 2
      %v5418 = vrot.slane %v5177, 2
      %v5419 = vsel %vm773, %v5417, %v5418
      %v5420 = vrot.slane %v5178, 2
      %v5421 = vsel %vm773, %v5418, %v5420
      %v5422 = vrot.slane %v5179, 2
      %v5423 = vrot.slane %v5180, 2
      %v5424 = vsel %vm773, %v5422, %v5423
      %v5425 = vrot.slane %v5181, 2
      %v5426 = vsel %vm773, %v5423, %v5425
      %v5427 = vrot.slane %v5182, 2
      %v5428 = vrot.slane %v5183, 2
      %v5429 = vsel %vm773, %v5427, %v5428
      %v5430 = vrot.slane %v5184, 2
      %v5431 = vsel %vm773, %v5428, %v5430
      %v5432 = vrot.slane %v5185, 2
      %v5433 = vrot.slane %v5186, 2
      %v5434 = vsel %vm773, %v5432, %v5433
      %v5435 = vrot.slane %v5187, 2
      %v5436 = vsel %vm773, %v5433, %v5435
      %v5437 = vrot.slane %v5188, 2
      %v5438 = vrot.slane %v5189, 2
      %v5439 = vsel %vm773, %v5437, %v5438
      %v5440 = vrot.slane %v5190, 2
      %v5441 = vsel %vm773, %v5438, %v5440
      %v5442 = vrot.slane %v5191, 2
      %v5443 = vrot.slane %v5192, 2
      %v5444 = vsel %vm773, %v5442, %v5443
      %v5445 = vrot.slane %v5193, 2
      %v5446 = vsel %vm773, %v5443, %v5445
      %v5450 = vrot.slane %v5194, 1
      %v5451 = vrot.slane %v5195, 1
      %v5452 = vsel %vm692, %v5450, %v5451
      %v5453 = vrot.slane %v5196, 1
      %v5454 = vsel %vm692, %v5451, %v5453
      %v5487 = vrot.slane %v5194, 2
      %v5488 = vrot.slane %v5195, 2
      %v5489 = vsel %vm773, %v5487, %v5488
      %v5490 = vrot.slane %v5196, 2
      %v5491 = vsel %vm773, %v5488, %v5490
      %v5495 = vrot.slane %v5197, 1
      %v5496 = vrot.slane %v5198, 1
      %v5497 = vsel %vm692, %v5495, %v5496
      %v5498 = vrot.slane %v5199, 1
      %v5499 = vsel %vm692, %v5496, %v5498
      %v5500 = vrot.slane %v5197, 2
      %v5501 = vrot.slane %v5198, 2
      %v5502 = vsel %vm773, %v5500, %v5501
      %v5503 = vrot.slane %v5199, 2
      %v5504 = vsel %vm773, %v5501, %v5503
      %5505 = vrot.lane.b32.xlu0 %v5289, 32
      %v5506 = vpop.permute.xlu0 %5505
      %5507 = vrot.lane.b32.xlu0 %v5291, 32
      %v5508 = vpop.permute.xlu0 %5507
      %5509 = vrot.lane.b32.xlu0 %v5294, 32
      %v5510 = vpop.permute.xlu0 %5509
      %5511 = vrot.lane.b32.xlu0 %v5296, 32
      %v5512 = vpop.permute.xlu0 %5511
      %5513 = vrot.lane.b32.xlu0 %v5299, 32
      %v5514 = vpop.permute.xlu0 %5513
      %5515 = vrot.lane.b32.xlu0 %v5301, 32
      %v5516 = vpop.permute.xlu0 %5515
      %5517 = vrot.lane.b32.xlu0 %v5304, 32
      %v5518 = vpop.permute.xlu0 %5517
      %5519 = vrot.lane.b32.xlu0 %v5306, 32
      %v5520 = vpop.permute.xlu0 %5519
      %5521 = vrot.lane.b32.xlu0 %v5309, 32
      %v5522 = vpop.permute.xlu0 %5521
      %5523 = vrot.lane.b32.xlu0 %v5311, 32
      %v5524 = vpop.permute.xlu0 %5523
      %5525 = vrot.lane.b32.xlu0 %v5314, 32
      %v5526 = vpop.permute.xlu0 %5525
      %5527 = vrot.lane.b32.xlu0 %v5316, 32
      %v5528 = vpop.permute.xlu0 %5527
      %5529 = vrot.lane.b32.xlu0 %v5319, 32
      %v5530 = vpop.permute.xlu0 %5529
      %5531 = vrot.lane.b32.xlu0 %v5321, 32
      %v5532 = vpop.permute.xlu0 %5531
      %5533 = vrot.lane.b32.xlu0 %v5324, 32
      %v5534 = vpop.permute.xlu0 %5533
      %5535 = vrot.lane.b32.xlu0 %v5326, 32
      %v5536 = vpop.permute.xlu0 %5535
      %5537 = vrot.lane.b32.xlu0 %v5329, 32
      %v5538 = vpop.permute.xlu0 %5537
      %5539 = vrot.lane.b32.xlu0 %v5331, 32
      %v5540 = vpop.permute.xlu0 %5539
      %5541 = vrot.lane.b32.xlu0 %v5334, 32
      %v5542 = vpop.permute.xlu0 %5541
      %5543 = vrot.lane.b32.xlu0 %v5336, 32
      %v5544 = vpop.permute.xlu0 %5543
      %5545 = vrot.lane.b32.xlu0 %v5339, 32
      %v5546 = vpop.permute.xlu0 %5545
      %5547 = vrot.lane.b32.xlu0 %v5341, 32
      %v5548 = vpop.permute.xlu0 %5547
      %5549 = vrot.lane.b32.xlu0 %v5344, 32
      %v5550 = vpop.permute.xlu0 %5549
      %5551 = vrot.lane.b32.xlu0 %v5346, 32
      %v5552 = vpop.permute.xlu0 %5551
      %5553 = vrot.lane.b32.xlu0 %v5349, 32
      %v5554 = vpop.permute.xlu0 %5553
      %5555 = vrot.lane.b32.xlu0 %v5351, 32
      %v5556 = vpop.permute.xlu0 %5555
      %5557 = vrot.lane.b32.xlu0 %v5354, 32
      %v5558 = vpop.permute.xlu0 %5557
      %5559 = vrot.lane.b32.xlu0 %v5356, 32
      %v5560 = vpop.permute.xlu0 %5559
      %5561 = vrot.lane.b32.xlu0 %v5359, 32
      %v5562 = vpop.permute.xlu0 %5561
      %5563 = vrot.lane.b32.xlu0 %v5361, 32
      %v5564 = vpop.permute.xlu0 %5563
      %5565 = vrot.lane.b32.xlu0 %v5364, 32
      %v5566 = vpop.permute.xlu0 %5565
      %5567 = vrot.lane.b32.xlu0 %v5366, 32
      %v5568 = vpop.permute.xlu0 %5567
      %5601 = vrot.lane.b32.xlu0 %v5369, 64
      %v5602 = vpop.permute.xlu0 %5601
      %5603 = vrot.lane.b32.xlu0 %v5371, 64
      %v5604 = vpop.permute.xlu0 %5603
      %5605 = vrot.lane.b32.xlu0 %v5374, 64
      %v5606 = vpop.permute.xlu0 %5605
      %5607 = vrot.lane.b32.xlu0 %v5376, 64
      %v5608 = vpop.permute.xlu0 %5607
      %5609 = vrot.lane.b32.xlu0 %v5379, 64
      %v5610 = vpop.permute.xlu0 %5609
      %5611 = vrot.lane.b32.xlu0 %v5381, 64
      %v5612 = vpop.permute.xlu0 %5611
      %5613 = vrot.lane.b32.xlu0 %v5384, 64
      %v5614 = vpop.permute.xlu0 %5613
      %5615 = vrot.lane.b32.xlu0 %v5386, 64
      %v5616 = vpop.permute.xlu0 %5615
      %5617 = vrot.lane.b32.xlu0 %v5389, 64
      %v5618 = vpop.permute.xlu0 %5617
      %5619 = vrot.lane.b32.xlu0 %v5391, 64
      %v5620 = vpop.permute.xlu0 %5619
      %5621 = vrot.lane.b32.xlu0 %v5394, 64
      %v5622 = vpop.permute.xlu0 %5621
      %5623 = vrot.lane.b32.xlu0 %v5396, 64
      %v5624 = vpop.permute.xlu0 %5623
      %5625 = vrot.lane.b32.xlu0 %v5399, 64
      %v5626 = vpop.permute.xlu0 %5625
      %5627 = vrot.lane.b32.xlu0 %v5401, 64
      %v5628 = vpop.permute.xlu0 %5627
      %5629 = vrot.lane.b32.xlu0 %v5404, 64
      %v5630 = vpop.permute.xlu0 %5629
      %5631 = vrot.lane.b32.xlu0 %v5406, 64
      %v5632 = vpop.permute.xlu0 %5631
      %5633 = vrot.lane.b32.xlu0 %v5409, 64
      %v5634 = vpop.permute.xlu0 %5633
      %5635 = vrot.lane.b32.xlu0 %v5411, 64
      %v5636 = vpop.permute.xlu0 %5635
      %5637 = vrot.lane.b32.xlu0 %v5414, 64
      %v5638 = vpop.permute.xlu0 %5637
      %5639 = vrot.lane.b32.xlu0 %v5416, 64
      %v5640 = vpop.permute.xlu0 %5639
      %5641 = vrot.lane.b32.xlu0 %v5419, 64
      %v5642 = vpop.permute.xlu0 %5641
      %5643 = vrot.lane.b32.xlu0 %v5421, 64
      %v5644 = vpop.permute.xlu0 %5643
      %5645 = vrot.lane.b32.xlu0 %v5424, 64
      %v5646 = vpop.permute.xlu0 %5645
      %5647 = vrot.lane.b32.xlu0 %v5426, 64
      %v5648 = vpop.permute.xlu0 %5647
      %5649 = vrot.lane.b32.xlu0 %v5429, 64
      %v5650 = vpop.permute.xlu0 %5649
      %5651 = vrot.lane.b32.xlu0 %v5431, 64
      %v5652 = vpop.permute.xlu0 %5651
      %5653 = vrot.lane.b32.xlu0 %v5434, 64
      %v5654 = vpop.permute.xlu0 %5653
      %5655 = vrot.lane.b32.xlu0 %v5436, 64
      %v5656 = vpop.permute.xlu0 %5655
      %5657 = vrot.lane.b32.xlu0 %v5439, 64
      %v5658 = vpop.permute.xlu0 %5657
      %5659 = vrot.lane.b32.xlu0 %v5441, 64
      %v5660 = vpop.permute.xlu0 %5659
      %5661 = vrot.lane.b32.xlu0 %v5444, 64
      %v5662 = vpop.permute.xlu0 %5661
      %5663 = vrot.lane.b32.xlu0 %v5446, 64
      %v5664 = vpop.permute.xlu0 %5663
      %5697 = vrot.lane.b32.xlu0 %v5149, 96
      %v5698 = vpop.permute.xlu0 %5697
      %5699 = vrot.lane.b32.xlu0 %v5150, 96
      %v5700 = vpop.permute.xlu0 %5699
      %5701 = vrot.lane.b32.xlu0 %v5152, 96
      %v5702 = vpop.permute.xlu0 %5701
      %5703 = vrot.lane.b32.xlu0 %v5153, 96
      %v5704 = vpop.permute.xlu0 %5703
      %5705 = vrot.lane.b32.xlu0 %v5155, 96
      %v5706 = vpop.permute.xlu0 %5705
      %5707 = vrot.lane.b32.xlu0 %v5156, 96
      %v5708 = vpop.permute.xlu0 %5707
      %5709 = vrot.lane.b32.xlu0 %v5158, 96
      %v5710 = vpop.permute.xlu0 %5709
      %5711 = vrot.lane.b32.xlu0 %v5159, 96
      %v5712 = vpop.permute.xlu0 %5711
      %5713 = vrot.lane.b32.xlu0 %v5161, 96
      %v5714 = vpop.permute.xlu0 %5713
      %5715 = vrot.lane.b32.xlu0 %v5162, 96
      %v5716 = vpop.permute.xlu0 %5715
      %5717 = vrot.lane.b32.xlu0 %v5164, 96
      %v5718 = vpop.permute.xlu0 %5717
      %5719 = vrot.lane.b32.xlu0 %v5165, 96
      %v5720 = vpop.permute.xlu0 %5719
      %5721 = vrot.lane.b32.xlu0 %v5167, 96
      %v5722 = vpop.permute.xlu0 %5721
      %5723 = vrot.lane.b32.xlu0 %v5168, 96
      %v5724 = vpop.permute.xlu0 %5723
      %5725 = vrot.lane.b32.xlu0 %v5170, 96
      %v5726 = vpop.permute.xlu0 %5725
      %5727 = vrot.lane.b32.xlu0 %v5171, 96
      %v5728 = vpop.permute.xlu0 %5727
      %5729 = vrot.lane.b32.xlu0 %v5173, 96
      %v5730 = vpop.permute.xlu0 %5729
      %5731 = vrot.lane.b32.xlu0 %v5174, 96
      %v5732 = vpop.permute.xlu0 %5731
      %5733 = vrot.lane.b32.xlu0 %v5176, 96
      %v5734 = vpop.permute.xlu0 %5733
      %5735 = vrot.lane.b32.xlu0 %v5177, 96
      %v5736 = vpop.permute.xlu0 %5735
      %5737 = vrot.lane.b32.xlu0 %v5179, 96
      %v5738 = vpop.permute.xlu0 %5737
      %5739 = vrot.lane.b32.xlu0 %v5180, 96
      %v5740 = vpop.permute.xlu0 %5739
      %5741 = vrot.lane.b32.xlu0 %v5182, 96
      %v5742 = vpop.permute.xlu0 %5741
      %5743 = vrot.lane.b32.xlu0 %v5183, 96
      %v5744 = vpop.permute.xlu0 %5743
      %5745 = vrot.lane.b32.xlu0 %v5185, 96
      %v5746 = vpop.permute.xlu0 %5745
      %5747 = vrot.lane.b32.xlu0 %v5186, 96
      %v5748 = vpop.permute.xlu0 %5747
      %5749 = vrot.lane.b32.xlu0 %v5188, 96
      %v5750 = vpop.permute.xlu0 %5749
      %5751 = vrot.lane.b32.xlu0 %v5189, 96
      %v5752 = vpop.permute.xlu0 %5751
      %5753 = vrot.lane.b32.xlu0 %v5191, 96
      %v5754 = vpop.permute.xlu0 %5753
      %5755 = vrot.lane.b32.xlu0 %v5192, 96
      %v5756 = vpop.permute.xlu0 %5755
      %5757 = vrot.lane.b32.xlu0 %v5194, 96
      %v5758 = vpop.permute.xlu0 %5757
      %5759 = vrot.lane.b32.xlu0 %v5195, 96
      %v5760 = vpop.permute.xlu0 %5759
      %5793 = vrot.lane.b32.xlu0 %v5374, 32
      %v5794 = vpop.permute.xlu0 %5793
      %5795 = vrot.lane.b32.xlu0 %v5376, 32
      %v5796 = vpop.permute.xlu0 %5795
      %5797 = vrot.lane.b32.xlu0 %v5379, 32
      %v5798 = vpop.permute.xlu0 %5797
      %5799 = vrot.lane.b32.xlu0 %v5381, 32
      %v5800 = vpop.permute.xlu0 %5799
      %5801 = vrot.lane.b32.xlu0 %v5384, 32
      %v5802 = vpop.permute.xlu0 %5801
      %5803 = vrot.lane.b32.xlu0 %v5386, 32
      %v5804 = vpop.permute.xlu0 %5803
      %5805 = vrot.lane.b32.xlu0 %v5389, 32
      %v5806 = vpop.permute.xlu0 %5805
      %5807 = vrot.lane.b32.xlu0 %v5391, 32
      %v5808 = vpop.permute.xlu0 %5807
      %5809 = vrot.lane.b32.xlu0 %v5394, 32
      %v5810 = vpop.permute.xlu0 %5809
      %5811 = vrot.lane.b32.xlu0 %v5396, 32
      %v5812 = vpop.permute.xlu0 %5811
      %5813 = vrot.lane.b32.xlu0 %v5399, 32
      %v5814 = vpop.permute.xlu0 %5813
      %5815 = vrot.lane.b32.xlu0 %v5401, 32
      %v5816 = vpop.permute.xlu0 %5815
      %5817 = vrot.lane.b32.xlu0 %v5404, 32
      %v5818 = vpop.permute.xlu0 %5817
      %5819 = vrot.lane.b32.xlu0 %v5406, 32
      %v5820 = vpop.permute.xlu0 %5819
      %5821 = vrot.lane.b32.xlu0 %v5409, 32
      %v5822 = vpop.permute.xlu0 %5821
      %5823 = vrot.lane.b32.xlu0 %v5411, 32
      %v5824 = vpop.permute.xlu0 %5823
      %5825 = vrot.lane.b32.xlu0 %v5414, 32
      %v5826 = vpop.permute.xlu0 %5825
      %5827 = vrot.lane.b32.xlu0 %v5416, 32
      %v5828 = vpop.permute.xlu0 %5827
      %5829 = vrot.lane.b32.xlu0 %v5419, 32
      %v5830 = vpop.permute.xlu0 %5829
      %5831 = vrot.lane.b32.xlu0 %v5421, 32
      %v5832 = vpop.permute.xlu0 %5831
      %5833 = vrot.lane.b32.xlu0 %v5424, 32
      %v5834 = vpop.permute.xlu0 %5833
      %5835 = vrot.lane.b32.xlu0 %v5426, 32
      %v5836 = vpop.permute.xlu0 %5835
      %5837 = vrot.lane.b32.xlu0 %v5429, 32
      %v5838 = vpop.permute.xlu0 %5837
      %5839 = vrot.lane.b32.xlu0 %v5431, 32
      %v5840 = vpop.permute.xlu0 %5839
      %5841 = vrot.lane.b32.xlu0 %v5434, 32
      %v5842 = vpop.permute.xlu0 %5841
      %5843 = vrot.lane.b32.xlu0 %v5436, 32
      %v5844 = vpop.permute.xlu0 %5843
      %5845 = vrot.lane.b32.xlu0 %v5439, 32
      %v5846 = vpop.permute.xlu0 %5845
      %5847 = vrot.lane.b32.xlu0 %v5441, 32
      %v5848 = vpop.permute.xlu0 %5847
      %5849 = vrot.lane.b32.xlu0 %v5444, 32
      %v5850 = vpop.permute.xlu0 %5849
      %5851 = vrot.lane.b32.xlu0 %v5446, 32
      %v5852 = vpop.permute.xlu0 %5851
      %5853 = vrot.lane.b32.xlu0 %v5489, 32
      %v5854 = vpop.permute.xlu0 %5853
      %5855 = vrot.lane.b32.xlu0 %v5491, 32
      %v5856 = vpop.permute.xlu0 %5855
      %5889 = vrot.lane.b32.xlu0 %v5152, 64
      %v5890 = vpop.permute.xlu0 %5889
      %5891 = vrot.lane.b32.xlu0 %v5153, 64
      %v5892 = vpop.permute.xlu0 %5891
      %5893 = vrot.lane.b32.xlu0 %v5155, 64
      %v5894 = vpop.permute.xlu0 %5893
      %5895 = vrot.lane.b32.xlu0 %v5156, 64
      %v5896 = vpop.permute.xlu0 %5895
      %5897 = vrot.lane.b32.xlu0 %v5158, 64
      %v5898 = vpop.permute.xlu0 %5897
      %5899 = vrot.lane.b32.xlu0 %v5159, 64
      %v5900 = vpop.permute.xlu0 %5899
      %5901 = vrot.lane.b32.xlu0 %v5161, 64
      %v5902 = vpop.permute.xlu0 %5901
      %5903 = vrot.lane.b32.xlu0 %v5162, 64
      %v5904 = vpop.permute.xlu0 %5903
      %5905 = vrot.lane.b32.xlu0 %v5164, 64
      %v5906 = vpop.permute.xlu0 %5905
      %5907 = vrot.lane.b32.xlu0 %v5165, 64
      %v5908 = vpop.permute.xlu0 %5907
      %5909 = vrot.lane.b32.xlu0 %v5167, 64
      %v5910 = vpop.permute.xlu0 %5909
      %5911 = vrot.lane.b32.xlu0 %v5168, 64
      %v5912 = vpop.permute.xlu0 %5911
      %5913 = vrot.lane.b32.xlu0 %v5170, 64
      %v5914 = vpop.permute.xlu0 %5913
      %5915 = vrot.lane.b32.xlu0 %v5171, 64
      %v5916 = vpop.permute.xlu0 %5915
      %5917 = vrot.lane.b32.xlu0 %v5173, 64
      %v5918 = vpop.permute.xlu0 %5917
      %5919 = vrot.lane.b32.xlu0 %v5174, 64
      %v5920 = vpop.permute.xlu0 %5919
      %5921 = vrot.lane.b32.xlu0 %v5176, 64
      %v5922 = vpop.permute.xlu0 %5921
      %5923 = vrot.lane.b32.xlu0 %v5177, 64
      %v5924 = vpop.permute.xlu0 %5923
      %5925 = vrot.lane.b32.xlu0 %v5179, 64
      %v5926 = vpop.permute.xlu0 %5925
      %5927 = vrot.lane.b32.xlu0 %v5180, 64
      %v5928 = vpop.permute.xlu0 %5927
      %5929 = vrot.lane.b32.xlu0 %v5182, 64
      %v5930 = vpop.permute.xlu0 %5929
      %5931 = vrot.lane.b32.xlu0 %v5183, 64
      %v5932 = vpop.permute.xlu0 %5931
      %5933 = vrot.lane.b32.xlu0 %v5185, 64
      %v5934 = vpop.permute.xlu0 %5933
      %5935 = vrot.lane.b32.xlu0 %v5186, 64
      %v5936 = vpop.permute.xlu0 %5935
      %5937 = vrot.lane.b32.xlu0 %v5188, 64
      %v5938 = vpop.permute.xlu0 %5937
      %5939 = vrot.lane.b32.xlu0 %v5189, 64
      %v5940 = vpop.permute.xlu0 %5939
      %5941 = vrot.lane.b32.xlu0 %v5191, 64
      %v5942 = vpop.permute.xlu0 %5941
      %5943 = vrot.lane.b32.xlu0 %v5192, 64
      %v5944 = vpop.permute.xlu0 %5943
      %5945 = vrot.lane.b32.xlu0 %v5194, 64
      %v5946 = vpop.permute.xlu0 %5945
      %5947 = vrot.lane.b32.xlu0 %v5195, 64
      %v5948 = vpop.permute.xlu0 %5947
      %5949 = vrot.lane.b32.xlu0 %v5197, 64
      %v5950 = vpop.permute.xlu0 %5949
      %5951 = vrot.lane.b32.xlu0 %v5198, 64
      %v5952 = vpop.permute.xlu0 %5951
      %5985 = vrot.lane.b32.xlu0 %v5299, 96
      %v5986 = vpop.permute.xlu0 %5985
      %5987 = vrot.lane.b32.xlu0 %v5301, 96
      %v5988 = vpop.permute.xlu0 %5987
      %5989 = vrot.lane.b32.xlu0 %v5304, 96
      %v5990 = vpop.permute.xlu0 %5989
      %5991 = vrot.lane.b32.xlu0 %v5306, 96
      %v5992 = vpop.permute.xlu0 %5991
      %5993 = vrot.lane.b32.xlu0 %v5309, 96
      %v5994 = vpop.permute.xlu0 %5993
      %5995 = vrot.lane.b32.xlu0 %v5311, 96
      %v5996 = vpop.permute.xlu0 %5995
      %5997 = vrot.lane.b32.xlu0 %v5314, 96
      %v5998 = vpop.permute.xlu0 %5997
      %5999 = vrot.lane.b32.xlu0 %v5316, 96
      %v6000 = vpop.permute.xlu0 %5999
      %6001 = vrot.lane.b32.xlu0 %v5319, 96
      %v6002 = vpop.permute.xlu0 %6001
      %6003 = vrot.lane.b32.xlu0 %v5321, 96
      %v6004 = vpop.permute.xlu0 %6003
      %6005 = vrot.lane.b32.xlu0 %v5324, 96
      %v6006 = vpop.permute.xlu0 %6005
      %6007 = vrot.lane.b32.xlu0 %v5326, 96
      %v6008 = vpop.permute.xlu0 %6007
      %6009 = vrot.lane.b32.xlu0 %v5329, 96
      %v6010 = vpop.permute.xlu0 %6009
      %6011 = vrot.lane.b32.xlu0 %v5331, 96
      %v6012 = vpop.permute.xlu0 %6011
      %6013 = vrot.lane.b32.xlu0 %v5334, 96
      %v6014 = vpop.permute.xlu0 %6013
      %6015 = vrot.lane.b32.xlu0 %v5336, 96
      %v6016 = vpop.permute.xlu0 %6015
      %6017 = vrot.lane.b32.xlu0 %v5339, 96
      %v6018 = vpop.permute.xlu0 %6017
      %6019 = vrot.lane.b32.xlu0 %v5341, 96
      %v6020 = vpop.permute.xlu0 %6019
      %6021 = vrot.lane.b32.xlu0 %v5344, 96
      %v6022 = vpop.permute.xlu0 %6021
      %6023 = vrot.lane.b32.xlu0 %v5346, 96
      %v6024 = vpop.permute.xlu0 %6023
      %6025 = vrot.lane.b32.xlu0 %v5349, 96
      %v6026 = vpop.permute.xlu0 %6025
      %6027 = vrot.lane.b32.xlu0 %v5351, 96
      %v6028 = vpop.permute.xlu0 %6027
      %6029 = vrot.lane.b32.xlu0 %v5354, 96
      %v6030 = vpop.permute.xlu0 %6029
      %6031 = vrot.lane.b32.xlu0 %v5356, 96
      %v6032 = vpop.permute.xlu0 %6031
      %6033 = vrot.lane.b32.xlu0 %v5359, 96
      %v6034 = vpop.permute.xlu0 %6033
      %6035 = vrot.lane.b32.xlu0 %v5361, 96
      %v6036 = vpop.permute.xlu0 %6035
      %6037 = vrot.lane.b32.xlu0 %v5364, 96
      %v6038 = vpop.permute.xlu0 %6037
      %6039 = vrot.lane.b32.xlu0 %v5366, 96
      %v6040 = vpop.permute.xlu0 %6039
      %6041 = vrot.lane.b32.xlu0 %v5452, 96
      %v6042 = vpop.permute.xlu0 %6041
      %6043 = vrot.lane.b32.xlu0 %v5454, 96
      %v6044 = vpop.permute.xlu0 %6043
      %6045 = vrot.lane.b32.xlu0 %v5497, 96
      %v6046 = vpop.permute.xlu0 %6045
      %6047 = vrot.lane.b32.xlu0 %v5499, 96
      %v6048 = vpop.permute.xlu0 %6047
      %v6081 = vsel %vm530, %v5146, %v5506
      %v6082 = vsel %vm530, %v5147, %v5508
      %v6083 = vsel %vm530, %v5149, %v5510
      %v6084 = vsel %vm530, %v5150, %v5512
      %v6085 = vsel %vm530, %v5152, %v5514
      %v6086 = vsel %vm530, %v5153, %v5516
      %v6087 = vsel %vm530, %v5155, %v5518
      %v6088 = vsel %vm530, %v5156, %v5520
      %v6089 = vsel %vm530, %v5158, %v5522
      %v6090 = vsel %vm530, %v5159, %v5524
      %v6091 = vsel %vm530, %v5161, %v5526
      %v6092 = vsel %vm530, %v5162, %v5528
      %v6093 = vsel %vm530, %v5164, %v5530
      %v6094 = vsel %vm530, %v5165, %v5532
      %v6095 = vsel %vm530, %v5167, %v5534
      %v6096 = vsel %vm530, %v5168, %v5536
      %v6097 = vsel %vm530, %v5170, %v5538
      %v6098 = vsel %vm530, %v5171, %v5540
      %v6099 = vsel %vm530, %v5173, %v5542
      %v6100 = vsel %vm530, %v5174, %v5544
      %v6101 = vsel %vm530, %v5176, %v5546
      %v6102 = vsel %vm530, %v5177, %v5548
      %v6103 = vsel %vm530, %v5179, %v5550
      %v6104 = vsel %vm530, %v5180, %v5552
      %v6105 = vsel %vm530, %v5182, %v5554
      %v6106 = vsel %vm530, %v5183, %v5556
      %v6107 = vsel %vm530, %v5185, %v5558
      %v6108 = vsel %vm530, %v5186, %v5560
      %v6109 = vsel %vm530, %v5188, %v5562
      %v6110 = vsel %vm530, %v5189, %v5564
      %v6111 = vsel %vm530, %v5191, %v5566
      %v6112 = vsel %vm530, %v5192, %v5568
      %v6113 = vsel %vm3638, %v6081, %v5602
      %v6114 = vsel %vm3638, %v6082, %v5604
      %v6115 = vsel %vm3638, %v6083, %v5606
      %v6116 = vsel %vm3638, %v6084, %v5608
      %v6117 = vsel %vm3638, %v6085, %v5610
      %v6118 = vsel %vm3638, %v6086, %v5612
      %v6119 = vsel %vm3638, %v6087, %v5614
      %v6120 = vsel %vm3638, %v6088, %v5616
      %v6121 = vsel %vm3638, %v6089, %v5618
      %v6122 = vsel %vm3638, %v6090, %v5620
      %v6123 = vsel %vm3638, %v6091, %v5622
      %v6124 = vsel %vm3638, %v6092, %v5624
      %v6125 = vsel %vm3638, %v6093, %v5626
      %v6126 = vsel %vm3638, %v6094, %v5628
      %v6127 = vsel %vm3638, %v6095, %v5630
      %v6128 = vsel %vm3638, %v6096, %v5632
      %v6129 = vsel %vm3638, %v6097, %v5634
      %v6130 = vsel %vm3638, %v6098, %v5636
      %v6131 = vsel %vm3638, %v6099, %v5638
      %v6132 = vsel %vm3638, %v6100, %v5640
      %v6133 = vsel %vm3638, %v6101, %v5642
      %v6134 = vsel %vm3638, %v6102, %v5644
      %v6135 = vsel %vm3638, %v6103, %v5646
      %v6136 = vsel %vm3638, %v6104, %v5648
      %v6137 = vsel %vm3638, %v6105, %v5650
      %v6138 = vsel %vm3638, %v6106, %v5652
      %v6139 = vsel %vm3638, %v6107, %v5654
      %v6140 = vsel %vm3638, %v6108, %v5656
      %v6141 = vsel %vm3638, %v6109, %v5658
      %v6142 = vsel %vm3638, %v6110, %v5660
      %v6143 = vsel %vm3638, %v6111, %v5662
      %v6144 = vsel %vm3638, %v6112, %v5664
      %v6145 = vsel %vm3671, %v6113, %v5698
      %v6146 = vsel %vm3671, %v6114, %v5700
      %v6147 = vsel %vm3671, %v6115, %v5702
      %v6148 = vsel %vm3671, %v6116, %v5704
      %v6149 = vsel %vm3671, %v6117, %v5706
      %v6150 = vsel %vm3671, %v6118, %v5708
      %v6151 = vsel %vm3671, %v6119, %v5710
      %v6152 = vsel %vm3671, %v6120, %v5712
      %v6153 = vsel %vm3671, %v6121, %v5714
      %v6154 = vsel %vm3671, %v6122, %v5716
      %v6155 = vsel %vm3671, %v6123, %v5718
      %v6156 = vsel %vm3671, %v6124, %v5720
      %v6157 = vsel %vm3671, %v6125, %v5722
      %v6158 = vsel %vm3671, %v6126, %v5724
      %v6159 = vsel %vm3671, %v6127, %v5726
      %v6160 = vsel %vm3671, %v6128, %v5728
      %v6161 = vsel %vm3671, %v6129, %v5730
      %v6162 = vsel %vm3671, %v6130, %v5732
      %v6163 = vsel %vm3671, %v6131, %v5734
      %v6164 = vsel %vm3671, %v6132, %v5736
      %v6165 = vsel %vm3671, %v6133, %v5738
      %v6166 = vsel %vm3671, %v6134, %v5740
      %v6167 = vsel %vm3671, %v6135, %v5742
      %v6168 = vsel %vm3671, %v6136, %v5744
      %v6169 = vsel %vm3671, %v6137, %v5746
      %v6170 = vsel %vm3671, %v6138, %v5748
      %v6171 = vsel %vm3671, %v6139, %v5750
      %v6172 = vsel %vm3671, %v6140, %v5752
      %v6173 = vsel %vm3671, %v6141, %v5754
      %v6174 = vsel %vm3671, %v6142, %v5756
      %v6175 = vsel %vm3671, %v6143, %v5758
      %v6176 = vsel %vm3671, %v6144, %v5760
      %v6177 = vsel %vm530, %v5294, %v5794
      %v6178 = vsel %vm530, %v5296, %v5796
      %v6179 = vsel %vm530, %v5299, %v5798
      %v6180 = vsel %vm530, %v5301, %v5800
      %v6181 = vsel %vm530, %v5304, %v5802
      %v6182 = vsel %vm530, %v5306, %v5804
      %v6183 = vsel %vm530, %v5309, %v5806
      %v6184 = vsel %vm530, %v5311, %v5808
      %v6185 = vsel %vm530, %v5314, %v5810
      %v6186 = vsel %vm530, %v5316, %v5812
      %v6187 = vsel %vm530, %v5319, %v5814
      %v6188 = vsel %vm530, %v5321, %v5816
      %v6189 = vsel %vm530, %v5324, %v5818
      %v6190 = vsel %vm530, %v5326, %v5820
      %v6191 = vsel %vm530, %v5329, %v5822
      %v6192 = vsel %vm530, %v5331, %v5824
      %v6193 = vsel %vm530, %v5334, %v5826
      %v6194 = vsel %vm530, %v5336, %v5828
      %v6195 = vsel %vm530, %v5339, %v5830
      %v6196 = vsel %vm530, %v5341, %v5832
      %v6197 = vsel %vm530, %v5344, %v5834
      %v6198 = vsel %vm530, %v5346, %v5836
      %v6199 = vsel %vm530, %v5349, %v5838
      %v6200 = vsel %vm530, %v5351, %v5840
      %v6201 = vsel %vm530, %v5354, %v5842
      %v6202 = vsel %vm530, %v5356, %v5844
      %v6203 = vsel %vm530, %v5359, %v5846
      %v6204 = vsel %vm530, %v5361, %v5848
      %v6205 = vsel %vm530, %v5364, %v5850
      %v6206 = vsel %vm530, %v5366, %v5852
      %v6207 = vsel %vm530, %v5452, %v5854
      %v6208 = vsel %vm530, %v5454, %v5856
      %v6209 = vsel %vm3638, %v6177, %v5890
      %v6210 = vsel %vm3638, %v6178, %v5892
      %v6211 = vsel %vm3638, %v6179, %v5894
      %v6212 = vsel %vm3638, %v6180, %v5896
      %v6213 = vsel %vm3638, %v6181, %v5898
      %v6214 = vsel %vm3638, %v6182, %v5900
      %v6215 = vsel %vm3638, %v6183, %v5902
      %v6216 = vsel %vm3638, %v6184, %v5904
      %v6217 = vsel %vm3638, %v6185, %v5906
      %v6218 = vsel %vm3638, %v6186, %v5908
      %v6219 = vsel %vm3638, %v6187, %v5910
      %v6220 = vsel %vm3638, %v6188, %v5912
      %v6221 = vsel %vm3638, %v6189, %v5914
      %v6222 = vsel %vm3638, %v6190, %v5916
      %v6223 = vsel %vm3638, %v6191, %v5918
      %v6224 = vsel %vm3638, %v6192, %v5920
      %v6225 = vsel %vm3638, %v6193, %v5922
      %v6226 = vsel %vm3638, %v6194, %v5924
      %v6227 = vsel %vm3638, %v6195, %v5926
      %v6228 = vsel %vm3638, %v6196, %v5928
      %v6229 = vsel %vm3638, %v6197, %v5930
      %v6230 = vsel %vm3638, %v6198, %v5932
      %v6231 = vsel %vm3638, %v6199, %v5934
      %v6232 = vsel %vm3638, %v6200, %v5936
      %v6233 = vsel %vm3638, %v6201, %v5938
      %v6234 = vsel %vm3638, %v6202, %v5940
      %v6235 = vsel %vm3638, %v6203, %v5942
      %v6236 = vsel %vm3638, %v6204, %v5944
      %v6237 = vsel %vm3638, %v6205, %v5946
      %v6238 = vsel %vm3638, %v6206, %v5948
      %v6239 = vsel %vm3638, %v6207, %v5950
      %v6240 = vsel %vm3638, %v6208, %v5952
      %v6241 = vsel %vm3671, %v6209, %v5986
      %v6242 = vsel %vm3671, %v6210, %v5988
      %v6243 = vsel %vm3671, %v6211, %v5990
      %v6244 = vsel %vm3671, %v6212, %v5992
      %v6245 = vsel %vm3671, %v6213, %v5994
      %v6246 = vsel %vm3671, %v6214, %v5996
      %v6247 = vsel %vm3671, %v6215, %v5998
      %v6248 = vsel %vm3671, %v6216, %v6000
      %v6249 = vsel %vm3671, %v6217, %v6002
      %v6250 = vsel %vm3671, %v6218, %v6004
      %v6251 = vsel %vm3671, %v6219, %v6006
      %v6252 = vsel %vm3671, %v6220, %v6008
      %v6253 = vsel %vm3671, %v6221, %v6010
      %v6254 = vsel %vm3671, %v6222, %v6012
      %v6255 = vsel %vm3671, %v6223, %v6014
      %v6256 = vsel %vm3671, %v6224, %v6016
      %v6257 = vsel %vm3671, %v6225, %v6018
      %v6258 = vsel %vm3671, %v6226, %v6020
      %v6259 = vsel %vm3671, %v6227, %v6022
      %v6260 = vsel %vm3671, %v6228, %v6024
      %v6261 = vsel %vm3671, %v6229, %v6026
      %v6262 = vsel %vm3671, %v6230, %v6028
      %v6263 = vsel %vm3671, %v6231, %v6030
      %v6264 = vsel %vm3671, %v6232, %v6032
      %v6265 = vsel %vm3671, %v6233, %v6034
      %v6266 = vsel %vm3671, %v6234, %v6036
      %v6267 = vsel %vm3671, %v6235, %v6038
      %v6268 = vsel %vm3671, %v6236, %v6040
      %v6269 = vsel %vm3671, %v6237, %v6042
      %v6270 = vsel %vm3671, %v6238, %v6044
      %v6271 = vsel %vm3671, %v6239, %v6046
      %v6272 = vsel %vm3671, %v6240, %v6048
      %v6274 = vlaneseq
      %v6275 = vshrl.u32 %v6274, 7
      %v6276 = vsub.s32 0, %v6275
      %v6277 = vrot.slane %v5238, %v6276
      %v6279 = vsel %vm530, %v5379, 0
      %v6281 = vsel %vm530, %v5381, 0
      %v6283 = vsel %vm530, %v5384, 0
      %v6285 = vsel %vm530, %v5386, 0
      %v6287 = vsel %vm530, %v5389, 0
      %v6289 = vsel %vm530, %v5391, 0
      %v6291 = vsel %vm530, %v5394, 0
      %v6293 = vsel %vm530, %v5396, 0
      %v6295 = vsel %vm530, %v5399, 0
      %v6297 = vsel %vm530, %v5401, 0
      %v6299 = vsel %vm530, %v5404, 0
      %v6301 = vsel %vm530, %v5406, 0
      %v6303 = vsel %vm530, %v5409, 0
      %v6305 = vsel %vm530, %v5411, 0
      %v6307 = vsel %vm530, %v5414, 0
      %v6309 = vsel %vm530, %v5416, 0
      %v6311 = vsel %vm530, %v5419, 0
      %v6313 = vsel %vm530, %v5421, 0
      %v6315 = vsel %vm530, %v5424, 0
      %v6317 = vsel %vm530, %v5426, 0
      %v6319 = vsel %vm530, %v5429, 0
      %v6321 = vsel %vm530, %v5431, 0
      %v6323 = vsel %vm530, %v5434, 0
      %v6325 = vsel %vm530, %v5436, 0
      %v6327 = vsel %vm530, %v5439, 0
      %v6329 = vsel %vm530, %v5441, 0
      %v6331 = vsel %vm530, %v5444, 0
      %v6333 = vsel %vm530, %v5446, 0
      %v6335 = vsel %vm530, %v5489, 0
      %v6337 = vsel %vm530, %v5491, 0
      %v6339 = vsel %vm530, %v5502, 0
      %v6341 = vsel %vm530, %v5504, 0
      %6343 = vmatprep.subr.mxu0 0.0
      %6344 = vmatpush1.msra.mxu0 %v5201
      %6345 = vmatprep.subr.mxu0 0.0
      %6346 = vmatpush1.msra.mxu0 %v5202
      %6347 = vmatprep.subr.mxu0 0.0
      %6348 = vmatpush1.msra.mxu0 %v5203
      %6349 = vmatprep.subr.mxu0 0.0
      %6350 = vmatpush1.msra.mxu0 %v5204
      %6351 = vmatprep.subr.mxu0 0.0
      %6352 = vmatpush1.msra.mxu0 %v5205
      %6353 = vmatprep.subr.mxu0 0.0
      %6354 = vmatpush1.msra.mxu0 %v5206
      %6355 = vmatprep.subr.mxu0 0.0
      %6356 = vmatpush1.msra.mxu0 %v5207
      %6357 = vmatprep.subr.mxu0 0.0
      %6358 = vmatpush1.msra.mxu0 %v5208
      %6359 = vmatprep.subr.mxu0 0.0
      %6360 = vmatpush1.msra.mxu0 %v5209
      %6361 = vmatprep.subr.mxu0 0.0
      %6362 = vmatpush1.msra.mxu0 %v5210
      %6363 = vmatprep.subr.mxu0 0.0
      %6364 = vmatpush1.msra.mxu0 %v5211
      %6365 = vmatprep.subr.mxu0 0.0
      %6366 = vmatpush1.msra.mxu0 %v5212
      %6367 = vmatprep.subr.mxu0 0.0
      %6368 = vmatpush1.msra.mxu0 %v5213
      %6369 = vmatprep.subr.mxu0 0.0
      %6370 = vmatpush1.msra.mxu0 %v5214
      %6371 = vmatprep.subr.mxu0 0.0
      %6372 = vmatpush1.msra.mxu0 %v5215
      %6373 = vmatprep.subr.mxu0 0.0
      %6374 = vmatpush1.msra.mxu0 %v5216
      %6375 = vmatprep.subr.mxu0 0.0
      %6376 = vmatpush1.msra.mxu0 %v5217
      %6377 = vmatprep.subr.mxu0 0.0
      %6378 = vmatpush1.msra.mxu0 %v5218
      %6379 = vmatprep.subr.mxu0 0.0
      %6380 = vmatpush1.msra.mxu0 %v5219
      %6381 = vmatprep.subr.mxu0 0.0
      %6382 = vmatpush1.msra.mxu0 %v5220
      %6383 = vmatprep.subr.mxu0 0.0
      %6384 = vmatpush1.msra.mxu0 %v5221
      %6385 = vmatprep.subr.mxu0 0.0
      %6386 = vmatpush1.msra.mxu0 %v5222
      %6387 = vmatprep.subr.mxu0 0.0
      %6388 = vmatpush1.msra.mxu0 %v5223
      %6389 = vmatprep.subr.mxu0 0.0
      %6390 = vmatpush1.msra.mxu0 %v5224
      %6391 = vmatprep.subr.mxu0 0.0
      %6392 = vmatpush1.msra.mxu0 %v5225
      %6393 = vmatprep.subr.mxu0 0.0
      %6394 = vmatpush1.msra.mxu0 %v5226
      %6395 = vmatprep.subr.mxu0 0.0
      %6396 = vmatpush1.msra.mxu0 %v5227
      %6397 = vmatprep.subr.mxu0 0.0
      %6398 = vmatpush1.msra.mxu0 %v5228
      %6399 = vmatprep.subr.mxu0 0.0
      %6400 = vmatpush1.msra.mxu0 %v5229
      %6401 = vmatprep.subr.mxu0 0.0
      %6402 = vmatpush1.msra.mxu0 %v5230
      %6403 = vmatprep.subr.mxu0 0.0
      %6404 = vmatpush1.msra.mxu0 %v5231
      %6405 = vmatprep.subr.mxu0 0.0
      %6406 = vmatpush1.msra.mxu0 %v5232
      %6407 = vmatprep.mubr.f32.mxu0 %v6241
      %6408 = vmatmul.mubr.f32.gmra.mrb[0].mxu0 %v6145
      %v6409 = vpop.f32.mrb[0].mxu0
      %v6410 = vadd.f32 %v6277, %v6409
      %v6411 = vpop.f32.mrb[0].mxu0
      %6412 = vmatprep.mubr.f32.mxu0 %v6242
      %6413 = vmatmul.mubr.f32.gmra.mrb[0].mxu0 %v6146
      %v6414 = vpop.f32.mrb[0].mxu0
      %v6415 = vadd.f32 %v6277, %v6414
      %v6416 = vpop.f32.mrb[0].mxu0
      %6417 = vmatprep.mubr.f32.mxu0 %v6243
      %6418 = vmatmul.mubr.f32.gmra.mrb[0].mxu0 %v6147
      %v6419 = vpop.f32.mrb[0].mxu0
      %v6420 = vadd.f32 %v6277, %v6419
      %v6421 = vpop.f32.mrb[0].mxu0
      %6422 = vmatprep.mubr.f32.mxu0 %v6244
      %6423 = vmatmul.mubr.f32.gmra.mrb[0].mxu0 %v6148
      %v6424 = vpop.f32.mrb[0].mxu0
      %v6425 = vadd.f32 %v6277, %v6424
      %v6426 = vpop.f32.mrb[0].mxu0
      %6427 = vmatprep.mubr.f32.mxu0 %v6245
      %6428 = vmatmul.mubr.f32.gmra.mrb[0].mxu0 %v6149
      %v6429 = vpop.f32.mrb[0].mxu0
      %v6430 = vadd.f32 %v6277, %v6429
      %v6431 = vpop.f32.mrb[0].mxu0
      %6432 = vmatprep.mubr.f32.mxu0 %v6246
      %6433 = vmatmul.mubr.f32.gmra.mrb[0].mxu0 %v6150
      %v6434 = vpop.f32.mrb[0].mxu0
      %v6435 = vadd.f32 %v6277, %v6434
      %v6436 = vpop.f32.mrb[0].mxu0
      %6437 = vmatprep.mubr.f32.mxu0 %v6247
      %6438 = vmatmul.mubr.f32.gmra.mrb[0].mxu0 %v6151
      %v6439 = vpop.f32.mrb[0].mxu0
      %v6440 = vadd.f32 %v6277, %v6439
      %v6441 = vpop.f32.mrb[0].mxu0
      %6442 = vmatprep.mubr.f32.mxu0 %v6248
      %6443 = vmatmul.mubr.f32.gmra.mrb[0].mxu0 %v6152
      %v6444 = vpop.f32.mrb[0].mxu0
      %v6445 = vadd.f32 %v6277, %v6444
      %v6446 = vpop.f32.mrb[0].mxu0
      %6447 = vmatprep.mubr.f32.mxu0 %v6249
      %6448 = vmatmul.mubr.f32.gmra.mrb[0].mxu0 %v6153
      %v6449 = vpop.f32.mrb[0].mxu0
      %v6450 = vadd.f32 %v6277, %v6449
      %v6451 = vpop.f32.mrb[0].mxu0
      %6452 = vmatprep.mubr.f32.mxu0 %v6250
      %6453 = vmatmul.mubr.f32.gmra.mrb[0].mxu0 %v6154
      %v6454 = vpop.f32.mrb[0].mxu0
      %v6455 = vadd.f32 %v6277, %v6454
      %v6456 = vpop.f32.mrb[0].mxu0
      %6457 = vmatprep.mubr.f32.mxu0 %v6251
      %6458 = vmatmul.mubr.f32.gmra.mrb[0].mxu0 %v6155
      %v6459 = vpop.f32.mrb[0].mxu0
      %v6460 = vadd.f32 %v6277, %v6459
      %v6461 = vpop.f32.mrb[0].mxu0
      %6462 = vmatprep.mubr.f32.mxu0 %v6252
      %6463 = vmatmul.mubr.f32.gmra.mrb[0].mxu0 %v6156
      %v6464 = vpop.f32.mrb[0].mxu0
      %v6465 = vadd.f32 %v6277, %v6464
      %v6466 = vpop.f32.mrb[0].mxu0
      %6467 = vmatprep.mubr.f32.mxu0 %v6253
      %6468 = vmatmul.mubr.f32.gmra.mrb[0].mxu0 %v6157
      %v6469 = vpop.f32.mrb[0].mxu0
      %v6470 = vadd.f32 %v6277, %v6469
      %v6471 = vpop.f32.mrb[0].mxu0
      %6472 = vmatprep.mubr.f32.mxu0 %v6254
      %6473 = vmatmul.mubr.f32.gmra.mrb[0].mxu0 %v6158
      %v6474 = vpop.f32.mrb[0].mxu0
      %v6475 = vadd.f32 %v6277, %v6474
      %v6476 = vpop.f32.mrb[0].mxu0
      %6477 = vmatprep.mubr.f32.mxu0 %v6255
      %6478 = vmatmul.mubr.f32.gmra.mrb[0].mxu0 %v6159
      %v6479 = vpop.f32.mrb[0].mxu0
      %v6480 = vadd.f32 %v6277, %v6479
      %v6481 = vpop.f32.mrb[0].mxu0
      %6482 = vmatprep.mubr.f32.mxu0 %v6256
      %6483 = vmatmul.mubr.f32.gmra.mrb[0].mxu0 %v6160
      %v6484 = vpop.f32.mrb[0].mxu0
      %v6485 = vadd.f32 %v6277, %v6484
      %v6486 = vpop.f32.mrb[0].mxu0
      %6487 = vmatprep.mubr.f32.mxu0 %v6257
      %6488 = vmatmul.mubr.f32.gmra.mrb[0].mxu0 %v6161
      %v6489 = vpop.f32.mrb[0].mxu0
      %v6490 = vadd.f32 %v6277, %v6489
      %v6491 = vpop.f32.mrb[0].mxu0
      %6492 = vmatprep.mubr.f32.mxu0 %v6258
      %6493 = vmatmul.mubr.f32.gmra.mrb[0].mxu0 %v6162
      %v6494 = vpop.f32.mrb[0].mxu0
      %v6495 = vadd.f32 %v6277, %v6494
      %v6496 = vpop.f32.mrb[0].mxu0
      %6497 = vmatprep.mubr.f32.mxu0 %v6259
      %6498 = vmatmul.mubr.f32.gmra.mrb[0].mxu0 %v6163
      %v6499 = vpop.f32.mrb[0].mxu0
      %v6500 = vadd.f32 %v6277, %v6499
      %v6501 = vpop.f32.mrb[0].mxu0
      %6502 = vmatprep.mubr.f32.mxu0 %v6260
      %6503 = vmatmul.mubr.f32.gmra.mrb[0].mxu0 %v6164
      %v6504 = vpop.f32.mrb[0].mxu0
      %v6505 = vadd.f32 %v6277, %v6504
      %v6506 = vpop.f32.mrb[0].mxu0
      %6507 = vmatprep.mubr.f32.mxu0 %v6261
      %6508 = vmatmul.mubr.f32.gmra.mrb[0].mxu0 %v6165
      %v6509 = vpop.f32.mrb[0].mxu0
      %v6510 = vadd.f32 %v6277, %v6509
      %v6511 = vpop.f32.mrb[0].mxu0
      %6512 = vmatprep.mubr.f32.mxu0 %v6262
      %6513 = vmatmul.mubr.f32.gmra.mrb[0].mxu0 %v6166
      %v6514 = vpop.f32.mrb[0].mxu0
      %v6515 = vadd.f32 %v6277, %v6514
      %v6516 = vpop.f32.mrb[0].mxu0
      %6517 = vmatprep.mubr.f32.mxu0 %v6263
      %6518 = vmatmul.mubr.f32.gmra.mrb[0].mxu0 %v6167
      %v6519 = vpop.f32.mrb[0].mxu0
      %v6520 = vadd.f32 %v6277, %v6519
      %v6521 = vpop.f32.mrb[0].mxu0
      %6522 = vmatprep.mubr.f32.mxu0 %v6264
      %6523 = vmatmul.mubr.f32.gmra.mrb[0].mxu0 %v6168
      %v6524 = vpop.f32.mrb[0].mxu0
      %v6525 = vadd.f32 %v6277, %v6524
      %v6526 = vpop.f32.mrb[0].mxu0
      %6527 = vmatprep.mubr.f32.mxu0 %v6265
      %6528 = vmatmul.mubr.f32.gmra.mrb[0].mxu0 %v6169
      %v6529 = vpop.f32.mrb[0].mxu0
      %v6530 = vadd.f32 %v6277, %v6529
      %v6531 = vpop.f32.mrb[0].mxu0
      %6532 = vmatprep.mubr.f32.mxu0 %v6266
      %6533 = vmatmul.mubr.f32.gmra.mrb[0].mxu0 %v6170
      %v6534 = vpop.f32.mrb[0].mxu0
      %v6535 = vadd.f32 %v6277, %v6534
      %v6536 = vpop.f32.mrb[0].mxu0
      %6537 = vmatprep.mubr.f32.mxu0 %v6267
      %6538 = vmatmul.mubr.f32.gmra.mrb[0].mxu0 %v6171
      %v6539 = vpop.f32.mrb[0].mxu0
      %v6540 = vadd.f32 %v6277, %v6539
      %v6541 = vpop.f32.mrb[0].mxu0
      %6542 = vmatprep.mubr.f32.mxu0 %v6268
      %6543 = vmatmul.mubr.f32.gmra.mrb[0].mxu0 %v6172
      %v6544 = vpop.f32.mrb[0].mxu0
      %v6545 = vadd.f32 %v6277, %v6544
      %v6546 = vpop.f32.mrb[0].mxu0
      %6547 = vmatprep.mubr.f32.mxu0 %v6269
      %6548 = vmatmul.mubr.f32.gmra.mrb[0].mxu0 %v6173
      %v6549 = vpop.f32.mrb[0].mxu0
      %v6550 = vadd.f32 %v6277, %v6549
      %v6551 = vpop.f32.mrb[0].mxu0
      %6552 = vmatprep.mubr.f32.mxu0 %v6270
      %6553 = vmatmul.mubr.f32.gmra.mrb[0].mxu0 %v6174
      %v6554 = vpop.f32.mrb[0].mxu0
      %v6555 = vadd.f32 %v6277, %v6554
      %v6556 = vpop.f32.mrb[0].mxu0
      %6557 = vmatprep.mubr.f32.mxu0 %v6271
      %6558 = vmatmul.mubr.f32.gmra.mrb[0].mxu0 %v6175
      %v6559 = vpop.f32.mrb[0].mxu0
      %v6560 = vadd.f32 %v6277, %v6559
      %v6561 = vpop.f32.mrb[0].mxu0
      %6562 = vmatprep.mubr.f32.mxu0 %v6272
      %6563 = vmatmul.mubr.f32.gmra.mrb[0].mxu0 %v6176
      %v6564 = vpop.f32.mrb[0].mxu0
      %v6565 = vadd.f32 %v6277, %v6564
      %v6566 = vpop.f32.mrb[0].mxu0
      %6567 = vdwg.mxu0
      %6568 = vmatprep.subr.mxu0 0.0
      %6569 = vmatpush1.msra.mxu0 %v5233
      %6570 = vmatprep.subr.mxu0 0.0
      %6571 = vmatpush1.msra.mxu0 %v5234
      %6572 = vmatprep.subr.mxu0 0.0
      %6573 = vmatpush1.msra.mxu0 %v5235
      %6574 = vmatprep.subr.mxu0 0.0
      %6575 = vmatpush1.msra.mxu0 %v5236
      %6576 = vmatprep.subr.mxu0 0.0
      %6577 = vmatpush1.msra.mxu0 0.0
      %6578 = vmatprep.subr.mxu0 0.0
      %6579 = vmatpush1.msra.mxu0 0.0
      %6580 = vmatprep.subr.mxu0 0.0
      %6581 = vmatpush1.msra.mxu0 0.0
      %6582 = vmatprep.subr.mxu0 0.0
      %6583 = vmatpush1.msra.mxu0 0.0
      %6584 = vmatprep.subr.mxu0 0.0
      %6585 = vmatpush1.msra.mxu0 0.0
      %6586 = vmatprep.subr.mxu0 0.0
      %6587 = vmatpush1.msra.mxu0 0.0
      %6588 = vmatprep.subr.mxu0 0.0
      %6589 = vmatpush1.msra.mxu0 0.0
      %6590 = vmatprep.subr.mxu0 0.0
      %6591 = vmatpush1.msra.mxu0 0.0
      %6592 = vmatprep.subr.mxu0 0.0
      %6593 = vmatpush1.msra.mxu0 0.0
      %6594 = vmatprep.subr.mxu0 0.0
      %6595 = vmatpush1.msra.mxu0 0.0
      %6596 = vmatprep.subr.mxu0 0.0
      %6597 = vmatpush1.msra.mxu0 0.0
      %6598 = vmatprep.subr.mxu0 0.0
      %6599 = vmatpush1.msra.mxu0 0.0
      %6600 = vmatprep.subr.mxu0 0.0
      %6601 = vmatpush1.msra.mxu0 0.0
      %6602 = vmatprep.subr.mxu0 0.0
      %6603 = vmatpush1.msra.mxu0 0.0
      %6604 = vmatprep.subr.mxu0 0.0
      %6605 = vmatpush1.msra.mxu0 0.0
      %6606 = vmatprep.subr.mxu0 0.0
      %6607 = vmatpush1.msra.mxu0 0.0
      %6608 = vmatprep.subr.mxu0 0.0
      %6609 = vmatpush1.msra.mxu0 0.0
      %6610 = vmatprep.subr.mxu0 0.0
      %6611 = vmatpush1.msra.mxu0 0.0
      %6612 = vmatprep.subr.mxu0 0.0
      %6613 = vmatpush1.msra.mxu0 0.0
      %6614 = vmatprep.subr.mxu0 0.0
      %6615 = vmatpush1.msra.mxu0 0.0
      %6616 = vmatprep.subr.mxu0 0.0
      %6617 = vmatpush1.msra.mxu0 0.0
      %6618 = vmatprep.subr.mxu0 0.0
      %6619 = vmatpush1.msra.mxu0 0.0
      %6620 = vmatprep.subr.mxu0 0.0
      %6621 = vmatpush1.msra.mxu0 0.0
      %6622 = vmatprep.subr.mxu0 0.0
      %6623 = vmatpush1.msra.mxu0 0.0
      %6624 = vmatprep.subr.mxu0 0.0
      %6625 = vmatpush1.msra.mxu0 0.0
      %6626 = vmatprep.subr.mxu0 0.0
      %6627 = vmatpush1.msra.mxu0 0.0
      %6628 = vmatprep.subr.mxu0 0.0
      %6629 = vmatpush1.msra.mxu0 0.0
      %6630 = vmatprep.subr.mxu0 0.0
      %6631 = vmatpush1.msra.mxu0 0.0
      %6632 = vmatprep.mubr.f32.mxu0 0.0
      %6633 = vmatmul.mubr.f32.gmra.mrb[0].mxu0 %v6279
      %v6634 = vpop.f32.mrb[0].mxu0
      %v6635 = vadd.f32 %v6410, %v6634
      %v6636 = vpop.f32.mrb[0].mxu0
      %6637 = vmatprep.mubr.f32.mxu0 0.0
      %6638 = vmatmul.mubr.f32.gmra.mrb[0].mxu0 %v6281
      %v6639 = vpop.f32.mrb[0].mxu0
      %v6640 = vadd.f32 %v6415, %v6639
      %v6641 = vpop.f32.mrb[0].mxu0
      %6642 = vmatprep.mubr.f32.mxu0 0.0
      %6643 = vmatmul.mubr.f32.gmra.mrb[0].mxu0 %v6283
      %v6644 = vpop.f32.mrb[0].mxu0
      %v6645 = vadd.f32 %v6420, %v6644
      %v6646 = vpop.f32.mrb[0].mxu0
      %6647 = vmatprep.mubr.f32.mxu0 0.0
      %6648 = vmatmul.mubr.f32.gmra.mrb[0].mxu0 %v6285
      %v6649 = vpop.f32.mrb[0].mxu0
      %v6650 = vadd.f32 %v6425, %v6649
      %v6651 = vpop.f32.mrb[0].mxu0
      %6652 = vmatprep.mubr.f32.mxu0 0.0
      %6653 = vmatmul.mubr.f32.gmra.mrb[0].mxu0 %v6287
      %v6654 = vpop.f32.mrb[0].mxu0
      %v6655 = vadd.f32 %v6430, %v6654
      %v6656 = vpop.f32.mrb[0].mxu0
      %6657 = vmatprep.mubr.f32.mxu0 0.0
      %6658 = vmatmul.mubr.f32.gmra.mrb[0].mxu0 %v6289
      %v6659 = vpop.f32.mrb[0].mxu0
      %v6660 = vadd.f32 %v6435, %v6659
      %v6661 = vpop.f32.mrb[0].mxu0
      %6662 = vmatprep.mubr.f32.mxu0 0.0
      %6663 = vmatmul.mubr.f32.gmra.mrb[0].mxu0 %v6291
      %v6664 = vpop.f32.mrb[0].mxu0
      %v6665 = vadd.f32 %v6440, %v6664
      %v6666 = vpop.f32.mrb[0].mxu0
      %6667 = vmatprep.mubr.f32.mxu0 0.0
      %6668 = vmatmul.mubr.f32.gmra.mrb[0].mxu0 %v6293
      %v6669 = vpop.f32.mrb[0].mxu0
      %v6670 = vadd.f32 %v6445, %v6669
      %v6671 = vpop.f32.mrb[0].mxu0
      %6672 = vmatprep.mubr.f32.mxu0 0.0
      %6673 = vmatmul.mubr.f32.gmra.mrb[0].mxu0 %v6295
      %v6674 = vpop.f32.mrb[0].mxu0
      %v6675 = vadd.f32 %v6450, %v6674
      %v6676 = vpop.f32.mrb[0].mxu0
      %6677 = vmatprep.mubr.f32.mxu0 0.0
      %6678 = vmatmul.mubr.f32.gmra.mrb[0].mxu0 %v6297
      %v6679 = vpop.f32.mrb[0].mxu0
      %v6680 = vadd.f32 %v6455, %v6679
      %v6681 = vpop.f32.mrb[0].mxu0
      %6682 = vmatprep.mubr.f32.mxu0 0.0
      %6683 = vmatmul.mubr.f32.gmra.mrb[0].mxu0 %v6299
      %v6684 = vpop.f32.mrb[0].mxu0
      %v6685 = vadd.f32 %v6460, %v6684
      %v6686 = vpop.f32.mrb[0].mxu0
      %6687 = vmatprep.mubr.f32.mxu0 0.0
      %6688 = vmatmul.mubr.f32.gmra.mrb[0].mxu0 %v6301
      %v6689 = vpop.f32.mrb[0].mxu0
      %v6690 = vadd.f32 %v6465, %v6689
      %v6691 = vpop.f32.mrb[0].mxu0
      %6692 = vmatprep.mubr.f32.mxu0 0.0
      %6693 = vmatmul.mubr.f32.gmra.mrb[0].mxu0 %v6303
      %v6694 = vpop.f32.mrb[0].mxu0
      %v6695 = vadd.f32 %v6470, %v6694
      %v6696 = vpop.f32.mrb[0].mxu0
      %6697 = vmatprep.mubr.f32.mxu0 0.0
      %6698 = vmatmul.mubr.f32.gmra.mrb[0].mxu0 %v6305
      %v6699 = vpop.f32.mrb[0].mxu0
      %v6700 = vadd.f32 %v6475, %v6699
      %v6701 = vpop.f32.mrb[0].mxu0
      %6702 = vmatprep.mubr.f32.mxu0 0.0
      %6703 = vmatmul.mubr.f32.gmra.mrb[0].mxu0 %v6307
      %v6704 = vpop.f32.mrb[0].mxu0
      %v6705 = vadd.f32 %v6480, %v6704
      %v6706 = vpop.f32.mrb[0].mxu0
      %6707 = vmatprep.mubr.f32.mxu0 0.0
      %6708 = vmatmul.mubr.f32.gmra.mrb[0].mxu0 %v6309
      %v6709 = vpop.f32.mrb[0].mxu0
      %v6710 = vadd.f32 %v6485, %v6709
      %v6711 = vpop.f32.mrb[0].mxu0
      %6712 = vmatprep.mubr.f32.mxu0 0.0
      %6713 = vmatmul.mubr.f32.gmra.mrb[0].mxu0 %v6311
      %v6714 = vpop.f32.mrb[0].mxu0
      %v6715 = vadd.f32 %v6490, %v6714
      %v6716 = vpop.f32.mrb[0].mxu0
      %6717 = vmatprep.mubr.f32.mxu0 0.0
      %6718 = vmatmul.mubr.f32.gmra.mrb[0].mxu0 %v6313
      %v6719 = vpop.f32.mrb[0].mxu0
      %v6720 = vadd.f32 %v6495, %v6719
      %v6721 = vpop.f32.mrb[0].mxu0
      %6722 = vmatprep.mubr.f32.mxu0 0.0
      %6723 = vmatmul.mubr.f32.gmra.mrb[0].mxu0 %v6315
      %v6724 = vpop.f32.mrb[0].mxu0
      %v6725 = vadd.f32 %v6500, %v6724
      %v6726 = vpop.f32.mrb[0].mxu0
      %6727 = vmatprep.mubr.f32.mxu0 0.0
      %6728 = vmatmul.mubr.f32.gmra.mrb[0].mxu0 %v6317
      %v6729 = vpop.f32.mrb[0].mxu0
      %v6730 = vadd.f32 %v6505, %v6729
      %v6731 = vpop.f32.mrb[0].mxu0
      %6732 = vmatprep.mubr.f32.mxu0 0.0
      %6733 = vmatmul.mubr.f32.gmra.mrb[0].mxu0 %v6319
      %v6734 = vpop.f32.mrb[0].mxu0
      %v6735 = vadd.f32 %v6510, %v6734
      %v6736 = vpop.f32.mrb[0].mxu0
      %6737 = vmatprep.mubr.f32.mxu0 0.0
      %6738 = vmatmul.mubr.f32.gmra.mrb[0].mxu0 %v6321
      %v6739 = vpop.f32.mrb[0].mxu0
      %v6740 = vadd.f32 %v6515, %v6739
      %v6741 = vpop.f32.mrb[0].mxu0
      %6742 = vmatprep.mubr.f32.mxu0 0.0
      %6743 = vmatmul.mubr.f32.gmra.mrb[0].mxu0 %v6323
      %v6744 = vpop.f32.mrb[0].mxu0
      %v6745 = vadd.f32 %v6520, %v6744
      %v6746 = vpop.f32.mrb[0].mxu0
      %6747 = vmatprep.mubr.f32.mxu0 0.0
      %6748 = vmatmul.mubr.f32.gmra.mrb[0].mxu0 %v6325
      %v6749 = vpop.f32.mrb[0].mxu0
      %v6750 = vadd.f32 %v6525, %v6749
      %v6751 = vpop.f32.mrb[0].mxu0
      %6752 = vmatprep.mubr.f32.mxu0 0.0
      %6753 = vmatmul.mubr.f32.gmra.mrb[0].mxu0 %v6327
      %v6754 = vpop.f32.mrb[0].mxu0
      %v6755 = vadd.f32 %v6530, %v6754
      %v6756 = vpop.f32.mrb[0].mxu0
      %6757 = vmatprep.mubr.f32.mxu0 0.0
      %6758 = vmatmul.mubr.f32.gmra.mrb[0].mxu0 %v6329
      %v6759 = vpop.f32.mrb[0].mxu0
      %v6760 = vadd.f32 %v6535, %v6759
      %v6761 = vpop.f32.mrb[0].mxu0
      %6762 = vmatprep.mubr.f32.mxu0 0.0
      %6763 = vmatmul.mubr.f32.gmra.mrb[0].mxu0 %v6331
      %v6764 = vpop.f32.mrb[0].mxu0
      %v6765 = vadd.f32 %v6540, %v6764
      %v6766 = vpop.f32.mrb[0].mxu0
      %6767 = vmatprep.mubr.f32.mxu0 0.0
      %6768 = vmatmul.mubr.f32.gmra.mrb[0].mxu0 %v6333
      %v6769 = vpop.f32.mrb[0].mxu0
      %v6770 = vadd.f32 %v6545, %v6769
      %v6771 = vpop.f32.mrb[0].mxu0
      %6772 = vmatprep.mubr.f32.mxu0 0.0
      %6773 = vmatmul.mubr.f32.gmra.mrb[0].mxu0 %v6335
      %v6774 = vpop.f32.mrb[0].mxu0
      %v6775 = vadd.f32 %v6550, %v6774
      %v6776 = vpop.f32.mrb[0].mxu0
      %6777 = vmatprep.mubr.f32.mxu0 0.0
      %6778 = vmatmul.mubr.f32.gmra.mrb[0].mxu0 %v6337
      %v6779 = vpop.f32.mrb[0].mxu0
      %v6780 = vadd.f32 %v6555, %v6779
      %v6781 = vpop.f32.mrb[0].mxu0
      %6782 = vmatprep.mubr.f32.mxu0 0.0
      %6783 = vmatmul.mubr.f32.gmra.mrb[0].mxu0 %v6339
      %v6784 = vpop.f32.mrb[0].mxu0
      %v6785 = vadd.f32 %v6560, %v6784
      %v6786 = vpop.f32.mrb[0].mxu0
      %6787 = vmatprep.mubr.f32.mxu0 0.0
      %6788 = vmatmul.mubr.f32.gmra.mrb[0].mxu0 %v6341
      %v6789 = vpop.f32.mrb[0].mxu0
      %v6790 = vadd.f32 %v6565, %v6789
      %v6791 = vpop.f32.mrb[0].mxu0
      %6792 = vdwg.mxu0
      %v6793 = vmax.f32 %v6635, 0.0
      %v6794 = vmax.f32 %v6640, 0.0
      %v6795 = vmax.f32 %v6645, 0.0
      %v6796 = vmax.f32 %v6650, 0.0
      %v6797 = vmax.f32 %v6655, 0.0
      %v6798 = vmax.f32 %v6660, 0.0
      %v6799 = vmax.f32 %v6665, 0.0
      %v6800 = vmax.f32 %v6670, 0.0
      %v6801 = vmax.f32 %v6675, 0.0
      %v6802 = vmax.f32 %v6680, 0.0
      %v6803 = vmax.f32 %v6685, 0.0
      %v6804 = vmax.f32 %v6690, 0.0
      %v6805 = vmax.f32 %v6695, 0.0
      %v6806 = vmax.f32 %v6700, 0.0
      %v6807 = vmax.f32 %v6705, 0.0
      %v6808 = vmax.f32 %v6710, 0.0
      %v6809 = vmax.f32 %v6715, 0.0
      %v6810 = vmax.f32 %v6720, 0.0
      %v6811 = vmax.f32 %v6725, 0.0
      %v6812 = vmax.f32 %v6730, 0.0
      %v6813 = vmax.f32 %v6735, 0.0
      %v6814 = vmax.f32 %v6740, 0.0
      %v6815 = vmax.f32 %v6745, 0.0
      %v6816 = vmax.f32 %v6750, 0.0
      %v6817 = vmax.f32 %v6755, 0.0
      %v6818 = vmax.f32 %v6760, 0.0
      %v6819 = vmax.f32 %v6765, 0.0
      %v6820 = vmax.f32 %v6770, 0.0
      %v6821 = vmax.f32 %v6775, 0.0
      %v6822 = vmax.f32 %v6780, 0.0
      %v6823 = vmax.f32 %v6785, 0.0
      %v6824 = vmax.f32 %v6790, 0.0
      %s6825 = scalar_lea.vmem %s10, 32
      %v6826 = vld [vmem:[%s6825] sm:$0xff]
      %v6827 = vld [vmem:[%s6825 + $0x8] sm:$0xff]
      %v6828 = vld [vmem:[%s6825 + $0x10] sm:$0xff]
      %v6829 = vld [vmem:[%s6825 + $0x18] sm:$0xff]
      %s6830 = scalar_lea.vmem %s11, 1
      %v6831 = vld [vmem:[%s6830] sm:$0x1]
      %v6833 = vlaneseq
      %v6834 = vshrl.u32 %v6833, 7
      %v6835 = vsub.s32 0, %v6834
      %v6836 = vrot.slane %v6831, %v6835
      %v6839 = vsel %vm530, %v6793, 0
      %v6842 = vsel %vm530, %v6794, 0
      %v6845 = vsel %vm530, %v6795, 0
      %v6848 = vsel %vm530, %v6796, 0
      %v6851 = vsel %vm530, %v6797, 0
      %v6854 = vsel %vm530, %v6798, 0
      %v6857 = vsel %vm530, %v6799, 0
      %v6860 = vsel %vm530, %v6800, 0
      %v6863 = vsel %vm530, %v6801, 0
      %v6866 = vsel %vm530, %v6802, 0
      %v6869 = vsel %vm530, %v6803, 0
      %v6872 = vsel %vm530, %v6804, 0
      %v6875 = vsel %vm530, %v6805, 0
      %v6878 = vsel %vm530, %v6806, 0
      %v6881 = vsel %vm530, %v6807, 0
      %v6884 = vsel %vm530, %v6808, 0
      %v6887 = vsel %vm530, %v6809, 0
      %v6890 = vsel %vm530, %v6810, 0
      %v6893 = vsel %vm530, %v6811, 0
      %v6896 = vsel %vm530, %v6812, 0
      %v6899 = vsel %vm530, %v6813, 0
      %v6902 = vsel %vm530, %v6814, 0
      %v6905 = vsel %vm530, %v6815, 0
      %v6908 = vsel %vm530, %v6816, 0
      %v6911 = vsel %vm530, %v6817, 0
      %v6914 = vsel %vm530, %v6818, 0
      %v6917 = vsel %vm530, %v6819, 0
      %v6920 = vsel %vm530, %v6820, 0
      %v6923 = vsel %vm530, %v6821, 0
      %v6926 = vsel %vm530, %v6822, 0
      %v6929 = vsel %vm530, %v6823, 0
      %v6932 = vsel %vm530, %v6824, 0
      %6934 = vmatprep.subr.mxu0 0.0
      %6935 = vmatpush1.msra.mxu0 %v6826
      %6936 = vmatprep.subr.mxu0 0.0
      %6937 = vmatpush1.msra.mxu0 %v6827
      %6938 = vmatprep.subr.mxu0 0.0
      %6939 = vmatpush1.msra.mxu0 %v6828
      %6940 = vmatprep.subr.mxu0 0.0
      %6941 = vmatpush1.msra.mxu0 %v6829
      %6942 = vmatprep.subr.mxu0 0.0
      %6943 = vmatpush1.msra.mxu0 0.0
      %6944 = vmatprep.subr.mxu0 0.0
      %6945 = vmatpush1.msra.mxu0 0.0
      %6946 = vmatprep.subr.mxu0 0.0
      %6947 = vmatpush1.msra.mxu0 0.0
      %6948 = vmatprep.subr.mxu0 0.0
      %6949 = vmatpush1.msra.mxu0 0.0
      %6950 = vmatprep.subr.mxu0 0.0
      %6951 = vmatpush1.msra.mxu0 0.0
      %6952 = vmatprep.subr.mxu0 0.0
      %6953 = vmatpush1.msra.mxu0 0.0
      %6954 = vmatprep.subr.mxu0 0.0
      %6955 = vmatpush1.msra.mxu0 0.0
      %6956 = vmatprep.subr.mxu0 0.0
      %6957 = vmatpush1.msra.mxu0 0.0
      %6958 = vmatprep.subr.mxu0 0.0
      %6959 = vmatpush1.msra.mxu0 0.0
      %6960 = vmatprep.subr.mxu0 0.0
      %6961 = vmatpush1.msra.mxu0 0.0
      %6962 = vmatprep.subr.mxu0 0.0
      %6963 = vmatpush1.msra.mxu0 0.0
      %6964 = vmatprep.subr.mxu0 0.0
      %6965 = vmatpush1.msra.mxu0 0.0
      %6966 = vmatprep.subr.mxu0 0.0
      %6967 = vmatpush1.msra.mxu0 0.0
      %6968 = vmatprep.subr.mxu0 0.0
      %6969 = vmatpush1.msra.mxu0 0.0
      %6970 = vmatprep.subr.mxu0 0.0
      %6971 = vmatpush1.msra.mxu0 0.0
      %6972 = vmatprep.subr.mxu0 0.0
      %6973 = vmatpush1.msra.mxu0 0.0
      %6974 = vmatprep.subr.mxu0 0.0
      %6975 = vmatpush1.msra.mxu0 0.0
      %6976 = vmatprep.subr.mxu0 0.0
      %6977 = vmatpush1.msra.mxu0 0.0
      %6978 = vmatprep.subr.mxu0 0.0
      %6979 = vmatpush1.msra.mxu0 0.0
      %6980 = vmatprep.subr.mxu0 0.0
      %6981 = vmatpush1.msra.mxu0 0.0
      %6982 = vmatprep.subr.mxu0 0.0
      %6983 = vmatpush1.msra.mxu0 0.0
      %6984 = vmatprep.subr.mxu0 0.0
      %6985 = vmatpush1.msra.mxu0 0.0
      %6986 = vmatprep.subr.mxu0 0.0
      %6987 = vmatpush1.msra.mxu0 0.0
      %6988 = vmatprep.subr.mxu0 0.0
      %6989 = vmatpush1.msra.mxu0 0.0
      %6990 = vmatprep.subr.mxu0 0.0
      %6991 = vmatpush1.msra.mxu0 0.0
      %6992 = vmatprep.subr.mxu0 0.0
      %6993 = vmatpush1.msra.mxu0 0.0
      %6994 = vmatprep.subr.mxu0 0.0
      %6995 = vmatpush1.msra.mxu0 0.0
      %6996 = vmatprep.subr.mxu0 0.0
      %6997 = vmatpush1.msra.mxu0 0.0
      %6998 = vmatprep.mubr.f32.mxu0 0.0
      %6999 = vmatmul.mubr.f32.gmra.mrb[0].mxu0 %v6839
      %v7000 = vpop.f32.mrb[0].mxu0
      %v7001 = vadd.f32 %v6836, %v7000
      %v7002 = vpop.f32.mrb[0].mxu0
      %7003 = vmatprep.mubr.f32.mxu0 0.0
      %7004 = vmatmul.mubr.f32.gmra.mrb[0].mxu0 %v6842
      %v7005 = vpop.f32.mrb[0].mxu0
      %v7006 = vadd.f32 %v6836, %v7005
      %v7007 = vpop.f32.mrb[0].mxu0
      %7008 = vmatprep.mubr.f32.mxu0 0.0
      %7009 = vmatmul.mubr.f32.gmra.mrb[0].mxu0 %v6845
      %v7010 = vpop.f32.mrb[0].mxu0
      %v7011 = vadd.f32 %v6836, %v7010
      %v7012 = vpop.f32.mrb[0].mxu0
      %7013 = vmatprep.mubr.f32.mxu0 0.0
      %7014 = vmatmul.mubr.f32.gmra.mrb[0].mxu0 %v6848
      %v7015 = vpop.f32.mrb[0].mxu0
      %v7016 = vadd.f32 %v6836, %v7015
      %v7017 = vpop.f32.mrb[0].mxu0
      %7018 = vmatprep.mubr.f32.mxu0 0.0
      %7019 = vmatmul.mubr.f32.gmra.mrb[0].mxu0 %v6851
      %v7020 = vpop.f32.mrb[0].mxu0
      %v7021 = vadd.f32 %v6836, %v7020
      %v7022 = vpop.f32.mrb[0].mxu0
      %7023 = vmatprep.mubr.f32.mxu0 0.0
      %7024 = vmatmul.mubr.f32.gmra.mrb[0].mxu0 %v6854
      %v7025 = vpop.f32.mrb[0].mxu0
      %v7026 = vadd.f32 %v6836, %v7025
      %v7027 = vpop.f32.mrb[0].mxu0
      %7028 = vmatprep.mubr.f32.mxu0 0.0
      %7029 = vmatmul.mubr.f32.gmra.mrb[0].mxu0 %v6857
      %v7030 = vpop.f32.mrb[0].mxu0
      %v7031 = vadd.f32 %v6836, %v7030
      %v7032 = vpop.f32.mrb[0].mxu0
      %7033 = vmatprep.mubr.f32.mxu0 0.0
      %7034 = vmatmul.mubr.f32.gmra.mrb[0].mxu0 %v6860
      %v7035 = vpop.f32.mrb[0].mxu0
      %v7036 = vadd.f32 %v6836, %v7035
      %v7037 = vpop.f32.mrb[0].mxu0
      %7038 = vmatprep.mubr.f32.mxu0 0.0
      %7039 = vmatmul.mubr.f32.gmra.mrb[0].mxu0 %v6863
      %v7040 = vpop.f32.mrb[0].mxu0
      %v7041 = vadd.f32 %v6836, %v7040
      %v7042 = vpop.f32.mrb[0].mxu0
      %7043 = vmatprep.mubr.f32.mxu0 0.0
      %7044 = vmatmul.mubr.f32.gmra.mrb[0].mxu0 %v6866
      %v7045 = vpop.f32.mrb[0].mxu0
      %v7046 = vadd.f32 %v6836, %v7045
      %v7047 = vpop.f32.mrb[0].mxu0
      %7048 = vmatprep.mubr.f32.mxu0 0.0
      %7049 = vmatmul.mubr.f32.gmra.mrb[0].mxu0 %v6869
      %v7050 = vpop.f32.mrb[0].mxu0
      %v7051 = vadd.f32 %v6836, %v7050
      %v7052 = vpop.f32.mrb[0].mxu0
      %7053 = vmatprep.mubr.f32.mxu0 0.0
      %7054 = vmatmul.mubr.f32.gmra.mrb[0].mxu0 %v6872
      %v7055 = vpop.f32.mrb[0].mxu0
      %v7056 = vadd.f32 %v6836, %v7055
      %v7057 = vpop.f32.mrb[0].mxu0
      %7058 = vmatprep.mubr.f32.mxu0 0.0
      %7059 = vmatmul.mubr.f32.gmra.mrb[0].mxu0 %v6875
      %v7060 = vpop.f32.mrb[0].mxu0
      %v7061 = vadd.f32 %v6836, %v7060
      %v7062 = vpop.f32.mrb[0].mxu0
      %7063 = vmatprep.mubr.f32.mxu0 0.0
      %7064 = vmatmul.mubr.f32.gmra.mrb[0].mxu0 %v6878
      %v7065 = vpop.f32.mrb[0].mxu0
      %v7066 = vadd.f32 %v6836, %v7065
      %v7067 = vpop.f32.mrb[0].mxu0
      %7068 = vmatprep.mubr.f32.mxu0 0.0
      %7069 = vmatmul.mubr.f32.gmra.mrb[0].mxu0 %v6881
      %v7070 = vpop.f32.mrb[0].mxu0
      %v7071 = vadd.f32 %v6836, %v7070
      %v7072 = vpop.f32.mrb[0].mxu0
      %7073 = vmatprep.mubr.f32.mxu0 0.0
      %7074 = vmatmul.mubr.f32.gmra.mrb[0].mxu0 %v6884
      %v7075 = vpop.f32.mrb[0].mxu0
      %v7076 = vadd.f32 %v6836, %v7075
      %v7077 = vpop.f32.mrb[0].mxu0
      %7078 = vmatprep.mubr.f32.mxu0 0.0
      %7079 = vmatmul.mubr.f32.gmra.mrb[0].mxu0 %v6887
      %v7080 = vpop.f32.mrb[0].mxu0
      %v7081 = vadd.f32 %v6836, %v7080
      %v7082 = vpop.f32.mrb[0].mxu0
      %7083 = vmatprep.mubr.f32.mxu0 0.0
      %7084 = vmatmul.mubr.f32.gmra.mrb[0].mxu0 %v6890
      %v7085 = vpop.f32.mrb[0].mxu0
      %v7086 = vadd.f32 %v6836, %v7085
      %v7087 = vpop.f32.mrb[0].mxu0
      %7088 = vmatprep.mubr.f32.mxu0 0.0
      %7089 = vmatmul.mubr.f32.gmra.mrb[0].mxu0 %v6893
      %v7090 = vpop.f32.mrb[0].mxu0
      %v7091 = vadd.f32 %v6836, %v7090
      %v7092 = vpop.f32.mrb[0].mxu0
      %7093 = vmatprep.mubr.f32.mxu0 0.0
      %7094 = vmatmul.mubr.f32.gmra.mrb[0].mxu0 %v6896
      %v7095 = vpop.f32.mrb[0].mxu0
      %v7096 = vadd.f32 %v6836, %v7095
      %v7097 = vpop.f32.mrb[0].mxu0
      %7098 = vmatprep.mubr.f32.mxu0 0.0
      %7099 = vmatmul.mubr.f32.gmra.mrb[0].mxu0 %v6899
      %v7100 = vpop.f32.mrb[0].mxu0
      %v7101 = vadd.f32 %v6836, %v7100
      %v7102 = vpop.f32.mrb[0].mxu0
      %7103 = vmatprep.mubr.f32.mxu0 0.0
      %7104 = vmatmul.mubr.f32.gmra.mrb[0].mxu0 %v6902
      %v7105 = vpop.f32.mrb[0].mxu0
      %v7106 = vadd.f32 %v6836, %v7105
      %v7107 = vpop.f32.mrb[0].mxu0
      %7108 = vmatprep.mubr.f32.mxu0 0.0
      %7109 = vmatmul.mubr.f32.gmra.mrb[0].mxu0 %v6905
      %v7110 = vpop.f32.mrb[0].mxu0
      %v7111 = vadd.f32 %v6836, %v7110
      %v7112 = vpop.f32.mrb[0].mxu0
      %7113 = vmatprep.mubr.f32.mxu0 0.0
      %7114 = vmatmul.mubr.f32.gmra.mrb[0].mxu0 %v6908
      %v7115 = vpop.f32.mrb[0].mxu0
      %v7116 = vadd.f32 %v6836, %v7115
      %v7117 = vpop.f32.mrb[0].mxu0
      %7118 = vmatprep.mubr.f32.mxu0 0.0
      %7119 = vmatmul.mubr.f32.gmra.mrb[0].mxu0 %v6911
      %v7120 = vpop.f32.mrb[0].mxu0
      %v7121 = vadd.f32 %v6836, %v7120
      %v7122 = vpop.f32.mrb[0].mxu0
      %7123 = vmatprep.mubr.f32.mxu0 0.0
      %7124 = vmatmul.mubr.f32.gmra.mrb[0].mxu0 %v6914
      %v7125 = vpop.f32.mrb[0].mxu0
      %v7126 = vadd.f32 %v6836, %v7125
      %v7127 = vpop.f32.mrb[0].mxu0
      %7128 = vmatprep.mubr.f32.mxu0 0.0
      %7129 = vmatmul.mubr.f32.gmra.mrb[0].mxu0 %v6917
      %v7130 = vpop.f32.mrb[0].mxu0
      %v7131 = vadd.f32 %v6836, %v7130
      %v7132 = vpop.f32.mrb[0].mxu0
      %7133 = vmatprep.mubr.f32.mxu0 0.0
      %7134 = vmatmul.mubr.f32.gmra.mrb[0].mxu0 %v6920
      %v7135 = vpop.f32.mrb[0].mxu0
      %v7136 = vadd.f32 %v6836, %v7135
      %v7137 = vpop.f32.mrb[0].mxu0
      %7138 = vmatprep.mubr.f32.mxu0 0.0
      %7139 = vmatmul.mubr.f32.gmra.mrb[0].mxu0 %v6923
      %v7140 = vpop.f32.mrb[0].mxu0
      %v7141 = vadd.f32 %v6836, %v7140
      %v7142 = vpop.f32.mrb[0].mxu0
      %7143 = vmatprep.mubr.f32.mxu0 0.0
      %7144 = vmatmul.mubr.f32.gmra.mrb[0].mxu0 %v6926
      %v7145 = vpop.f32.mrb[0].mxu0
      %v7146 = vadd.f32 %v6836, %v7145
      %v7147 = vpop.f32.mrb[0].mxu0
      %7148 = vmatprep.mubr.f32.mxu0 0.0
      %7149 = vmatmul.mubr.f32.gmra.mrb[0].mxu0 %v6929
      %v7150 = vpop.f32.mrb[0].mxu0
      %v7151 = vadd.f32 %v6836, %v7150
      %v7152 = vpop.f32.mrb[0].mxu0
      %7153 = vmatprep.mubr.f32.mxu0 0.0
      %7154 = vmatmul.mubr.f32.gmra.mrb[0].mxu0 %v6932
      %v7155 = vpop.f32.mrb[0].mxu0
      %v7156 = vadd.f32 %v6836, %v7155
      %v7157 = vpop.f32.mrb[0].mxu0
      %7158 = vdwg.mxu0
      %v7159 = vmax.f32 %v7001, 0.0
      %v7160 = vmax.f32 %v7006, 0.0
      %v7161 = vmax.f32 %v7011, 0.0
      %v7162 = vmax.f32 %v7016, 0.0
      %v7163 = vmax.f32 %v7021, 0.0
      %v7164 = vmax.f32 %v7026, 0.0
      %v7165 = vmax.f32 %v7031, 0.0
      %v7166 = vmax.f32 %v7036, 0.0
      %v7167 = vmax.f32 %v7041, 0.0
      %v7168 = vmax.f32 %v7046, 0.0
      %v7169 = vmax.f32 %v7051, 0.0
      %v7170 = vmax.f32 %v7056, 0.0
      %v7171 = vmax.f32 %v7061, 0.0
      %v7172 = vmax.f32 %v7066, 0.0
      %v7173 = vmax.f32 %v7071, 0.0
      %v7174 = vmax.f32 %v7076, 0.0
      %v7175 = vmax.f32 %v7081, 0.0
      %v7176 = vmax.f32 %v7086, 0.0
      %v7177 = vmax.f32 %v7091, 0.0
      %v7178 = vmax.f32 %v7096, 0.0
      %v7179 = vmax.f32 %v7101, 0.0
      %v7180 = vmax.f32 %v7106, 0.0
      %v7181 = vmax.f32 %v7111, 0.0
      %v7182 = vmax.f32 %v7116, 0.0
      %v7183 = vmax.f32 %v7121, 0.0
      %v7184 = vmax.f32 %v7126, 0.0
      %v7185 = vmax.f32 %v7131, 0.0
      %v7186 = vmax.f32 %v7136, 0.0
      %v7187 = vmax.f32 %v7141, 0.0
      %v7188 = vmax.f32 %v7146, 0.0
      %v7189 = vmax.f32 %v7151, 0.0
      %v7190 = vmax.f32 %v7156, 0.0
      %v7191 = vadd.f32 %v4716, %v7159
      %v7192 = vadd.f32 %v4717, %v7160
      %v7193 = vadd.f32 %v4718, %v7161
      %v7194 = vadd.f32 %v4719, %v7162
      %v7195 = vadd.f32 %v4720, %v7163
      %v7196 = vadd.f32 %v4721, %v7164
      %v7197 = vadd.f32 %v4722, %v7165
      %v7198 = vadd.f32 %v4723, %v7166
      %v7199 = vadd.f32 %v4724, %v7167
      %v7200 = vadd.f32 %v4725, %v7168
      %v7201 = vadd.f32 %v4726, %v7169
      %v7202 = vadd.f32 %v4727, %v7170
      %v7203 = vadd.f32 %v4728, %v7171
      %v7204 = vadd.f32 %v4729, %v7172
      %v7205 = vadd.f32 %v4730, %v7173
      %v7206 = vadd.f32 %v4731, %v7174
      %v7207 = vadd.f32 %v4732, %v7175
      %v7208 = vadd.f32 %v4733, %v7176
      %v7209 = vadd.f32 %v4734, %v7177
      %v7210 = vadd.f32 %v4735, %v7178
      %v7211 = vadd.f32 %v4736, %v7179
      %v7212 = vadd.f32 %v4737, %v7180
      %v7213 = vadd.f32 %v4738, %v7181
      %v7214 = vadd.f32 %v4739, %v7182
      %v7215 = vadd.f32 %v4740, %v7183
      %v7216 = vadd.f32 %v4741, %v7184
      %v7217 = vadd.f32 %v4742, %v7185
      %v7218 = vadd.f32 %v4743, %v7186
      %v7219 = vadd.f32 %v4744, %v7187
      %v7220 = vadd.f32 %v4745, %v7188
      %v7221 = vadd.f32 %v4746, %v7189
      %v7222 = vadd.f32 %v4747, %v7190
      %7223 = vst.msk [vmem:[%s2640 + $0x1] sm:$0xff] %vm530, %v7191
      %7224 = vst.msk [vmem:[%s2640 + $0x9] sm:$0xff] %vm530, %v7192
      %7225 = vst.msk [vmem:[%s2640 + $0x19] sm:$0xff] %vm530, %v7193
      %7226 = vst.msk [vmem:[%s2640 + $0x21] sm:$0xff] %vm530, %v7194
      %7227 = vst.msk [vmem:[%s2640 + $0x31] sm:$0xff] %vm530, %v7195
      %7228 = vst.msk [vmem:[%s2640 + $0x39] sm:$0xff] %vm530, %v7196
      %7229 = vst.msk [vmem:[%s2640 + $0x49] sm:$0xff] %vm530, %v7197
      %7230 = vst.msk [vmem:[%s2640 + $0x51] sm:$0xff] %vm530, %v7198
      %7231 = vst.msk [vmem:[%s2640 + $0x61] sm:$0xff] %vm530, %v7199
      %7232 = vst.msk [vmem:[%s2640 + $0x69] sm:$0xff] %vm530, %v7200
      %7233 = vst.msk [vmem:[%s2640 + $0x79] sm:$0xff] %vm530, %v7201
      %7234 = vst.msk [vmem:[%s2640 + $0x81] sm:$0xff] %vm530, %v7202
      %7235 = vst.msk [vmem:[%s2640 + $0x91] sm:$0xff] %vm530, %v7203
      %7236 = vst.msk [vmem:[%s2640 + $0x99] sm:$0xff] %vm530, %v7204
      %7237 = vst.msk [vmem:[%s2640 + $0xa9] sm:$0xff] %vm530, %v7205
      %7238 = vst.msk [vmem:[%s2640 + $0xb1] sm:$0xff] %vm530, %v7206
      %7239 = vst.msk [vmem:[%s2640 + $0xc1] sm:$0xff] %vm530, %v7207
      %7240 = vst.msk [vmem:[%s2640 + $0xc9] sm:$0xff] %vm530, %v7208
      %7241 = vst.msk [vmem:[%s2640 + $0xd9] sm:$0xff] %vm530, %v7209
      %7242 = vst.msk [vmem:[%s2640 + $0xe1] sm:$0xff] %vm530, %v7210
      %7243 = vst.msk [vmem:[%s2640 + $0xf1] sm:$0xff] %vm530, %v7211
      %7244 = vst.msk [vmem:[%s2640 + $0xf9] sm:$0xff] %vm530, %v7212
      %7245 = vst.msk [vmem:[%s2640 + $0x109] sm:$0xff] %vm530, %v7213
      %7246 = vst.msk [vmem:[%s2640 + $0x111] sm:$0xff] %vm530, %v7214
      %7247 = vst.msk [vmem:[%s2640 + $0x121] sm:$0xff] %vm530, %v7215
      %7248 = vst.msk [vmem:[%s2640 + $0x129] sm:$0xff] %vm530, %v7216
      %7249 = vst.msk [vmem:[%s2640 + $0x139] sm:$0xff] %vm530, %v7217
      %7250 = vst.msk [vmem:[%s2640 + $0x141] sm:$0xff] %vm530, %v7218
      %7251 = vst.msk [vmem:[%s2640 + $0x151] sm:$0xff] %vm530, %v7219
      %7252 = vst.msk [vmem:[%s2640 + $0x159] sm:$0xff] %vm530, %v7220
      %7253 = vst.msk [vmem:[%s2640 + $0x169] sm:$0xff] %vm530, %v7221
      %7254 = vst.msk [vmem:[%s2640 + $0x171] sm:$0xff] %vm530, %v7222
      %v7255 = vld [vmem:[#allocation2] sm:$0xff]
      %v7256 = vld [vmem:[#allocation2 + $0x8] sm:$0xff]
      %v7257 = vld [vmem:[#allocation2 + $0x10] sm:$0x3]
      %v7258 = vld [vmem:[#allocation2 + $0x18] sm:$0xff]
      %v7259 = vld [vmem:[#allocation2 + $0x20] sm:$0xff]
      %v7260 = vld [vmem:[#allocation2 + $0x28] sm:$0x3]
      %v7261 = vld [vmem:[#allocation2 + $0x30] sm:$0xff]
      %v7262 = vld [vmem:[#allocation2 + $0x38] sm:$0xff]
      %v7263 = vld [vmem:[#allocation2 + $0x40] sm:$0x3]
      %v7264 = vld [vmem:[#allocation2 + $0x48] sm:$0xff]
      %v7265 = vld [vmem:[#allocation2 + $0x50] sm:$0xff]
      %v7266 = vld [vmem:[#allocation2 + $0x58] sm:$0x3]
      %v7267 = vld [vmem:[#allocation2 + $0x60] sm:$0xff]
      %v7268 = vld [vmem:[#allocation2 + $0x68] sm:$0xff]
      %v7269 = vld [vmem:[#allocation2 + $0x70] sm:$0x3]
      %v7270 = vld [vmem:[#allocation2 + $0x78] sm:$0xff]
      %v7271 = vld [vmem:[#allocation2 + $0x80] sm:$0xff]
      %v7272 = vld [vmem:[#allocation2 + $0x88] sm:$0x3]
      %v7273 = vld [vmem:[#allocation2 + $0x90] sm:$0xff]
      %v7274 = vld [vmem:[#allocation2 + $0x98] sm:$0xff]
      %v7275 = vld [vmem:[#allocation2 + $0xa0] sm:$0x3]
      %v7276 = vld [vmem:[#allocation2 + $0xa8] sm:$0xff]
      %v7277 = vld [vmem:[#allocation2 + $0xb0] sm:$0xff]
      %v7278 = vld [vmem:[#allocation2 + $0xb8] sm:$0x3]
      %v7279 = vld [vmem:[#allocation2 + $0xc0] sm:$0xff]
      %v7280 = vld [vmem:[#allocation2 + $0xc8] sm:$0xff]
      %v7281 = vld [vmem:[#allocation2 + $0xd0] sm:$0x3]
      %v7282 = vld [vmem:[#allocation2 + $0xd8] sm:$0xff]
      %v7283 = vld [vmem:[#allocation2 + $0xe0] sm:$0xff]
      %v7284 = vld [vmem:[#allocation2 + $0xe8] sm:$0x3]
      %v7285 = vld [vmem:[#allocation2 + $0xf0] sm:$0xff]
      %v7286 = vld [vmem:[#allocation2 + $0xf8] sm:$0xff]
      %v7287 = vld [vmem:[#allocation2 + $0x100] sm:$0x3]
      %v7288 = vld [vmem:[#allocation2 + $0x108] sm:$0xff]
      %v7289 = vld [vmem:[#allocation2 + $0x110] sm:$0xff]
      %v7290 = vld [vmem:[#allocation2 + $0x118] sm:$0x3]
      %v7291 = vld [vmem:[#allocation2 + $0x120] sm:$0xff]
      %v7292 = vld [vmem:[#allocation2 + $0x128] sm:$0xff]
      %v7293 = vld [vmem:[#allocation2 + $0x130] sm:$0x3]
      %v7294 = vld [vmem:[#allocation2 + $0x138] sm:$0xff]
      %v7295 = vld [vmem:[#allocation2 + $0x140] sm:$0xff]
      %v7296 = vld [vmem:[#allocation2 + $0x148] sm:$0x3]
      %v7297 = vld [vmem:[#allocation2 + $0x150] sm:$0xff]
      %v7298 = vld [vmem:[#allocation2 + $0x158] sm:$0xff]
      %v7299 = vld [vmem:[#allocation2 + $0x160] sm:$0x3]
      %v7300 = vld [vmem:[#allocation2 + $0x168] sm:$0xff]
      %v7301 = vld [vmem:[#allocation2 + $0x170] sm:$0xff]
      %v7302 = vld [vmem:[#allocation2 + $0x178] sm:$0x3]
      %v7303 = vld [vmem:[#allocation2 + $0x180] sm:$0xff]
      %v7304 = vld [vmem:[#allocation2 + $0x188] sm:$0xff]
      %v7305 = vld [vmem:[#allocation2 + $0x190] sm:$0x3]
      %v7306 = vld [vmem:[#allocation2 + $0x198] sm:$0xff]
      %v7307 = vld [vmem:[#allocation2 + $0x1a0] sm:$0xff]
      %v7308 = vld [vmem:[#allocation2 + $0x1a8] sm:$0x3]
      %v7309 = vld [vmem:[%s12] sm:$0xff]
      %v7310 = vld [vmem:[%s12 + $0x8] sm:$0xff]
      %v7311 = vld [vmem:[%s12 + $0x10] sm:$0xff]
      %v7312 = vld [vmem:[%s12 + $0x18] sm:$0xff]
      %v7313 = vld [vmem:[%s12 + $0x20] sm:$0xff]
      %v7314 = vld [vmem:[%s12 + $0x28] sm:$0xff]
      %v7315 = vld [vmem:[%s12 + $0x30] sm:$0xff]
      %v7316 = vld [vmem:[%s12 + $0x38] sm:$0xff]
      %v7317 = vld [vmem:[%s12 + $0x40] sm:$0xff]
      %v7318 = vld [vmem:[%s12 + $0x48] sm:$0xff]
      %v7319 = vld [vmem:[%s12 + $0x50] sm:$0xff]
      %v7320 = vld [vmem:[%s12 + $0x58] sm:$0xff]
      %v7321 = vld [vmem:[%s12 + $0x60] sm:$0xff]
      %v7322 = vld [vmem:[%s12 + $0x68] sm:$0xff]
      %v7323 = vld [vmem:[%s12 + $0x70] sm:$0xff]
      %v7324 = vld [vmem:[%s12 + $0x78] sm:$0xff]
      %v7325 = vld [vmem:[%s12 + $0x80] sm:$0xff]
      %v7326 = vld [vmem:[%s12 + $0x88] sm:$0xff]
      %v7327 = vld [vmem:[%s12 + $0x90] sm:$0xff]
      %v7328 = vld [vmem:[%s12 + $0x98] sm:$0xff]
      %v7329 = vld [vmem:[%s12 + $0xa0] sm:$0xff]
      %v7330 = vld [vmem:[%s12 + $0xa8] sm:$0xff]
      %v7331 = vld [vmem:[%s12 + $0xb0] sm:$0xff]
      %v7332 = vld [vmem:[%s12 + $0xb8] sm:$0xff]
      %v7333 = vld [vmem:[%s12 + $0xc0] sm:$0xff]
      %v7334 = vld [vmem:[%s12 + $0xc8] sm:$0xff]
      %v7335 = vld [vmem:[%s12 + $0xd0] sm:$0xff]
      %v7336 = vld [vmem:[%s12 + $0xd8] sm:$0xff]
      %v7337 = vld [vmem:[%s12 + $0xe0] sm:$0xff]
      %v7338 = vld [vmem:[%s12 + $0xe8] sm:$0xff]
      %v7339 = vld [vmem:[%s12 + $0xf0] sm:$0xff]
      %v7340 = vld [vmem:[%s12 + $0xf8] sm:$0xff]
      %v7341 = vld [vmem:[%s12 + $0x100] sm:$0xff]
      %v7342 = vld [vmem:[%s12 + $0x108] sm:$0xff]
      %v7343 = vld [vmem:[%s12 + $0x110] sm:$0xff]
      %v7344 = vld [vmem:[%s12 + $0x118] sm:$0xff]
      %v7345 = vld [vmem:[%s13] sm:$0x1]
      %v7394 = vrot.slane %v7255, 1
      %v7395 = vrot.slane %v7256, 1
      %v7396 = vsel %vm692, %v7394, %v7395
      %v7397 = vrot.slane %v7257, 1
      %v7398 = vsel %vm692, %v7395, %v7397
      %v7399 = vrot.slane %v7258, 1
      %v7400 = vrot.slane %v7259, 1
      %v7401 = vsel %vm692, %v7399, %v7400
      %v7402 = vrot.slane %v7260, 1
      %v7403 = vsel %vm692, %v7400, %v7402
      %v7404 = vrot.slane %v7261, 1
      %v7405 = vrot.slane %v7262, 1
      %v7406 = vsel %vm692, %v7404, %v7405
      %v7407 = vrot.slane %v7263, 1
      %v7408 = vsel %vm692, %v7405, %v7407
      %v7409 = vrot.slane %v7264, 1
      %v7410 = vrot.slane %v7265, 1
      %v7411 = vsel %vm692, %v7409, %v7410
      %v7412 = vrot.slane %v7266, 1
      %v7413 = vsel %vm692, %v7410, %v7412
      %v7414 = vrot.slane %v7267, 1
      %v7415 = vrot.slane %v7268, 1
      %v7416 = vsel %vm692, %v7414, %v7415
      %v7417 = vrot.slane %v7269, 1
      %v7418 = vsel %vm692, %v7415, %v7417
      %v7419 = vrot.slane %v7270, 1
      %v7420 = vrot.slane %v7271, 1
      %v7421 = vsel %vm692, %v7419, %v7420
      %v7422 = vrot.slane %v7272, 1
      %v7423 = vsel %vm692, %v7420, %v7422
      %v7424 = vrot.slane %v7273, 1
      %v7425 = vrot.slane %v7274, 1
      %v7426 = vsel %vm692, %v7424, %v7425
      %v7427 = vrot.slane %v7275, 1
      %v7428 = vsel %vm692, %v7425, %v7427
      %v7429 = vrot.slane %v7276, 1
      %v7430 = vrot.slane %v7277, 1
      %v7431 = vsel %vm692, %v7429, %v7430
      %v7432 = vrot.slane %v7278, 1
      %v7433 = vsel %vm692, %v7430, %v7432
      %v7434 = vrot.slane %v7279, 1
      %v7435 = vrot.slane %v7280, 1
      %v7436 = vsel %vm692, %v7434, %v7435
      %v7437 = vrot.slane %v7281, 1
      %v7438 = vsel %vm692, %v7435, %v7437
      %v7439 = vrot.slane %v7282, 1
      %v7440 = vrot.slane %v7283, 1
      %v7441 = vsel %vm692, %v7439, %v7440
      %v7442 = vrot.slane %v7284, 1
      %v7443 = vsel %vm692, %v7440, %v7442
      %v7444 = vrot.slane %v7285, 1
      %v7445 = vrot.slane %v7286, 1
      %v7446 = vsel %vm692, %v7444, %v7445
      %v7447 = vrot.slane %v7287, 1
      %v7448 = vsel %vm692, %v7445, %v7447
      %v7449 = vrot.slane %v7288, 1
      %v7450 = vrot.slane %v7289, 1
      %v7451 = vsel %vm692, %v7449, %v7450
      %v7452 = vrot.slane %v7290, 1
      %v7453 = vsel %vm692, %v7450, %v7452
      %v7454 = vrot.slane %v7291, 1
      %v7455 = vrot.slane %v7292, 1
      %v7456 = vsel %vm692, %v7454, %v7455
      %v7457 = vrot.slane %v7293, 1
      %v7458 = vsel %vm692, %v7455, %v7457
      %v7459 = vrot.slane %v7294, 1
      %v7460 = vrot.slane %v7295, 1
      %v7461 = vsel %vm692, %v7459, %v7460
      %v7462 = vrot.slane %v7296, 1
      %v7463 = vsel %vm692, %v7460, %v7462
      %v7464 = vrot.slane %v7297, 1
      %v7465 = vrot.slane %v7298, 1
      %v7466 = vsel %vm692, %v7464, %v7465
      %v7467 = vrot.slane %v7299, 1
      %v7468 = vsel %vm692, %v7465, %v7467
      %v7469 = vrot.slane %v7300, 1
      %v7470 = vrot.slane %v7301, 1
      %v7471 = vsel %vm692, %v7469, %v7470
      %v7472 = vrot.slane %v7302, 1
      %v7473 = vsel %vm692, %v7470, %v7472
      %v7474 = vrot.slane %v7255, 2
      %v7475 = vrot.slane %v7256, 2
      %v7476 = vsel %vm773, %v7474, %v7475
      %v7477 = vrot.slane %v7257, 2
      %v7478 = vsel %vm773, %v7475, %v7477
      %v7479 = vrot.slane %v7258, 2
      %v7480 = vrot.slane %v7259, 2
      %v7481 = vsel %vm773, %v7479, %v7480
      %v7482 = vrot.slane %v7260, 2
      %v7483 = vsel %vm773, %v7480, %v7482
      %v7484 = vrot.slane %v7261, 2
      %v7485 = vrot.slane %v7262, 2
      %v7486 = vsel %vm773, %v7484, %v7485
      %v7487 = vrot.slane %v7263, 2
      %v7488 = vsel %vm773, %v7485, %v7487
      %v7489 = vrot.slane %v7264, 2
      %v7490 = vrot.slane %v7265, 2
      %v7491 = vsel %vm773, %v7489, %v7490
      %v7492 = vrot.slane %v7266, 2
      %v7493 = vsel %vm773, %v7490, %v7492
      %v7494 = vrot.slane %v7267, 2
      %v7495 = vrot.slane %v7268, 2
      %v7496 = vsel %vm773, %v7494, %v7495
      %v7497 = vrot.slane %v7269, 2
      %v7498 = vsel %vm773, %v7495, %v7497
      %v7499 = vrot.slane %v7270, 2
      %v7500 = vrot.slane %v7271, 2
      %v7501 = vsel %vm773, %v7499, %v7500
      %v7502 = vrot.slane %v7272, 2
      %v7503 = vsel %vm773, %v7500, %v7502
      %v7504 = vrot.slane %v7273, 2
      %v7505 = vrot.slane %v7274, 2
      %v7506 = vsel %vm773, %v7504, %v7505
      %v7507 = vrot.slane %v7275, 2
      %v7508 = vsel %vm773, %v7505, %v7507
      %v7509 = vrot.slane %v7276, 2
      %v7510 = vrot.slane %v7277, 2
      %v7511 = vsel %vm773, %v7509, %v7510
      %v7512 = vrot.slane %v7278, 2
      %v7513 = vsel %vm773, %v7510, %v7512
      %v7514 = vrot.slane %v7279, 2
      %v7515 = vrot.slane %v7280, 2
      %v7516 = vsel %vm773, %v7514, %v7515
      %v7517 = vrot.slane %v7281, 2
      %v7518 = vsel %vm773, %v7515, %v7517
      %v7519 = vrot.slane %v7282, 2
      %v7520 = vrot.slane %v7283, 2
      %v7521 = vsel %vm773, %v7519, %v7520
      %v7522 = vrot.slane %v7284, 2
      %v7523 = vsel %vm773, %v7520, %v7522
      %v7524 = vrot.slane %v7285, 2
      %v7525 = vrot.slane %v7286, 2
      %v7526 = vsel %vm773, %v7524, %v7525
      %v7527 = vrot.slane %v7287, 2
      %v7528 = vsel %vm773, %v7525, %v7527
      %v7529 = vrot.slane %v7288, 2
      %v7530 = vrot.slane %v7289, 2
      %v7531 = vsel %vm773, %v7529, %v7530
      %v7532 = vrot.slane %v7290, 2
      %v7533 = vsel %vm773, %v7530, %v7532
      %v7534 = vrot.slane %v7291, 2
      %v7535 = vrot.slane %v7292, 2
      %v7536 = vsel %vm773, %v7534, %v7535
      %v7537 = vrot.slane %v7293, 2
      %v7538 = vsel %vm773, %v7535, %v7537
      %v7539 = vrot.slane %v7294, 2
      %v7540 = vrot.slane %v7295, 2
      %v7541 = vsel %vm773, %v7539, %v7540
      %v7542 = vrot.slane %v7296, 2
      %v7543 = vsel %vm773, %v7540, %v7542
      %v7544 = vrot.slane %v7297, 2
      %v7545 = vrot.slane %v7298, 2
      %v7546 = vsel %vm773, %v7544, %v7545
      %v7547 = vrot.slane %v7299, 2
      %v7548 = vsel %vm773, %v7545, %v7547
      %v7549 = vrot.slane %v7300, 2
      %v7550 = vrot.slane %v7301, 2
      %v7551 = vsel %vm773, %v7549, %v7550
      %v7552 = vrot.slane %v7302, 2
      %v7553 = vsel %vm773, %v7550, %v7552
      %v7557 = vrot.slane %v7303, 1
      %v7558 = vrot.slane %v7304, 1
      %v7559 = vsel %vm692, %v7557, %v7558
      %v7560 = vrot.slane %v7305, 1
      %v7561 = vsel %vm692, %v7558, %v7560
      %v7594 = vrot.slane %v7303, 2
      %v7595 = vrot.slane %v7304, 2
      %v7596 = vsel %vm773, %v7594, %v7595
      %v7597 = vrot.slane %v7305, 2
      %v7598 = vsel %vm773, %v7595, %v7597
      %v7602 = vrot.slane %v7306, 1
      %v7603 = vrot.slane %v7307, 1
      %v7604 = vsel %vm692, %v7602, %v7603
      %v7605 = vrot.slane %v7308, 1
      %v7606 = vsel %vm692, %v7603, %v7605
      %v7607 = vrot.slane %v7306, 2
      %v7608 = vrot.slane %v7307, 2
      %v7609 = vsel %vm773, %v7607, %v7608
      %v7610 = vrot.slane %v7308, 2
      %v7611 = vsel %vm773, %v7608, %v7610
      %7612 = vrot.lane.b32.xlu0 %v7396, 32
      %v7613 = vpop.permute.xlu0 %7612
      %7614 = vrot.lane.b32.xlu0 %v7398, 32
      %v7615 = vpop.permute.xlu0 %7614
      %7616 = vrot.lane.b32.xlu0 %v7401, 32
      %v7617 = vpop.permute.xlu0 %7616
      %7618 = vrot.lane.b32.xlu0 %v7403, 32
      %v7619 = vpop.permute.xlu0 %7618
      %7620 = vrot.lane.b32.xlu0 %v7406, 32
      %v7621 = vpop.permute.xlu0 %7620
      %7622 = vrot.lane.b32.xlu0 %v7408, 32
      %v7623 = vpop.permute.xlu0 %7622
      %7624 = vrot.lane.b32.xlu0 %v7411, 32
      %v7625 = vpop.permute.xlu0 %7624
      %7626 = vrot.lane.b32.xlu0 %v7413, 32
      %v7627 = vpop.permute.xlu0 %7626
      %7628 = vrot.lane.b32.xlu0 %v7416, 32
      %v7629 = vpop.permute.xlu0 %7628
      %7630 = vrot.lane.b32.xlu0 %v7418, 32
      %v7631 = vpop.permute.xlu0 %7630
      %7632 = vrot.lane.b32.xlu0 %v7421, 32
      %v7633 = vpop.permute.xlu0 %7632
      %7634 = vrot.lane.b32.xlu0 %v7423, 32
      %v7635 = vpop.permute.xlu0 %7634
      %7636 = vrot.lane.b32.xlu0 %v7426, 32
      %v7637 = vpop.permute.xlu0 %7636
      %7638 = vrot.lane.b32.xlu0 %v7428, 32
      %v7639 = vpop.permute.xlu0 %7638
      %7640 = vrot.lane.b32.xlu0 %v7431, 32
      %v7641 = vpop.permute.xlu0 %7640
      %7642 = vrot.lane.b32.xlu0 %v7433, 32
      %v7643 = vpop.permute.xlu0 %7642
      %7644 = vrot.lane.b32.xlu0 %v7436, 32
      %v7645 = vpop.permute.xlu0 %7644
      %7646 = vrot.lane.b32.xlu0 %v7438, 32
      %v7647 = vpop.permute.xlu0 %7646
      %7648 = vrot.lane.b32.xlu0 %v7441, 32
      %v7649 = vpop.permute.xlu0 %7648
      %7650 = vrot.lane.b32.xlu0 %v7443, 32
      %v7651 = vpop.permute.xlu0 %7650
      %7652 = vrot.lane.b32.xlu0 %v7446, 32
      %v7653 = vpop.permute.xlu0 %7652
      %7654 = vrot.lane.b32.xlu0 %v7448, 32
      %v7655 = vpop.permute.xlu0 %7654
      %7656 = vrot.lane.b32.xlu0 %v7451, 32
      %v7657 = vpop.permute.xlu0 %7656
      %7658 = vrot.lane.b32.xlu0 %v7453, 32
      %v7659 = vpop.permute.xlu0 %7658
      %7660 = vrot.lane.b32.xlu0 %v7456, 32
      %v7661 = vpop.permute.xlu0 %7660
      %7662 = vrot.lane.b32.xlu0 %v7458, 32
      %v7663 = vpop.permute.xlu0 %7662
      %7664 = vrot.lane.b32.xlu0 %v7461, 32
      %v7665 = vpop.permute.xlu0 %7664
      %7666 = vrot.lane.b32.xlu0 %v7463, 32
      %v7667 = vpop.permute.xlu0 %7666
      %7668 = vrot.lane.b32.xlu0 %v7466, 32
      %v7669 = vpop.permute.xlu0 %7668
      %7670 = vrot.lane.b32.xlu0 %v7468, 32
      %v7671 = vpop.permute.xlu0 %7670
      %7672 = vrot.lane.b32.xlu0 %v7471, 32
      %v7673 = vpop.permute.xlu0 %7672
      %7674 = vrot.lane.b32.xlu0 %v7473, 32
      %v7675 = vpop.permute.xlu0 %7674
      %7708 = vrot.lane.b32.xlu0 %v7476, 64
      %v7709 = vpop.permute.xlu0 %7708
      %7710 = vrot.lane.b32.xlu0 %v7478, 64
      %v7711 = vpop.permute.xlu0 %7710
      %7712 = vrot.lane.b32.xlu0 %v7481, 64
      %v7713 = vpop.permute.xlu0 %7712
      %7714 = vrot.lane.b32.xlu0 %v7483, 64
      %v7715 = vpop.permute.xlu0 %7714
      %7716 = vrot.lane.b32.xlu0 %v7486, 64
      %v7717 = vpop.permute.xlu0 %7716
      %7718 = vrot.lane.b32.xlu0 %v7488, 64
      %v7719 = vpop.permute.xlu0 %7718
      %7720 = vrot.lane.b32.xlu0 %v7491, 64
      %v7721 = vpop.permute.xlu0 %7720
      %7722 = vrot.lane.b32.xlu0 %v7493, 64
      %v7723 = vpop.permute.xlu0 %7722
      %7724 = vrot.lane.b32.xlu0 %v7496, 64
      %v7725 = vpop.permute.xlu0 %7724
      %7726 = vrot.lane.b32.xlu0 %v7498, 64
      %v7727 = vpop.permute.xlu0 %7726
      %7728 = vrot.lane.b32.xlu0 %v7501, 64
      %v7729 = vpop.permute.xlu0 %7728
      %7730 = vrot.lane.b32.xlu0 %v7503, 64
      %v7731 = vpop.permute.xlu0 %7730
      %7732 = vrot.lane.b32.xlu0 %v7506, 64
      %v7733 = vpop.permute.xlu0 %7732
      %7734 = vrot.lane.b32.xlu0 %v7508, 64
      %v7735 = vpop.permute.xlu0 %7734
      %7736 = vrot.lane.b32.xlu0 %v7511, 64
      %v7737 = vpop.permute.xlu0 %7736
      %7738 = vrot.lane.b32.xlu0 %v7513, 64
      %v7739 = vpop.permute.xlu0 %7738
      %7740 = vrot.lane.b32.xlu0 %v7516, 64
      %v7741 = vpop.permute.xlu0 %7740
      %7742 = vrot.lane.b32.xlu0 %v7518, 64
      %v7743 = vpop.permute.xlu0 %7742
      %7744 = vrot.lane.b32.xlu0 %v7521, 64
      %v7745 = vpop.permute.xlu0 %7744
      %7746 = vrot.lane.b32.xlu0 %v7523, 64
      %v7747 = vpop.permute.xlu0 %7746
      %7748 = vrot.lane.b32.xlu0 %v7526, 64
      %v7749 = vpop.permute.xlu0 %7748
      %7750 = vrot.lane.b32.xlu0 %v7528, 64
      %v7751 = vpop.permute.xlu0 %7750
      %7752 = vrot.lane.b32.xlu0 %v7531, 64
      %v7753 = vpop.permute.xlu0 %7752
      %7754 = vrot.lane.b32.xlu0 %v7533, 64
      %v7755 = vpop.permute.xlu0 %7754
      %7756 = vrot.lane.b32.xlu0 %v7536, 64
      %v7757 = vpop.permute.xlu0 %7756
      %7758 = vrot.lane.b32.xlu0 %v7538, 64
      %v7759 = vpop.permute.xlu0 %7758
      %7760 = vrot.lane.b32.xlu0 %v7541, 64
      %v7761 = vpop.permute.xlu0 %7760
      %7762 = vrot.lane.b32.xlu0 %v7543, 64
      %v7763 = vpop.permute.xlu0 %7762
      %7764 = vrot.lane.b32.xlu0 %v7546, 64
      %v7765 = vpop.permute.xlu0 %7764
      %7766 = vrot.lane.b32.xlu0 %v7548, 64
      %v7767 = vpop.permute.xlu0 %7766
      %7768 = vrot.lane.b32.xlu0 %v7551, 64
      %v7769 = vpop.permute.xlu0 %7768
      %7770 = vrot.lane.b32.xlu0 %v7553, 64
      %v7771 = vpop.permute.xlu0 %7770
      %7804 = vrot.lane.b32.xlu0 %v7258, 96
      %v7805 = vpop.permute.xlu0 %7804
      %7806 = vrot.lane.b32.xlu0 %v7259, 96
      %v7807 = vpop.permute.xlu0 %7806
      %7808 = vrot.lane.b32.xlu0 %v7261, 96
      %v7809 = vpop.permute.xlu0 %7808
      %7810 = vrot.lane.b32.xlu0 %v7262, 96
      %v7811 = vpop.permute.xlu0 %7810
      %7812 = vrot.lane.b32.xlu0 %v7264, 96
      %v7813 = vpop.permute.xlu0 %7812
      %7814 = vrot.lane.b32.xlu0 %v7265, 96
      %v7815 = vpop.permute.xlu0 %7814
      %7816 = vrot.lane.b32.xlu0 %v7267, 96
      %v7817 = vpop.permute.xlu0 %7816
      %7818 = vrot.lane.b32.xlu0 %v7268, 96
      %v7819 = vpop.permute.xlu0 %7818
      %7820 = vrot.lane.b32.xlu0 %v7270, 96
      %v7821 = vpop.permute.xlu0 %7820
      %7822 = vrot.lane.b32.xlu0 %v7271, 96
      %v7823 = vpop.permute.xlu0 %7822
      %7824 = vrot.lane.b32.xlu0 %v7273, 96
      %v7825 = vpop.permute.xlu0 %7824
      %7826 = vrot.lane.b32.xlu0 %v7274, 96
      %v7827 = vpop.permute.xlu0 %7826
      %7828 = vrot.lane.b32.xlu0 %v7276, 96
      %v7829 = vpop.permute.xlu0 %7828
      %7830 = vrot.lane.b32.xlu0 %v7277, 96
      %v7831 = vpop.permute.xlu0 %7830
      %7832 = vrot.lane.b32.xlu0 %v7279, 96
      %v7833 = vpop.permute.xlu0 %7832
      %7834 = vrot.lane.b32.xlu0 %v7280, 96
      %v7835 = vpop.permute.xlu0 %7834
      %7836 = vrot.lane.b32.xlu0 %v7282, 96
      %v7837 = vpop.permute.xlu0 %7836
      %7838 = vrot.lane.b32.xlu0 %v7283, 96
      %v7839 = vpop.permute.xlu0 %7838
      %7840 = vrot.lane.b32.xlu0 %v7285, 96
      %v7841 = vpop.permute.xlu0 %7840
      %7842 = vrot.lane.b32.xlu0 %v7286, 96
      %v7843 = vpop.permute.xlu0 %7842
      %7844 = vrot.lane.b32.xlu0 %v7288, 96
      %v7845 = vpop.permute.xlu0 %7844
      %7846 = vrot.lane.b32.xlu0 %v7289, 96
      %v7847 = vpop.permute.xlu0 %7846
      %7848 = vrot.lane.b32.xlu0 %v7291, 96
      %v7849 = vpop.permute.xlu0 %7848
      %7850 = vrot.lane.b32.xlu0 %v7292, 96
      %v7851 = vpop.permute.xlu0 %7850
      %7852 = vrot.lane.b32.xlu0 %v7294, 96
      %v7853 = vpop.permute.xlu0 %7852
      %7854 = vrot.lane.b32.xlu0 %v7295, 96
      %v7855 = vpop.permute.xlu0 %7854
      %7856 = vrot.lane.b32.xlu0 %v7297, 96
      %v7857 = vpop.permute.xlu0 %7856
      %7858 = vrot.lane.b32.xlu0 %v7298, 96
      %v7859 = vpop.permute.xlu0 %7858
      %7860 = vrot.lane.b32.xlu0 %v7300, 96
      %v7861 = vpop.permute.xlu0 %7860
      %7862 = vrot.lane.b32.xlu0 %v7301, 96
      %v7863 = vpop.permute.xlu0 %7862
      %7864 = vrot.lane.b32.xlu0 %v7303, 96
      %v7865 = vpop.permute.xlu0 %7864
      %7866 = vrot.lane.b32.xlu0 %v7304, 96
      %v7867 = vpop.permute.xlu0 %7866
      %7900 = vrot.lane.b32.xlu0 %v7481, 32
      %v7901 = vpop.permute.xlu0 %7900
      %7902 = vrot.lane.b32.xlu0 %v7483, 32
      %v7903 = vpop.permute.xlu0 %7902
      %7904 = vrot.lane.b32.xlu0 %v7486, 32
      %v7905 = vpop.permute.xlu0 %7904
      %7906 = vrot.lane.b32.xlu0 %v7488, 32
      %v7907 = vpop.permute.xlu0 %7906
      %7908 = vrot.lane.b32.xlu0 %v7491, 32
      %v7909 = vpop.permute.xlu0 %7908
      %7910 = vrot.lane.b32.xlu0 %v7493, 32
      %v7911 = vpop.permute.xlu0 %7910
      %7912 = vrot.lane.b32.xlu0 %v7496, 32
      %v7913 = vpop.permute.xlu0 %7912
      %7914 = vrot.lane.b32.xlu0 %v7498, 32
      %v7915 = vpop.permute.xlu0 %7914
      %7916 = vrot.lane.b32.xlu0 %v7501, 32
      %v7917 = vpop.permute.xlu0 %7916
      %7918 = vrot.lane.b32.xlu0 %v7503, 32
      %v7919 = vpop.permute.xlu0 %7918
      %7920 = vrot.lane.b32.xlu0 %v7506, 32
      %v7921 = vpop.permute.xlu0 %7920
      %7922 = vrot.lane.b32.xlu0 %v7508, 32
      %v7923 = vpop.permute.xlu0 %7922
      %7924 = vrot.lane.b32.xlu0 %v7511, 32
      %v7925 = vpop.permute.xlu0 %7924
      %7926 = vrot.lane.b32.xlu0 %v7513, 32
      %v7927 = vpop.permute.xlu0 %7926
      %7928 = vrot.lane.b32.xlu0 %v7516, 32
      %v7929 = vpop.permute.xlu0 %7928
      %7930 = vrot.lane.b32.xlu0 %v7518, 32
      %v7931 = vpop.permute.xlu0 %7930
      %7932 = vrot.lane.b32.xlu0 %v7521, 32
      %v7933 = vpop.permute.xlu0 %7932
      %7934 = vrot.lane.b32.xlu0 %v7523, 32
      %v7935 = vpop.permute.xlu0 %7934
      %7936 = vrot.lane.b32.xlu0 %v7526, 32
      %v7937 = vpop.permute.xlu0 %7936
      %7938 = vrot.lane.b32.xlu0 %v7528, 32
      %v7939 = vpop.permute.xlu0 %7938
      %7940 = vrot.lane.b32.xlu0 %v7531, 32
      %v7941 = vpop.permute.xlu0 %7940
      %7942 = vrot.lane.b32.xlu0 %v7533, 32
      %v7943 = vpop.permute.xlu0 %7942
      %7944 = vrot.lane.b32.xlu0 %v7536, 32
      %v7945 = vpop.permute.xlu0 %7944
      %7946 = vrot.lane.b32.xlu0 %v7538, 32
      %v7947 = vpop.permute.xlu0 %7946
      %7948 = vrot.lane.b32.xlu0 %v7541, 32
      %v7949 = vpop.permute.xlu0 %7948
      %7950 = vrot.lane.b32.xlu0 %v7543, 32
      %v7951 = vpop.permute.xlu0 %7950
      %7952 = vrot.lane.b32.xlu0 %v7546, 32
      %v7953 = vpop.permute.xlu0 %7952
      %7954 = vrot.lane.b32.xlu0 %v7548, 32
      %v7955 = vpop.permute.xlu0 %7954
      %7956 = vrot.lane.b32.xlu0 %v7551, 32
      %v7957 = vpop.permute.xlu0 %7956
      %7958 = vrot.lane.b32.xlu0 %v7553, 32
      %v7959 = vpop.permute.xlu0 %7958
      %7960 = vrot.lane.b32.xlu0 %v7596, 32
      %v7961 = vpop.permute.xlu0 %7960
      %7962 = vrot.lane.b32.xlu0 %v7598, 32
      %v7963 = vpop.permute.xlu0 %7962
      %7996 = vrot.lane.b32.xlu0 %v7261, 64
      %v7997 = vpop.permute.xlu0 %7996
      %7998 = vrot.lane.b32.xlu0 %v7262, 64
      %v7999 = vpop.permute.xlu0 %7998
      %8000 = vrot.lane.b32.xlu0 %v7264, 64
      %v8001 = vpop.permute.xlu0 %8000
      %8002 = vrot.lane.b32.xlu0 %v7265, 64
      %v8003 = vpop.permute.xlu0 %8002
      %8004 = vrot.lane.b32.xlu0 %v7267, 64
      %v8005 = vpop.permute.xlu0 %8004
      %8006 = vrot.lane.b32.xlu0 %v7268, 64
      %v8007 = vpop.permute.xlu0 %8006
      %8008 = vrot.lane.b32.xlu0 %v7270, 64
      %v8009 = vpop.permute.xlu0 %8008
      %8010 = vrot.lane.b32.xlu0 %v7271, 64
      %v8011 = vpop.permute.xlu0 %8010
      %8012 = vrot.lane.b32.xlu0 %v7273, 64
      %v8013 = vpop.permute.xlu0 %8012
      %8014 = vrot.lane.b32.xlu0 %v7274, 64
      %v8015 = vpop.permute.xlu0 %8014
      %8016 = vrot.lane.b32.xlu0 %v7276, 64
      %v8017 = vpop.permute.xlu0 %8016
      %8018 = vrot.lane.b32.xlu0 %v7277, 64
      %v8019 = vpop.permute.xlu0 %8018
      %8020 = vrot.lane.b32.xlu0 %v7279, 64
      %v8021 = vpop.permute.xlu0 %8020
      %8022 = vrot.lane.b32.xlu0 %v7280, 64
      %v8023 = vpop.permute.xlu0 %8022
      %8024 = vrot.lane.b32.xlu0 %v7282, 64
      %v8025 = vpop.permute.xlu0 %8024
      %8026 = vrot.lane.b32.xlu0 %v7283, 64
      %v8027 = vpop.permute.xlu0 %8026
      %8028 = vrot.lane.b32.xlu0 %v7285, 64
      %v8029 = vpop.permute.xlu0 %8028
      %8030 = vrot.lane.b32.xlu0 %v7286, 64
      %v8031 = vpop.permute.xlu0 %8030
      %8032 = vrot.lane.b32.xlu0 %v7288, 64
      %v8033 = vpop.permute.xlu0 %8032
      %8034 = vrot.lane.b32.xlu0 %v7289, 64
      %v8035 = vpop.permute.xlu0 %8034
      %8036 = vrot.lane.b32.xlu0 %v7291, 64
      %v8037 = vpop.permute.xlu0 %8036
      %8038 = vrot.lane.b32.xlu0 %v7292, 64
      %v8039 = vpop.permute.xlu0 %8038
      %8040 = vrot.lane.b32.xlu0 %v7294, 64
      %v8041 = vpop.permute.xlu0 %8040
      %8042 = vrot.lane.b32.xlu0 %v7295, 64
      %v8043 = vpop.permute.xlu0 %8042
      %8044 = vrot.lane.b32.xlu0 %v7297, 64
      %v8045 = vpop.permute.xlu0 %8044
      %8046 = vrot.lane.b32.xlu0 %v7298, 64
      %v8047 = vpop.permute.xlu0 %8046
      %8048 = vrot.lane.b32.xlu0 %v7300, 64
      %v8049 = vpop.permute.xlu0 %8048
      %8050 = vrot.lane.b32.xlu0 %v7301, 64
      %v8051 = vpop.permute.xlu0 %8050
      %8052 = vrot.lane.b32.xlu0 %v7303, 64
      %v8053 = vpop.permute.xlu0 %8052
      %8054 = vrot.lane.b32.xlu0 %v7304, 64
      %v8055 = vpop.permute.xlu0 %8054
      %8056 = vrot.lane.b32.xlu0 %v7306, 64
      %v8057 = vpop.permute.xlu0 %8056
      %8058 = vrot.lane.b32.xlu0 %v7307, 64
      %v8059 = vpop.permute.xlu0 %8058
      %8092 = vrot.lane.b32.xlu0 %v7406, 96
      %v8093 = vpop.permute.xlu0 %8092
      %8094 = vrot.lane.b32.xlu0 %v7408, 96
      %v8095 = vpop.permute.xlu0 %8094
      %8096 = vrot.lane.b32.xlu0 %v7411, 96
      %v8097 = vpop.permute.xlu0 %8096
      %8098 = vrot.lane.b32.xlu0 %v7413, 96
      %v8099 = vpop.permute.xlu0 %8098
      %8100 = vrot.lane.b32.xlu0 %v7416, 96
      %v8101 = vpop.permute.xlu0 %8100
      %8102 = vrot.lane.b32.xlu0 %v7418, 96
      %v8103 = vpop.permute.xlu0 %8102
      %8104 = vrot.lane.b32.xlu0 %v7421, 96
      %v8105 = vpop.permute.xlu0 %8104
      %8106 = vrot.lane.b32.xlu0 %v7423, 96
      %v8107 = vpop.permute.xlu0 %8106
      %8108 = vrot.lane.b32.xlu0 %v7426, 96
      %v8109 = vpop.permute.xlu0 %8108
      %8110 = vrot.lane.b32.xlu0 %v7428, 96
      %v8111 = vpop.permute.xlu0 %8110
      %8112 = vrot.lane.b32.xlu0 %v7431, 96
      %v8113 = vpop.permute.xlu0 %8112
      %8114 = vrot.lane.b32.xlu0 %v7433, 96
      %v8115 = vpop.permute.xlu0 %8114
      %8116 = vrot.lane.b32.xlu0 %v7436, 96
      %v8117 = vpop.permute.xlu0 %8116
      %8118 = vrot.lane.b32.xlu0 %v7438, 96
      %v8119 = vpop.permute.xlu0 %8118
      %8120 = vrot.lane.b32.xlu0 %v7441, 96
      %v8121 = vpop.permute.xlu0 %8120
      %8122 = vrot.lane.b32.xlu0 %v7443, 96
      %v8123 = vpop.permute.xlu0 %8122
      %8124 = vrot.lane.b32.xlu0 %v7446, 96
      %v8125 = vpop.permute.xlu0 %8124
      %8126 = vrot.lane.b32.xlu0 %v7448, 96
      %v8127 = vpop.permute.xlu0 %8126
      %8128 = vrot.lane.b32.xlu0 %v7451, 96
      %v8129 = vpop.permute.xlu0 %8128
      %8130 = vrot.lane.b32.xlu0 %v7453, 96
      %v8131 = vpop.permute.xlu0 %8130
      %8132 = vrot.lane.b32.xlu0 %v7456, 96
      %v8133 = vpop.permute.xlu0 %8132
      %8134 = vrot.lane.b32.xlu0 %v7458, 96
      %v8135 = vpop.permute.xlu0 %8134
      %8136 = vrot.lane.b32.xlu0 %v7461, 96
      %v8137 = vpop.permute.xlu0 %8136
      %8138 = vrot.lane.b32.xlu0 %v7463, 96
      %v8139 = vpop.permute.xlu0 %8138
      %8140 = vrot.lane.b32.xlu0 %v7466, 96
      %v8141 = vpop.permute.xlu0 %8140
      %8142 = vrot.lane.b32.xlu0 %v7468, 96
      %v8143 = vpop.permute.xlu0 %8142
      %8144 = vrot.lane.b32.xlu0 %v7471, 96
      %v8145 = vpop.permute.xlu0 %8144
      %8146 = vrot.lane.b32.xlu0 %v7473, 96
      %v8147 = vpop.permute.xlu0 %8146
      %8148 = vrot.lane.b32.xlu0 %v7559, 96
      %v8149 = vpop.permute.xlu0 %8148
      %8150 = vrot.lane.b32.xlu0 %v7561, 96
      %v8151 = vpop.permute.xlu0 %8150
      %8152 = vrot.lane.b32.xlu0 %v7604, 96
      %v8153 = vpop.permute.xlu0 %8152
      %8154 = vrot.lane.b32.xlu0 %v7606, 96
      %v8155 = vpop.permute.xlu0 %8154
      %v8188 = vsel %vm530, %v7255, %v7613
      %v8189 = vsel %vm530, %v7256, %v7615
      %v8190 = vsel %vm530, %v7258, %v7617
      %v8191 = vsel %vm530, %v7259, %v7619
      %v8192 = vsel %vm530, %v7261, %v7621
      %v8193 = vsel %vm530, %v7262, %v7623
      %v8194 = vsel %vm530, %v7264, %v7625
      %v8195 = vsel %vm530, %v7265, %v7627
      %v8196 = vsel %vm530, %v7267, %v7629
      %v8197 = vsel %vm530, %v7268, %v7631
      %v8198 = vsel %vm530, %v7270, %v7633
      %v8199 = vsel %vm530, %v7271, %v7635
      %v8200 = vsel %vm530, %v7273, %v7637
      %v8201 = vsel %vm530, %v7274, %v7639
      %v8202 = vsel %vm530, %v7276, %v7641
      %v8203 = vsel %vm530, %v7277, %v7643
      %v8204 = vsel %vm530, %v7279, %v7645
      %v8205 = vsel %vm530, %v7280, %v7647
      %v8206 = vsel %vm530, %v7282, %v7649
      %v8207 = vsel %vm530, %v7283, %v7651
      %v8208 = vsel %vm530, %v7285, %v7653
      %v8209 = vsel %vm530, %v7286, %v7655
      %v8210 = vsel %vm530, %v7288, %v7657
      %v8211 = vsel %vm530, %v7289, %v7659
      %v8212 = vsel %vm530, %v7291, %v7661
      %v8213 = vsel %vm530, %v7292, %v7663
      %v8214 = vsel %vm530, %v7294, %v7665
      %v8215 = vsel %vm530, %v7295, %v7667
      %v8216 = vsel %vm530, %v7297, %v7669
      %v8217 = vsel %vm530, %v7298, %v7671
      %v8218 = vsel %vm530, %v7300, %v7673
      %v8219 = vsel %vm530, %v7301, %v7675
      %v8220 = vsel %vm3638, %v8188, %v7709
      %v8221 = vsel %vm3638, %v8189, %v7711
      %v8222 = vsel %vm3638, %v8190, %v7713
      %v8223 = vsel %vm3638, %v8191, %v7715
      %v8224 = vsel %vm3638, %v8192, %v7717
      %v8225 = vsel %vm3638, %v8193, %v7719
      %v8226 = vsel %vm3638, %v8194, %v7721
      %v8227 = vsel %vm3638, %v8195, %v7723
      %v8228 = vsel %vm3638, %v8196, %v7725
      %v8229 = vsel %vm3638, %v8197, %v7727
      %v8230 = vsel %vm3638, %v8198, %v7729
      %v8231 = vsel %vm3638, %v8199, %v7731
      %v8232 = vsel %vm3638, %v8200, %v7733
      %v8233 = vsel %vm3638, %v8201, %v7735
      %v8234 = vsel %vm3638, %v8202, %v7737
      %v8235 = vsel %vm3638, %v8203, %v7739
      %v8236 = vsel %vm3638, %v8204, %v7741
      %v8237 = vsel %vm3638, %v8205, %v7743
      %v8238 = vsel %vm3638, %v8206, %v7745
      %v8239 = vsel %vm3638, %v8207, %v7747
      %v8240 = vsel %vm3638, %v8208, %v7749
      %v8241 = vsel %vm3638, %v8209, %v7751
      %v8242 = vsel %vm3638, %v8210, %v7753
      %v8243 = vsel %vm3638, %v8211, %v7755
      %v8244 = vsel %vm3638, %v8212, %v7757
      %v8245 = vsel %vm3638, %v8213, %v7759
      %v8246 = vsel %vm3638, %v8214, %v7761
      %v8247 = vsel %vm3638, %v8215, %v7763
      %v8248 = vsel %vm3638, %v8216, %v7765
      %v8249 = vsel %vm3638, %v8217, %v7767
      %v8250 = vsel %vm3638, %v8218, %v7769
      %v8251 = vsel %vm3638, %v8219, %v7771
      %v8252 = vsel %vm3671, %v8220, %v7805
      %v8253 = vsel %vm3671, %v8221, %v7807
      %v8254 = vsel %vm3671, %v8222, %v7809
      %v8255 = vsel %vm3671, %v8223, %v7811
      %v8256 = vsel %vm3671, %v8224, %v7813
      %v8257 = vsel %vm3671, %v8225, %v7815
      %v8258 = vsel %vm3671, %v8226, %v7817
      %v8259 = vsel %vm3671, %v8227, %v7819
      %v8260 = vsel %vm3671, %v8228, %v7821
      %v8261 = vsel %vm3671, %v8229, %v7823
      %v8262 = vsel %vm3671, %v8230, %v7825
      %v8263 = vsel %vm3671, %v8231, %v7827
      %v8264 = vsel %vm3671, %v8232, %v7829
      %v8265 = vsel %vm3671, %v8233, %v7831
      %v8266 = vsel %vm3671, %v8234, %v7833
      %v8267 = vsel %vm3671, %v8235, %v7835
      %v8268 = vsel %vm3671, %v8236, %v7837
      %v8269 = vsel %vm3671, %v8237, %v7839
      %v8270 = vsel %vm3671, %v8238, %v7841
      %v8271 = vsel %vm3671, %v8239, %v7843
      %v8272 = vsel %vm3671, %v8240, %v7845
      %v8273 = vsel %vm3671, %v8241, %v7847
      %v8274 = vsel %vm3671, %v8242, %v7849
      %v8275 = vsel %vm3671, %v8243, %v7851
      %v8276 = vsel %vm3671, %v8244, %v7853
      %v8277 = vsel %vm3671, %v8245, %v7855
      %v8278 = vsel %vm3671, %v8246, %v7857
      %v8279 = vsel %vm3671, %v8247, %v7859
      %v8280 = vsel %vm3671, %v8248, %v7861
      %v8281 = vsel %vm3671, %v8249, %v7863
      %v8282 = vsel %vm3671, %v8250, %v7865
      %v8283 = vsel %vm3671, %v8251, %v7867
      %v8284 = vsel %vm530, %v7401, %v7901
      %v8285 = vsel %vm530, %v7403, %v7903
      %v8286 = vsel %vm530, %v7406, %v7905
      %v8287 = vsel %vm530, %v7408, %v7907
      %v8288 = vsel %vm530, %v7411, %v7909
      %v8289 = vsel %vm530, %v7413, %v7911
      %v8290 = vsel %vm530, %v7416, %v7913
      %v8291 = vsel %vm530, %v7418, %v7915
      %v8292 = vsel %vm530, %v7421, %v7917
      %v8293 = vsel %vm530, %v7423, %v7919
      %v8294 = vsel %vm530, %v7426, %v7921
      %v8295 = vsel %vm530, %v7428, %v7923
      %v8296 = vsel %vm530, %v7431, %v7925
      %v8297 = vsel %vm530, %v7433, %v7927
      %v8298 = vsel %vm530, %v7436, %v7929
      %v8299 = vsel %vm530, %v7438, %v7931
      %v8300 = vsel %vm530, %v7441, %v7933
      %v8301 = vsel %vm530, %v7443, %v7935
      %v8302 = vsel %vm530, %v7446, %v7937
      %v8303 = vsel %vm530, %v7448, %v7939
      %v8304 = vsel %vm530, %v7451, %v7941
      %v8305 = vsel %vm530, %v7453, %v7943
      %v8306 = vsel %vm530, %v7456, %v7945
      %v8307 = vsel %vm530, %v7458, %v7947
      %v8308 = vsel %vm530, %v7461, %v7949
      %v8309 = vsel %vm530, %v7463, %v7951
      %v8310 = vsel %vm530, %v7466, %v7953
      %v8311 = vsel %vm530, %v7468, %v7955
      %v8312 = vsel %vm530, %v7471, %v7957
      %v8313 = vsel %vm530, %v7473, %v7959
      %v8314 = vsel %vm530, %v7559, %v7961
      %v8315 = vsel %vm530, %v7561, %v7963
      %v8316 = vsel %vm3638, %v8284, %v7997
      %v8317 = vsel %vm3638, %v8285, %v7999
      %v8318 = vsel %vm3638, %v8286, %v8001
      %v8319 = vsel %vm3638, %v8287, %v8003
      %v8320 = vsel %vm3638, %v8288, %v8005
      %v8321 = vsel %vm3638, %v8289, %v8007
      %v8322 = vsel %vm3638, %v8290, %v8009
      %v8323 = vsel %vm3638, %v8291, %v8011
      %v8324 = vsel %vm3638, %v8292, %v8013
      %v8325 = vsel %vm3638, %v8293, %v8015
      %v8326 = vsel %vm3638, %v8294, %v8017
      %v8327 = vsel %vm3638, %v8295, %v8019
      %v8328 = vsel %vm3638, %v8296, %v8021
      %v8329 = vsel %vm3638, %v8297, %v8023
      %v8330 = vsel %vm3638, %v8298, %v8025
      %v8331 = vsel %vm3638, %v8299, %v8027
      %v8332 = vsel %vm3638, %v8300, %v8029
      %v8333 = vsel %vm3638, %v8301, %v8031
      %v8334 = vsel %vm3638, %v8302, %v8033
      %v8335 = vsel %vm3638, %v8303, %v8035
      %v8336 = vsel %vm3638, %v8304, %v8037
      %v8337 = vsel %vm3638, %v8305, %v8039
      %v8338 = vsel %vm3638, %v8306, %v8041
      %v8339 = vsel %vm3638, %v8307, %v8043
      %v8340 = vsel %vm3638, %v8308, %v8045
      %v8341 = vsel %vm3638, %v8309, %v8047
      %v8342 = vsel %vm3638, %v8310, %v8049
      %v8343 = vsel %vm3638, %v8311, %v8051
      %v8344 = vsel %vm3638, %v8312, %v8053
      %v8345 = vsel %vm3638, %v8313, %v8055
      %v8346 = vsel %vm3638, %v8314, %v8057
      %v8347 = vsel %vm3638, %v8315, %v8059
      %v8348 = vsel %vm3671, %v8316, %v8093
      %v8349 = vsel %vm3671, %v8317, %v8095
      %v8350 = vsel %vm3671, %v8318, %v8097
      %v8351 = vsel %vm3671, %v8319, %v8099
      %v8352 = vsel %vm3671, %v8320, %v8101
      %v8353 = vsel %vm3671, %v8321, %v8103
      %v8354 = vsel %vm3671, %v8322, %v8105
      %v8355 = vsel %vm3671, %v8323, %v8107
      %v8356 = vsel %vm3671, %v8324, %v8109
      %v8357 = vsel %vm3671, %v8325, %v8111
      %v8358 = vsel %vm3671, %v8326, %v8113
      %v8359 = vsel %vm3671, %v8327, %v8115
      %v8360 = vsel %vm3671, %v8328, %v8117
      %v8361 = vsel %vm3671, %v8329, %v8119
      %v8362 = vsel %vm3671, %v8330, %v8121
      %v8363 = vsel %vm3671, %v8331, %v8123
      %v8364 = vsel %vm3671, %v8332, %v8125
      %v8365 = vsel %vm3671, %v8333, %v8127
      %v8366 = vsel %vm3671, %v8334, %v8129
      %v8367 = vsel %vm3671, %v8335, %v8131
      %v8368 = vsel %vm3671, %v8336, %v8133
      %v8369 = vsel %vm3671, %v8337, %v8135
      %v8370 = vsel %vm3671, %v8338, %v8137
      %v8371 = vsel %vm3671, %v8339, %v8139
      %v8372 = vsel %vm3671, %v8340, %v8141
      %v8373 = vsel %vm3671, %v8341, %v8143
      %v8374 = vsel %vm3671, %v8342, %v8145
      %v8375 = vsel %vm3671, %v8343, %v8147
      %v8376 = vsel %vm3671, %v8344, %v8149
      %v8377 = vsel %vm3671, %v8345, %v8151
      %v8378 = vsel %vm3671, %v8346, %v8153
      %v8379 = vsel %vm3671, %v8347, %v8155
      %v8381 = vlaneseq
      %v8382 = vshrl.u32 %v8381, 7
      %v8383 = vsub.s32 0, %v8382
      %v8384 = vrot.slane %v7345, %v8383
      %v8386 = vsel %vm530, %v7486, 0
      %v8388 = vsel %vm530, %v7488, 0
      %v8390 = vsel %vm530, %v7491, 0
      %v8392 = vsel %vm530, %v7493, 0
      %v8394 = vsel %vm530, %v7496, 0
      %v8396 = vsel %vm530, %v7498, 0
      %v8398 = vsel %vm530, %v7501, 0
      %v8400 = vsel %vm530, %v7503, 0
      %v8402 = vsel %vm530, %v7506, 0
      %v8404 = vsel %vm530, %v7508, 0
      %v8406 = vsel %vm530, %v7511, 0
      %v8408 = vsel %vm530, %v7513, 0
      %v8410 = vsel %vm530, %v7516, 0
      %v8412 = vsel %vm530, %v7518, 0
      %v8414 = vsel %vm530, %v7521, 0
      %v8416 = vsel %vm530, %v7523, 0
      %v8418 = vsel %vm530, %v7526, 0
      %v8420 = vsel %vm530, %v7528, 0
      %v8422 = vsel %vm530, %v7531, 0
      %v8424 = vsel %vm530, %v7533, 0
      %v8426 = vsel %vm530, %v7536, 0
      %v8428 = vsel %vm530, %v7538, 0
      %v8430 = vsel %vm530, %v7541, 0
      %v8432 = vsel %vm530, %v7543, 0
      %v8434 = vsel %vm530, %v7546, 0
      %v8436 = vsel %vm530, %v7548, 0
      %v8438 = vsel %vm530, %v7551, 0
      %v8440 = vsel %vm530, %v7553, 0
      %v8442 = vsel %vm530, %v7596, 0
      %v8444 = vsel %vm530, %v7598, 0
      %v8446 = vsel %vm530, %v7609, 0
      %v8448 = vsel %vm530, %v7611, 0
      %8450 = vmatprep.subr.mxu0 0.0
      %8451 = vmatpush1.msra.mxu0 %v7309
      %8452 = vmatprep.subr.mxu0 0.0
      %8453 = vmatpush1.msra.mxu0 %v7310
      %8454 = vmatprep.subr.mxu0 0.0
      %8455 = vmatpush1.msra.mxu0 %v7311
      %8456 = vmatprep.subr.mxu0 0.0
      %8457 = vmatpush1.msra.mxu0 %v7312
      %8458 = vmatprep.subr.mxu0 0.0
      %8459 = vmatpush1.msra.mxu0 %v7313
      %8460 = vmatprep.subr.mxu0 0.0
      %8461 = vmatpush1.msra.mxu0 %v7314
      %8462 = vmatprep.subr.mxu0 0.0
      %8463 = vmatpush1.msra.mxu0 %v7315
      %8464 = vmatprep.subr.mxu0 0.0
      %8465 = vmatpush1.msra.mxu0 %v7316
      %8466 = vmatprep.subr.mxu0 0.0
      %8467 = vmatpush1.msra.mxu0 %v7317
      %8468 = vmatprep.subr.mxu0 0.0
      %8469 = vmatpush1.msra.mxu0 %v7318
      %8470 = vmatprep.subr.mxu0 0.0
      %8471 = vmatpush1.msra.mxu0 %v7319
      %8472 = vmatprep.subr.mxu0 0.0
      %8473 = vmatpush1.msra.mxu0 %v7320
      %8474 = vmatprep.subr.mxu0 0.0
      %8475 = vmatpush1.msra.mxu0 %v7321
      %8476 = vmatprep.subr.mxu0 0.0
      %8477 = vmatpush1.msra.mxu0 %v7322
      %8478 = vmatprep.subr.mxu0 0.0
      %8479 = vmatpush1.msra.mxu0 %v7323
      %8480 = vmatprep.subr.mxu0 0.0
      %8481 = vmatpush1.msra.mxu0 %v7324
      %8482 = vmatprep.subr.mxu0 0.0
      %8483 = vmatpush1.msra.mxu0 %v7325
      %8484 = vmatprep.subr.mxu0 0.0
      %8485 = vmatpush1.msra.mxu0 %v7326
      %8486 = vmatprep.subr.mxu0 0.0
      %8487 = vmatpush1.msra.mxu0 %v7327
      %8488 = vmatprep.subr.mxu0 0.0
      %8489 = vmatpush1.msra.mxu0 %v7328
      %8490 = vmatprep.subr.mxu0 0.0
      %8491 = vmatpush1.msra.mxu0 %v7329
      %8492 = vmatprep.subr.mxu0 0.0
      %8493 = vmatpush1.msra.mxu0 %v7330
      %8494 = vmatprep.subr.mxu0 0.0
      %8495 = vmatpush1.msra.mxu0 %v7331
      %8496 = vmatprep.subr.mxu0 0.0
      %8497 = vmatpush1.msra.mxu0 %v7332
      %8498 = vmatprep.subr.mxu0 0.0
      %8499 = vmatpush1.msra.mxu0 %v7333
      %8500 = vmatprep.subr.mxu0 0.0
      %8501 = vmatpush1.msra.mxu0 %v7334
      %8502 = vmatprep.subr.mxu0 0.0
      %8503 = vmatpush1.msra.mxu0 %v7335
      %8504 = vmatprep.subr.mxu0 0.0
      %8505 = vmatpush1.msra.mxu0 %v7336
      %8506 = vmatprep.subr.mxu0 0.0
      %8507 = vmatpush1.msra.mxu0 %v7337
      %8508 = vmatprep.subr.mxu0 0.0
      %8509 = vmatpush1.msra.mxu0 %v7338
      %8510 = vmatprep.subr.mxu0 0.0
      %8511 = vmatpush1.msra.mxu0 %v7339
      %8512 = vmatprep.subr.mxu0 0.0
      %8513 = vmatpush1.msra.mxu0 %v7340
      %8514 = vmatprep.mubr.f32.mxu0 %v8348
      %8515 = vmatmul.mubr.f32.gmra.mrb[0].mxu0 %v8252
      %v8516 = vpop.f32.mrb[0].mxu0
      %v8517 = vadd.f32 %v8384, %v8516
      %v8518 = vpop.f32.mrb[0].mxu0
      %8519 = vmatprep.mubr.f32.mxu0 %v8349
      %8520 = vmatmul.mubr.f32.gmra.mrb[0].mxu0 %v8253
      %v8521 = vpop.f32.mrb[0].mxu0
      %v8522 = vadd.f32 %v8384, %v8521
      %v8523 = vpop.f32.mrb[0].mxu0
      %8524 = vmatprep.mubr.f32.mxu0 %v8350
      %8525 = vmatmul.mubr.f32.gmra.mrb[0].mxu0 %v8254
      %v8526 = vpop.f32.mrb[0].mxu0
      %v8527 = vadd.f32 %v8384, %v8526
      %v8528 = vpop.f32.mrb[0].mxu0
      %8529 = vmatprep.mubr.f32.mxu0 %v8351
      %8530 = vmatmul.mubr.f32.gmra.mrb[0].mxu0 %v8255
      %v8531 = vpop.f32.mrb[0].mxu0
      %v8532 = vadd.f32 %v8384, %v8531
      %v8533 = vpop.f32.mrb[0].mxu0
      %8534 = vmatprep.mubr.f32.mxu0 %v8352
      %8535 = vmatmul.mubr.f32.gmra.mrb[0].mxu0 %v8256
      %v8536 = vpop.f32.mrb[0].mxu0
      %v8537 = vadd.f32 %v8384, %v8536
      %v8538 = vpop.f32.mrb[0].mxu0
      %8539 = vmatprep.mubr.f32.mxu0 %v8353
      %8540 = vmatmul.mubr.f32.gmra.mrb[0].mxu0 %v8257
      %v8541 = vpop.f32.mrb[0].mxu0
      %v8542 = vadd.f32 %v8384, %v8541
      %v8543 = vpop.f32.mrb[0].mxu0
      %8544 = vmatprep.mubr.f32.mxu0 %v8354
      %8545 = vmatmul.mubr.f32.gmra.mrb[0].mxu0 %v8258
      %v8546 = vpop.f32.mrb[0].mxu0
      %v8547 = vadd.f32 %v8384, %v8546
      %v8548 = vpop.f32.mrb[0].mxu0
      %8549 = vmatprep.mubr.f32.mxu0 %v8355
      %8550 = vmatmul.mubr.f32.gmra.mrb[0].mxu0 %v8259
      %v8551 = vpop.f32.mrb[0].mxu0
      %v8552 = vadd.f32 %v8384, %v8551
      %v8553 = vpop.f32.mrb[0].mxu0
      %8554 = vmatprep.mubr.f32.mxu0 %v8356
      %8555 = vmatmul.mubr.f32.gmra.mrb[0].mxu0 %v8260
      %v8556 = vpop.f32.mrb[0].mxu0
      %v8557 = vadd.f32 %v8384, %v8556
      %v8558 = vpop.f32.mrb[0].mxu0
      %8559 = vmatprep.mubr.f32.mxu0 %v8357
      %8560 = vmatmul.mubr.f32.gmra.mrb[0].mxu0 %v8261
      %v8561 = vpop.f32.mrb[0].mxu0
      %v8562 = vadd.f32 %v8384, %v8561
      %v8563 = vpop.f32.mrb[0].mxu0
      %8564 = vmatprep.mubr.f32.mxu0 %v8358
      %8565 = vmatmul.mubr.f32.gmra.mrb[0].mxu0 %v8262
      %v8566 = vpop.f32.mrb[0].mxu0
      %v8567 = vadd.f32 %v8384, %v8566
      %v8568 = vpop.f32.mrb[0].mxu0
      %8569 = vmatprep.mubr.f32.mxu0 %v8359
      %8570 = vmatmul.mubr.f32.gmra.mrb[0].mxu0 %v8263
      %v8571 = vpop.f32.mrb[0].mxu0
      %v8572 = vadd.f32 %v8384, %v8571
      %v8573 = vpop.f32.mrb[0].mxu0
      %8574 = vmatprep.mubr.f32.mxu0 %v8360
      %8575 = vmatmul.mubr.f32.gmra.mrb[0].mxu0 %v8264
      %v8576 = vpop.f32.mrb[0].mxu0
      %v8577 = vadd.f32 %v8384, %v8576
      %v8578 = vpop.f32.mrb[0].mxu0
      %8579 = vmatprep.mubr.f32.mxu0 %v8361
      %8580 = vmatmul.mubr.f32.gmra.mrb[0].mxu0 %v8265
      %v8581 = vpop.f32.mrb[0].mxu0
      %v8582 = vadd.f32 %v8384, %v8581
      %v8583 = vpop.f32.mrb[0].mxu0
      %8584 = vmatprep.mubr.f32.mxu0 %v8362
      %8585 = vmatmul.mubr.f32.gmra.mrb[0].mxu0 %v8266
      %v8586 = vpop.f32.mrb[0].mxu0
      %v8587 = vadd.f32 %v8384, %v8586
      %v8588 = vpop.f32.mrb[0].mxu0
      %8589 = vmatprep.mubr.f32.mxu0 %v8363
      %8590 = vmatmul.mubr.f32.gmra.mrb[0].mxu0 %v8267
      %v8591 = vpop.f32.mrb[0].mxu0
      %v8592 = vadd.f32 %v8384, %v8591
      %v8593 = vpop.f32.mrb[0].mxu0
      %8594 = vmatprep.mubr.f32.mxu0 %v8364
      %8595 = vmatmul.mubr.f32.gmra.mrb[0].mxu0 %v8268
      %v8596 = vpop.f32.mrb[0].mxu0
      %v8597 = vadd.f32 %v8384, %v8596
      %v8598 = vpop.f32.mrb[0].mxu0
      %8599 = vmatprep.mubr.f32.mxu0 %v8365
      %8600 = vmatmul.mubr.f32.gmra.mrb[0].mxu0 %v8269
      %v8601 = vpop.f32.mrb[0].mxu0
      %v8602 = vadd.f32 %v8384, %v8601
      %v8603 = vpop.f32.mrb[0].mxu0
      %8604 = vmatprep.mubr.f32.mxu0 %v8366
      %8605 = vmatmul.mubr.f32.gmra.mrb[0].mxu0 %v8270
      %v8606 = vpop.f32.mrb[0].mxu0
      %v8607 = vadd.f32 %v8384, %v8606
      %v8608 = vpop.f32.mrb[0].mxu0
      %8609 = vmatprep.mubr.f32.mxu0 %v8367
      %8610 = vmatmul.mubr.f32.gmra.mrb[0].mxu0 %v8271
      %v8611 = vpop.f32.mrb[0].mxu0
      %v8612 = vadd.f32 %v8384, %v8611
      %v8613 = vpop.f32.mrb[0].mxu0
      %8614 = vmatprep.mubr.f32.mxu0 %v8368
      %8615 = vmatmul.mubr.f32.gmra.mrb[0].mxu0 %v8272
      %v8616 = vpop.f32.mrb[0].mxu0
      %v8617 = vadd.f32 %v8384, %v8616
      %v8618 = vpop.f32.mrb[0].mxu0
      %8619 = vmatprep.mubr.f32.mxu0 %v8369
      %8620 = vmatmul.mubr.f32.gmra.mrb[0].mxu0 %v8273
      %v8621 = vpop.f32.mrb[0].mxu0
      %v8622 = vadd.f32 %v8384, %v8621
      %v8623 = vpop.f32.mrb[0].mxu0
      %8624 = vmatprep.mubr.f32.mxu0 %v8370
      %8625 = vmatmul.mubr.f32.gmra.mrb[0].mxu0 %v8274
      %v8626 = vpop.f32.mrb[0].mxu0
      %v8627 = vadd.f32 %v8384, %v8626
      %v8628 = vpop.f32.mrb[0].mxu0
      %8629 = vmatprep.mubr.f32.mxu0 %v8371
      %8630 = vmatmul.mubr.f32.gmra.mrb[0].mxu0 %v8275
      %v8631 = vpop.f32.mrb[0].mxu0
      %v8632 = vadd.f32 %v8384, %v8631
      %v8633 = vpop.f32.mrb[0].mxu0
      %8634 = vmatprep.mubr.f32.mxu0 %v8372
      %8635 = vmatmul.mubr.f32.gmra.mrb[0].mxu0 %v8276
      %v8636 = vpop.f32.mrb[0].mxu0
      %v8637 = vadd.f32 %v8384, %v8636
      %v8638 = vpop.f32.mrb[0].mxu0
      %8639 = vmatprep.mubr.f32.mxu0 %v8373
      %8640 = vmatmul.mubr.f32.gmra.mrb[0].mxu0 %v8277
      %v8641 = vpop.f32.mrb[0].mxu0
      %v8642 = vadd.f32 %v8384, %v8641
      %v8643 = vpop.f32.mrb[0].mxu0
      %8644 = vmatprep.mubr.f32.mxu0 %v8374
      %8645 = vmatmul.mubr.f32.gmra.mrb[0].mxu0 %v8278
      %v8646 = vpop.f32.mrb[0].mxu0
      %v8647 = vadd.f32 %v8384, %v8646
      %v8648 = vpop.f32.mrb[0].mxu0
      %8649 = vmatprep.mubr.f32.mxu0 %v8375
      %8650 = vmatmul.mubr.f32.gmra.mrb[0].mxu0 %v8279
      %v8651 = vpop.f32.mrb[0].mxu0
      %v8652 = vadd.f32 %v8384, %v8651
      %v8653 = vpop.f32.mrb[0].mxu0
      %8654 = vmatprep.mubr.f32.mxu0 %v8376
      %8655 = vmatmul.mubr.f32.gmra.mrb[0].mxu0 %v8280
      %v8656 = vpop.f32.mrb[0].mxu0
      %v8657 = vadd.f32 %v8384, %v8656
      %v8658 = vpop.f32.mrb[0].mxu0
      %8659 = vmatprep.mubr.f32.mxu0 %v8377
      %8660 = vmatmul.mubr.f32.gmra.mrb[0].mxu0 %v8281
      %v8661 = vpop.f32.mrb[0].mxu0
      %v8662 = vadd.f32 %v8384, %v8661
      %v8663 = vpop.f32.mrb[0].mxu0
      %8664 = vmatprep.mubr.f32.mxu0 %v8378
      %8665 = vmatmul.mubr.f32.gmra.mrb[0].mxu0 %v8282
      %v8666 = vpop.f32.mrb[0].mxu0
      %v8667 = vadd.f32 %v8384, %v8666
      %v8668 = vpop.f32.mrb[0].mxu0
      %8669 = vmatprep.mubr.f32.mxu0 %v8379
      %8670 = vmatmul.mubr.f32.gmra.mrb[0].mxu0 %v8283
      %v8671 = vpop.f32.mrb[0].mxu0
      %v8672 = vadd.f32 %v8384, %v8671
      %v8673 = vpop.f32.mrb[0].mxu0
      %8674 = vdwg.mxu0
      %8675 = vmatprep.subr.mxu0 0.0
      %8676 = vmatpush1.msra.mxu0 %v7341
      %8677 = vmatprep.subr.mxu0 0.0
      %8678 = vmatpush1.msra.mxu0 %v7342
      %8679 = vmatprep.subr.mxu0 0.0
      %8680 = vmatpush1.msra.mxu0 %v7343
      %8681 = vmatprep.subr.mxu0 0.0
      %8682 = vmatpush1.msra.mxu0 %v7344
      %8683 = vmatprep.subr.mxu0 0.0
      %8684 = vmatpush1.msra.mxu0 0.0
      %8685 = vmatprep.subr.mxu0 0.0
      %8686 = vmatpush1.msra.mxu0 0.0
      %8687 = vmatprep.subr.mxu0 0.0
      %8688 = vmatpush1.msra.mxu0 0.0
      %8689 = vmatprep.subr.mxu0 0.0
      %8690 = vmatpush1.msra.mxu0 0.0
      %8691 = vmatprep.subr.mxu0 0.0
      %8692 = vmatpush1.msra.mxu0 0.0
      %8693 = vmatprep.subr.mxu0 0.0
      %8694 = vmatpush1.msra.mxu0 0.0
      %8695 = vmatprep.subr.mxu0 0.0
      %8696 = vmatpush1.msra.mxu0 0.0
      %8697 = vmatprep.subr.mxu0 0.0
      %8698 = vmatpush1.msra.mxu0 0.0
      %8699 = vmatprep.subr.mxu0 0.0
      %8700 = vmatpush1.msra.mxu0 0.0
      %8701 = vmatprep.subr.mxu0 0.0
      %8702 = vmatpush1.msra.mxu0 0.0
      %8703 = vmatprep.subr.mxu0 0.0
      %8704 = vmatpush1.msra.mxu0 0.0
      %8705 = vmatprep.subr.mxu0 0.0
      %8706 = vmatpush1.msra.mxu0 0.0
      %8707 = vmatprep.subr.mxu0 0.0
      %8708 = vmatpush1.msra.mxu0 0.0
      %8709 = vmatprep.subr.mxu0 0.0
      %8710 = vmatpush1.msra.mxu0 0.0
      %8711 = vmatprep.subr.mxu0 0.0
      %8712 = vmatpush1.msra.mxu0 0.0
      %8713 = vmatprep.subr.mxu0 0.0
      %8714 = vmatpush1.msra.mxu0 0.0
      %8715 = vmatprep.subr.mxu0 0.0
      %8716 = vmatpush1.msra.mxu0 0.0
      %8717 = vmatprep.subr.mxu0 0.0
      %8718 = vmatpush1.msra.mxu0 0.0
      %8719 = vmatprep.subr.mxu0 0.0
      %8720 = vmatpush1.msra.mxu0 0.0
      %8721 = vmatprep.subr.mxu0 0.0
      %8722 = vmatpush1.msra.mxu0 0.0
      %8723 = vmatprep.subr.mxu0 0.0
      %8724 = vmatpush1.msra.mxu0 0.0
      %8725 = vmatprep.subr.mxu0 0.0
      %8726 = vmatpush1.msra.mxu0 0.0
      %8727 = vmatprep.subr.mxu0 0.0
      %8728 = vmatpush1.msra.mxu0 0.0
      %8729 = vmatprep.subr.mxu0 0.0
      %8730 = vmatpush1.msra.mxu0 0.0
      %8731 = vmatprep.subr.mxu0 0.0
      %8732 = vmatpush1.msra.mxu0 0.0
      %8733 = vmatprep.subr.mxu0 0.0
      %8734 = vmatpush1.msra.mxu0 0.0
      %8735 = vmatprep.subr.mxu0 0.0
      %8736 = vmatpush1.msra.mxu0 0.0
      %8737 = vmatprep.subr.mxu0 0.0
      %8738 = vmatpush1.msra.mxu0 0.0
      %8739 = vmatprep.mubr.f32.mxu0 0.0
      %8740 = vmatmul.mubr.f32.gmra.mrb[0].mxu0 %v8386
      %v8741 = vpop.f32.mrb[0].mxu0
      %v8742 = vadd.f32 %v8517, %v8741
      %v8743 = vpop.f32.mrb[0].mxu0
      %8744 = vmatprep.mubr.f32.mxu0 0.0
      %8745 = vmatmul.mubr.f32.gmra.mrb[0].mxu0 %v8388
      %v8746 = vpop.f32.mrb[0].mxu0
      %v8747 = vadd.f32 %v8522, %v8746
      %v8748 = vpop.f32.mrb[0].mxu0
      %8749 = vmatprep.mubr.f32.mxu0 0.0
      %8750 = vmatmul.mubr.f32.gmra.mrb[0].mxu0 %v8390
      %v8751 = vpop.f32.mrb[0].mxu0
      %v8752 = vadd.f32 %v8527, %v8751
      %v8753 = vpop.f32.mrb[0].mxu0
      %8754 = vmatprep.mubr.f32.mxu0 0.0
      %8755 = vmatmul.mubr.f32.gmra.mrb[0].mxu0 %v8392
      %v8756 = vpop.f32.mrb[0].mxu0
      %v8757 = vadd.f32 %v8532, %v8756
      %v8758 = vpop.f32.mrb[0].mxu0
      %8759 = vmatprep.mubr.f32.mxu0 0.0
      %8760 = vmatmul.mubr.f32.gmra.mrb[0].mxu0 %v8394
      %v8761 = vpop.f32.mrb[0].mxu0
      %v8762 = vadd.f32 %v8537, %v8761
      %v8763 = vpop.f32.mrb[0].mxu0
      %8764 = vmatprep.mubr.f32.mxu0 0.0
      %8765 = vmatmul.mubr.f32.gmra.mrb[0].mxu0 %v8396
      %v8766 = vpop.f32.mrb[0].mxu0
      %v8767 = vadd.f32 %v8542, %v8766
      %v8768 = vpop.f32.mrb[0].mxu0
      %8769 = vmatprep.mubr.f32.mxu0 0.0
      %8770 = vmatmul.mubr.f32.gmra.mrb[0].mxu0 %v8398
      %v8771 = vpop.f32.mrb[0].mxu0
      %v8772 = vadd.f32 %v8547, %v8771
      %v8773 = vpop.f32.mrb[0].mxu0
      %8774 = vmatprep.mubr.f32.mxu0 0.0
      %8775 = vmatmul.mubr.f32.gmra.mrb[0].mxu0 %v8400
      %v8776 = vpop.f32.mrb[0].mxu0
      %v8777 = vadd.f32 %v8552, %v8776
      %v8778 = vpop.f32.mrb[0].mxu0
      %8779 = vmatprep.mubr.f32.mxu0 0.0
      %8780 = vmatmul.mubr.f32.gmra.mrb[0].mxu0 %v8402
      %v8781 = vpop.f32.mrb[0].mxu0
      %v8782 = vadd.f32 %v8557, %v8781
      %v8783 = vpop.f32.mrb[0].mxu0
      %8784 = vmatprep.mubr.f32.mxu0 0.0
      %8785 = vmatmul.mubr.f32.gmra.mrb[0].mxu0 %v8404
      %v8786 = vpop.f32.mrb[0].mxu0
      %v8787 = vadd.f32 %v8562, %v8786
      %v8788 = vpop.f32.mrb[0].mxu0
      %8789 = vmatprep.mubr.f32.mxu0 0.0
      %8790 = vmatmul.mubr.f32.gmra.mrb[0].mxu0 %v8406
      %v8791 = vpop.f32.mrb[0].mxu0
      %v8792 = vadd.f32 %v8567, %v8791
      %v8793 = vpop.f32.mrb[0].mxu0
      %8794 = vmatprep.mubr.f32.mxu0 0.0
      %8795 = vmatmul.mubr.f32.gmra.mrb[0].mxu0 %v8408
      %v8796 = vpop.f32.mrb[0].mxu0
      %v8797 = vadd.f32 %v8572, %v8796
      %v8798 = vpop.f32.mrb[0].mxu0
      %8799 = vmatprep.mubr.f32.mxu0 0.0
      %8800 = vmatmul.mubr.f32.gmra.mrb[0].mxu0 %v8410
      %v8801 = vpop.f32.mrb[0].mxu0
      %v8802 = vadd.f32 %v8577, %v8801
      %v8803 = vpop.f32.mrb[0].mxu0
      %8804 = vmatprep.mubr.f32.mxu0 0.0
      %8805 = vmatmul.mubr.f32.gmra.mrb[0].mxu0 %v8412
      %v8806 = vpop.f32.mrb[0].mxu0
      %v8807 = vadd.f32 %v8582, %v8806
      %v8808 = vpop.f32.mrb[0].mxu0
      %8809 = vmatprep.mubr.f32.mxu0 0.0
      %8810 = vmatmul.mubr.f32.gmra.mrb[0].mxu0 %v8414
      %v8811 = vpop.f32.mrb[0].mxu0
      %v8812 = vadd.f32 %v8587, %v8811
      %v8813 = vpop.f32.mrb[0].mxu0
      %8814 = vmatprep.mubr.f32.mxu0 0.0
      %8815 = vmatmul.mubr.f32.gmra.mrb[0].mxu0 %v8416
      %v8816 = vpop.f32.mrb[0].mxu0
      %v8817 = vadd.f32 %v8592, %v8816
      %v8818 = vpop.f32.mrb[0].mxu0
      %8819 = vmatprep.mubr.f32.mxu0 0.0
      %8820 = vmatmul.mubr.f32.gmra.mrb[0].mxu0 %v8418
      %v8821 = vpop.f32.mrb[0].mxu0
      %v8822 = vadd.f32 %v8597, %v8821
      %v8823 = vpop.f32.mrb[0].mxu0
      %8824 = vmatprep.mubr.f32.mxu0 0.0
      %8825 = vmatmul.mubr.f32.gmra.mrb[0].mxu0 %v8420
      %v8826 = vpop.f32.mrb[0].mxu0
      %v8827 = vadd.f32 %v8602, %v8826
      %v8828 = vpop.f32.mrb[0].mxu0
      %8829 = vmatprep.mubr.f32.mxu0 0.0
      %8830 = vmatmul.mubr.f32.gmra.mrb[0].mxu0 %v8422
      %v8831 = vpop.f32.mrb[0].mxu0
      %v8832 = vadd.f32 %v8607, %v8831
      %v8833 = vpop.f32.mrb[0].mxu0
      %8834 = vmatprep.mubr.f32.mxu0 0.0
      %8835 = vmatmul.mubr.f32.gmra.mrb[0].mxu0 %v8424
      %v8836 = vpop.f32.mrb[0].mxu0
      %v8837 = vadd.f32 %v8612, %v8836
      %v8838 = vpop.f32.mrb[0].mxu0
      %8839 = vmatprep.mubr.f32.mxu0 0.0
      %8840 = vmatmul.mubr.f32.gmra.mrb[0].mxu0 %v8426
      %v8841 = vpop.f32.mrb[0].mxu0
      %v8842 = vadd.f32 %v8617, %v8841
      %v8843 = vpop.f32.mrb[0].mxu0
      %8844 = vmatprep.mubr.f32.mxu0 0.0
      %8845 = vmatmul.mubr.f32.gmra.mrb[0].mxu0 %v8428
      %v8846 = vpop.f32.mrb[0].mxu0
      %v8847 = vadd.f32 %v8622, %v8846
      %v8848 = vpop.f32.mrb[0].mxu0
      %8849 = vmatprep.mubr.f32.mxu0 0.0
      %8850 = vmatmul.mubr.f32.gmra.mrb[0].mxu0 %v8430
      %v8851 = vpop.f32.mrb[0].mxu0
      %v8852 = vadd.f32 %v8627, %v8851
      %v8853 = vpop.f32.mrb[0].mxu0
      %8854 = vmatprep.mubr.f32.mxu0 0.0
      %8855 = vmatmul.mubr.f32.gmra.mrb[0].mxu0 %v8432
      %v8856 = vpop.f32.mrb[0].mxu0
      %v8857 = vadd.f32 %v8632, %v8856
      %v8858 = vpop.f32.mrb[0].mxu0
      %8859 = vmatprep.mubr.f32.mxu0 0.0
      %8860 = vmatmul.mubr.f32.gmra.mrb[0].mxu0 %v8434
      %v8861 = vpop.f32.mrb[0].mxu0
      %v8862 = vadd.f32 %v8637, %v8861
      %v8863 = vpop.f32.mrb[0].mxu0
      %8864 = vmatprep.mubr.f32.mxu0 0.0
      %8865 = vmatmul.mubr.f32.gmra.mrb[0].mxu0 %v8436
      %v8866 = vpop.f32.mrb[0].mxu0
      %v8867 = vadd.f32 %v8642, %v8866
      %v8868 = vpop.f32.mrb[0].mxu0
      %8869 = vmatprep.mubr.f32.mxu0 0.0
      %8870 = vmatmul.mubr.f32.gmra.mrb[0].mxu0 %v8438
      %v8871 = vpop.f32.mrb[0].mxu0
      %v8872 = vadd.f32 %v8647, %v8871
      %v8873 = vpop.f32.mrb[0].mxu0
      %8874 = vmatprep.mubr.f32.mxu0 0.0
      %8875 = vmatmul.mubr.f32.gmra.mrb[0].mxu0 %v8440
      %v8876 = vpop.f32.mrb[0].mxu0
      %v8877 = vadd.f32 %v8652, %v8876
      %v8878 = vpop.f32.mrb[0].mxu0
      %8879 = vmatprep.mubr.f32.mxu0 0.0
      %8880 = vmatmul.mubr.f32.gmra.mrb[0].mxu0 %v8442
      %v8881 = vpop.f32.mrb[0].mxu0
      %v8882 = vadd.f32 %v8657, %v8881
      %v8883 = vpop.f32.mrb[0].mxu0
      %8884 = vmatprep.mubr.f32.mxu0 0.0
      %8885 = vmatmul.mubr.f32.gmra.mrb[0].mxu0 %v8444
      %v8886 = vpop.f32.mrb[0].mxu0
      %v8887 = vadd.f32 %v8662, %v8886
      %v8888 = vpop.f32.mrb[0].mxu0
      %8889 = vmatprep.mubr.f32.mxu0 0.0
      %8890 = vmatmul.mubr.f32.gmra.mrb[0].mxu0 %v8446
      %v8891 = vpop.f32.mrb[0].mxu0
      %v8892 = vadd.f32 %v8667, %v8891
      %v8893 = vpop.f32.mrb[0].mxu0
      %8894 = vmatprep.mubr.f32.mxu0 0.0
      %8895 = vmatmul.mubr.f32.gmra.mrb[0].mxu0 %v8448
      %v8896 = vpop.f32.mrb[0].mxu0
      %v8897 = vadd.f32 %v8672, %v8896
      %v8898 = vpop.f32.mrb[0].mxu0
      %8899 = vdwg.mxu0
      %s8900 = sld [smem:[#allocation3]]
      %v8901 = vtanh.pop %v8742
      %v8902 = vtanh.pop %v8747
      %v8903 = vtanh.pop %v8752
      %v8904 = vtanh.pop %v8757
      %v8905 = vtanh.pop %v8762
      %v8906 = vtanh.pop %v8767
      %v8907 = vtanh.pop %v8772
      %v8908 = vtanh.pop %v8777
      %v8909 = vtanh.pop %v8782
      %v8910 = vtanh.pop %v8787
      %v8911 = vtanh.pop %v8792
      %v8912 = vtanh.pop %v8797
      %v8913 = vtanh.pop %v8802
      %v8914 = vtanh.pop %v8807
      %v8915 = vtanh.pop %v8812
      %v8916 = vtanh.pop %v8817
      %v8917 = vtanh.pop %v8822
      %v8918 = vtanh.pop %v8827
      %v8919 = vtanh.pop %v8832
      %v8920 = vtanh.pop %v8837
      %v8921 = vtanh.pop %v8842
      %v8922 = vtanh.pop %v8847
      %v8923 = vtanh.pop %v8852
      %v8924 = vtanh.pop %v8857
      %v8925 = vtanh.pop %v8862
      %v8926 = vtanh.pop %v8867
      %v8927 = vtanh.pop %v8872
      %v8928 = vtanh.pop %v8877
      %v8929 = vtanh.pop %v8882
      %v8930 = vtanh.pop %v8887
      %v8931 = vtanh.pop %v8892
      %v8932 = vtanh.pop %v8897
      %v8933 = vstv %s8900
      %v8934 = vmul.f32 %v8933, %v8901
      %v8935 = vmul.f32 %v8933, %v8902
      %v8936 = vmul.f32 %v8933, %v8903
      %v8937 = vmul.f32 %v8933, %v8904
      %v8938 = vmul.f32 %v8933, %v8905
      %v8939 = vmul.f32 %v8933, %v8906
      %v8940 = vmul.f32 %v8933, %v8907
      %v8941 = vmul.f32 %v8933, %v8908
      %v8942 = vmul.f32 %v8933, %v8909
      %v8943 = vmul.f32 %v8933, %v8910
      %v8944 = vmul.f32 %v8933, %v8911
      %v8945 = vmul.f32 %v8933, %v8912
      %v8946 = vmul.f32 %v8933, %v8913
      %v8947 = vmul.f32 %v8933, %v8914
      %v8948 = vmul.f32 %v8933, %v8915
      %v8949 = vmul.f32 %v8933, %v8916
      %v8950 = vmul.f32 %v8933, %v8917
      %v8951 = vmul.f32 %v8933, %v8918
      %v8952 = vmul.f32 %v8933, %v8919
      %v8953 = vmul.f32 %v8933, %v8920
      %v8954 = vmul.f32 %v8933, %v8921
      %v8955 = vmul.f32 %v8933, %v8922
      %v8956 = vmul.f32 %v8933, %v8923
      %v8957 = vmul.f32 %v8933, %v8924
      %v8958 = vmul.f32 %v8933, %v8925
      %v8959 = vmul.f32 %v8933, %v8926
      %v8960 = vmul.f32 %v8933, %v8927
      %v8961 = vmul.f32 %v8933, %v8928
      %v8962 = vmul.f32 %v8933, %v8929
      %v8963 = vmul.f32 %v8933, %v8930
      %v8964 = vmul.f32 %v8933, %v8931
      %v8965 = vmul.f32 %v8933, %v8932
      %s8966 = sld [smem:[#allocation4]]
      %v8967 = vstv %s8966
      %v8968 = vadd.f32 %v8934, %v8967
      %v8969 = vadd.f32 %v8935, %v8967
      %v8970 = vadd.f32 %v8936, %v8967
      %v8971 = vadd.f32 %v8937, %v8967
      %v8972 = vadd.f32 %v8938, %v8967
      %v8973 = vadd.f32 %v8939, %v8967
      %v8974 = vadd.f32 %v8940, %v8967
      %v8975 = vadd.f32 %v8941, %v8967
      %v8976 = vadd.f32 %v8942, %v8967
      %v8977 = vadd.f32 %v8943, %v8967
      %v8978 = vadd.f32 %v8944, %v8967
      %v8979 = vadd.f32 %v8945, %v8967
      %v8980 = vadd.f32 %v8946, %v8967
      %v8981 = vadd.f32 %v8947, %v8967
      %v8982 = vadd.f32 %v8948, %v8967
      %v8983 = vadd.f32 %v8949, %v8967
      %v8984 = vadd.f32 %v8950, %v8967
      %v8985 = vadd.f32 %v8951, %v8967
      %v8986 = vadd.f32 %v8952, %v8967
      %v8987 = vadd.f32 %v8953, %v8967
      %v8988 = vadd.f32 %v8954, %v8967
      %v8989 = vadd.f32 %v8955, %v8967
      %v8990 = vadd.f32 %v8956, %v8967
      %v8991 = vadd.f32 %v8957, %v8967
      %v8992 = vadd.f32 %v8958, %v8967
      %v8993 = vadd.f32 %v8959, %v8967
      %v8994 = vadd.f32 %v8960, %v8967
      %v8995 = vadd.f32 %v8961, %v8967
      %v8996 = vadd.f32 %v8962, %v8967
      %v8997 = vadd.f32 %v8963, %v8967
      %v8998 = vadd.f32 %v8964, %v8967
      %v8999 = vadd.f32 %v8965, %v8967
      %v9000 = vld [vmem:[%s519] sm:$0xff]
      %v9001 = vld [vmem:[%s519 + $0x8] sm:$0xff]
      %v9002 = vld [vmem:[%s519 + $0x10] sm:$0xff]
      %v9003 = vld [vmem:[%s519 + $0x18] sm:$0xff]
      %v9004 = vld [vmem:[%s519 + $0x20] sm:$0xff]
      %v9005 = vld [vmem:[%s519 + $0x28] sm:$0xff]
      %v9006 = vld [vmem:[%s519 + $0x30] sm:$0xff]
      %v9007 = vld [vmem:[%s519 + $0x38] sm:$0xff]
      %v9008 = vld [vmem:[%s519 + $0x40] sm:$0xff]
      %v9009 = vld [vmem:[%s519 + $0x48] sm:$0xff]
      %v9010 = vld [vmem:[%s519 + $0x50] sm:$0xff]
      %v9011 = vld [vmem:[%s519 + $0x58] sm:$0xff]
      %v9012 = vld [vmem:[%s519 + $0x60] sm:$0xff]
      %v9013 = vld [vmem:[%s519 + $0x68] sm:$0xff]
      %v9014 = vld [vmem:[%s519 + $0x70] sm:$0xff]
      %v9015 = vld [vmem:[%s519 + $0x78] sm:$0xff]
      %v9016 = vld [vmem:[%s519 + $0x80] sm:$0xff]
      %v9017 = vld [vmem:[%s519 + $0x88] sm:$0xff]
      %v9018 = vld [vmem:[%s519 + $0x90] sm:$0xff]
      %v9019 = vld [vmem:[%s519 + $0x98] sm:$0xff]
      %v9020 = vld [vmem:[%s519 + $0xa0] sm:$0xff]
      %v9021 = vld [vmem:[%s519 + $0xa8] sm:$0xff]
      %v9022 = vld [vmem:[%s519 + $0xb0] sm:$0xff]
      %v9023 = vld [vmem:[%s519 + $0xb8] sm:$0xff]
      %v9024 = vld [vmem:[%s519 + $0xc0] sm:$0xff]
      %v9025 = vld [vmem:[%s519 + $0xc8] sm:$0xff]
      %v9026 = vld [vmem:[%s519 + $0xd0] sm:$0xff]
      %v9027 = vld [vmem:[%s519 + $0xd8] sm:$0xff]
      %v9028 = vld [vmem:[%s519 + $0xe0] sm:$0xff]
      %v9029 = vld [vmem:[%s519 + $0xe8] sm:$0xff]
      %v9030 = vld [vmem:[%s519 + $0xf0] sm:$0xff]
      %v9031 = vld [vmem:[%s519 + $0xf8] sm:$0xff]
      %v9032 = vmul.f32 %v8968, 1.442695
      %v9033 = vpow.pop %v9032
      %v9034 = vmul.f32 %v8969, 1.442695
      %v9035 = vpow.pop %v9034
      %v9036 = vmul.f32 %v8970, 1.442695
      %v9037 = vpow.pop %v9036
      %v9038 = vmul.f32 %v8971, 1.442695
      %v9039 = vpow.pop %v9038
      %v9040 = vmul.f32 %v8972, 1.442695
      %v9041 = vpow.pop %v9040
      %v9042 = vmul.f32 %v8973, 1.442695
      %v9043 = vpow.pop %v9042
      %v9044 = vmul.f32 %v8974, 1.442695
      %v9045 = vpow.pop %v9044
      %v9046 = vmul.f32 %v8975, 1.442695
      %v9047 = vpow.pop %v9046
      %v9048 = vmul.f32 %v8976, 1.442695
      %v9049 = vpow.pop %v9048
      %v9050 = vmul.f32 %v8977, 1.442695
      %v9051 = vpow.pop %v9050
      %v9052 = vmul.f32 %v8978, 1.442695
      %v9053 = vpow.pop %v9052
      %v9054 = vmul.f32 %v8979, 1.442695
      %v9055 = vpow.pop %v9054
      %v9056 = vmul.f32 %v8980, 1.442695
      %v9057 = vpow.pop %v9056
      %v9058 = vmul.f32 %v8981, 1.442695
      %v9059 = vpow.pop %v9058
      %v9060 = vmul.f32 %v8982, 1.442695
      %v9061 = vpow.pop %v9060
      %v9062 = vmul.f32 %v8983, 1.442695
      %v9063 = vpow.pop %v9062
      %v9064 = vmul.f32 %v8984, 1.442695
      %v9065 = vpow.pop %v9064
      %v9066 = vmul.f32 %v8985, 1.442695
      %v9067 = vpow.pop %v9066
      %v9068 = vmul.f32 %v8986, 1.442695
      %v9069 = vpow.pop %v9068
      %v9070 = vmul.f32 %v8987, 1.442695
      %v9071 = vpow.pop %v9070
      %v9072 = vmul.f32 %v8988, 1.442695
      %v9073 = vpow.pop %v9072
      %v9074 = vmul.f32 %v8989, 1.442695
      %v9075 = vpow.pop %v9074
      %v9076 = vmul.f32 %v8990, 1.442695
      %v9077 = vpow.pop %v9076
      %v9078 = vmul.f32 %v8991, 1.442695
      %v9079 = vpow.pop %v9078
      %v9080 = vmul.f32 %v8992, 1.442695
      %v9081 = vpow.pop %v9080
      %v9082 = vmul.f32 %v8993, 1.442695
      %v9083 = vpow.pop %v9082
      %v9084 = vmul.f32 %v8994, 1.442695
      %v9085 = vpow.pop %v9084
      %v9086 = vmul.f32 %v8995, 1.442695
      %v9087 = vpow.pop %v9086
      %v9088 = vmul.f32 %v8996, 1.442695
      %v9089 = vpow.pop %v9088
      %v9090 = vmul.f32 %v8997, 1.442695
      %v9091 = vpow.pop %v9090
      %v9092 = vmul.f32 %v8998, 1.442695
      %v9093 = vpow.pop %v9092
      %v9094 = vmul.f32 %v8999, 1.442695
      %v9095 = vpow.pop %v9094
      %v9096 = vmul.f32 %v9000, %v9033
      %v9097 = vmul.f32 %v9001, %v9035
      %v9098 = vmul.f32 %v9002, %v9037
      %v9099 = vmul.f32 %v9003, %v9039
      %v9100 = vmul.f32 %v9004, %v9041
      %v9101 = vmul.f32 %v9005, %v9043
      %v9102 = vmul.f32 %v9006, %v9045
      %v9103 = vmul.f32 %v9007, %v9047
      %v9104 = vmul.f32 %v9008, %v9049
      %v9105 = vmul.f32 %v9009, %v9051
      %v9106 = vmul.f32 %v9010, %v9053
      %v9107 = vmul.f32 %v9011, %v9055
      %v9108 = vmul.f32 %v9012, %v9057
      %v9109 = vmul.f32 %v9013, %v9059
      %v9110 = vmul.f32 %v9014, %v9061
      %v9111 = vmul.f32 %v9015, %v9063
      %v9112 = vmul.f32 %v9016, %v9065
      %v9113 = vmul.f32 %v9017, %v9067
      %v9114 = vmul.f32 %v9018, %v9069
      %v9115 = vmul.f32 %v9019, %v9071
      %v9116 = vmul.f32 %v9020, %v9073
      %v9117 = vmul.f32 %v9021, %v9075
      %v9118 = vmul.f32 %v9022, %v9077
      %v9119 = vmul.f32 %v9023, %v9079
      %v9120 = vmul.f32 %v9024, %v9081
      %v9121 = vmul.f32 %v9025, %v9083
      %v9122 = vmul.f32 %v9026, %v9085
      %v9123 = vmul.f32 %v9027, %v9087
      %v9124 = vmul.f32 %v9028, %v9089
      %v9125 = vmul.f32 %v9029, %v9091
      %v9126 = vmul.f32 %v9030, %v9093
      %v9127 = vmul.f32 %v9031, %v9095
      %9160 = vrot.lane.b32.xlu0 %v8742, 126
      %v9161 = vpop.permute.xlu0 %9160
      %9162 = vrot.lane.b32.xlu0 %v8747, 126
      %v9163 = vpop.permute.xlu0 %9162
      %9164 = vrot.lane.b32.xlu0 %v8752, 126
      %v9165 = vpop.permute.xlu0 %9164
      %9166 = vrot.lane.b32.xlu0 %v8757, 126
      %v9167 = vpop.permute.xlu0 %9166
      %9168 = vrot.lane.b32.xlu0 %v8762, 126
      %v9169 = vpop.permute.xlu0 %9168
      %9170 = vrot.lane.b32.xlu0 %v8767, 126
      %v9171 = vpop.permute.xlu0 %9170
      %9172 = vrot.lane.b32.xlu0 %v8772, 126
      %v9173 = vpop.permute.xlu0 %9172
      %9174 = vrot.lane.b32.xlu0 %v8777, 126
      %v9175 = vpop.permute.xlu0 %9174
      %9176 = vrot.lane.b32.xlu0 %v8782, 126
      %v9177 = vpop.permute.xlu0 %9176
      %9178 = vrot.lane.b32.xlu0 %v8787, 126
      %v9179 = vpop.permute.xlu0 %9178
      %9180 = vrot.lane.b32.xlu0 %v8792, 126
      %v9181 = vpop.permute.xlu0 %9180
      %9182 = vrot.lane.b32.xlu0 %v8797, 126
      %v9183 = vpop.permute.xlu0 %9182
      %9184 = vrot.lane.b32.xlu0 %v8802, 126
      %v9185 = vpop.permute.xlu0 %9184
      %9186 = vrot.lane.b32.xlu0 %v8807, 126
      %v9187 = vpop.permute.xlu0 %9186
      %9188 = vrot.lane.b32.xlu0 %v8812, 126
      %v9189 = vpop.permute.xlu0 %9188
      %9190 = vrot.lane.b32.xlu0 %v8817, 126
      %v9191 = vpop.permute.xlu0 %9190
      %9192 = vrot.lane.b32.xlu0 %v8822, 126
      %v9193 = vpop.permute.xlu0 %9192
      %9194 = vrot.lane.b32.xlu0 %v8827, 126
      %v9195 = vpop.permute.xlu0 %9194
      %9196 = vrot.lane.b32.xlu0 %v8832, 126
      %v9197 = vpop.permute.xlu0 %9196
      %9198 = vrot.lane.b32.xlu0 %v8837, 126
      %v9199 = vpop.permute.xlu0 %9198
      %9200 = vrot.lane.b32.xlu0 %v8842, 126
      %v9201 = vpop.permute.xlu0 %9200
      %9202 = vrot.lane.b32.xlu0 %v8847, 126
      %v9203 = vpop.permute.xlu0 %9202
      %9204 = vrot.lane.b32.xlu0 %v8852, 126
      %v9205 = vpop.permute.xlu0 %9204
      %9206 = vrot.lane.b32.xlu0 %v8857, 126
      %v9207 = vpop.permute.xlu0 %9206
      %9208 = vrot.lane.b32.xlu0 %v8862, 126
      %v9209 = vpop.permute.xlu0 %9208
      %9210 = vrot.lane.b32.xlu0 %v8867, 126
      %v9211 = vpop.permute.xlu0 %9210
      %9212 = vrot.lane.b32.xlu0 %v8872, 126
      %v9213 = vpop.permute.xlu0 %9212
      %9214 = vrot.lane.b32.xlu0 %v8877, 126
      %v9215 = vpop.permute.xlu0 %9214
      %9216 = vrot.lane.b32.xlu0 %v8882, 126
      %v9217 = vpop.permute.xlu0 %9216
      %9218 = vrot.lane.b32.xlu0 %v8887, 126
      %v9219 = vpop.permute.xlu0 %9218
      %9220 = vrot.lane.b32.xlu0 %v8892, 126
      %v9221 = vpop.permute.xlu0 %9220
      %9222 = vrot.lane.b32.xlu0 %v8897, 126
      %v9223 = vpop.permute.xlu0 %9222
      %v9256 = vadd.f32 %v9096, %v9161
      %v9257 = vadd.f32 %v9097, %v9163
      %v9258 = vadd.f32 %v9098, %v9165
      %v9259 = vadd.f32 %v9099, %v9167
      %v9260 = vadd.f32 %v9100, %v9169
      %v9261 = vadd.f32 %v9101, %v9171
      %v9262 = vadd.f32 %v9102, %v9173
      %v9263 = vadd.f32 %v9103, %v9175
      %v9264 = vadd.f32 %v9104, %v9177
      %v9265 = vadd.f32 %v9105, %v9179
      %v9266 = vadd.f32 %v9106, %v9181
      %v9267 = vadd.f32 %v9107, %v9183
      %v9268 = vadd.f32 %v9108, %v9185
      %v9269 = vadd.f32 %v9109, %v9187
      %v9270 = vadd.f32 %v9110, %v9189
      %v9271 = vadd.f32 %v9111, %v9191
      %v9272 = vadd.f32 %v9112, %v9193
      %v9273 = vadd.f32 %v9113, %v9195
      %v9274 = vadd.f32 %v9114, %v9197
      %v9275 = vadd.f32 %v9115, %v9199
      %v9276 = vadd.f32 %v9116, %v9201
      %v9277 = vadd.f32 %v9117, %v9203
      %v9278 = vadd.f32 %v9118, %v9205
      %v9279 = vadd.f32 %v9119, %v9207
      %v9280 = vadd.f32 %v9120, %v9209
      %v9281 = vadd.f32 %v9121, %v9211
      %v9282 = vadd.f32 %v9122, %v9213
      %v9283 = vadd.f32 %v9123, %v9215
      %v9284 = vadd.f32 %v9124, %v9217
      %v9285 = vadd.f32 %v9125, %v9219
      %v9286 = vadd.f32 %v9126, %v9221
      %v9287 = vadd.f32 %v9127, %v9223
      %9288 = vst.msk [vmem:[%s524] sm:$0xff] %vm1648, %v9256
      %9289 = vst.msk [vmem:[%s524 + $0x8] sm:$0xff] %vm1648, %v9257
      %9290 = vst.msk [vmem:[%s524 + $0x10] sm:$0xff] %vm1648, %v9258
      %9291 = vst.msk [vmem:[%s524 + $0x18] sm:$0xff] %vm1648, %v9259
      %9292 = vst.msk [vmem:[%s524 + $0x20] sm:$0xff] %vm1648, %v9260
      %9293 = vst.msk [vmem:[%s524 + $0x28] sm:$0xff] %vm1648, %v9261
      %9294 = vst.msk [vmem:[%s524 + $0x30] sm:$0xff] %vm1648, %v9262
      %9295 = vst.msk [vmem:[%s524 + $0x38] sm:$0xff] %vm1648, %v9263
      %9296 = vst.msk [vmem:[%s524 + $0x40] sm:$0xff] %vm1648, %v9264
      %9297 = vst.msk [vmem:[%s524 + $0x48] sm:$0xff] %vm1648, %v9265
      %9298 = vst.msk [vmem:[%s524 + $0x50] sm:$0xff] %vm1648, %v9266
      %9299 = vst.msk [vmem:[%s524 + $0x58] sm:$0xff] %vm1648, %v9267
      %9300 = vst.msk [vmem:[%s524 + $0x60] sm:$0xff] %vm1648, %v9268
      %9301 = vst.msk [vmem:[%s524 + $0x68] sm:$0xff] %vm1648, %v9269
      %9302 = vst.msk [vmem:[%s524 + $0x70] sm:$0xff] %vm1648, %v9270
      %9303 = vst.msk [vmem:[%s524 + $0x78] sm:$0xff] %vm1648, %v9271
      %9304 = vst.msk [vmem:[%s524 + $0x80] sm:$0xff] %vm1648, %v9272
      %9305 = vst.msk [vmem:[%s524 + $0x88] sm:$0xff] %vm1648, %v9273
      %9306 = vst.msk [vmem:[%s524 + $0x90] sm:$0xff] %vm1648, %v9274
      %9307 = vst.msk [vmem:[%s524 + $0x98] sm:$0xff] %vm1648, %v9275
      %9308 = vst.msk [vmem:[%s524 + $0xa0] sm:$0xff] %vm1648, %v9276
      %9309 = vst.msk [vmem:[%s524 + $0xa8] sm:$0xff] %vm1648, %v9277
      %9310 = vst.msk [vmem:[%s524 + $0xb0] sm:$0xff] %vm1648, %v9278
      %9311 = vst.msk [vmem:[%s524 + $0xb8] sm:$0xff] %vm1648, %v9279
      %9312 = vst.msk [vmem:[%s524 + $0xc0] sm:$0xff] %vm1648, %v9280
      %9313 = vst.msk [vmem:[%s524 + $0xc8] sm:$0xff] %vm1648, %v9281
      %9314 = vst.msk [vmem:[%s524 + $0xd0] sm:$0xff] %vm1648, %v9282
      %9315 = vst.msk [vmem:[%s524 + $0xd8] sm:$0xff] %vm1648, %v9283
      %9316 = vst.msk [vmem:[%s524 + $0xe0] sm:$0xff] %vm1648, %v9284
      %9317 = vst.msk [vmem:[%s524 + $0xe8] sm:$0xff] %vm1648, %v9285
      %9318 = vst.msk [vmem:[%s524 + $0xf0] sm:$0xff] %vm1648, %v9286
      %9319 = vst.msk [vmem:[%s524 + $0xf8] sm:$0xff] %vm1648, %v9287
      %9320 = vst.msk [vmem:[%s529] sm:$0xff] %vm1648, %v8968
      %9321 = vst.msk [vmem:[%s529 + $0x8] sm:$0xff] %vm1648, %v8969
      %9322 = vst.msk [vmem:[%s529 + $0x10] sm:$0xff] %vm1648, %v8970
      %9323 = vst.msk [vmem:[%s529 + $0x18] sm:$0xff] %vm1648, %v8971
      %9324 = vst.msk [vmem:[%s529 + $0x20] sm:$0xff] %vm1648, %v8972
      %9325 = vst.msk [vmem:[%s529 + $0x28] sm:$0xff] %vm1648, %v8973
      %9326 = vst.msk [vmem:[%s529 + $0x30] sm:$0xff] %vm1648, %v8974
      %9327 = vst.msk [vmem:[%s529 + $0x38] sm:$0xff] %vm1648, %v8975
      %9328 = vst.msk [vmem:[%s529 + $0x40] sm:$0xff] %vm1648, %v8976
      %9329 = vst.msk [vmem:[%s529 + $0x48] sm:$0xff] %vm1648, %v8977
      %9330 = vst.msk [vmem:[%s529 + $0x50] sm:$0xff] %vm1648, %v8978
      %9331 = vst.msk [vmem:[%s529 + $0x58] sm:$0xff] %vm1648, %v8979
      %9332 = vst.msk [vmem:[%s529 + $0x60] sm:$0xff] %vm1648, %v8980
      %9333 = vst.msk [vmem:[%s529 + $0x68] sm:$0xff] %vm1648, %v8981
      %9334 = vst.msk [vmem:[%s529 + $0x70] sm:$0xff] %vm1648, %v8982
      %9335 = vst.msk [vmem:[%s529 + $0x78] sm:$0xff] %vm1648, %v8983
      %9336 = vst.msk [vmem:[%s529 + $0x80] sm:$0xff] %vm1648, %v8984
      %9337 = vst.msk [vmem:[%s529 + $0x88] sm:$0xff] %vm1648, %v8985
      %9338 = vst.msk [vmem:[%s529 + $0x90] sm:$0xff] %vm1648, %v8986
      %9339 = vst.msk [vmem:[%s529 + $0x98] sm:$0xff] %vm1648, %v8987
      %9340 = vst.msk [vmem:[%s529 + $0xa0] sm:$0xff] %vm1648, %v8988
      %9341 = vst.msk [vmem:[%s529 + $0xa8] sm:$0xff] %vm1648, %v8989
      %9342 = vst.msk [vmem:[%s529 + $0xb0] sm:$0xff] %vm1648, %v8990
      %9343 = vst.msk [vmem:[%s529 + $0xb8] sm:$0xff] %vm1648, %v8991
      %9344 = vst.msk [vmem:[%s529 + $0xc0] sm:$0xff] %vm1648, %v8992
      %9345 = vst.msk [vmem:[%s529 + $0xc8] sm:$0xff] %vm1648, %v8993
      %9346 = vst.msk [vmem:[%s529 + $0xd0] sm:$0xff] %vm1648, %v8994
      %9347 = vst.msk [vmem:[%s529 + $0xd8] sm:$0xff] %vm1648, %v8995
      %9348 = vst.msk [vmem:[%s529 + $0xe0] sm:$0xff] %vm1648, %v8996
      %9349 = vst.msk [vmem:[%s529 + $0xe8] sm:$0xff] %vm1648, %v8997
      %9350 = vst.msk [vmem:[%s529 + $0xf0] sm:$0xff] %vm1648, %v8998
      %9351 = vst.msk [vmem:[%s529 + $0xf8] sm:$0xff] %vm1648, %v8999
      %p9352 = scmp.lt.s32.totalorder %s29, 1
      %s9353 = scalar_select %p9352, %s29, 1
      %s9354 = smul.addr %s9353, 32
      %s9355 = smul.addr %s9354, 8
      %s9356 = scalar_lea.vmem %s14, %s9355
      %p9357 = scmp.lt.s32.totalorder %s29, 1
      %s9358 = scalar_select %p9357, %s29, 1
      %s9359 = smul.addr %s9358, 32
      %s9360 = smul.addr %s9359, 8
      %s9361 = scalar_lea.vmem %s15, %s9360
      // Predicated region
      $region77: #{channel_affine_coupling_forward.1} parent=75 // pred_check
        %p9362 = pneg %p351
      $region78: #{channel_affine_coupling_forward.1} parent=75 // pred_check_branch
        %9364 = sbr.rel (%p9362) target = $region80
      $region79: #{channel_affine_coupling_forward.1} parent=75 // pred_region
        _
      $region80: #{channel_affine_coupling_forward.1} parent=75 // pred_fallthru
        _
      // Predicated region
      $region81: #{channel_affine_coupling_forward.1} parent=75 // pred_check
        %p9365 = pneg %p377
      $region82: #{channel_affine_coupling_forward.1} parent=75 // pred_check_branch
        %9367 = sbr.rel (%p9365) target = $region84
      $region83: #{channel_affine_coupling_forward.1} parent=75 // pred_region
        _
      $region84: #{channel_affine_coupling_forward.1} parent=75 // pred_fallthru
        _
    $region76: #{channel_affine_coupling_forward.1} parent=5 // pred_fallthru
      _
    %p9368 = scmp.le.s32.totalorder 2, %s24
    // Predicated region
    $region85: #{channel_affine_coupling_forward.1} parent=5 // pred_check
      %p9369 = pneg %p9368
    $region86: #{channel_affine_coupling_forward.1} parent=5 // pred_check_branch
      %9371 = sbr.rel (%p9369) target = $region88
    $region87: #{channel_affine_coupling_forward.1} parent=5 // pred_region
      %s9372 = ssub.s32 %s24, 2
      // Predicated region
      $region89: #{channel_affine_coupling_forward.1} parent=87 // pred_check
        %p9373 = pneg %p357
      $region90: #{channel_affine_coupling_forward.1} parent=87 // pred_check_branch
        %9375 = sbr.rel (%p9373) target = $region92
      $region91: #{channel_affine_coupling_forward.1} parent=87 // pred_region
        %p9376 = scmp.lt.s32.totalorder %s30, 1
        %s9377 = scalar_select %p9376, %s30, 1
        %s9378 = smul.addr %s9377, 32
        %s9379 = smul.addr %s9378, 8
        %s9380 = scalar_lea.vmem %s14, %s9379
      $region92: #{channel_affine_coupling_forward.1} parent=87 // pred_fallthru
        _
      // Predicated region
      $region93: #{channel_affine_coupling_forward.1} parent=87 // pred_check
        %p9381 = pneg %p383
      $region94: #{channel_affine_coupling_forward.1} parent=87 // pred_check_branch
        %9383 = sbr.rel (%p9381) target = $region96
      $region95: #{channel_affine_coupling_forward.1} parent=87 // pred_region
        %p9384 = scmp.lt.s32.totalorder %s30, 1
        %s9385 = scalar_select %p9384, %s30, 1
        %s9386 = smul.addr %s9385, 32
        %s9387 = smul.addr %s9386, 8
        %s9388 = scalar_lea.vmem %s15, %s9387
      $region96: #{channel_affine_coupling_forward.1} parent=87 // pred_fallthru
        _
    $region88: #{channel_affine_coupling_forward.1} parent=5 // pred_fallthru
      _
  $region6: #{channel_affine_coupling_forward.1} parent=0 // loop_footer
    %s28 = sadd.s32 1, %s24
  $region7: #{channel_affine_coupling_forward.1} parent=0 // loop_footer_branch
    %23 = sbr.rel target = $region3
  $region8: #{channel_affine_coupling_forward.1} parent=0 // loop_exit
    _

</llo_original>
